<compile_context>
chip_gen: v5e
topology: v5e:2x2
jax: 0.10.0
libtpu: 0.0.40
codegen_flags: <defaults>
</compile_context>

<pallas_src>
import functools
import math

import jax
import jax.numpy as jnp
from jax.experimental import pallas as pl
from jax.experimental.pallas import tpu as pltpu


# ----------------------------------------------------------------------------
# Pallas kernels
# ----------------------------------------------------------------------------
def _conv_gn_swish_kernel(*refs, num_a, inv_count, eps):
    """Fused (sum of conv matmuls) + GroupNorm + SiLU for one batch element.

    refs = a_0, w_0, ..., a_{num_a-1}, w_{num_a-1}, oh2, oht2, gamma, beta, out
      a_i   : (1, M, K_i)        im2col patches (skip connection = extra a/w pair)
      w_i   : (K_i, N)
      oh2   : (2N, 2G) f32       block-diag one-hot channel->group (for [s|ss])
      oht2  : (2G, 2N) f32       block-diag one-hot group->channel (for [mean|inv])
      gamma : (1, N) f32
      beta  : (1, N) f32
      out   : (1, M, N) bf16
    """
    o_ref = refs[-1]
    oh2_ref, oht2_ref, g_ref, b_ref = refs[2 * num_a: 2 * num_a + 4]
    N = g_ref.shape[1]
    G = oh2_ref.shape[1] // 2

    # conv as accumulating MXU matmuls, f32 accumulator resident in VMEM
    acc = jnp.dot(refs[0][0], refs[1][...], preferred_element_type=jnp.float32)
    for i in range(1, num_a):
        acc = acc + jnp.dot(refs[2 * i][0], refs[2 * i + 1][...],
                            preferred_element_type=jnp.float32)

    # GroupNorm statistics in f32; both reductions share ONE one-hot matmul each
    # (lane-concat -> block-diagonal one-hot), halving the tiny stats matmuls.
    s = jnp.sum(acc, axis=0, keepdims=True)               # (1, N)
    ss = jnp.sum(acc * acc, axis=0, keepdims=True)        # (1, N)
    stats = jnp.concatenate([s, ss], axis=1)              # (1, 2N)  minor-most concat
    g2 = jnp.dot(stats, oh2_ref[...], preferred_element_type=jnp.float32)  # (1, 2G)
    gmean = g2[:, :G] * inv_count
    gvar = jnp.maximum(g2[:, G:] * inv_count - gmean * gmean, 0.0)
    ginv = jax.lax.rsqrt(gvar + eps)
    mg = jnp.concatenate([gmean, ginv], axis=1)            # (1, 2G)
    mc = jnp.dot(mg, oht2_ref[...], preferred_element_type=jnp.float32)    # (1, 2N)
    mean_c, inv_c = mc[:, :N], mc[:, N:]

    # folded affine: one multiply-add per element, then swish
    scale_c = g_ref[...] * inv_c
    shift_c = b_ref[...] - mean_c * scale_c
    y = acc * scale_c + shift_c
    sig = 0.5 * jnp.tanh(0.5 * y) + 0.5                    # sigmoid via one EUP tanh
    o_ref[0] = (y * sig).astype(o_ref.dtype)


def _final_conv_kernel(a1_ref, w1_ref, a2_ref, w2_ref, bias_ref, rs_ref, o_ref, *, sc):
    """out = ((a1 @ w1 + a2 @ w2)[:, :sc] + bias) * rs_inv2[b].

    The weight operands are zero-padded to 128 lanes for the MXU; only the sc
    real channels are stored (no 128-lane f32 write amplification)."""
    acc = jnp.dot(a1_ref[0], w1_ref[...], preferred_element_type=jnp.float32)
    acc = acc + jnp.dot(a2_ref[0], w2_ref[...], preferred_element_type=jnp.float32)
    scale = rs_ref[pl.program_id(0)]            # per-batch 1/rs^2 scalar from SMEM
    o_ref[0] = (acc[:, :sc] + bias_ref[...]) * scale


# ----------------------------------------------------------------------------
# pallas_call wrappers
# ----------------------------------------------------------------------------
def _vmem_limit_bytes(block_bytes, acc_bytes):
    """Scoped VMEM budget from the actual resident buffers with headroom."""
    resident = 2 * block_bytes + 4 * acc_bytes           # double-buffered blocks + acc/temps
    limit = 2 * resident + (2 << 20)
    return int(max(32 << 20, min(limit, 128 << 20)))


def fused_conv_gn_swish(a_list, w_list, gamma, beta, num_groups, eps=1e-5,
                        out_dtype=jnp.bfloat16):
    """One pallas_call per layer: sum_i(a_i @ w_i) -> GroupNorm -> SiLU."""
    B, M, _ = a_list[0].shape
    N = w_list[0].shape[1]
    cg = N // num_groups
    oh = (jnp.arange(N)[:, None] // cg
          == jnp.arange(num_groups)[None, :]).astype(jnp.float32)     # (N, G)
    zng = jnp.zeros_like(oh)
    oh2 = jnp.concatenate([jnp.concatenate([oh, zng], axis=1),
                           jnp.concatenate([zng, oh], axis=1)], axis=0)  # (2N, 2G)
    oht2 = oh2.T                                                          # (2G, 2N)

    operands, in_specs, blk_bytes = [], [], 0
    for a, w in zip(a_list, w_list):
        K = a.shape[2]
        operands += [a, w]
        in_specs += [pl.BlockSpec((1, M, K), lambda b: (b, 0, 0)),
                     pl.BlockSpec((K, N), lambda b: (0, 0))]
        blk_bytes += M * K * a.dtype.itemsize + K * N * w.dtype.itemsize
    operands += [oh2, oht2,
                 gamma.reshape(1, N).astype(jnp.float32),
                 beta.reshape(1, N).astype(jnp.float32)]
    in_specs += [pl.BlockSpec((2 * N, 2 * num_groups), lambda b: (0, 0)),
                 pl.BlockSpec((2 * num_groups, 2 * N), lambda b: (0, 0)),
                 pl.BlockSpec((1, N), lambda b: (0, 0)),
                 pl.BlockSpec((1, N), lambda b: (0, 0))]
    blk_bytes += (2 * (2 * N) * (2 * num_groups) + 2 * N) * 4
    out_bytes = M * N * jnp.dtype(out_dtype).itemsize
    acc_bytes = M * N * 4

    kernel = functools.partial(_conv_gn_swish_kernel, num_a=len(a_list),
                               inv_count=1.0 / float(M * cg), eps=float(eps))
    return pl.pallas_call(
        kernel,
        out_shape=jax.ShapeDtypeStruct((B, M, N), out_dtype),
        grid=(B,),
        in_specs=in_specs,
        out_specs=pl.BlockSpec((1, M, N), lambda b: (b, 0, 0)),
        compiler_params=pltpu.CompilerParams(
            dimension_semantics=("parallel",),
            vmem_limit_bytes=_vmem_limit_bytes(blk_bytes + out_bytes, acc_bytes)),
    )(*operands)


def final_conv_scaled(a1, w1, a2, w2, bias, rs_inv2):
    """Last layer: two accumulating dots + bias, scaled by per-batch 1/rs^2.

    Output is the un-padded (B, M, sc) f32 map (no lane-pad write amplification)."""
    B, M, K1 = a1.shape
    K2 = a2.shape[2]
    n_pad = w1.shape[1]
    sc = bias.shape[1]
    blk_bytes = (M * (K1 + K2) * a1.dtype.itemsize
                 + (K1 + K2) * n_pad * w1.dtype.itemsize
                 + sc * 4 + M * sc * 4)
    acc_bytes = M * n_pad * 4
    kernel = functools.partial(_final_conv_kernel, sc=sc)
    return pl.pallas_call(
        kernel,
        out_shape=jax.ShapeDtypeStruct((B, M, sc), jnp.float32),
        grid=(B,),
        in_specs=[
            pl.BlockSpec((1, M, K1), lambda b: (b, 0, 0)),
            pl.BlockSpec((K1, n_pad), lambda b: (0, 0)),
            pl.BlockSpec((1, M, K2), lambda b: (b, 0, 0)),
            pl.BlockSpec((K2, n_pad), lambda b: (0, 0)),
            pl.BlockSpec((1, sc), lambda b: (0, 0)),
            pl.BlockSpec(memory_space=pltpu.MemorySpace.SMEM),   # rs_inv2 scalars
        ],
        out_specs=pl.BlockSpec((1, M, sc), lambda b: (b, 0, 0)),
        compiler_params=pltpu.CompilerParams(
            dimension_semantics=("parallel",),
            vmem_limit_bytes=_vmem_limit_bytes(blk_bytes, acc_bytes)),
    )(a1, w1, a2, w2, bias, rs_inv2)


# ----------------------------------------------------------------------------
# Glue: weight layout, im2col patch extraction, tconv zero-insertion
# ----------------------------------------------------------------------------
def conv_w_to_mat(w):
    """(Cout, Cin, kh, kw) -> (kh*kw*Cin, Cout) matching im2col column order."""
    cout, cin, kh, kw = w.shape
    return jnp.transpose(w, (2, 3, 1, 0)).reshape(kh * kw * cin, cout)


def tconv_w_to_mat(w):
    """ConvTranspose weight (Cin, Cout, kh, kw) -> equivalent forward-conv matrix."""
    w_conv = jnp.transpose(jnp.flip(w, axis=(2, 3)), (1, 0, 2, 3))   # (Cout, Cin, kh, kw)
    return conv_w_to_mat(w_conv)


def _extract_patches_3x3(xp, stride):
    """Padded NHWC -> (B, Ho*Wo, 9*C) patches (tap-major, channel-minor)."""
    B, Hp, Wp, C = xp.shape
    Ho = (Hp - 3) // stride + 1
    Wo = (Wp - 3) // stride + 1
    cols = []
    for di in range(3):
        for dj in range(3):
            cols.append(
                xp[:, di:di + stride * Ho:stride, dj:dj + stride * Wo:stride, :])
    patches = jnp.stack(cols, axis=3)                     # (B, Ho, Wo, 9, C)
    return patches.reshape(B, Ho * Wo, 9 * C), Ho, Wo


def conv_im2col(x, stride):
    """3x3 conv patches with padding=1."""
    xp = jnp.pad(x, ((0, 0), (1, 1), (1, 1), (0, 0)))
    return _extract_patches_3x3(xp, stride)


def tconv_im2col(x, stride, pad, out_pad):
    """3x3 ConvTranspose patches: zero-insertion + halo pad in ONE lax.pad op."""
    p0 = 3 - 1 - pad
    zero = jnp.zeros((), x.dtype)
    xp = jax.lax.pad(x, zero, ((0, 0, 0),
                               (p0, p0 + out_pad, stride - 1),
                               (p0, p0 + out_pad, stride - 1),
                               (0, 0, 0)))
    return _extract_patches_3x3(xp, 1)


# ----------------------------------------------------------------------------
# Parameters (deterministic synthetic init; shapes follow the PyTorch module)
# ----------------------------------------------------------------------------
def init_params(key, source_channels=1, channels=(32, 64, 128, 256)):
    c = list(channels)
    sc = source_channels
    keys = iter(jax.random.split(key, 32))

    def nrm(shape, fan_in):
        return jax.random.normal(next(keys), shape, jnp.float32) / math.sqrt(fan_in)

    def bf16(w):
        return w.astype(jnp.bfloat16)

    p = {}
    # conv1: tiny K (9*sc) -> keep A/W f32 and un-padded (no 14x HBM pad of A)
    p['conv1'] = conv_w_to_mat(nrm((c[0], sc, 3, 3), sc * 9))          # (9*sc, c0) f32
    p['conv2'] = bf16(conv_w_to_mat(nrm((c[1], c[0], 3, 3), c[0] * 9)))
    p['conv3'] = bf16(conv_w_to_mat(nrm((c[2], c[1], 3, 3), c[1] * 9)))
    p['conv4'] = bf16(conv_w_to_mat(nrm((c[3], c[2], 3, 3), c[2] * 9)))
    p['tconv4'] = bf16(tconv_w_to_mat(nrm((c[3], c[2], 3, 3), c[3] * 9)))

    # skip-fused transposed convs: split weight along input channels (h | skip)
    wt3 = nrm((c[2] * 2, c[1], 3, 3), c[2] * 2 * 9)
    p['tconv3_a'] = bf16(tconv_w_to_mat(wt3[:c[2]]))
    p['tconv3_b'] = bf16(tconv_w_to_mat(wt3[c[2]:]))
    wt2 = nrm((c[1] * 2, c[0], 3, 3), c[1] * 2 * 9)
    p['tconv2_a'] = bf16(tconv_w_to_mat(wt2[:c[1]]))
    p['tconv2_b'] = bf16(tconv_w_to_mat(wt2[c[1]:]))

    # final tconv1: weight padded to 128 lanes for the MXU, bias/output un-padded
    wt1 = nrm((c[0] * 2, sc, 3, 3), c[0] * 2 * 9)
    n_pad = max(128, sc)
    w1a, w1b = tconv_w_to_mat(wt1[:c[0]]), tconv_w_to_mat(wt1[c[0]:])
    p['tconv1_a'] = bf16(jnp.pad(w1a, ((0, 0), (0, n_pad - sc))))
    p['tconv1_b'] = bf16(jnp.pad(w1b, ((0, 0), (0, n_pad - sc))))
    p['tconv1_bias'] = 0.01 * jax.random.normal(next(keys), (1, sc), jnp.float32)

    for name, ch in [('g1', c[0]), ('g2', c[1]), ('g3', c[2]), ('g4', c[3]),
                     ('tg4', c[2]), ('tg3', c[1]), ('tg2', c[0])]:
        p[name + '_g'] = 1.0 + 0.1 * jax.random.normal(next(keys), (ch,), jnp.float32)
        p[name + '_b'] = 0.05 * jax.random.normal(next(keys), (ch,), jnp.float32)
    return p


# ----------------------------------------------------------------------------
# Full ScoreNet forward (NCHW in/out; bf16 NHWC activations internally)
# ----------------------------------------------------------------------------
def scorenet_forward(params, x_nchw, rs):
    p = params
    B, sc, H, W = x_nchw.shape
    x = jnp.transpose(x_nchw, (0, 2, 3, 1))                # NCHW -> NHWC (f32 for conv1)

    def conv_layer(xmap, w, gamma, beta, groups, stride):
        a, ho, wo = conv_im2col(xmap, stride)
        h = fused_conv_gn_swish([a], [w], gamma, beta, groups)
        return h.reshape(B, ho, wo, -1)

    # encoder
    h1 = conv_layer(x, p['conv1'], p['g1_g'], p['g1_b'], 4, 1)
    h2 = conv_layer(h1, p['conv2'], p['g2_g'], p['g2_b'], 32, 2)
    h3 = conv_layer(h2, p['conv3'], p['g3_g'], p['g3_b'], 32, 2)
    h4 = conv_layer(h3, p['conv4'], p['g4_g'], p['g4_b'], 32, 2)

    # decoder (skip connections fused as a second accumulating dot)
    a, ho, wo = tconv_im2col(h4, 2, 1, 0)
    h = fused_conv_gn_swish([a], [p['tconv4']],
                            p['tg4_g'], p['tg4_b'], 32).reshape(B, ho, wo, -1)

    a1, ho, wo = tconv_im2col(h, 2, 1, 0)
    a2, _, _ = tconv_im2col(h3, 2, 1, 0)
    h = fused_conv_gn_swish([a1, a2], [p['tconv3_a'], p['tconv3_b']],
                            p['tg3_g'], p['tg3_b'], 32).reshape(B, ho, wo, -1)

    a1, ho, wo = tconv_im2col(h, 2, 1, 1)
    a2, _, _ = tconv_im2col(h2, 2, 1, 1)
    h = fused_conv_gn_swish([a1, a2], [p['tconv2_a'], p['tconv2_b']],
                            p['tg2_g'], p['tg2_b'], 32).reshape(B, ho, wo, -1)

    # final tconv1 (stride 1) + bias + 1/rs^2 scaling; un-padded (B, M, sc) f32 out
    a1, ho, wo = tconv_im2col(h, 1, 1, 0)
    a2, _, _ = tconv_im2col(h1, 1, 1, 0)
    rs_inv2 = 1.0 / (rs.astype(jnp.float32) ** 2)
    out = final_conv_scaled(a1, p['tconv1_a'], a2, p['tconv1_b'],
                            p['tconv1_bias'], rs_inv2)
    out = out.reshape(B, H, W, sc)
    return jnp.transpose(out, (0, 3, 1, 2))                # NHWC -> NCHW


# ----------------------------------------------------------------------------
if __name__ == "__main__":
    key = jax.random.PRNGKey(0)
    kp, kx, kr = jax.random.split(key, 3)

    params = init_params(kp)

    # Spatial size must satisfy the module's skip-connection shape constraint
    # (output_padding pattern 0/0/1) -> S ≡ 2 (mod 8); use S = 10.
    B, C, S = 2, 1, 10
    x = jax.random.normal(kx, (B, C, S, S), jnp.float32)
    rs = jax.random.uniform(kr, (B,), jnp.float32, 0.5, 1.5)

    fwd = jax.jit(functools.partial(scorenet_forward, params))
    out = fwd(x, rs)
    jax.block_until_ready(out)
    assert out.shape == (B, C, S, S), out.shape
    assert jnp.all(jnp.isfinite(out))
    print("KERNEL_OK")
</pallas_src>

<mosaic_0001>
module attributes {stable_mosaic.version = 11 : i64} {
  func.func @_conv_gn_swish_kernel(%arg0: i32, %arg1: memref<1x100x9xf32, #tpu.memory_space<vmem>>, %arg2: memref<9x32xf32, #tpu.memory_space<vmem>>, %arg3: memref<64x8xf32, #tpu.memory_space<vmem>>, %arg4: memref<8x64xf32, #tpu.memory_space<vmem>>, %arg5: memref<1x32xf32, #tpu.memory_space<vmem>>, %arg6: memref<1x32xf32, #tpu.memory_space<vmem>>, %arg7: memref<1x100x32xbf16, #tpu.memory_space<vmem>>) attributes {dimension_semantics = [#tpu.dimension_semantics<parallel>], iteration_bounds = array<i64: 2>, scalar_prefetch = 0 : i64, scratch_operands = 0 : i64, tpu.core_type = #tpu.core_type<tc>, window_params = [{transform_indices = @transform_0, window_bounds = array<i64: 1, 100, 9>}, {pipeline_mode = #tpu.pipeline_mode<synchronous>, transform_indices = @transform_1, window_bounds = array<i64: 9, 32>}, {pipeline_mode = #tpu.pipeline_mode<synchronous>, transform_indices = @transform_2, window_bounds = array<i64: 64, 8>}, {pipeline_mode = #tpu.pipeline_mode<synchronous>, transform_indices = @transform_3, window_bounds = array<i64: 8, 64>}, {pipeline_mode = #tpu.pipeline_mode<synchronous>, transform_indices = @transform_4, window_bounds = array<i64: 1, 32>}, {pipeline_mode = #tpu.pipeline_mode<synchronous>, transform_indices = @transform_5, window_bounds = array<i64: 1, 32>}, {transform_indices = @transform_6, window_bounds = array<i64: 1, 100, 32>}]} {
    %c0 = arith.constant 0 : index
    %c0_0 = arith.constant 0 : index
    %c0_1 = arith.constant 0 : index
    %0 = vector.load %arg1[%c0, %c0_0, %c0_1] : memref<1x100x9xf32, #tpu.memory_space<vmem>>, vector<1x100x9xf32>
    %1 = vector.shape_cast %0 : vector<1x100x9xf32> to vector<100x9xf32>
    %c0_2 = arith.constant 0 : index
    %c0_3 = arith.constant 0 : index
    %2 = vector.load %arg2[%c0_2, %c0_3] : memref<9x32xf32, #tpu.memory_space<vmem>>, vector<9x32xf32>
    %cst = arith.constant dense<0.000000e+00> : vector<100x32xf32>
    %3 = tpu.matmul %1, %2, %cst {dimension_numbers = #tpu.dot_dimension_numbers<[1], [0], [0], [1], [0, 0, 1, 1], [], []>} : vector<100x9xf32>, vector<9x32xf32>, vector<100x32xf32> -> vector<100x32xf32>
    %cst_4 = arith.constant dense<0.000000e+00> : vector<32xf32>
    %4 = vector.multi_reduction <add>, %3, %cst_4 [0] : vector<100x32xf32> to vector<32xf32>
    %5 = vector.shape_cast %4 : vector<32xf32> to vector<1x32xf32>
    %6 = arith.mulf %3, %3 : vector<100x32xf32>
    %cst_5 = arith.constant dense<0.000000e+00> : vector<32xf32>
    %7 = vector.multi_reduction <add>, %6, %cst_5 [0] : vector<100x32xf32> to vector<32xf32>
    %8 = vector.shape_cast %7 : vector<32xf32> to vector<1x32xf32>
    %9 = tpu.concatenate %5, %8 in 1 : vector<1x32xf32>, vector<1x32xf32> -> vector<1x64xf32>
    %c0_6 = arith.constant 0 : index
    %c0_7 = arith.constant 0 : index
    %10 = vector.load %arg3[%c0_6, %c0_7] : memref<64x8xf32, #tpu.memory_space<vmem>>, vector<64x8xf32>
    %cst_8 = arith.constant dense<0.000000e+00> : vector<1x8xf32>
    %11 = tpu.matmul %9, %10, %cst_8 {dimension_numbers = #tpu.dot_dimension_numbers<[1], [0], [0], [1], [0, 0, 1, 1], [], []>} : vector<1x64xf32>, vector<64x8xf32>, vector<1x8xf32> -> vector<1x8xf32>
    %12 = vector.extract_strided_slice %11 {offsets = [0, 0], sizes = [1, 4], strides = [1, 1]} : vector<1x8xf32> to vector<1x4xf32>
    %cst_9 = arith.constant 1.250000e-03 : f32
    %13 = vector.broadcast %cst_9 : f32 to vector<1x4xf32>
    %14 = arith.mulf %12, %13 : vector<1x4xf32>
    %15 = vector.extract_strided_slice %11 {offsets = [0, 4], sizes = [1, 4], strides = [1, 1]} : vector<1x8xf32> to vector<1x4xf32>
    %cst_10 = arith.constant 1.250000e-03 : f32
    %16 = vector.broadcast %cst_10 : f32 to vector<1x4xf32>
    %17 = arith.mulf %15, %16 : vector<1x4xf32>
    %18 = arith.mulf %14, %14 : vector<1x4xf32>
    %19 = arith.subf %17, %18 : vector<1x4xf32>
    %cst_11 = arith.constant 0.000000e+00 : f32
    %20 = vector.broadcast %cst_11 : f32 to vector<1x4xf32>
    %21 = arith.maximumf %19, %20 : vector<1x4xf32>
    %cst_12 = arith.constant 9.99999974E-6 : f32
    %22 = vector.broadcast %cst_12 : f32 to vector<1x4xf32>
    %23 = arith.addf %21, %22 : vector<1x4xf32>
    %24 = math.rsqrt %23 : vector<1x4xf32>
    %25 = tpu.concatenate %14, %24 in 1 : vector<1x4xf32>, vector<1x4xf32> -> vector<1x8xf32>
    %c0_13 = arith.constant 0 : index
    %c0_14 = arith.constant 0 : index
    %26 = vector.load %arg4[%c0_13, %c0_14] : memref<8x64xf32, #tpu.memory_space<vmem>>, vector<8x64xf32>
    %cst_15 = arith.constant dense<0.000000e+00> : vector<1x64xf32>
    %27 = tpu.matmul %25, %26, %cst_15 {dimension_numbers = #tpu.dot_dimension_numbers<[1], [0], [0], [1], [0, 0, 1, 1], [], []>} : vector<1x8xf32>, vector<8x64xf32>, vector<1x64xf32> -> vector<1x64xf32>
    %28 = vector.extract_strided_slice %27 {offsets = [0, 0], sizes = [1, 32], strides = [1, 1]} : vector<1x64xf32> to vector<1x32xf32>
    %29 = vector.extract_strided_slice %27 {offsets = [0, 32], sizes = [1, 32], strides = [1, 1]} : vector<1x64xf32> to vector<1x32xf32>
    %c0_16 = arith.constant 0 : index
    %c0_17 = arith.constant 0 : index
    %30 = vector.load %arg5[%c0_16, %c0_17] : memref<1x32xf32, #tpu.memory_space<vmem>>, vector<1x32xf32>
    %31 = arith.mulf %30, %29 : vector<1x32xf32>
    %c0_18 = arith.constant 0 : index
    %c0_19 = arith.constant 0 : index
    %32 = vector.load %arg6[%c0_18, %c0_19] : memref<1x32xf32, #tpu.memory_space<vmem>>, vector<1x32xf32>
    %33 = arith.mulf %28, %31 : vector<1x32xf32>
    %34 = arith.subf %32, %33 : vector<1x32xf32>
    %35 = vector.broadcast %31 : vector<1x32xf32> to vector<100x32xf32>
    %36 = arith.mulf %3, %35 : vector<100x32xf32>
    %37 = vector.broadcast %34 : vector<1x32xf32> to vector<100x32xf32>
    %38 = arith.addf %36, %37 : vector<100x32xf32>
    %cst_20 = arith.constant 5.000000e-01 : f32
    %39 = vector.broadcast %cst_20 : f32 to vector<100x32xf32>
    %40 = arith.mulf %39, %38 : vector<100x32xf32>
    %41 = math.tanh %40 : vector<100x32xf32>
    %cst_21 = arith.constant 5.000000e-01 : f32
    %42 = vector.broadcast %cst_21 : f32 to vector<100x32xf32>
    %43 = arith.mulf %42, %41 : vector<100x32xf32>
    %cst_22 = arith.constant 5.000000e-01 : f32
    %44 = vector.broadcast %cst_22 : f32 to vector<100x32xf32>
    %45 = arith.addf %43, %44 : vector<100x32xf32>
    %46 = arith.mulf %38, %45 : vector<100x32xf32>
    %47 = arith.truncf %46 : vector<100x32xf32> to vector<100x32xbf16>
    %c0_23 = arith.constant 0 : index
    %c0_24 = arith.constant 0 : index
    %c0_25 = arith.constant 0 : index
    %48 = vector.load %arg7[%c0_23, %c0_24, %c0_25] : memref<1x100x32xbf16, #tpu.memory_space<vmem>>, vector<1x100x32xbf16>
    %49 = vector.shape_cast %48 : vector<1x100x32xbf16> to vector<100x32xbf16>
    %50 = vector.shape_cast %47 : vector<100x32xbf16> to vector<1x100x32xbf16>
    tpu.vector_store %arg7[%c0_23, %c0_24, %c0_25], %50 {strides = array<i32>} : memref<1x100x32xbf16, #tpu.memory_space<vmem>>, vector<1x100x32xbf16>,
    return
  }
  func.func @transform_0(%arg0: i32) -> (i32, i32, i32) {
    %c0_i32 = arith.constant 0 : i32
    %c0_i32_0 = arith.constant 0 : i32
    %c0_i32_1 = arith.constant 0 : i32
    return %arg0, %c0_i32, %c0_i32_0 : i32, i32, i32
  }
  func.func @transform_1(%arg0: i32) -> (i32, i32) {
    %c0_i32 = arith.constant 0 : i32
    %c0_i32_0 = arith.constant 0 : i32
    %c0_i32_1 = arith.constant 0 : i32
    return %c0_i32, %c0_i32_0 : i32, i32
  }
  func.func @transform_2(%arg0: i32) -> (i32, i32) {
    %c0_i32 = arith.constant 0 : i32
    %c0_i32_0 = arith.constant 0 : i32
    %c0_i32_1 = arith.constant 0 : i32
    return %c0_i32, %c0_i32_0 : i32, i32
  }
  func.func @transform_3(%arg0: i32) -> (i32, i32) {
    %c0_i32 = arith.constant 0 : i32
    %c0_i32_0 = arith.constant 0 : i32
    %c0_i32_1 = arith.constant 0 : i32
    return %c0_i32, %c0_i32_0 : i32, i32
  }
  func.func @transform_4(%arg0: i32) -> (i32, i32) {
    %c0_i32 = arith.constant 0 : i32
    %c0_i32_0 = arith.constant 0 : i32
    %c0_i32_1 = arith.constant 0 : i32
    return %c0_i32, %c0_i32_0 : i32, i32
  }
  func.func @transform_5(%arg0: i32) -> (i32, i32) {
    %c0_i32 = arith.constant 0 : i32
    %c0_i32_0 = arith.constant 0 : i32
    %c0_i32_1 = arith.constant 0 : i32
    return %c0_i32, %c0_i32_0 : i32, i32
  }
  func.func @transform_6(%arg0: i32) -> (i32, i32, i32) {
    %c0_i32 = arith.constant 0 : i32
    %c0_i32_0 = arith.constant 0 : i32
    %c0_i32_1 = arith.constant 0 : i32
    return %arg0, %c0_i32, %c0_i32_0 : i32, i32, i32
  }
}

module attributes {stable_mosaic.version = 11 : i64} {
  func.func @_conv_gn_swish_kernel(%arg0: i32, %arg1: memref<1x25x288xbf16, #tpu.memory_space<vmem>>, %arg2: memref<288x64xbf16, #tpu.memory_space<vmem>>, %arg3: memref<128x64xf32, #tpu.memory_space<vmem>>, %arg4: memref<64x128xf32, #tpu.memory_space<vmem>>, %arg5: memref<1x64xf32, #tpu.memory_space<vmem>>, %arg6: memref<1x64xf32, #tpu.memory_space<vmem>>, %arg7: memref<1x25x64xbf16, #tpu.memory_space<vmem>>) attributes {dimension_semantics = [#tpu.dimension_semantics<parallel>], iteration_bounds = array<i64: 2>, scalar_prefetch = 0 : i64, scratch_operands = 0 : i64, tpu.core_type = #tpu.core_type<tc>, window_params = [{transform_indices = @transform_0, window_bounds = array<i64: 1, 25, 288>}, {pipeline_mode = #tpu.pipeline_mode<synchronous>, transform_indices = @transform_1, window_bounds = array<i64: 288, 64>}, {pipeline_mode = #tpu.pipeline_mode<synchronous>, transform_indices = @transform_2, window_bounds = array<i64: 128, 64>}, {pipeline_mode = #tpu.pipeline_mode<synchronous>, transform_indices = @transform_3, window_bounds = array<i64: 64, 128>}, {pipeline_mode = #tpu.pipeline_mode<synchronous>, transform_indices = @transform_4, window_bounds = array<i64: 1, 64>}, {pipeline_mode = #tpu.pipeline_mode<synchronous>, transform_indices = @transform_5, window_bounds = array<i64: 1, 64>}, {transform_indices = @transform_6, window_bounds = array<i64: 1, 25, 64>}]} {
    %c0 = arith.constant 0 : index
    %c0_0 = arith.constant 0 : index
    %c0_1 = arith.constant 0 : index
    %0 = vector.load %arg1[%c0, %c0_0, %c0_1] : memref<1x25x288xbf16, #tpu.memory_space<vmem>>, vector<1x25x288xbf16>
    %1 = vector.shape_cast %0 : vector<1x25x288xbf16> to vector<25x288xbf16>
    %c0_2 = arith.constant 0 : index
    %c0_3 = arith.constant 0 : index
    %2 = vector.load %arg2[%c0_2, %c0_3] : memref<288x64xbf16, #tpu.memory_space<vmem>>, vector<288x64xbf16>
    %cst = arith.constant dense<0.000000e+00> : vector<25x64xf32>
    %3 = tpu.matmul %1, %2, %cst {dimension_numbers = #tpu.dot_dimension_numbers<[1], [0], [0], [1], [0, 0, 1, 1], [], []>} : vector<25x288xbf16>, vector<288x64xbf16>, vector<25x64xf32> -> vector<25x64xf32>
    %cst_4 = arith.constant dense<0.000000e+00> : vector<64xf32>
    %4 = vector.multi_reduction <add>, %3, %cst_4 [0] : vector<25x64xf32> to vector<64xf32>
    %5 = vector.shape_cast %4 : vector<64xf32> to vector<1x64xf32>
    %6 = arith.mulf %3, %3 : vector<25x64xf32>
    %cst_5 = arith.constant dense<0.000000e+00> : vector<64xf32>
    %7 = vector.multi_reduction <add>, %6, %cst_5 [0] : vector<25x64xf32> to vector<64xf32>
    %8 = vector.shape_cast %7 : vector<64xf32> to vector<1x64xf32>
    %9 = tpu.concatenate %5, %8 in 1 : vector<1x64xf32>, vector<1x64xf32> -> vector<1x128xf32>
    %c0_6 = arith.constant 0 : index
    %c0_7 = arith.constant 0 : index
    %10 = vector.load %arg3[%c0_6, %c0_7] : memref<128x64xf32, #tpu.memory_space<vmem>>, vector<128x64xf32>
    %cst_8 = arith.constant dense<0.000000e+00> : vector<1x64xf32>
    %11 = tpu.matmul %9, %10, %cst_8 {dimension_numbers = #tpu.dot_dimension_numbers<[1], [0], [0], [1], [0, 0, 1, 1], [], []>} : vector<1x128xf32>, vector<128x64xf32>, vector<1x64xf32> -> vector<1x64xf32>
    %12 = vector.extract_strided_slice %11 {offsets = [0, 0], sizes = [1, 32], strides = [1, 1]} : vector<1x64xf32> to vector<1x32xf32>
    %cst_9 = arith.constant 2.000000e-02 : f32
    %13 = vector.broadcast %cst_9 : f32 to vector<1x32xf32>
    %14 = arith.mulf %12, %13 : vector<1x32xf32>
    %15 = vector.extract_strided_slice %11 {offsets = [0, 32], sizes = [1, 32], strides = [1, 1]} : vector<1x64xf32> to vector<1x32xf32>
    %cst_10 = arith.constant 2.000000e-02 : f32
    %16 = vector.broadcast %cst_10 : f32 to vector<1x32xf32>
    %17 = arith.mulf %15, %16 : vector<1x32xf32>
    %18 = arith.mulf %14, %14 : vector<1x32xf32>
    %19 = arith.subf %17, %18 : vector<1x32xf32>
    %cst_11 = arith.constant 0.000000e+00 : f32
    %20 = vector.broadcast %cst_11 : f32 to vector<1x32xf32>
    %21 = arith.maximumf %19, %20 : vector<1x32xf32>
    %cst_12 = arith.constant 9.99999974E-6 : f32
    %22 = vector.broadcast %cst_12 : f32 to vector<1x32xf32>
    %23 = arith.addf %21, %22 : vector<1x32xf32>
    %24 = math.rsqrt %23 : vector<1x32xf32>
    %25 = tpu.concatenate %14, %24 in 1 : vector<1x32xf32>, vector<1x32xf32> -> vector<1x64xf32>
    %c0_13 = arith.constant 0 : index
    %c0_14 = arith.constant 0 : index
    %26 = vector.load %arg4[%c0_13, %c0_14] : memref<64x128xf32, #tpu.memory_space<vmem>>, vector<64x128xf32>
    %cst_15 = arith.constant dense<0.000000e+00> : vector<1x128xf32>
    %27 = tpu.matmul %25, %26, %cst_15 {dimension_numbers = #tpu.dot_dimension_numbers<[1], [0], [0], [1], [0, 0, 1, 1], [], []>} : vector<1x64xf32>, vector<64x128xf32>, vector<1x128xf32> -> vector<1x128xf32>
    %28 = vector.extract_strided_slice %27 {offsets = [0, 0], sizes = [1, 64], strides = [1, 1]} : vector<1x128xf32> to vector<1x64xf32>
    %29 = vector.extract_strided_slice %27 {offsets = [0, 64], sizes = [1, 64], strides = [1, 1]} : vector<1x128xf32> to vector<1x64xf32>
    %c0_16 = arith.constant 0 : index
    %c0_17 = arith.constant 0 : index
    %30 = vector.load %arg5[%c0_16, %c0_17] : memref<1x64xf32, #tpu.memory_space<vmem>>, vector<1x64xf32>
    %31 = arith.mulf %30, %29 : vector<1x64xf32>
    %c0_18 = arith.constant 0 : index
    %c0_19 = arith.constant 0 : index
    %32 = vector.load %arg6[%c0_18, %c0_19] : memref<1x64xf32, #tpu.memory_space<vmem>>, vector<1x64xf32>
    %33 = arith.mulf %28, %31 : vector<1x64xf32>
    %34 = arith.subf %32, %33 : vector<1x64xf32>
    %35 = vector.broadcast %31 : vector<1x64xf32> to vector<25x64xf32>
    %36 = arith.mulf %3, %35 : vector<25x64xf32>
    %37 = vector.broadcast %34 : vector<1x64xf32> to vector<25x64xf32>
    %38 = arith.addf %36, %37 : vector<25x64xf32>
    %cst_20 = arith.constant 5.000000e-01 : f32
    %39 = vector.broadcast %cst_20 : f32 to vector<25x64xf32>
    %40 = arith.mulf %39, %38 : vector<25x64xf32>
    %41 = math.tanh %40 : vector<25x64xf32>
    %cst_21 = arith.constant 5.000000e-01 : f32
    %42 = vector.broadcast %cst_21 : f32 to vector<25x64xf32>
    %43 = arith.mulf %42, %41 : vector<25x64xf32>
    %cst_22 = arith.constant 5.000000e-01 : f32
    %44 = vector.broadcast %cst_22 : f32 to vector<25x64xf32>
    %45 = arith.addf %43, %44 : vector<25x64xf32>
    %46 = arith.mulf %38, %45 : vector<25x64xf32>
    %47 = arith.truncf %46 : vector<25x64xf32> to vector<25x64xbf16>
    %c0_23 = arith.constant 0 : index
    %c0_24 = arith.constant 0 : index
    %c0_25 = arith.constant 0 : index
    %48 = vector.load %arg7[%c0_23, %c0_24, %c0_25] : memref<1x25x64xbf16, #tpu.memory_space<vmem>>, vector<1x25x64xbf16>
    %49 = vector.shape_cast %48 : vector<1x25x64xbf16> to vector<25x64xbf16>
    %50 = vector.shape_cast %47 : vector<25x64xbf16> to vector<1x25x64xbf16>
    tpu.vector_store %arg7[%c0_23, %c0_24, %c0_25], %50 {strides = array<i32>} : memref<1x25x64xbf16, #tpu.memory_space<vmem>>, vector<1x25x64xbf16>,
    return
  }
  func.func @transform_0(%arg0: i32) -> (i32, i32, i32) {
    %c0_i32 = arith.constant 0 : i32
    %c0_i32_0 = arith.constant 0 : i32
    %c0_i32_1 = arith.constant 0 : i32
    return %arg0, %c0_i32, %c0_i32_0 : i32, i32, i32
  }
  func.func @transform_1(%arg0: i32) -> (i32, i32) {
    %c0_i32 = arith.constant 0 : i32
    %c0_i32_0 = arith.constant 0 : i32
    %c0_i32_1 = arith.constant 0 : i32
    return %c0_i32, %c0_i32_0 : i32, i32
  }
  func.func @transform_2(%arg0: i32) -> (i32, i32) {
    %c0_i32 = arith.constant 0 : i32
    %c0_i32_0 = arith.constant 0 : i32
    %c0_i32_1 = arith.constant 0 : i32
    return %c0_i32, %c0_i32_0 : i32, i32
  }
  func.func @transform_3(%arg0: i32) -> (i32, i32) {
    %c0_i32 = arith.constant 0 : i32
    %c0_i32_0 = arith.constant 0 : i32
    %c0_i32_1 = arith.constant 0 : i32
    return %c0_i32, %c0_i32_0 : i32, i32
  }
  func.func @transform_4(%arg0: i32) -> (i32, i32) {
    %c0_i32 = arith.constant 0 : i32
    %c0_i32_0 = arith.constant 0 : i32
    %c0_i32_1 = arith.constant 0 : i32
    return %c0_i32, %c0_i32_0 : i32, i32
  }
  func.func @transform_5(%arg0: i32) -> (i32, i32) {
    %c0_i32 = arith.constant 0 : i32
    %c0_i32_0 = arith.constant 0 : i32
    %c0_i32_1 = arith.constant 0 : i32
    return %c0_i32, %c0_i32_0 : i32, i32
  }
  func.func @transform_6(%arg0: i32) -> (i32, i32, i32) {
    %c0_i32 = arith.constant 0 : i32
    %c0_i32_0 = arith.constant 0 : i32
    %c0_i32_1 = arith.constant 0 : i32
    return %arg0, %c0_i32, %c0_i32_0 : i32, i32, i32
  }
}

module attributes {stable_mosaic.version = 11 : i64} {
  func.func @_conv_gn_swish_kernel(%arg0: i32, %arg1: memref<1x9x576xbf16, #tpu.memory_space<vmem>>, %arg2: memref<576x128xbf16, #tpu.memory_space<vmem>>, %arg3: memref<256x64xf32, #tpu.memory_space<vmem>>, %arg4: memref<64x256xf32, #tpu.memory_space<vmem>>, %arg5: memref<1x128xf32, #tpu.memory_space<vmem>>, %arg6: memref<1x128xf32, #tpu.memory_space<vmem>>, %arg7: memref<1x9x128xbf16, #tpu.memory_space<vmem>>) attributes {dimension_semantics = [#tpu.dimension_semantics<parallel>], iteration_bounds = array<i64: 2>, scalar_prefetch = 0 : i64, scratch_operands = 0 : i64, tpu.core_type = #tpu.core_type<tc>, window_params = [{transform_indices = @transform_0, window_bounds = array<i64: 1, 9, 576>}, {pipeline_mode = #tpu.pipeline_mode<synchronous>, transform_indices = @transform_1, window_bounds = array<i64: 576, 128>}, {pipeline_mode = #tpu.pipeline_mode<synchronous>, transform_indices = @transform_2, window_bounds = array<i64: 256, 64>}, {pipeline_mode = #tpu.pipeline_mode<synchronous>, transform_indices = @transform_3, window_bounds = array<i64: 64, 256>}, {pipeline_mode = #tpu.pipeline_mode<synchronous>, transform_indices = @transform_4, window_bounds = array<i64: 1, 128>}, {pipeline_mode = #tpu.pipeline_mode<synchronous>, transform_indices = @transform_5, window_bounds = array<i64: 1, 128>}, {transform_indices = @transform_6, window_bounds = array<i64: 1, 9, 128>}]} {
    %c0 = arith.constant 0 : index
    %c0_0 = arith.constant 0 : index
    %c0_1 = arith.constant 0 : index
    %0 = vector.load %arg1[%c0, %c0_0, %c0_1] : memref<1x9x576xbf16, #tpu.memory_space<vmem>>, vector<1x9x576xbf16>
    %1 = vector.shape_cast %0 : vector<1x9x576xbf16> to vector<9x576xbf16>
    %c0_2 = arith.constant 0 : index
    %c0_3 = arith.constant 0 : index
    %2 = vector.load %arg2[%c0_2, %c0_3] : memref<576x128xbf16, #tpu.memory_space<vmem>>, vector<576x128xbf16>
    %cst = arith.constant dense<0.000000e+00> : vector<9x128xf32>
    %3 = tpu.matmul %1, %2, %cst {dimension_numbers = #tpu.dot_dimension_numbers<[1], [0], [0], [1], [0, 0, 1, 1], [], []>} : vector<9x576xbf16>, vector<576x128xbf16>, vector<9x128xf32> -> vector<9x128xf32>
    %cst_4 = arith.constant dense<0.000000e+00> : vector<128xf32>
    %4 = vector.multi_reduction <add>, %3, %cst_4 [0] : vector<9x128xf32> to vector<128xf32>
    %5 = vector.shape_cast %4 : vector<128xf32> to vector<1x128xf32>
    %6 = arith.mulf %3, %3 : vector<9x128xf32>
    %cst_5 = arith.constant dense<0.000000e+00> : vector<128xf32>
    %7 = vector.multi_reduction <add>, %6, %cst_5 [0] : vector<9x128xf32> to vector<128xf32>
    %8 = vector.shape_cast %7 : vector<128xf32> to vector<1x128xf32>
    %9 = tpu.concatenate %5, %8 in 1 : vector<1x128xf32>, vector<1x128xf32> -> vector<1x256xf32>
    %c0_6 = arith.constant 0 : index
    %c0_7 = arith.constant 0 : index
    %10 = vector.load %arg3[%c0_6, %c0_7] : memref<256x64xf32, #tpu.memory_space<vmem>>, vector<256x64xf32>
    %cst_8 = arith.constant dense<0.000000e+00> : vector<1x64xf32>
    %11 = tpu.matmul %9, %10, %cst_8 {dimension_numbers = #tpu.dot_dimension_numbers<[1], [0], [0], [1], [0, 0, 1, 1], [], []>} : vector<1x256xf32>, vector<256x64xf32>, vector<1x64xf32> -> vector<1x64xf32>
    %12 = vector.extract_strided_slice %11 {offsets = [0, 0], sizes = [1, 32], strides = [1, 1]} : vector<1x64xf32> to vector<1x32xf32>
    %cst_9 = arith.constant 0.027777778 : f32
    %13 = vector.broadcast %cst_9 : f32 to vector<1x32xf32>
    %14 = arith.mulf %12, %13 : vector<1x32xf32>
    %15 = vector.extract_strided_slice %11 {offsets = [0, 32], sizes = [1, 32], strides = [1, 1]} : vector<1x64xf32> to vector<1x32xf32>
    %cst_10 = arith.constant 0.027777778 : f32
    %16 = vector.broadcast %cst_10 : f32 to vector<1x32xf32>
    %17 = arith.mulf %15, %16 : vector<1x32xf32>
    %18 = arith.mulf %14, %14 : vector<1x32xf32>
    %19 = arith.subf %17, %18 : vector<1x32xf32>
    %cst_11 = arith.constant 0.000000e+00 : f32
    %20 = vector.broadcast %cst_11 : f32 to vector<1x32xf32>
    %21 = arith.maximumf %19, %20 : vector<1x32xf32>
    %cst_12 = arith.constant 9.99999974E-6 : f32
    %22 = vector.broadcast %cst_12 : f32 to vector<1x32xf32>
    %23 = arith.addf %21, %22 : vector<1x32xf32>
    %24 = math.rsqrt %23 : vector<1x32xf32>
    %25 = tpu.concatenate %14, %24 in 1 : vector<1x32xf32>, vector<1x32xf32> -> vector<1x64xf32>
    %c0_13 = arith.constant 0 : index
    %c0_14 = arith.constant 0 : index
    %26 = vector.load %arg4[%c0_13, %c0_14] : memref<64x256xf32, #tpu.memory_space<vmem>>, vector<64x256xf32>
    %cst_15 = arith.constant dense<0.000000e+00> : vector<1x256xf32>
    %27 = tpu.matmul %25, %26, %cst_15 {dimension_numbers = #tpu.dot_dimension_numbers<[1], [0], [0], [1], [0, 0, 1, 1], [], []>} : vector<1x64xf32>, vector<64x256xf32>, vector<1x256xf32> -> vector<1x256xf32>
    %28 = vector.extract_strided_slice %27 {offsets = [0, 0], sizes = [1, 128], strides = [1, 1]} : vector<1x256xf32> to vector<1x128xf32>
    %29 = vector.extract_strided_slice %27 {offsets = [0, 128], sizes = [1, 128], strides = [1, 1]} : vector<1x256xf32> to vector<1x128xf32>
    %c0_16 = arith.constant 0 : index
    %c0_17 = arith.constant 0 : index
    %30 = vector.load %arg5[%c0_16, %c0_17] : memref<1x128xf32, #tpu.memory_space<vmem>>, vector<1x128xf32>
    %31 = arith.mulf %30, %29 : vector<1x128xf32>
    %c0_18 = arith.constant 0 : index
    %c0_19 = arith.constant 0 : index
    %32 = vector.load %arg6[%c0_18, %c0_19] : memref<1x128xf32, #tpu.memory_space<vmem>>, vector<1x128xf32>
    %33 = arith.mulf %28, %31 : vector<1x128xf32>
    %34 = arith.subf %32, %33 : vector<1x128xf32>
    %35 = vector.broadcast %31 : vector<1x128xf32> to vector<9x128xf32>
    %36 = arith.mulf %3, %35 : vector<9x128xf32>
    %37 = vector.broadcast %34 : vector<1x128xf32> to vector<9x128xf32>
    %38 = arith.addf %36, %37 : vector<9x128xf32>
    %cst_20 = arith.constant 5.000000e-01 : f32
    %39 = vector.broadcast %cst_20 : f32 to vector<9x128xf32>
    %40 = arith.mulf %39, %38 : vector<9x128xf32>
    %41 = math.tanh %40 : vector<9x128xf32>
    %cst_21 = arith.constant 5.000000e-01 : f32
    %42 = vector.broadcast %cst_21 : f32 to vector<9x128xf32>
    %43 = arith.mulf %42, %41 : vector<9x128xf32>
    %cst_22 = arith.constant 5.000000e-01 : f32
    %44 = vector.broadcast %cst_22 : f32 to vector<9x128xf32>
    %45 = arith.addf %43, %44 : vector<9x128xf32>
    %46 = arith.mulf %38, %45 : vector<9x128xf32>
    %47 = arith.truncf %46 : vector<9x128xf32> to vector<9x128xbf16>
    %c0_23 = arith.constant 0 : index
    %c0_24 = arith.constant 0 : index
    %c0_25 = arith.constant 0 : index
    %48 = vector.load %arg7[%c0_23, %c0_24, %c0_25] : memref<1x9x128xbf16, #tpu.memory_space<vmem>>, vector<1x9x128xbf16>
    %49 = vector.shape_cast %48 : vector<1x9x128xbf16> to vector<9x128xbf16>
    %50 = vector.shape_cast %47 : vector<9x128xbf16> to vector<1x9x128xbf16>
    tpu.vector_store %arg7[%c0_23, %c0_24, %c0_25], %50 {strides = array<i32>} : memref<1x9x128xbf16, #tpu.memory_space<vmem>>, vector<1x9x128xbf16>,
    return
  }
  func.func @transform_0(%arg0: i32) -> (i32, i32, i32) {
    %c0_i32 = arith.constant 0 : i32
    %c0_i32_0 = arith.constant 0 : i32
    %c0_i32_1 = arith.constant 0 : i32
    return %arg0, %c0_i32, %c0_i32_0 : i32, i32, i32
  }
  func.func @transform_1(%arg0: i32) -> (i32, i32) {
    %c0_i32 = arith.constant 0 : i32
    %c0_i32_0 = arith.constant 0 : i32
    %c0_i32_1 = arith.constant 0 : i32
    return %c0_i32, %c0_i32_0 : i32, i32
  }
  func.func @transform_2(%arg0: i32) -> (i32, i32) {
    %c0_i32 = arith.constant 0 : i32
    %c0_i32_0 = arith.constant 0 : i32
    %c0_i32_1 = arith.constant 0 : i32
    return %c0_i32, %c0_i32_0 : i32, i32
  }
  func.func @transform_3(%arg0: i32) -> (i32, i32) {
    %c0_i32 = arith.constant 0 : i32
    %c0_i32_0 = arith.constant 0 : i32
    %c0_i32_1 = arith.constant 0 : i32
    return %c0_i32, %c0_i32_0 : i32, i32
  }
  func.func @transform_4(%arg0: i32) -> (i32, i32) {
    %c0_i32 = arith.constant 0 : i32
    %c0_i32_0 = arith.constant 0 : i32
    %c0_i32_1 = arith.constant 0 : i32
    return %c0_i32, %c0_i32_0 : i32, i32
  }
  func.func @transform_5(%arg0: i32) -> (i32, i32) {
    %c0_i32 = arith.constant 0 : i32
    %c0_i32_0 = arith.constant 0 : i32
    %c0_i32_1 = arith.constant 0 : i32
    return %c0_i32, %c0_i32_0 : i32, i32
  }
  func.func @transform_6(%arg0: i32) -> (i32, i32, i32) {
    %c0_i32 = arith.constant 0 : i32
    %c0_i32_0 = arith.constant 0 : i32
    %c0_i32_1 = arith.constant 0 : i32
    return %arg0, %c0_i32, %c0_i32_0 : i32, i32, i32
  }
}

module attributes {stable_mosaic.version = 11 : i64} {
  func.func @_conv_gn_swish_kernel(%arg0: i32, %arg1: memref<1x4x1152xbf16, #tpu.memory_space<vmem>>, %arg2: memref<1152x256xbf16, #tpu.memory_space<vmem>>, %arg3: memref<512x64xf32, #tpu.memory_space<vmem>>, %arg4: memref<64x512xf32, #tpu.memory_space<vmem>>, %arg5: memref<1x256xf32, #tpu.memory_space<vmem>>, %arg6: memref<1x256xf32, #tpu.memory_space<vmem>>, %arg7: memref<1x4x256xbf16, #tpu.memory_space<vmem>>) attributes {dimension_semantics = [#tpu.dimension_semantics<parallel>], iteration_bounds = array<i64: 2>, scalar_prefetch = 0 : i64, scratch_operands = 0 : i64, tpu.core_type = #tpu.core_type<tc>, window_params = [{transform_indices = @transform_0, window_bounds = array<i64: 1, 4, 1152>}, {pipeline_mode = #tpu.pipeline_mode<synchronous>, transform_indices = @transform_1, window_bounds = array<i64: 1152, 256>}, {pipeline_mode = #tpu.pipeline_mode<synchronous>, transform_indices = @transform_2, window_bounds = array<i64: 512, 64>}, {pipeline_mode = #tpu.pipeline_mode<synchronous>, transform_indices = @transform_3, window_bounds = array<i64: 64, 512>}, {pipeline_mode = #tpu.pipeline_mode<synchronous>, transform_indices = @transform_4, window_bounds = array<i64: 1, 256>}, {pipeline_mode = #tpu.pipeline_mode<synchronous>, transform_indices = @transform_5, window_bounds = array<i64: 1, 256>}, {transform_indices = @transform_6, window_bounds = array<i64: 1, 4, 256>}]} {
    %c0 = arith.constant 0 : index
    %c0_0 = arith.constant 0 : index
    %c0_1 = arith.constant 0 : index
    %0 = vector.load %arg1[%c0, %c0_0, %c0_1] : memref<1x4x1152xbf16, #tpu.memory_space<vmem>>, vector<1x4x1152xbf16>
    %1 = vector.shape_cast %0 : vector<1x4x1152xbf16> to vector<4x1152xbf16>
    %c0_2 = arith.constant 0 : index
    %c0_3 = arith.constant 0 : index
    %2 = vector.load %arg2[%c0_2, %c0_3] : memref<1152x256xbf16, #tpu.memory_space<vmem>>, vector<1152x256xbf16>
    %cst = arith.constant dense<0.000000e+00> : vector<4x256xf32>
    %3 = tpu.matmul %1, %2, %cst {dimension_numbers = #tpu.dot_dimension_numbers<[1], [0], [0], [1], [0, 0, 1, 1], [], []>} : vector<4x1152xbf16>, vector<1152x256xbf16>, vector<4x256xf32> -> vector<4x256xf32>
    %cst_4 = arith.constant dense<0.000000e+00> : vector<256xf32>
    %4 = vector.multi_reduction <add>, %3, %cst_4 [0] : vector<4x256xf32> to vector<256xf32>
    %5 = vector.shape_cast %4 : vector<256xf32> to vector<1x256xf32>
    %6 = arith.mulf %3, %3 : vector<4x256xf32>
    %cst_5 = arith.constant dense<0.000000e+00> : vector<256xf32>
    %7 = vector.multi_reduction <add>, %6, %cst_5 [0] : vector<4x256xf32> to vector<256xf32>
    %8 = vector.shape_cast %7 : vector<256xf32> to vector<1x256xf32>
    %9 = tpu.concatenate %5, %8 in 1 : vector<1x256xf32>, vector<1x256xf32> -> vector<1x512xf32>
    %c0_6 = arith.constant 0 : index
    %c0_7 = arith.constant 0 : index
    %10 = vector.load %arg3[%c0_6, %c0_7] : memref<512x64xf32, #tpu.memory_space<vmem>>, vector<512x64xf32>
    %cst_8 = arith.constant dense<0.000000e+00> : vector<1x64xf32>
    %11 = tpu.matmul %9, %10, %cst_8 {dimension_numbers = #tpu.dot_dimension_numbers<[1], [0], [0], [1], [0, 0, 1, 1], [], []>} : vector<1x512xf32>, vector<512x64xf32>, vector<1x64xf32> -> vector<1x64xf32>
    %12 = vector.extract_strided_slice %11 {offsets = [0, 0], sizes = [1, 32], strides = [1, 1]} : vector<1x64xf32> to vector<1x32xf32>
    %cst_9 = arith.constant 3.125000e-02 : f32
    %13 = vector.broadcast %cst_9 : f32 to vector<1x32xf32>
    %14 = arith.mulf %12, %13 : vector<1x32xf32>
    %15 = vector.extract_strided_slice %11 {offsets = [0, 32], sizes = [1, 32], strides = [1, 1]} : vector<1x64xf32> to vector<1x32xf32>
    %cst_10 = arith.constant 3.125000e-02 : f32
    %16 = vector.broadcast %cst_10 : f32 to vector<1x32xf32>
    %17 = arith.mulf %15, %16 : vector<1x32xf32>
    %18 = arith.mulf %14, %14 : vector<1x32xf32>
    %19 = arith.subf %17, %18 : vector<1x32xf32>
    %cst_11 = arith.constant 0.000000e+00 : f32
    %20 = vector.broadcast %cst_11 : f32 to vector<1x32xf32>
    %21 = arith.maximumf %19, %20 : vector<1x32xf32>
    %cst_12 = arith.constant 9.99999974E-6 : f32
    %22 = vector.broadcast %cst_12 : f32 to vector<1x32xf32>
    %23 = arith.addf %21, %22 : vector<1x32xf32>
    %24 = math.rsqrt %23 : vector<1x32xf32>
    %25 = tpu.concatenate %14, %24 in 1 : vector<1x32xf32>, vector<1x32xf32> -> vector<1x64xf32>
    %c0_13 = arith.constant 0 : index
    %c0_14 = arith.constant 0 : index
    %26 = vector.load %arg4[%c0_13, %c0_14] : memref<64x512xf32, #tpu.memory_space<vmem>>, vector<64x512xf32>
    %cst_15 = arith.constant dense<0.000000e+00> : vector<1x512xf32>
    %27 = tpu.matmul %25, %26, %cst_15 {dimension_numbers = #tpu.dot_dimension_numbers<[1], [0], [0], [1], [0, 0, 1, 1], [], []>} : vector<1x64xf32>, vector<64x512xf32>, vector<1x512xf32> -> vector<1x512xf32>
    %28 = vector.extract_strided_slice %27 {offsets = [0, 0], sizes = [1, 256], strides = [1, 1]} : vector<1x512xf32> to vector<1x256xf32>
    %29 = vector.extract_strided_slice %27 {offsets = [0, 256], sizes = [1, 256], strides = [1, 1]} : vector<1x512xf32> to vector<1x256xf32>
    %c0_16 = arith.constant 0 : index
    %c0_17 = arith.constant 0 : index
    %30 = vector.load %arg5[%c0_16, %c0_17] : memref<1x256xf32, #tpu.memory_space<vmem>>, vector<1x256xf32>
    %31 = arith.mulf %30, %29 : vector<1x256xf32>
    %c0_18 = arith.constant 0 : index
    %c0_19 = arith.constant 0 : index
    %32 = vector.load %arg6[%c0_18, %c0_19] : memref<1x256xf32, #tpu.memory_space<vmem>>, vector<1x256xf32>
    %33 = arith.mulf %28, %31 : vector<1x256xf32>
    %34 = arith.subf %32, %33 : vector<1x256xf32>
    %35 = vector.broadcast %31 : vector<1x256xf32> to vector<4x256xf32>
    %36 = arith.mulf %3, %35 : vector<4x256xf32>
    %37 = vector.broadcast %34 : vector<1x256xf32> to vector<4x256xf32>
    %38 = arith.addf %36, %37 : vector<4x256xf32>
    %cst_20 = arith.constant 5.000000e-01 : f32
    %39 = vector.broadcast %cst_20 : f32 to vector<4x256xf32>
    %40 = arith.mulf %39, %38 : vector<4x256xf32>
    %41 = math.tanh %40 : vector<4x256xf32>
    %cst_21 = arith.constant 5.000000e-01 : f32
    %42 = vector.broadcast %cst_21 : f32 to vector<4x256xf32>
    %43 = arith.mulf %42, %41 : vector<4x256xf32>
    %cst_22 = arith.constant 5.000000e-01 : f32
    %44 = vector.broadcast %cst_22 : f32 to vector<4x256xf32>
    %45 = arith.addf %43, %44 : vector<4x256xf32>
    %46 = arith.mulf %38, %45 : vector<4x256xf32>
    %47 = arith.truncf %46 : vector<4x256xf32> to vector<4x256xbf16>
    %c0_23 = arith.constant 0 : index
    %c0_24 = arith.constant 0 : index
    %c0_25 = arith.constant 0 : index
    %48 = vector.load %arg7[%c0_23, %c0_24, %c0_25] : memref<1x4x256xbf16, #tpu.memory_space<vmem>>, vector<1x4x256xbf16>
    %49 = vector.shape_cast %48 : vector<1x4x256xbf16> to vector<4x256xbf16>
    %50 = vector.shape_cast %47 : vector<4x256xbf16> to vector<1x4x256xbf16>
    tpu.vector_store %arg7[%c0_23, %c0_24, %c0_25], %50 {strides = array<i32>} : memref<1x4x256xbf16, #tpu.memory_space<vmem>>, vector<1x4x256xbf16>,
    return
  }
  func.func @transform_0(%arg0: i32) -> (i32, i32, i32) {
    %c0_i32 = arith.constant 0 : i32
    %c0_i32_0 = arith.constant 0 : i32
    %c0_i32_1 = arith.constant 0 : i32
    return %arg0, %c0_i32, %c0_i32_0 : i32, i32, i32
  }
  func.func @transform_1(%arg0: i32) -> (i32, i32) {
    %c0_i32 = arith.constant 0 : i32
    %c0_i32_0 = arith.constant 0 : i32
    %c0_i32_1 = arith.constant 0 : i32
    return %c0_i32, %c0_i32_0 : i32, i32
  }
  func.func @transform_2(%arg0: i32) -> (i32, i32) {
    %c0_i32 = arith.constant 0 : i32
    %c0_i32_0 = arith.constant 0 : i32
    %c0_i32_1 = arith.constant 0 : i32
    return %c0_i32, %c0_i32_0 : i32, i32
  }
  func.func @transform_3(%arg0: i32) -> (i32, i32) {
    %c0_i32 = arith.constant 0 : i32
    %c0_i32_0 = arith.constant 0 : i32
    %c0_i32_1 = arith.constant 0 : i32
    return %c0_i32, %c0_i32_0 : i32, i32
  }
  func.func @transform_4(%arg0: i32) -> (i32, i32) {
    %c0_i32 = arith.constant 0 : i32
    %c0_i32_0 = arith.constant 0 : i32
    %c0_i32_1 = arith.constant 0 : i32
    return %c0_i32, %c0_i32_0 : i32, i32
  }
  func.func @transform_5(%arg0: i32) -> (i32, i32) {
    %c0_i32 = arith.constant 0 : i32
    %c0_i32_0 = arith.constant 0 : i32
    %c0_i32_1 = arith.constant 0 : i32
    return %c0_i32, %c0_i32_0 : i32, i32
  }
  func.func @transform_6(%arg0: i32) -> (i32, i32, i32) {
    %c0_i32 = arith.constant 0 : i32
    %c0_i32_0 = arith.constant 0 : i32
    %c0_i32_1 = arith.constant 0 : i32
    return %arg0, %c0_i32, %c0_i32_0 : i32, i32, i32
  }
}

module attributes {stable_mosaic.version = 11 : i64} {
  func.func @_conv_gn_swish_kernel(%arg0: i32, %arg1: memref<1x9x2304xbf16, #tpu.memory_space<vmem>>, %arg2: memref<2304x128xbf16, #tpu.memory_space<vmem>>, %arg3: memref<256x64xf32, #tpu.memory_space<vmem>>, %arg4: memref<64x256xf32, #tpu.memory_space<vmem>>, %arg5: memref<1x128xf32, #tpu.memory_space<vmem>>, %arg6: memref<1x128xf32, #tpu.memory_space<vmem>>, %arg7: memref<1x9x128xbf16, #tpu.memory_space<vmem>>) attributes {dimension_semantics = [#tpu.dimension_semantics<parallel>], iteration_bounds = array<i64: 2>, scalar_prefetch = 0 : i64, scratch_operands = 0 : i64, tpu.core_type = #tpu.core_type<tc>, window_params = [{transform_indices = @transform_0, window_bounds = array<i64: 1, 9, 2304>}, {pipeline_mode = #tpu.pipeline_mode<synchronous>, transform_indices = @transform_1, window_bounds = array<i64: 2304, 128>}, {pipeline_mode = #tpu.pipeline_mode<synchronous>, transform_indices = @transform_2, window_bounds = array<i64: 256, 64>}, {pipeline_mode = #tpu.pipeline_mode<synchronous>, transform_indices = @transform_3, window_bounds = array<i64: 64, 256>}, {pipeline_mode = #tpu.pipeline_mode<synchronous>, transform_indices = @transform_4, window_bounds = array<i64: 1, 128>}, {pipeline_mode = #tpu.pipeline_mode<synchronous>, transform_indices = @transform_5, window_bounds = array<i64: 1, 128>}, {transform_indices = @transform_6, window_bounds = array<i64: 1, 9, 128>}]} {
    %c0 = arith.constant 0 : index
    %c0_0 = arith.constant 0 : index
    %c0_1 = arith.constant 0 : index
    %0 = vector.load %arg1[%c0, %c0_0, %c0_1] : memref<1x9x2304xbf16, #tpu.memory_space<vmem>>, vector<1x9x2304xbf16>
    %1 = vector.shape_cast %0 : vector<1x9x2304xbf16> to vector<9x2304xbf16>
    %c0_2 = arith.constant 0 : index
    %c0_3 = arith.constant 0 : index
    %2 = vector.load %arg2[%c0_2, %c0_3] : memref<2304x128xbf16, #tpu.memory_space<vmem>>, vector<2304x128xbf16>
    %cst = arith.constant dense<0.000000e+00> : vector<9x128xf32>
    %3 = tpu.matmul %1, %2, %cst {dimension_numbers = #tpu.dot_dimension_numbers<[1], [0], [0], [1], [0, 0, 1, 1], [], []>} : vector<9x2304xbf16>, vector<2304x128xbf16>, vector<9x128xf32> -> vector<9x128xf32>
    %cst_4 = arith.constant dense<0.000000e+00> : vector<128xf32>
    %4 = vector.multi_reduction <add>, %3, %cst_4 [0] : vector<9x128xf32> to vector<128xf32>
    %5 = vector.shape_cast %4 : vector<128xf32> to vector<1x128xf32>
    %6 = arith.mulf %3, %3 : vector<9x128xf32>
    %cst_5 = arith.constant dense<0.000000e+00> : vector<128xf32>
    %7 = vector.multi_reduction <add>, %6, %cst_5 [0] : vector<9x128xf32> to vector<128xf32>
    %8 = vector.shape_cast %7 : vector<128xf32> to vector<1x128xf32>
    %9 = tpu.concatenate %5, %8 in 1 : vector<1x128xf32>, vector<1x128xf32> -> vector<1x256xf32>
    %c0_6 = arith.constant 0 : index
    %c0_7 = arith.constant 0 : index
    %10 = vector.load %arg3[%c0_6, %c0_7] : memref<256x64xf32, #tpu.memory_space<vmem>>, vector<256x64xf32>
    %cst_8 = arith.constant dense<0.000000e+00> : vector<1x64xf32>
    %11 = tpu.matmul %9, %10, %cst_8 {dimension_numbers = #tpu.dot_dimension_numbers<[1], [0], [0], [1], [0, 0, 1, 1], [], []>} : vector<1x256xf32>, vector<256x64xf32>, vector<1x64xf32> -> vector<1x64xf32>
    %12 = vector.extract_strided_slice %11 {offsets = [0, 0], sizes = [1, 32], strides = [1, 1]} : vector<1x64xf32> to vector<1x32xf32>
    %cst_9 = arith.constant 0.027777778 : f32
    %13 = vector.broadcast %cst_9 : f32 to vector<1x32xf32>
    %14 = arith.mulf %12, %13 : vector<1x32xf32>
    %15 = vector.extract_strided_slice %11 {offsets = [0, 32], sizes = [1, 32], strides = [1, 1]} : vector<1x64xf32> to vector<1x32xf32>
    %cst_10 = arith.constant 0.027777778 : f32
    %16 = vector.broadcast %cst_10 : f32 to vector<1x32xf32>
    %17 = arith.mulf %15, %16 : vector<1x32xf32>
    %18 = arith.mulf %14, %14 : vector<1x32xf32>
    %19 = arith.subf %17, %18 : vector<1x32xf32>
    %cst_11 = arith.constant 0.000000e+00 : f32
    %20 = vector.broadcast %cst_11 : f32 to vector<1x32xf32>
    %21 = arith.maximumf %19, %20 : vector<1x32xf32>
    %cst_12 = arith.constant 9.99999974E-6 : f32
    %22 = vector.broadcast %cst_12 : f32 to vector<1x32xf32>
    %23 = arith.addf %21, %22 : vector<1x32xf32>
    %24 = math.rsqrt %23 : vector<1x32xf32>
    %25 = tpu.concatenate %14, %24 in 1 : vector<1x32xf32>, vector<1x32xf32> -> vector<1x64xf32>
    %c0_13 = arith.constant 0 : index
    %c0_14 = arith.constant 0 : index
    %26 = vector.load %arg4[%c0_13, %c0_14] : memref<64x256xf32, #tpu.memory_space<vmem>>, vector<64x256xf32>
    %cst_15 = arith.constant dense<0.000000e+00> : vector<1x256xf32>
    %27 = tpu.matmul %25, %26, %cst_15 {dimension_numbers = #tpu.dot_dimension_numbers<[1], [0], [0], [1], [0, 0, 1, 1], [], []>} : vector<1x64xf32>, vector<64x256xf32>, vector<1x256xf32> -> vector<1x256xf32>
    %28 = vector.extract_strided_slice %27 {offsets = [0, 0], sizes = [1, 128], strides = [1, 1]} : vector<1x256xf32> to vector<1x128xf32>
    %29 = vector.extract_strided_slice %27 {offsets = [0, 128], sizes = [1, 128], strides = [1, 1]} : vector<1x256xf32> to vector<1x128xf32>
    %c0_16 = arith.constant 0 : index
    %c0_17 = arith.constant 0 : index
    %30 = vector.load %arg5[%c0_16, %c0_17] : memref<1x128xf32, #tpu.memory_space<vmem>>, vector<1x128xf32>
    %31 = arith.mulf %30, %29 : vector<1x128xf32>
    %c0_18 = arith.constant 0 : index
    %c0_19 = arith.constant 0 : index
    %32 = vector.load %arg6[%c0_18, %c0_19] : memref<1x128xf32, #tpu.memory_space<vmem>>, vector<1x128xf32>
    %33 = arith.mulf %28, %31 : vector<1x128xf32>
    %34 = arith.subf %32, %33 : vector<1x128xf32>
    %35 = vector.broadcast %31 : vector<1x128xf32> to vector<9x128xf32>
    %36 = arith.mulf %3, %35 : vector<9x128xf32>
    %37 = vector.broadcast %34 : vector<1x128xf32> to vector<9x128xf32>
    %38 = arith.addf %36, %37 : vector<9x128xf32>
    %cst_20 = arith.constant 5.000000e-01 : f32
    %39 = vector.broadcast %cst_20 : f32 to vector<9x128xf32>
    %40 = arith.mulf %39, %38 : vector<9x128xf32>
    %41 = math.tanh %40 : vector<9x128xf32>
    %cst_21 = arith.constant 5.000000e-01 : f32
    %42 = vector.broadcast %cst_21 : f32 to vector<9x128xf32>
    %43 = arith.mulf %42, %41 : vector<9x128xf32>
    %cst_22 = arith.constant 5.000000e-01 : f32
    %44 = vector.broadcast %cst_22 : f32 to vector<9x128xf32>
    %45 = arith.addf %43, %44 : vector<9x128xf32>
    %46 = arith.mulf %38, %45 : vector<9x128xf32>
    %47 = arith.truncf %46 : vector<9x128xf32> to vector<9x128xbf16>
    %c0_23 = arith.constant 0 : index
    %c0_24 = arith.constant 0 : index
    %c0_25 = arith.constant 0 : index
    %48 = vector.load %arg7[%c0_23, %c0_24, %c0_25] : memref<1x9x128xbf16, #tpu.memory_space<vmem>>, vector<1x9x128xbf16>
    %49 = vector.shape_cast %48 : vector<1x9x128xbf16> to vector<9x128xbf16>
    %50 = vector.shape_cast %47 : vector<9x128xbf16> to vector<1x9x128xbf16>
    tpu.vector_store %arg7[%c0_23, %c0_24, %c0_25], %50 {strides = array<i32>} : memref<1x9x128xbf16, #tpu.memory_space<vmem>>, vector<1x9x128xbf16>,
    return
  }
  func.func @transform_0(%arg0: i32) -> (i32, i32, i32) {
    %c0_i32 = arith.constant 0 : i32
    %c0_i32_0 = arith.constant 0 : i32
    %c0_i32_1 = arith.constant 0 : i32
    return %arg0, %c0_i32, %c0_i32_0 : i32, i32, i32
  }
  func.func @transform_1(%arg0: i32) -> (i32, i32) {
    %c0_i32 = arith.constant 0 : i32
    %c0_i32_0 = arith.constant 0 : i32
    %c0_i32_1 = arith.constant 0 : i32
    return %c0_i32, %c0_i32_0 : i32, i32
  }
  func.func @transform_2(%arg0: i32) -> (i32, i32) {
    %c0_i32 = arith.constant 0 : i32
    %c0_i32_0 = arith.constant 0 : i32
    %c0_i32_1 = arith.constant 0 : i32
    return %c0_i32, %c0_i32_0 : i32, i32
  }
  func.func @transform_3(%arg0: i32) -> (i32, i32) {
    %c0_i32 = arith.constant 0 : i32
    %c0_i32_0 = arith.constant 0 : i32
    %c0_i32_1 = arith.constant 0 : i32
    return %c0_i32, %c0_i32_0 : i32, i32
  }
  func.func @transform_4(%arg0: i32) -> (i32, i32) {
    %c0_i32 = arith.constant 0 : i32
    %c0_i32_0 = arith.constant 0 : i32
    %c0_i32_1 = arith.constant 0 : i32
    return %c0_i32, %c0_i32_0 : i32, i32
  }
  func.func @transform_5(%arg0: i32) -> (i32, i32) {
    %c0_i32 = arith.constant 0 : i32
    %c0_i32_0 = arith.constant 0 : i32
    %c0_i32_1 = arith.constant 0 : i32
    return %c0_i32, %c0_i32_0 : i32, i32
  }
  func.func @transform_6(%arg0: i32) -> (i32, i32, i32) {
    %c0_i32 = arith.constant 0 : i32
    %c0_i32_0 = arith.constant 0 : i32
    %c0_i32_1 = arith.constant 0 : i32
    return %arg0, %c0_i32, %c0_i32_0 : i32, i32, i32
  }
}

module attributes {stable_mosaic.version = 11 : i64} {
  func.func @_conv_gn_swish_kernel(%arg0: i32, %arg1: memref<1x25x1152xbf16, #tpu.memory_space<vmem>>, %arg2: memref<1152x64xbf16, #tpu.memory_space<vmem>>, %arg3: memref<1x25x1152xbf16, #tpu.memory_space<vmem>>, %arg4: memref<1152x64xbf16, #tpu.memory_space<vmem>>, %arg5: memref<128x64xf32, #tpu.memory_space<vmem>>, %arg6: memref<64x128xf32, #tpu.memory_space<vmem>>, %arg7: memref<1x64xf32, #tpu.memory_space<vmem>>, %arg8: memref<1x64xf32, #tpu.memory_space<vmem>>, %arg9: memref<1x25x64xbf16, #tpu.memory_space<vmem>>) attributes {dimension_semantics = [#tpu.dimension_semantics<parallel>], iteration_bounds = array<i64: 2>, scalar_prefetch = 0 : i64, scratch_operands = 0 : i64, tpu.core_type = #tpu.core_type<tc>, window_params = [{transform_indices = @transform_0, window_bounds = array<i64: 1, 25, 1152>}, {pipeline_mode = #tpu.pipeline_mode<synchronous>, transform_indices = @transform_1, window_bounds = array<i64: 1152, 64>}, {transform_indices = @transform_2, window_bounds = array<i64: 1, 25, 1152>}, {pipeline_mode = #tpu.pipeline_mode<synchronous>, transform_indices = @transform_3, window_bounds = array<i64: 1152, 64>}, {pipeline_mode = #tpu.pipeline_mode<synchronous>, transform_indices = @transform_4, window_bounds = array<i64: 128, 64>}, {pipeline_mode = #tpu.pipeline_mode<synchronous>, transform_indices = @transform_5, window_bounds = array<i64: 64, 128>}, {pipeline_mode = #tpu.pipeline_mode<synchronous>, transform_indices = @transform_6, window_bounds = array<i64: 1, 64>}, {pipeline_mode = #tpu.pipeline_mode<synchronous>, transform_indices = @transform_7, window_bounds = array<i64: 1, 64>}, {transform_indices = @transform_8, window_bounds = array<i64: 1, 25, 64>}]} {
    %c0 = arith.constant 0 : index
    %c0_0 = arith.constant 0 : index
    %c0_1 = arith.constant 0 : index
    %0 = vector.load %arg1[%c0, %c0_0, %c0_1] : memref<1x25x1152xbf16, #tpu.memory_space<vmem>>, vector<1x25x1152xbf16>
    %1 = vector.shape_cast %0 : vector<1x25x1152xbf16> to vector<25x1152xbf16>
    %c0_2 = arith.constant 0 : index
    %c0_3 = arith.constant 0 : index
    %2 = vector.load %arg2[%c0_2, %c0_3] : memref<1152x64xbf16, #tpu.memory_space<vmem>>, vector<1152x64xbf16>
    %cst = arith.constant dense<0.000000e+00> : vector<25x64xf32>
    %3 = tpu.matmul %1, %2, %cst {dimension_numbers = #tpu.dot_dimension_numbers<[1], [0], [0], [1], [0, 0, 1, 1], [], []>} : vector<25x1152xbf16>, vector<1152x64xbf16>, vector<25x64xf32> -> vector<25x64xf32>
    %c0_4 = arith.constant 0 : index
    %c0_5 = arith.constant 0 : index
    %c0_6 = arith.constant 0 : index
    %4 = vector.load %arg3[%c0_4, %c0_5, %c0_6] : memref<1x25x1152xbf16, #tpu.memory_space<vmem>>, vector<1x25x1152xbf16>
    %5 = vector.shape_cast %4 : vector<1x25x1152xbf16> to vector<25x1152xbf16>
    %c0_7 = arith.constant 0 : index
    %c0_8 = arith.constant 0 : index
    %6 = vector.load %arg4[%c0_7, %c0_8] : memref<1152x64xbf16, #tpu.memory_space<vmem>>, vector<1152x64xbf16>
    %cst_9 = arith.constant dense<0.000000e+00> : vector<25x64xf32>
    %7 = tpu.matmul %5, %6, %cst_9 {dimension_numbers = #tpu.dot_dimension_numbers<[1], [0], [0], [1], [0, 0, 1, 1], [], []>} : vector<25x1152xbf16>, vector<1152x64xbf16>, vector<25x64xf32> -> vector<25x64xf32>
    %8 = arith.addf %3, %7 : vector<25x64xf32>
    %cst_10 = arith.constant dense<0.000000e+00> : vector<64xf32>
    %9 = vector.multi_reduction <add>, %8, %cst_10 [0] : vector<25x64xf32> to vector<64xf32>
    %10 = vector.shape_cast %9 : vector<64xf32> to vector<1x64xf32>
    %11 = arith.mulf %8, %8 : vector<25x64xf32>
    %cst_11 = arith.constant dense<0.000000e+00> : vector<64xf32>
    %12 = vector.multi_reduction <add>, %11, %cst_11 [0] : vector<25x64xf32> to vector<64xf32>
    %13 = vector.shape_cast %12 : vector<64xf32> to vector<1x64xf32>
    %14 = tpu.concatenate %10, %13 in 1 : vector<1x64xf32>, vector<1x64xf32> -> vector<1x128xf32>
    %c0_12 = arith.constant 0 : index
    %c0_13 = arith.constant 0 : index
    %15 = vector.load %arg5[%c0_12, %c0_13] : memref<128x64xf32, #tpu.memory_space<vmem>>, vector<128x64xf32>
    %cst_14 = arith.constant dense<0.000000e+00> : vector<1x64xf32>
    %16 = tpu.matmul %14, %15, %cst_14 {dimension_numbers = #tpu.dot_dimension_numbers<[1], [0], [0], [1], [0, 0, 1, 1], [], []>} : vector<1x128xf32>, vector<128x64xf32>, vector<1x64xf32> -> vector<1x64xf32>
    %17 = vector.extract_strided_slice %16 {offsets = [0, 0], sizes = [1, 32], strides = [1, 1]} : vector<1x64xf32> to vector<1x32xf32>
    %cst_15 = arith.constant 2.000000e-02 : f32
    %18 = vector.broadcast %cst_15 : f32 to vector<1x32xf32>
    %19 = arith.mulf %17, %18 : vector<1x32xf32>
    %20 = vector.extract_strided_slice %16 {offsets = [0, 32], sizes = [1, 32], strides = [1, 1]} : vector<1x64xf32> to vector<1x32xf32>
    %cst_16 = arith.constant 2.000000e-02 : f32
    %21 = vector.broadcast %cst_16 : f32 to vector<1x32xf32>
    %22 = arith.mulf %20, %21 : vector<1x32xf32>
    %23 = arith.mulf %19, %19 : vector<1x32xf32>
    %24 = arith.subf %22, %23 : vector<1x32xf32>
    %cst_17 = arith.constant 0.000000e+00 : f32
    %25 = vector.broadcast %cst_17 : f32 to vector<1x32xf32>
    %26 = arith.maximumf %24, %25 : vector<1x32xf32>
    %cst_18 = arith.constant 9.99999974E-6 : f32
    %27 = vector.broadcast %cst_18 : f32 to vector<1x32xf32>
    %28 = arith.addf %26, %27 : vector<1x32xf32>
    %29 = math.rsqrt %28 : vector<1x32xf32>
    %30 = tpu.concatenate %19, %29 in 1 : vector<1x32xf32>, vector<1x32xf32> -> vector<1x64xf32>
    %c0_19 = arith.constant 0 : index
    %c0_20 = arith.constant 0 : index
    %31 = vector.load %arg6[%c0_19, %c0_20] : memref<64x128xf32, #tpu.memory_space<vmem>>, vector<64x128xf32>
    %cst_21 = arith.constant dense<0.000000e+00> : vector<1x128xf32>
    %32 = tpu.matmul %30, %31, %cst_21 {dimension_numbers = #tpu.dot_dimension_numbers<[1], [0], [0], [1], [0, 0, 1, 1], [], []>} : vector<1x64xf32>, vector<64x128xf32>, vector<1x128xf32> -> vector<1x128xf32>
    %33 = vector.extract_strided_slice %32 {offsets = [0, 0], sizes = [1, 64], strides = [1, 1]} : vector<1x128xf32> to vector<1x64xf32>
    %34 = vector.extract_strided_slice %32 {offsets = [0, 64], sizes = [1, 64], strides = [1, 1]} : vector<1x128xf32> to vector<1x64xf32>
    %c0_22 = arith.constant 0 : index
    %c0_23 = arith.constant 0 : index
    %35 = vector.load %arg7[%c0_22, %c0_23] : memref<1x64xf32, #tpu.memory_space<vmem>>, vector<1x64xf32>
    %36 = arith.mulf %35, %34 : vector<1x64xf32>
    %c0_24 = arith.constant 0 : index
    %c0_25 = arith.constant 0 : index
    %37 = vector.load %arg8[%c0_24, %c0_25] : memref<1x64xf32, #tpu.memory_space<vmem>>, vector<1x64xf32>
    %38 = arith.mulf %33, %36 : vector<1x64xf32>
    %39 = arith.subf %37, %38 : vector<1x64xf32>
    %40 = vector.broadcast %36 : vector<1x64xf32> to vector<25x64xf32>
    %41 = arith.mulf %8, %40 : vector<25x64xf32>
    %42 = vector.broadcast %39 : vector<1x64xf32> to vector<25x64xf32>
    %43 = arith.addf %41, %42 : vector<25x64xf32>
    %cst_26 = arith.constant 5.000000e-01 : f32
    %44 = vector.broadcast %cst_26 : f32 to vector<25x64xf32>
    %45 = arith.mulf %44, %43 : vector<25x64xf32>
    %46 = math.tanh %45 : vector<25x64xf32>
    %cst_27 = arith.constant 5.000000e-01 : f32
    %47 = vector.broadcast %cst_27 : f32 to vector<25x64xf32>
    %48 = arith.mulf %47, %46 : vector<25x64xf32>
    %cst_28 = arith.constant 5.000000e-01 : f32
    %49 = vector.broadcast %cst_28 : f32 to vector<25x64xf32>
    %50 = arith.addf %48, %49 : vector<25x64xf32>
    %51 = arith.mulf %43, %50 : vector<25x64xf32>
    %52 = arith.truncf %51 : vector<25x64xf32> to vector<25x64xbf16>
    %c0_29 = arith.constant 0 : index
    %c0_30 = arith.constant 0 : index
    %c0_31 = arith.constant 0 : index
    %53 = vector.load %arg9[%c0_29, %c0_30, %c0_31] : memref<1x25x64xbf16, #tpu.memory_space<vmem>>, vector<1x25x64xbf16>
    %54 = vector.shape_cast %53 : vector<1x25x64xbf16> to vector<25x64xbf16>
    %55 = vector.shape_cast %52 : vector<25x64xbf16> to vector<1x25x64xbf16>
    tpu.vector_store %arg9[%c0_29, %c0_30, %c0_31], %55 {strides = array<i32>} : memref<1x25x64xbf16, #tpu.memory_space<vmem>>, vector<1x25x64xbf16>,
    return
  }
  func.func @transform_0(%arg0: i32) -> (i32, i32, i32) {
    %c0_i32 = arith.constant 0 : i32
    %c0_i32_0 = arith.constant 0 : i32
    %c0_i32_1 = arith.constant 0 : i32
    return %arg0, %c0_i32, %c0_i32_0 : i32, i32, i32
  }
  func.func @transform_1(%arg0: i32) -> (i32, i32) {
    %c0_i32 = arith.constant 0 : i32
    %c0_i32_0 = arith.constant 0 : i32
    %c0_i32_1 = arith.constant 0 : i32
    return %c0_i32, %c0_i32_0 : i32, i32
  }
  func.func @transform_2(%arg0: i32) -> (i32, i32, i32) {
    %c0_i32 = arith.constant 0 : i32
    %c0_i32_0 = arith.constant 0 : i32
    %c0_i32_1 = arith.constant 0 : i32
    return %arg0, %c0_i32, %c0_i32_0 : i32, i32, i32
  }
  func.func @transform_3(%arg0: i32) -> (i32, i32) {
    %c0_i32 = arith.constant 0 : i32
    %c0_i32_0 = arith.constant 0 : i32
    %c0_i32_1 = arith.constant 0 : i32
    return %c0_i32, %c0_i32_0 : i32, i32
  }
  func.func @transform_4(%arg0: i32) -> (i32, i32) {
    %c0_i32 = arith.constant 0 : i32
    %c0_i32_0 = arith.constant 0 : i32
    %c0_i32_1 = arith.constant 0 : i32
    return %c0_i32, %c0_i32_0 : i32, i32
  }
  func.func @transform_5(%arg0: i32) -> (i32, i32) {
    %c0_i32 = arith.constant 0 : i32
    %c0_i32_0 = arith.constant 0 : i32
    %c0_i32_1 = arith.constant 0 : i32
    return %c0_i32, %c0_i32_0 : i32, i32
  }
  func.func @transform_6(%arg0: i32) -> (i32, i32) {
    %c0_i32 = arith.constant 0 : i32
    %c0_i32_0 = arith.constant 0 : i32
    %c0_i32_1 = arith.constant 0 : i32
    return %c0_i32, %c0_i32_0 : i32, i32
  }
  func.func @transform_7(%arg0: i32) -> (i32, i32) {
    %c0_i32 = arith.constant 0 : i32
    %c0_i32_0 = arith.constant 0 : i32
    %c0_i32_1 = arith.constant 0 : i32
    return %c0_i32, %c0_i32_0 : i32, i32
  }
  func.func @transform_8(%arg0: i32) -> (i32, i32, i32) {
    %c0_i32 = arith.constant 0 : i32
    %c0_i32_0 = arith.constant 0 : i32
    %c0_i32_1 = arith.constant 0 : i32
    return %arg0, %c0_i32, %c0_i32_0 : i32, i32, i32
  }
}

module attributes {stable_mosaic.version = 11 : i64} {
  func.func @_conv_gn_swish_kernel(%arg0: i32, %arg1: memref<1x100x576xbf16, #tpu.memory_space<vmem>>, %arg2: memref<576x32xbf16, #tpu.memory_space<vmem>>, %arg3: memref<1x100x576xbf16, #tpu.memory_space<vmem>>, %arg4: memref<576x32xbf16, #tpu.memory_space<vmem>>, %arg5: memref<64x64xf32, #tpu.memory_space<vmem>>, %arg6: memref<64x64xf32, #tpu.memory_space<vmem>>, %arg7: memref<1x32xf32, #tpu.memory_space<vmem>>, %arg8: memref<1x32xf32, #tpu.memory_space<vmem>>, %arg9: memref<1x100x32xbf16, #tpu.memory_space<vmem>>) attributes {dimension_semantics = [#tpu.dimension_semantics<parallel>], iteration_bounds = array<i64: 2>, scalar_prefetch = 0 : i64, scratch_operands = 0 : i64, tpu.core_type = #tpu.core_type<tc>, window_params = [{transform_indices = @transform_0, window_bounds = array<i64: 1, 100, 576>}, {pipeline_mode = #tpu.pipeline_mode<synchronous>, transform_indices = @transform_1, window_bounds = array<i64: 576, 32>}, {transform_indices = @transform_2, window_bounds = array<i64: 1, 100, 576>}, {pipeline_mode = #tpu.pipeline_mode<synchronous>, transform_indices = @transform_3, window_bounds = array<i64: 576, 32>}, {pipeline_mode = #tpu.pipeline_mode<synchronous>, transform_indices = @transform_4, window_bounds = array<i64: 64, 64>}, {pipeline_mode = #tpu.pipeline_mode<synchronous>, transform_indices = @transform_5, window_bounds = array<i64: 64, 64>}, {pipeline_mode = #tpu.pipeline_mode<synchronous>, transform_indices = @transform_6, window_bounds = array<i64: 1, 32>}, {pipeline_mode = #tpu.pipeline_mode<synchronous>, transform_indices = @transform_7, window_bounds = array<i64: 1, 32>}, {transform_indices = @transform_8, window_bounds = array<i64: 1, 100, 32>}]} {
    %c0 = arith.constant 0 : index
    %c0_0 = arith.constant 0 : index
    %c0_1 = arith.constant 0 : index
    %0 = vector.load %arg1[%c0, %c0_0, %c0_1] : memref<1x100x576xbf16, #tpu.memory_space<vmem>>, vector<1x100x576xbf16>
    %1 = vector.shape_cast %0 : vector<1x100x576xbf16> to vector<100x576xbf16>
    %c0_2 = arith.constant 0 : index
    %c0_3 = arith.constant 0 : index
    %2 = vector.load %arg2[%c0_2, %c0_3] : memref<576x32xbf16, #tpu.memory_space<vmem>>, vector<576x32xbf16>
    %cst = arith.constant dense<0.000000e+00> : vector<100x32xf32>
    %3 = tpu.matmul %1, %2, %cst {dimension_numbers = #tpu.dot_dimension_numbers<[1], [0], [0], [1], [0, 0, 1, 1], [], []>} : vector<100x576xbf16>, vector<576x32xbf16>, vector<100x32xf32> -> vector<100x32xf32>
    %c0_4 = arith.constant 0 : index
    %c0_5 = arith.constant 0 : index
    %c0_6 = arith.constant 0 : index
    %4 = vector.load %arg3[%c0_4, %c0_5, %c0_6] : memref<1x100x576xbf16, #tpu.memory_space<vmem>>, vector<1x100x576xbf16>
    %5 = vector.shape_cast %4 : vector<1x100x576xbf16> to vector<100x576xbf16>
    %c0_7 = arith.constant 0 : index
    %c0_8 = arith.constant 0 : index
    %6 = vector.load %arg4[%c0_7, %c0_8] : memref<576x32xbf16, #tpu.memory_space<vmem>>, vector<576x32xbf16>
    %cst_9 = arith.constant dense<0.000000e+00> : vector<100x32xf32>
    %7 = tpu.matmul %5, %6, %cst_9 {dimension_numbers = #tpu.dot_dimension_numbers<[1], [0], [0], [1], [0, 0, 1, 1], [], []>} : vector<100x576xbf16>, vector<576x32xbf16>, vector<100x32xf32> -> vector<100x32xf32>
    %8 = arith.addf %3, %7 : vector<100x32xf32>
    %cst_10 = arith.constant dense<0.000000e+00> : vector<32xf32>
    %9 = vector.multi_reduction <add>, %8, %cst_10 [0] : vector<100x32xf32> to vector<32xf32>
    %10 = vector.shape_cast %9 : vector<32xf32> to vector<1x32xf32>
    %11 = arith.mulf %8, %8 : vector<100x32xf32>
    %cst_11 = arith.constant dense<0.000000e+00> : vector<32xf32>
    %12 = vector.multi_reduction <add>, %11, %cst_11 [0] : vector<100x32xf32> to vector<32xf32>
    %13 = vector.shape_cast %12 : vector<32xf32> to vector<1x32xf32>
    %14 = tpu.concatenate %10, %13 in 1 : vector<1x32xf32>, vector<1x32xf32> -> vector<1x64xf32>
    %c0_12 = arith.constant 0 : index
    %c0_13 = arith.constant 0 : index
    %15 = vector.load %arg5[%c0_12, %c0_13] : memref<64x64xf32, #tpu.memory_space<vmem>>, vector<64x64xf32>
    %cst_14 = arith.constant dense<0.000000e+00> : vector<1x64xf32>
    %16 = tpu.matmul %14, %15, %cst_14 {dimension_numbers = #tpu.dot_dimension_numbers<[1], [0], [0], [1], [0, 0, 1, 1], [], []>} : vector<1x64xf32>, vector<64x64xf32>, vector<1x64xf32> -> vector<1x64xf32>
    %17 = vector.extract_strided_slice %16 {offsets = [0, 0], sizes = [1, 32], strides = [1, 1]} : vector<1x64xf32> to vector<1x32xf32>
    %cst_15 = arith.constant 0.00999999977 : f32
    %18 = vector.broadcast %cst_15 : f32 to vector<1x32xf32>
    %19 = arith.mulf %17, %18 : vector<1x32xf32>
    %20 = vector.extract_strided_slice %16 {offsets = [0, 32], sizes = [1, 32], strides = [1, 1]} : vector<1x64xf32> to vector<1x32xf32>
    %cst_16 = arith.constant 0.00999999977 : f32
    %21 = vector.broadcast %cst_16 : f32 to vector<1x32xf32>
    %22 = arith.mulf %20, %21 : vector<1x32xf32>
    %23 = arith.mulf %19, %19 : vector<1x32xf32>
    %24 = arith.subf %22, %23 : vector<1x32xf32>
    %cst_17 = arith.constant 0.000000e+00 : f32
    %25 = vector.broadcast %cst_17 : f32 to vector<1x32xf32>
    %26 = arith.maximumf %24, %25 : vector<1x32xf32>
    %cst_18 = arith.constant 9.99999974E-6 : f32
    %27 = vector.broadcast %cst_18 : f32 to vector<1x32xf32>
    %28 = arith.addf %26, %27 : vector<1x32xf32>
    %29 = math.rsqrt %28 : vector<1x32xf32>
    %30 = tpu.concatenate %19, %29 in 1 : vector<1x32xf32>, vector<1x32xf32> -> vector<1x64xf32>
    %c0_19 = arith.constant 0 : index
    %c0_20 = arith.constant 0 : index
    %31 = vector.load %arg6[%c0_19, %c0_20] : memref<64x64xf32, #tpu.memory_space<vmem>>, vector<64x64xf32>
    %cst_21 = arith.constant dense<0.000000e+00> : vector<1x64xf32>
    %32 = tpu.matmul %30, %31, %cst_21 {dimension_numbers = #tpu.dot_dimension_numbers<[1], [0], [0], [1], [0, 0, 1, 1], [], []>} : vector<1x64xf32>, vector<64x64xf32>, vector<1x64xf32> -> vector<1x64xf32>
    %33 = vector.extract_strided_slice %32 {offsets = [0, 0], sizes = [1, 32], strides = [1, 1]} : vector<1x64xf32> to vector<1x32xf32>
    %34 = vector.extract_strided_slice %32 {offsets = [0, 32], sizes = [1, 32], strides = [1, 1]} : vector<1x64xf32> to vector<1x32xf32>
    %c0_22 = arith.constant 0 : index
    %c0_23 = arith.constant 0 : index
    %35 = vector.load %arg7[%c0_22, %c0_23] : memref<1x32xf32, #tpu.memory_space<vmem>>, vector<1x32xf32>
    %36 = arith.mulf %35, %34 : vector<1x32xf32>
    %c0_24 = arith.constant 0 : index
    %c0_25 = arith.constant 0 : index
    %37 = vector.load %arg8[%c0_24, %c0_25] : memref<1x32xf32, #tpu.memory_space<vmem>>, vector<1x32xf32>
    %38 = arith.mulf %33, %36 : vector<1x32xf32>
    %39 = arith.subf %37, %38 : vector<1x32xf32>
    %40 = vector.broadcast %36 : vector<1x32xf32> to vector<100x32xf32>
    %41 = arith.mulf %8, %40 : vector<100x32xf32>
    %42 = vector.broadcast %39 : vector<1x32xf32> to vector<100x32xf32>
    %43 = arith.addf %41, %42 : vector<100x32xf32>
    %cst_26 = arith.constant 5.000000e-01 : f32
    %44 = vector.broadcast %cst_26 : f32 to vector<100x32xf32>
    %45 = arith.mulf %44, %43 : vector<100x32xf32>
    %46 = math.tanh %45 : vector<100x32xf32>
    %cst_27 = arith.constant 5.000000e-01 : f32
    %47 = vector.broadcast %cst_27 : f32 to vector<100x32xf32>
    %48 = arith.mulf %47, %46 : vector<100x32xf32>
    %cst_28 = arith.constant 5.000000e-01 : f32
    %49 = vector.broadcast %cst_28 : f32 to vector<100x32xf32>
    %50 = arith.addf %48, %49 : vector<100x32xf32>
    %51 = arith.mulf %43, %50 : vector<100x32xf32>
    %52 = arith.truncf %51 : vector<100x32xf32> to vector<100x32xbf16>
    %c0_29 = arith.constant 0 : index
    %c0_30 = arith.constant 0 : index
    %c0_31 = arith.constant 0 : index
    %53 = vector.load %arg9[%c0_29, %c0_30, %c0_31] : memref<1x100x32xbf16, #tpu.memory_space<vmem>>, vector<1x100x32xbf16>
    %54 = vector.shape_cast %53 : vector<1x100x32xbf16> to vector<100x32xbf16>
    %55 = vector.shape_cast %52 : vector<100x32xbf16> to vector<1x100x32xbf16>
    tpu.vector_store %arg9[%c0_29, %c0_30, %c0_31], %55 {strides = array<i32>} : memref<1x100x32xbf16, #tpu.memory_space<vmem>>, vector<1x100x32xbf16>,
    return
  }
  func.func @transform_0(%arg0: i32) -> (i32, i32, i32) {
    %c0_i32 = arith.constant 0 : i32
    %c0_i32_0 = arith.constant 0 : i32
    %c0_i32_1 = arith.constant 0 : i32
    return %arg0, %c0_i32, %c0_i32_0 : i32, i32, i32
  }
  func.func @transform_1(%arg0: i32) -> (i32, i32) {
    %c0_i32 = arith.constant 0 : i32
    %c0_i32_0 = arith.constant 0 : i32
    %c0_i32_1 = arith.constant 0 : i32
    return %c0_i32, %c0_i32_0 : i32, i32
  }
  func.func @transform_2(%arg0: i32) -> (i32, i32, i32) {
    %c0_i32 = arith.constant 0 : i32
    %c0_i32_0 = arith.constant 0 : i32
    %c0_i32_1 = arith.constant 0 : i32
    return %arg0, %c0_i32, %c0_i32_0 : i32, i32, i32
  }
  func.func @transform_3(%arg0: i32) -> (i32, i32) {
    %c0_i32 = arith.constant 0 : i32
    %c0_i32_0 = arith.constant 0 : i32
    %c0_i32_1 = arith.constant 0 : i32
    return %c0_i32, %c0_i32_0 : i32, i32
  }
  func.func @transform_4(%arg0: i32) -> (i32, i32) {
    %c0_i32 = arith.constant 0 : i32
    %c0_i32_0 = arith.constant 0 : i32
    %c0_i32_1 = arith.constant 0 : i32
    return %c0_i32, %c0_i32_0 : i32, i32
  }
  func.func @transform_5(%arg0: i32) -> (i32, i32) {
    %c0_i32 = arith.constant 0 : i32
    %c0_i32_0 = arith.constant 0 : i32
    %c0_i32_1 = arith.constant 0 : i32
    return %c0_i32, %c0_i32_0 : i32, i32
  }
  func.func @transform_6(%arg0: i32) -> (i32, i32) {
    %c0_i32 = arith.constant 0 : i32
    %c0_i32_0 = arith.constant 0 : i32
    %c0_i32_1 = arith.constant 0 : i32
    return %c0_i32, %c0_i32_0 : i32, i32
  }
  func.func @transform_7(%arg0: i32) -> (i32, i32) {
    %c0_i32 = arith.constant 0 : i32
    %c0_i32_0 = arith.constant 0 : i32
    %c0_i32_1 = arith.constant 0 : i32
    return %c0_i32, %c0_i32_0 : i32, i32
  }
  func.func @transform_8(%arg0: i32) -> (i32, i32, i32) {
    %c0_i32 = arith.constant 0 : i32
    %c0_i32_0 = arith.constant 0 : i32
    %c0_i32_1 = arith.constant 0 : i32
    return %arg0, %c0_i32, %c0_i32_0 : i32, i32, i32
  }
}

module attributes {stable_mosaic.version = 11 : i64} {
  func.func @_final_conv_kernel(%arg0: i32, %arg1: memref<1x100x288xbf16, #tpu.memory_space<vmem>>, %arg2: memref<288x128xbf16, #tpu.memory_space<vmem>>, %arg3: memref<1x100x288xbf16, #tpu.memory_space<vmem>>, %arg4: memref<288x128xbf16, #tpu.memory_space<vmem>>, %arg5: memref<1x1xf32, #tpu.memory_space<vmem>>, %arg6: memref<2xf32, #tpu.memory_space<smem>>, %arg7: memref<1x100x1xf32, #tpu.memory_space<vmem>>) attributes {dimension_semantics = [#tpu.dimension_semantics<parallel>], iteration_bounds = array<i64: 2>, scalar_prefetch = 0 : i64, scratch_operands = 0 : i64, tpu.core_type = #tpu.core_type<tc>, window_params = [{transform_indices = @transform_0, window_bounds = array<i64: 1, 100, 288>}, {pipeline_mode = #tpu.pipeline_mode<synchronous>, transform_indices = @transform_1, window_bounds = array<i64: 288, 128>}, {transform_indices = @transform_2, window_bounds = array<i64: 1, 100, 288>}, {pipeline_mode = #tpu.pipeline_mode<synchronous>, transform_indices = @transform_3, window_bounds = array<i64: 288, 128>}, {pipeline_mode = #tpu.pipeline_mode<synchronous>, transform_indices = @transform_4, window_bounds = array<i64: 1, 1>}, {transform_indices = @transform_5, window_bounds = array<i64: 2>}, {transform_indices = @transform_6, window_bounds = array<i64: 1, 100, 1>}]} {
    %c0 = arith.constant 0 : index
    %c0_0 = arith.constant 0 : index
    %c0_1 = arith.constant 0 : index
    %0 = vector.load %arg1[%c0, %c0_0, %c0_1] : memref<1x100x288xbf16, #tpu.memory_space<vmem>>, vector<1x100x288xbf16>
    %1 = vector.shape_cast %0 : vector<1x100x288xbf16> to vector<100x288xbf16>
    %c0_2 = arith.constant 0 : index
    %c0_3 = arith.constant 0 : index
    %2 = vector.load %arg2[%c0_2, %c0_3] : memref<288x128xbf16, #tpu.memory_space<vmem>>, vector<288x128xbf16>
    %cst = arith.constant dense<0.000000e+00> : vector<100x128xf32>
    %3 = tpu.matmul %1, %2, %cst {dimension_numbers = #tpu.dot_dimension_numbers<[1], [0], [0], [1], [0, 0, 1, 1], [], []>} : vector<100x288xbf16>, vector<288x128xbf16>, vector<100x128xf32> -> vector<100x128xf32>
    %c0_4 = arith.constant 0 : index
    %c0_5 = arith.constant 0 : index
    %c0_6 = arith.constant 0 : index
    %4 = vector.load %arg3[%c0_4, %c0_5, %c0_6] : memref<1x100x288xbf16, #tpu.memory_space<vmem>>, vector<1x100x288xbf16>
    %5 = vector.shape_cast %4 : vector<1x100x288xbf16> to vector<100x288xbf16>
    %c0_7 = arith.constant 0 : index
    %c0_8 = arith.constant 0 : index
    %6 = vector.load %arg4[%c0_7, %c0_8] : memref<288x128xbf16, #tpu.memory_space<vmem>>, vector<288x128xbf16>
    %cst_9 = arith.constant dense<0.000000e+00> : vector<100x128xf32>
    %7 = tpu.matmul %5, %6, %cst_9 {dimension_numbers = #tpu.dot_dimension_numbers<[1], [0], [0], [1], [0, 0, 1, 1], [], []>} : vector<100x288xbf16>, vector<288x128xbf16>, vector<100x128xf32> -> vector<100x128xf32>
    %8 = arith.addf %3, %7 : vector<100x128xf32>
    %9 = arith.index_cast %arg0 : i32 to index
    %10 = memref.load %arg6[%9] : memref<2xf32, #tpu.memory_space<smem>>
    %11 = vector.extract_strided_slice %8 {offsets = [0, 0], sizes = [100, 1], strides = [1, 1]} : vector<100x128xf32> to vector<100x1xf32>
    %c0_10 = arith.constant 0 : index
    %c0_11 = arith.constant 0 : index
    %12 = vector.load %arg5[%c0_10, %c0_11] : memref<1x1xf32, #tpu.memory_space<vmem>>, vector<1x1xf32>
    %13 = vector.broadcast %12 : vector<1x1xf32> to vector<100x1xf32>
    %14 = arith.addf %11, %13 : vector<100x1xf32>
    %15 = vector.broadcast %10 : f32 to vector<100x1xf32>
    %16 = arith.mulf %14, %15 : vector<100x1xf32>
    %c0_12 = arith.constant 0 : index
    %c0_13 = arith.constant 0 : index
    %c0_14 = arith.constant 0 : index
    %17 = vector.load %arg7[%c0_12, %c0_13, %c0_14] : memref<1x100x1xf32, #tpu.memory_space<vmem>>, vector<1x100x1xf32>
    %18 = vector.shape_cast %17 : vector<1x100x1xf32> to vector<100x1xf32>
    %19 = vector.shape_cast %16 : vector<100x1xf32> to vector<1x100x1xf32>
    tpu.vector_store %arg7[%c0_12, %c0_13, %c0_14], %19 {strides = array<i32>} : memref<1x100x1xf32, #tpu.memory_space<vmem>>, vector<1x100x1xf32>,
    return
  }
  func.func @transform_0(%arg0: i32) -> (i32, i32, i32) {
    %c0_i32 = arith.constant 0 : i32
    %c0_i32_0 = arith.constant 0 : i32
    %c0_i32_1 = arith.constant 0 : i32
    return %arg0, %c0_i32, %c0_i32_0 : i32, i32, i32
  }
  func.func @transform_1(%arg0: i32) -> (i32, i32) {
    %c0_i32 = arith.constant 0 : i32
    %c0_i32_0 = arith.constant 0 : i32
    %c0_i32_1 = arith.constant 0 : i32
    return %c0_i32, %c0_i32_0 : i32, i32
  }
  func.func @transform_2(%arg0: i32) -> (i32, i32, i32) {
    %c0_i32 = arith.constant 0 : i32
    %c0_i32_0 = arith.constant 0 : i32
    %c0_i32_1 = arith.constant 0 : i32
    return %arg0, %c0_i32, %c0_i32_0 : i32, i32, i32
  }
  func.func @transform_3(%arg0: i32) -> (i32, i32) {
    %c0_i32 = arith.constant 0 : i32
    %c0_i32_0 = arith.constant 0 : i32
    %c0_i32_1 = arith.constant 0 : i32
    return %c0_i32, %c0_i32_0 : i32, i32
  }
  func.func @transform_4(%arg0: i32) -> (i32, i32) {
    %c0_i32 = arith.constant 0 : i32
    %c0_i32_0 = arith.constant 0 : i32
    %c0_i32_1 = arith.constant 0 : i32
    return %c0_i32, %c0_i32_0 : i32, i32
  }
  func.func @transform_5(%arg0: i32) -> i32 {
    %c0_i32 = arith.constant 0 : i32
    %c0_i32_0 = arith.constant 0 : i32
    return %c0_i32 : i32
  }
  func.func @transform_6(%arg0: i32) -> (i32, i32, i32) {
    %c0_i32 = arith.constant 0 : i32
    %c0_i32_0 = arith.constant 0 : i32
    %c0_i32_1 = arith.constant 0 : i32
    return %arg0, %c0_i32, %c0_i32_0 : i32, i32, i32
  }
}

</mosaic_0001>

<llo_original>
// kernel: scorenet_forward.8
$region0: #{scorenet_forward.8}
  #allocation0 [shape = 'u32[]', space=smem, size = 0x4, offset = 0x4, fixed_abs, tag = 'smem constant byte address 0x4 - core index']
  #allocation1 [shape = 'u32[72,128]{1,0:T(1,128)}', space=vmem, size = 0x9000, scoped, tag = 'internal scratch']
  %s0 = inlined_call_operand.vmem [shape: f32[2,100,9], index: 0, kind: input, shape index: {}]
  %s1 = inlined_call_operand.vmem [shape: f32[9,32], index: 1, kind: input, shape index: {}]
  %s2 = inlined_call_operand.vmem [shape: f32[64,8], index: 2, kind: input, shape index: {}]
  %s3 = inlined_call_operand.vmem [shape: f32[8,64], index: 3, kind: input, shape index: {}]
  %s4 = inlined_call_operand.vmem [shape: f32[1,32], index: 4, kind: input, shape index: {}]
  %s5 = inlined_call_operand.vmem [shape: f32[1,32], index: 5, kind: input, shape index: {}]
  %s6 = inlined_call_operand.vmem [shape: bf16[2,100,32], index: 6, kind: output, shape index: {}]
  %s7 = sld [smem:[#allocation0]]
  $region57: #{scorenet_forward.8} parent=0
    _
  %s9 = ssub.s32 1, %s7
  %s10 = scalar_select 0, %s9, %s7
  loop: start=0, step=1, limit=4
  $region2: #{scorenet_forward.8} parent=0 // loop_pre_header
    _
  $region3: #{scorenet_forward.8} parent=0 // loop_header
    %s12 = sphi 0, %s16
    %p13 = scmp.ge.s32.totalorder %s12, 4
    %s22 = sphi 0, %s24
    %s25 = sphi 0, %s22
    %s26 = sphi 0, %s25
    %s42 = sphi 0, %s26
    %s46 = sphi 0, %s46
    %s48 = sphi 0, %s46
    %s49 = sphi 0, %s48
    %s63 = sphi 0, %s49
    %s67 = sphi 0, %s67
    %s69 = sphi 0, %s67
    %s70 = sphi 0, %s69
    %s84 = sphi 0, %s70
    %s88 = sphi 0, %s88
    %s90 = sphi 0, %s88
    %s91 = sphi 0, %s90
    %s105 = sphi 0, %s91
    %s109 = sphi 0, %s109
    %s111 = sphi 0, %s109
    %s112 = sphi 0, %s111
    %s126 = sphi 0, %s112
    %s130 = sphi 0, %s130
    %s132 = sphi 0, %s130
    %s133 = sphi 0, %s132
    %s147 = sphi 0, %s133
    %s153 = sphi 0, %s155
    %s156 = sphi 0, %s153
    %s157 = sphi 0, %s156
    %s173 = sphi 0, %s157
  $region4: #{scorenet_forward.8} parent=0 // loop_header_branch
    %15 = sbr.rel (%p13) target = $region8
  $region5: #{scorenet_forward.8} parent=0 // loop_body
    %s17 = ssub.s32 %s12, 1
    %s18 = ssub.s32 %s12, 2
    %s19 = sadd.s32 %s12, 1
    %s20 = ssub.s32 %s12, %s19
    %p21 = scmp.eq.s32.totalorder %s20, 0
    %s23 = sadd.s32 %s22, 1
    %s24 = scalar_select %p21, %s22, %s23
    %p27 = pneg %p21
    %p28 = scmp.eq.s32.totalorder %s12, 1
    %p29 = por %p27, %p28
    %p30 = scmp.ne.s32.totalorder %s22, %s25
    %p31 = scmp.eq.s32.totalorder %s12, 0
    %p32 = por %p30, %p31
    %p33 = scmp.ne.s32.totalorder %s22, %s25
    %p34 = scmp.eq.s32.totalorder %s17, 1
    %p35 = por %p33, %p34
    %p36 = scmp.ne.s32.totalorder %s25, %s26
    %p37 = scmp.eq.s32.totalorder %s17, 0
    %p38 = por %p36, %p37
    %p39 = scmp.ne.s32.totalorder %s25, %s26
    %p40 = scmp.eq.s32.totalorder %s18, 1
    %p41 = por %p39, %p40
    %p43 = scmp.ne.s32.totalorder %s26, %s42
    %p44 = scmp.eq.s32.totalorder %s18, 0
    %p45 = por %p43, %p44
    %s47 = sadd.s32 %s46, 1
    %p50 = scmp.eq.s32.totalorder %s12, 1
    %p51 = scmp.ne.s32.totalorder %s46, %s48
    %p52 = scmp.eq.s32.totalorder %s12, 0
    %p53 = por %p51, %p52
    %p54 = scmp.ne.s32.totalorder %s46, %s48
    %p55 = scmp.eq.s32.totalorder %s17, 1
    %p56 = por %p54, %p55
    %p57 = scmp.ne.s32.totalorder %s48, %s49
    %p58 = scmp.eq.s32.totalorder %s17, 0
    %p59 = por %p57, %p58
    %p60 = scmp.ne.s32.totalorder %s48, %s49
    %p61 = scmp.eq.s32.totalorder %s18, 1
    %p62 = por %p60, %p61
    %p64 = scmp.ne.s32.totalorder %s49, %s63
    %p65 = scmp.eq.s32.totalorder %s18, 0
    %p66 = por %p64, %p65
    %s68 = sadd.s32 %s67, 1
    %p71 = scmp.eq.s32.totalorder %s12, 1
    %p72 = scmp.ne.s32.totalorder %s67, %s69
    %p73 = scmp.eq.s32.totalorder %s12, 0
    %p74 = por %p72, %p73
    %p75 = scmp.ne.s32.totalorder %s67, %s69
    %p76 = scmp.eq.s32.totalorder %s17, 1
    %p77 = por %p75, %p76
    %p78 = scmp.ne.s32.totalorder %s69, %s70
    %p79 = scmp.eq.s32.totalorder %s17, 0
    %p80 = por %p78, %p79
    %p81 = scmp.ne.s32.totalorder %s69, %s70
    %p82 = scmp.eq.s32.totalorder %s18, 1
    %p83 = por %p81, %p82
    %p85 = scmp.ne.s32.totalorder %s70, %s84
    %p86 = scmp.eq.s32.totalorder %s18, 0
    %p87 = por %p85, %p86
    %s89 = sadd.s32 %s88, 1
    %p92 = scmp.eq.s32.totalorder %s12, 1
    %p93 = scmp.ne.s32.totalorder %s88, %s90
    %p94 = scmp.eq.s32.totalorder %s12, 0
    %p95 = por %p93, %p94
    %p96 = scmp.ne.s32.totalorder %s88, %s90
    %p97 = scmp.eq.s32.totalorder %s17, 1
    %p98 = por %p96, %p97
    %p99 = scmp.ne.s32.totalorder %s90, %s91
    %p100 = scmp.eq.s32.totalorder %s17, 0
    %p101 = por %p99, %p100
    %p102 = scmp.ne.s32.totalorder %s90, %s91
    %p103 = scmp.eq.s32.totalorder %s18, 1
    %p104 = por %p102, %p103
    %p106 = scmp.ne.s32.totalorder %s91, %s105
    %p107 = scmp.eq.s32.totalorder %s18, 0
    %p108 = por %p106, %p107
    %s110 = sadd.s32 %s109, 1
    %p113 = scmp.eq.s32.totalorder %s12, 1
    %p114 = scmp.ne.s32.totalorder %s109, %s111
    %p115 = scmp.eq.s32.totalorder %s12, 0
    %p116 = por %p114, %p115
    %p117 = scmp.ne.s32.totalorder %s109, %s111
    %p118 = scmp.eq.s32.totalorder %s17, 1
    %p119 = por %p117, %p118
    %p120 = scmp.ne.s32.totalorder %s111, %s112
    %p121 = scmp.eq.s32.totalorder %s17, 0
    %p122 = por %p120, %p121
    %p123 = scmp.ne.s32.totalorder %s111, %s112
    %p124 = scmp.eq.s32.totalorder %s18, 1
    %p125 = por %p123, %p124
    %p127 = scmp.ne.s32.totalorder %s112, %s126
    %p128 = scmp.eq.s32.totalorder %s18, 0
    %p129 = por %p127, %p128
    %s131 = sadd.s32 %s130, 1
    %p134 = scmp.eq.s32.totalorder %s12, 1
    %p135 = scmp.ne.s32.totalorder %s130, %s132
    %p136 = scmp.eq.s32.totalorder %s12, 0
    %p137 = por %p135, %p136
    %p138 = scmp.ne.s32.totalorder %s130, %s132
    %p139 = scmp.eq.s32.totalorder %s17, 1
    %p140 = por %p138, %p139
    %p141 = scmp.ne.s32.totalorder %s132, %s133
    %p142 = scmp.eq.s32.totalorder %s17, 0
    %p143 = por %p141, %p142
    %p144 = scmp.ne.s32.totalorder %s132, %s133
    %p145 = scmp.eq.s32.totalorder %s18, 1
    %p146 = por %p144, %p145
    %p148 = scmp.ne.s32.totalorder %s133, %s147
    %p149 = scmp.eq.s32.totalorder %s18, 0
    %p150 = por %p148, %p149
    %s151 = ssub.s32 %s12, %s19
    %p152 = scmp.eq.s32.totalorder %s151, 0
    %s154 = sadd.s32 %s153, 1
    %s155 = scalar_select %p152, %s153, %s154
    %p158 = pneg %p152
    %p159 = scmp.eq.s32.totalorder %s12, 1
    %p160 = por %p158, %p159
    %p161 = scmp.ne.s32.totalorder %s153, %s156
    %p162 = scmp.eq.s32.totalorder %s12, 0
    %p163 = por %p161, %p162
    %p164 = scmp.ne.s32.totalorder %s153, %s156
    %p165 = scmp.eq.s32.totalorder %s17, 1
    %p166 = por %p164, %p165
    %p167 = scmp.ne.s32.totalorder %s156, %s157
    %p168 = scmp.eq.s32.totalorder %s17, 0
    %p169 = por %p167, %p168
    %p170 = scmp.ne.s32.totalorder %s156, %s157
    %p171 = scmp.eq.s32.totalorder %s18, 1
    %p172 = por %p170, %p171
    %p174 = scmp.ne.s32.totalorder %s157, %s173
    %p175 = scmp.eq.s32.totalorder %s18, 0
    %p176 = por %p174, %p175
    %p177 = scmp.le.s32.totalorder 1, %s12
    %p178 = scmp.lt.s32.totalorder %s12, 3
    %p179 = pnand %p177, %p178
    %p180 = pneg %p179
    // Predicated region
    $region9: #{scorenet_forward.8} parent=5 // pred_check
      _
    $region10: #{scorenet_forward.8} parent=5 // pred_check_branch
      %182 = sbr.rel (%p179) target = $region12
    $region11: #{scorenet_forward.8} parent=5 // pred_region
      %s183 = ssub.s32 %s12, 1
      // Predicated region
      $region13: #{scorenet_forward.8} parent=11 // pred_check
        %p184 = pneg %p59
      $region14: #{scorenet_forward.8} parent=11 // pred_check_branch
        %186 = sbr.rel (%p184) target = $region16
      $region15: #{scorenet_forward.8} parent=11 // pred_region
        _
      $region16: #{scorenet_forward.8} parent=11 // pred_fallthru
        _
      // Predicated region
      $region17: #{scorenet_forward.8} parent=11 // pred_check
        %p187 = pneg %p80
      $region18: #{scorenet_forward.8} parent=11 // pred_check_branch
        %189 = sbr.rel (%p187) target = $region20
      $region19: #{scorenet_forward.8} parent=11 // pred_region
        _
      $region20: #{scorenet_forward.8} parent=11 // pred_fallthru
        _
      // Predicated region
      $region21: #{scorenet_forward.8} parent=11 // pred_check
        %p190 = pneg %p101
      $region22: #{scorenet_forward.8} parent=11 // pred_check_branch
        %192 = sbr.rel (%p190) target = $region24
      $region23: #{scorenet_forward.8} parent=11 // pred_region
        _
      $region24: #{scorenet_forward.8} parent=11 // pred_fallthru
        _
      // Predicated region
      $region25: #{scorenet_forward.8} parent=11 // pred_check
        %p193 = pneg %p122
      $region26: #{scorenet_forward.8} parent=11 // pred_check_branch
        %195 = sbr.rel (%p193) target = $region28
      $region27: #{scorenet_forward.8} parent=11 // pred_region
        _
      $region28: #{scorenet_forward.8} parent=11 // pred_fallthru
        _
      // Predicated region
      $region29: #{scorenet_forward.8} parent=11 // pred_check
        %p196 = pneg %p143
      $region30: #{scorenet_forward.8} parent=11 // pred_check_branch
        %198 = sbr.rel (%p196) target = $region32
      $region31: #{scorenet_forward.8} parent=11 // pred_region
        _
      $region32: #{scorenet_forward.8} parent=11 // pred_fallthru
        _
    $region12: #{scorenet_forward.8} parent=5 // pred_fallthru
      _
    %p199 = scmp.lt.s32.totalorder %s12, 2
    // Predicated region
    $region33: #{scorenet_forward.8} parent=5 // pred_check
      %p200 = pneg %p199
    $region34: #{scorenet_forward.8} parent=5 // pred_check_branch
      %202 = sbr.rel (%p200) target = $region36
    $region35: #{scorenet_forward.8} parent=5 // pred_region
      // Predicated region
      $region37: #{scorenet_forward.8} parent=35 // pred_check
        %p203 = pneg %p32
      $region38: #{scorenet_forward.8} parent=35 // pred_check_branch
        %205 = sbr.rel (%p203) target = $region40
      $region39: #{scorenet_forward.8} parent=35 // pred_region
        %p206 = scmp.lt.s32.totalorder %s12, 1
        %s207 = scalar_select %p206, %s12, 1
        %s208 = smul.addr %s207, 13
        %s209 = smul.addr %s208, 8
        %s210 = scalar_lea.vmem %s0, %s209
      $region40: #{scorenet_forward.8} parent=35 // pred_fallthru
        _
    $region36: #{scorenet_forward.8} parent=5 // pred_fallthru
      _
    %p211 = scmp.le.s32.totalorder 1, %s12
    %p212 = scmp.lt.s32.totalorder %s12, 3
    %p213 = pnand %p211, %p212
    %p214 = pneg %p213
    // Predicated region
    $region41: #{scorenet_forward.8} parent=5 // pred_check
      _
    $region42: #{scorenet_forward.8} parent=5 // pred_check_branch
      %216 = sbr.rel (%p213) target = $region44
    $region43: #{scorenet_forward.8} parent=5 // pred_region
      %s217 = ssub.s32 %s12, 1
      %p218 = scmp.lt.s32.totalorder %s17, 1
      %s219 = scalar_select %p218, %s17, 1
      %s220 = smul.addr %s219, 13
      %s221 = smul.addr %s220, 8
      %s222 = scalar_lea.vmem %s0, %s221
      %p223 = pneg %p38
      %p224 = pneg %p35
      %p225 = pneg %p59
      %p226 = pneg %p56
      %p227 = pneg %p80
      %p228 = pneg %p77
      %p229 = pneg %p101
      %p230 = pneg %p98
      %p231 = pneg %p122
      %p232 = pneg %p119
      %p233 = pneg %p143
      %p234 = pneg %p140
      %p235 = pneg %p169
      %p236 = pneg %p166
      %p237 = scmp.lt.s32.totalorder %s17, 1
      %s238 = scalar_select %p237, %s17, 1
      %s239 = smul.addr %s238, 13
      %s240 = smul.addr %s239, 4
      %s241 = scalar_lea.vmem %s6, %s240
      %p242 = scmp.lt.s32.totalorder %s17, 1
      %s243 = scalar_select %p242, %s17, 1
      %s244 = smul.addr %s243, 13
      %s245 = smul.addr %s244, 8
      %s246 = scalar_lea.vmem %s0, %s245
      %p247 = scmp.lt.s32.totalorder %s17, 1
      %s248 = scalar_select %p247, %s17, 1
      %s249 = smul.addr %s248, 13
      %s250 = smul.addr %s249, 4
      %s251 = scalar_lea.vmem %s6, %s250
      %v252 = vld [vmem:[%s246] sm:$0xff]
      %v253 = vld [vmem:[%s246 + $0x8] sm:$0xff]
      %v254 = vld [vmem:[%s246 + $0x10] sm:$0xff]
      %v255 = vld [vmem:[%s246 + $0x18] sm:$0xff]
      %v256 = vld [vmem:[%s246 + $0x20] sm:$0xff]
      %v257 = vld [vmem:[%s246 + $0x28] sm:$0xff]
      %v258 = vld [vmem:[%s246 + $0x30] sm:$0xff]
      %v259 = vld [vmem:[%s246 + $0x38] sm:$0xff]
      %v260 = vld [vmem:[%s246 + $0x40] sm:$0xff]
      %v261 = vld [vmem:[%s246 + $0x48] sm:$0xff]
      %v262 = vld [vmem:[%s246 + $0x50] sm:$0xff]
      %v263 = vld [vmem:[%s246 + $0x58] sm:$0xff]
      %v264 = vld [vmem:[%s246 + $0x60] sm:$0xf]
      %v265 = vld [vmem:[%s1] sm:$0xff]
      %v266 = vld [vmem:[%s1 + $0x8] sm:$0x1]
      %vm267 = vcmask 72704
      %v269 = vsel %vm267, %v252, 0
      %v272 = vsel %vm267, %v253, 0
      %v275 = vsel %vm267, %v254, 0
      %v278 = vsel %vm267, %v255, 0
      %v281 = vsel %vm267, %v256, 0
      %v284 = vsel %vm267, %v257, 0
      %v287 = vsel %vm267, %v258, 0
      %v290 = vsel %vm267, %v259, 0
      %v293 = vsel %vm267, %v260, 0
      %v296 = vsel %vm267, %v261, 0
      %v299 = vsel %vm267, %v262, 0
      %v302 = vsel %vm267, %v263, 0
      %v305 = vsel %vm267, %v264, 0
      %vm307 = vcmask 1040384
      %v309 = vsel %vm307, %v266, 0
      %311 = vmatpush.msra.mxu0 0.0
      %312 = vmatpush.msra.mxu0 0.0
      %313 = vmatpush.msra.mxu0 0.0
      %314 = vmatpush.msra.mxu0 0.0
      %315 = vmatpush.msra.mxu0 0.0
      %316 = vmatpush.msra.mxu0 0.0
      %317 = vmatpush.msra.mxu0 0.0
      %318 = vmatpush.msra.mxu0 0.0
      %319 = vmatpush.msra.mxu0 0.0
      %320 = vmatpush.msra.mxu0 0.0
      %321 = vmatpush.msra.mxu0 0.0
      %322 = vmatpush.msra.mxu0 0.0
      %323 = vmatpush.msra.mxu0 0.0
      %324 = vmatpush.msra.mxu0 0.0
      %325 = vmatpush.msra.mxu0 %v309
      %326 = vmatpush.msra.mxu0 %v265
      %327 = vmatmul.f32.gmra.mxu0 %v269
      %v328 = vpop.f32.mrf.mxu0
      %v329 = vadd.f32 0.0, %v328
      %330 = vmatmul.f32.gmra.mxu0 %v272
      %v331 = vpop.f32.mrf.mxu0
      %v332 = vadd.f32 0.0, %v331
      %333 = vmatmul.f32.gmra.mxu0 %v275
      %v334 = vpop.f32.mrf.mxu0
      %v335 = vadd.f32 0.0, %v334
      %336 = vmatmul.f32.gmra.mxu0 %v278
      %v337 = vpop.f32.mrf.mxu0
      %v338 = vadd.f32 0.0, %v337
      %339 = vmatmul.f32.gmra.mxu0 %v281
      %v340 = vpop.f32.mrf.mxu0
      %v341 = vadd.f32 0.0, %v340
      %342 = vmatmul.f32.gmra.mxu0 %v284
      %v343 = vpop.f32.mrf.mxu0
      %v344 = vadd.f32 0.0, %v343
      %345 = vmatmul.f32.gmra.mxu0 %v287
      %v346 = vpop.f32.mrf.mxu0
      %v347 = vadd.f32 0.0, %v346
      %348 = vmatmul.f32.gmra.mxu0 %v290
      %v349 = vpop.f32.mrf.mxu0
      %v350 = vadd.f32 0.0, %v349
      %351 = vmatmul.f32.gmra.mxu0 %v293
      %v352 = vpop.f32.mrf.mxu0
      %v353 = vadd.f32 0.0, %v352
      %354 = vmatmul.f32.gmra.mxu0 %v296
      %v355 = vpop.f32.mrf.mxu0
      %v356 = vadd.f32 0.0, %v355
      %357 = vmatmul.f32.gmra.mxu0 %v299
      %v358 = vpop.f32.mrf.mxu0
      %v359 = vadd.f32 0.0, %v358
      %360 = vmatmul.f32.gmra.mxu0 %v302
      %v361 = vpop.f32.mrf.mxu0
      %v362 = vadd.f32 0.0, %v361
      %363 = vmatmul.f32.gmra.mxu0 %v305
      %v364 = vpop.f32.mrf.mxu0
      %v365 = vadd.f32 0.0, %v364
      %366 = vdwg.mxu0
      %vm367 = vcmask 261120
      %v368 = vsel %vm367, %v329, 0.0
      %v369 = vsel %vm367, %v332, 0.0
      %v370 = vadd.f32 %v368, %v369
      %v371 = vsel %vm367, %v335, 0.0
      %v372 = vadd.f32 %v370, %v371
      %v373 = vsel %vm367, %v338, 0.0
      %v374 = vadd.f32 %v372, %v373
      %v375 = vsel %vm367, %v341, 0.0
      %v376 = vadd.f32 %v374, %v375
      %v377 = vsel %vm367, %v344, 0.0
      %v378 = vadd.f32 %v376, %v377
      %v379 = vsel %vm367, %v347, 0.0
      %v380 = vadd.f32 %v378, %v379
      %v381 = vsel %vm367, %v350, 0.0
      %v382 = vadd.f32 %v380, %v381
      %v383 = vsel %vm367, %v353, 0.0
      %v384 = vadd.f32 %v382, %v383
      %v385 = vsel %vm367, %v356, 0.0
      %v386 = vadd.f32 %v384, %v385
      %v387 = vsel %vm367, %v359, 0.0
      %v388 = vadd.f32 %v386, %v387
      %v389 = vsel %vm367, %v362, 0.0
      %v390 = vadd.f32 %v388, %v389
      %vm391 = vcmask 257024
      %v392 = vsel %vm391, %v365, 0.0
      %v393 = vadd.f32 %v390, %v392
      %v394 = vrot.slane %v393, 4
      %v395 = vadd.f32 %v393, %v394
      %v396 = vrot.slane %v395, 2
      %v397 = vadd.f32 %v395, %v396
      %v398 = vrot.slane %v397, 1
      %v399 = vadd.f32 %v397, %v398
      %v400 = vmul.f32 %v329, %v329
      %v401 = vmul.f32 %v332, %v332
      %v402 = vmul.f32 %v335, %v335
      %v403 = vmul.f32 %v338, %v338
      %v404 = vmul.f32 %v341, %v341
      %v405 = vmul.f32 %v344, %v344
      %v406 = vmul.f32 %v347, %v347
      %v407 = vmul.f32 %v350, %v350
      %v408 = vmul.f32 %v353, %v353
      %v409 = vmul.f32 %v356, %v356
      %v410 = vmul.f32 %v359, %v359
      %v411 = vmul.f32 %v362, %v362
      %v412 = vmul.f32 %v365, %v365
      %v413 = vsel %vm367, %v400, 0.0
      %v414 = vsel %vm367, %v401, 0.0
      %v415 = vadd.f32 %v413, %v414
      %v416 = vsel %vm367, %v402, 0.0
      %v417 = vadd.f32 %v415, %v416
      %v418 = vsel %vm367, %v403, 0.0
      %v419 = vadd.f32 %v417, %v418
      %v420 = vsel %vm367, %v404, 0.0
      %v421 = vadd.f32 %v419, %v420
      %v422 = vsel %vm367, %v405, 0.0
      %v423 = vadd.f32 %v421, %v422
      %v424 = vsel %vm367, %v406, 0.0
      %v425 = vadd.f32 %v423, %v424
      %v426 = vsel %vm367, %v407, 0.0
      %v427 = vadd.f32 %v425, %v426
      %v428 = vsel %vm367, %v408, 0.0
      %v429 = vadd.f32 %v427, %v428
      %v430 = vsel %vm367, %v409, 0.0
      %v431 = vadd.f32 %v429, %v430
      %v432 = vsel %vm367, %v410, 0.0
      %v433 = vadd.f32 %v431, %v432
      %v434 = vsel %vm367, %v411, 0.0
      %v435 = vadd.f32 %v433, %v434
      %v436 = vsel %vm391, %v412, 0.0
      %v437 = vadd.f32 %v435, %v436
      %v438 = vrot.slane %v437, 4
      %v439 = vadd.f32 %v437, %v438
      %v440 = vrot.slane %v439, 2
      %v441 = vadd.f32 %v439, %v440
      %v442 = vrot.slane %v441, 1
      %v443 = vadd.f32 %v441, %v442
      %445 = vrot.lane.b32.xlu0 %v443, 32
      %v446 = vpop.permute.xlu0 %445
      %v448 = vsel %vm367, %v399, %v446
      %v449 = vld [vmem:[%s2] sm:$0xff]
      %v450 = vld [vmem:[%s2 + $0x8] sm:$0xff]
      %v451 = vld [vmem:[%s2 + $0x10] sm:$0xff]
      %v452 = vld [vmem:[%s2 + $0x18] sm:$0xff]
      %v453 = vld [vmem:[%s2 + $0x20] sm:$0xff]
      %v454 = vld [vmem:[%s2 + $0x28] sm:$0xff]
      %v455 = vld [vmem:[%s2 + $0x30] sm:$0xff]
      %v456 = vld [vmem:[%s2 + $0x38] sm:$0xff]
      %vm457 = vcmask 523264
      %v459 = vsel %vm457, %v448, 0
      %461 = vmatpush.msra.mxu0 0.0
      %462 = vmatpush.msra.mxu0 0.0
      %463 = vmatpush.msra.mxu0 0.0
      %464 = vmatpush.msra.mxu0 0.0
      %465 = vmatpush.msra.mxu0 0.0
      %466 = vmatpush.msra.mxu0 0.0
      %467 = vmatpush.msra.mxu0 0.0
      %468 = vmatpush.msra.mxu0 0.0
      %469 = vmatpush.msra.mxu0 %v456
      %470 = vmatpush.msra.mxu0 %v455
      %471 = vmatpush.msra.mxu0 %v454
      %472 = vmatpush.msra.mxu0 %v453
      %473 = vmatpush.msra.mxu0 %v452
      %474 = vmatpush.msra.mxu0 %v451
      %475 = vmatpush.msra.mxu0 %v450
      %476 = vmatpush.msra.mxu0 %v449
      %477 = vmatmul.f32.gmra.mxu0 %v459
      %v478 = vpop.f32.mrf.mxu0
      %v479 = vadd.f32 0.0, %v478
      %480 = vdwg.mxu0
      %v481 = vmul.f32 %v479, 0.00125
      %v482 = vmul.f32 %v481, %v481
      %484 = vrot.lane.b32.xlu0 %v482, 4
      %v485 = vpop.permute.xlu0 %484
      %v487 = vsub.f32 %v481, %v485
      %v488 = vmax.f32 %v487, 0.0
      %v489 = vadd.f32 %v488, 1e-05
      %v490 = vrsqrt.pop %v489
      %v491 = vmul.f32 %v490, %v489
      %v492 = vmul.f32 %v491, %v490
      %v493 = vmul.f32 0.5, %v492
      %v494 = vsub.f32 1.5, %v493
      %v495 = vmul.f32 %v490, %v494
      %vm496 = vweird.f32 %v489
      %vm497 = vweird.f32 %v490
      %vm498 = vmor %vm496, %vm497
      %v499 = vsel %vm498, %v490, %v495
      %vm500 = vcmask 31744
      %v501 = vsel %vm500, %v481, %v499
      %v502 = vld [vmem:[%s3] sm:$0xff]
      %vm503 = vcmask 64512
      %v505 = vsel %vm503, %v501, 0
      %507 = vmatpush.msra.mxu0 0.0
      %508 = vmatpush.msra.mxu0 0.0
      %509 = vmatpush.msra.mxu0 0.0
      %510 = vmatpush.msra.mxu0 0.0
      %511 = vmatpush.msra.mxu0 0.0
      %512 = vmatpush.msra.mxu0 0.0
      %513 = vmatpush.msra.mxu0 0.0
      %514 = vmatpush.msra.mxu0 0.0
      %515 = vmatpush.msra.mxu0 0.0
      %516 = vmatpush.msra.mxu0 0.0
      %517 = vmatpush.msra.mxu0 0.0
      %518 = vmatpush.msra.mxu0 0.0
      %519 = vmatpush.msra.mxu0 0.0
      %520 = vmatpush.msra.mxu0 0.0
      %521 = vmatpush.msra.mxu0 0.0
      %522 = vmatpush.msra.mxu0 %v502
      %523 = vmatmul.f32.gmra.mxu0 %v505
      %v524 = vpop.f32.mrf.mxu0
      %v525 = vadd.f32 0.0, %v524
      %526 = vdwg.mxu0
      %v527 = vld [vmem:[%s4] sm:$0x1]
      %529 = vrot.lane.b32.xlu0 %v525, 96
      %v530 = vpop.permute.xlu0 %529
      %v532 = vmul.f32 %v527, %v530
      %v533 = vld [vmem:[%s5] sm:$0x1]
      %v534 = vmul.f32 %v525, %v532
      %v535 = vsub.f32 %v533, %v534
      %v537 = vperm.slane %v532, 0
      %v539 = vmul.f32 %v329, %v537
      %v540 = vmul.f32 %v332, %v537
      %v541 = vmul.f32 %v335, %v537
      %v542 = vmul.f32 %v338, %v537
      %v543 = vmul.f32 %v341, %v537
      %v544 = vmul.f32 %v344, %v537
      %v545 = vmul.f32 %v347, %v537
      %v546 = vmul.f32 %v350, %v537
      %v547 = vmul.f32 %v353, %v537
      %v548 = vmul.f32 %v356, %v537
      %v549 = vmul.f32 %v359, %v537
      %v550 = vmul.f32 %v362, %v537
      %v551 = vmul.f32 %v365, %v537
      %v553 = vperm.slane %v535, 0
      %v555 = vadd.f32 %v539, %v553
      %v556 = vadd.f32 %v540, %v553
      %v557 = vadd.f32 %v541, %v553
      %v558 = vadd.f32 %v542, %v553
      %v559 = vadd.f32 %v543, %v553
      %v560 = vadd.f32 %v544, %v553
      %v561 = vadd.f32 %v545, %v553
      %v562 = vadd.f32 %v546, %v553
      %v563 = vadd.f32 %v547, %v553
      %v564 = vadd.f32 %v548, %v553
      %v565 = vadd.f32 %v549, %v553
      %v566 = vadd.f32 %v550, %v553
      %v567 = vadd.f32 %v551, %v553
      %v568 = vmul.f32 %v555, 0.5
      %v569 = vmul.f32 %v556, 0.5
      %v570 = vmul.f32 %v557, 0.5
      %v571 = vmul.f32 %v558, 0.5
      %v572 = vmul.f32 %v559, 0.5
      %v573 = vmul.f32 %v560, 0.5
      %v574 = vmul.f32 %v561, 0.5
      %v575 = vmul.f32 %v562, 0.5
      %v576 = vmul.f32 %v563, 0.5
      %v577 = vmul.f32 %v564, 0.5
      %v578 = vmul.f32 %v565, 0.5
      %v579 = vmul.f32 %v566, 0.5
      %v580 = vmul.f32 %v567, 0.5
      %v581 = vtanh.pop %v568
      %v582 = vtanh.pop %v569
      %v583 = vtanh.pop %v570
      %v584 = vtanh.pop %v571
      %v585 = vtanh.pop %v572
      %v586 = vtanh.pop %v573
      %v587 = vtanh.pop %v574
      %v588 = vtanh.pop %v575
      %v589 = vtanh.pop %v576
      %v590 = vtanh.pop %v577
      %v591 = vtanh.pop %v578
      %v592 = vtanh.pop %v579
      %v593 = vtanh.pop %v580
      %v594 = vmul.f32 %v581, 0.5
      %v595 = vmul.f32 %v582, 0.5
      %v596 = vmul.f32 %v583, 0.5
      %v597 = vmul.f32 %v584, 0.5
      %v598 = vmul.f32 %v585, 0.5
      %v599 = vmul.f32 %v586, 0.5
      %v600 = vmul.f32 %v587, 0.5
      %v601 = vmul.f32 %v588, 0.5
      %v602 = vmul.f32 %v589, 0.5
      %v603 = vmul.f32 %v590, 0.5
      %v604 = vmul.f32 %v591, 0.5
      %v605 = vmul.f32 %v592, 0.5
      %v606 = vmul.f32 %v593, 0.5
      %v607 = vadd.f32 %v594, 0.5
      %v608 = vadd.f32 %v595, 0.5
      %v609 = vadd.f32 %v596, 0.5
      %v610 = vadd.f32 %v597, 0.5
      %v611 = vadd.f32 %v598, 0.5
      %v612 = vadd.f32 %v599, 0.5
      %v613 = vadd.f32 %v600, 0.5
      %v614 = vadd.f32 %v601, 0.5
      %v615 = vadd.f32 %v602, 0.5
      %v616 = vadd.f32 %v603, 0.5
      %v617 = vadd.f32 %v604, 0.5
      %v618 = vadd.f32 %v605, 0.5
      %v619 = vadd.f32 %v606, 0.5
      %v620 = vmul.f32 %v555, %v607
      %v621 = vmul.f32 %v556, %v608
      %v622 = vmul.f32 %v557, %v609
      %v623 = vmul.f32 %v558, %v610
      %v624 = vmul.f32 %v559, %v611
      %v625 = vmul.f32 %v560, %v612
      %v626 = vmul.f32 %v561, %v613
      %v627 = vmul.f32 %v562, %v614
      %v628 = vmul.f32 %v563, %v615
      %v629 = vmul.f32 %v564, %v616
      %v630 = vmul.f32 %v565, %v617
      %v631 = vmul.f32 %v566, %v618
      %v632 = vmul.f32 %v567, %v619
      %v633 = vpack.c.bf16 %v620, %v620
      %v634 = vpack.c.bf16 %v621, %v621
      %v635 = vpack.c.bf16 %v622, %v622
      %v636 = vpack.c.bf16 %v623, %v623
      %v637 = vpack.c.bf16 %v624, %v624
      %v638 = vpack.c.bf16 %v625, %v625
      %v639 = vpack.c.bf16 %v626, %v626
      %v640 = vpack.c.bf16 %v627, %v627
      %v641 = vpack.c.bf16 %v628, %v628
      %v642 = vpack.c.bf16 %v629, %v629
      %v643 = vpack.c.bf16 %v630, %v630
      %v644 = vpack.c.bf16 %v631, %v631
      %v645 = vpack.c.bf16 %v632, %v632
      %646 = vst.msk [vmem:[%s251] sm:$0xf] %vm391, %v633
      %647 = vst.msk [vmem:[%s251 + $0x4] sm:$0xf] %vm391, %v634
      %648 = vst.msk [vmem:[%s251 + $0x8] sm:$0xf] %vm391, %v635
      %649 = vst.msk [vmem:[%s251 + $0xc] sm:$0xf] %vm391, %v636
      %650 = vst.msk [vmem:[%s251 + $0x10] sm:$0xf] %vm391, %v637
      %651 = vst.msk [vmem:[%s251 + $0x14] sm:$0xf] %vm391, %v638
      %652 = vst.msk [vmem:[%s251 + $0x18] sm:$0xf] %vm391, %v639
      %653 = vst.msk [vmem:[%s251 + $0x1c] sm:$0xf] %vm391, %v640
      %654 = vst.msk [vmem:[%s251 + $0x20] sm:$0xf] %vm391, %v641
      %655 = vst.msk [vmem:[%s251 + $0x24] sm:$0xf] %vm391, %v642
      %656 = vst.msk [vmem:[%s251 + $0x28] sm:$0xf] %vm391, %v643
      %657 = vst.msk [vmem:[%s251 + $0x2c] sm:$0xf] %vm391, %v644
      %vm658 = vcmask 254976
      %659 = vst.msk [vmem:[%s251 + $0x30] sm:$0x3] %vm658, %v645
      %p660 = scmp.lt.s32.totalorder %s17, 1
      %s661 = scalar_select %p660, %s17, 1
      %s662 = smul.addr %s661, 13
      %s663 = smul.addr %s662, 4
      %s664 = scalar_lea.vmem %s6, %s663
      // Predicated region
      $region45: #{scorenet_forward.8} parent=43 // pred_check
        %p665 = pneg %p166
      $region46: #{scorenet_forward.8} parent=43 // pred_check_branch
        %667 = sbr.rel (%p665) target = $region48
      $region47: #{scorenet_forward.8} parent=43 // pred_region
        _
      $region48: #{scorenet_forward.8} parent=43 // pred_fallthru
        _
    $region44: #{scorenet_forward.8} parent=5 // pred_fallthru
      _
    %p668 = scmp.le.s32.totalorder 2, %s12
    // Predicated region
    $region49: #{scorenet_forward.8} parent=5 // pred_check
      %p669 = pneg %p668
    $region50: #{scorenet_forward.8} parent=5 // pred_check_branch
      %671 = sbr.rel (%p669) target = $region52
    $region51: #{scorenet_forward.8} parent=5 // pred_region
      %s672 = ssub.s32 %s12, 2
      // Predicated region
      $region53: #{scorenet_forward.8} parent=51 // pred_check
        %p673 = pneg %p172
      $region54: #{scorenet_forward.8} parent=51 // pred_check_branch
        %675 = sbr.rel (%p673) target = $region56
      $region55: #{scorenet_forward.8} parent=51 // pred_region
        %p676 = scmp.lt.s32.totalorder %s18, 1
        %s677 = scalar_select %p676, %s18, 1
        %s678 = smul.addr %s677, 13
        %s679 = smul.addr %s678, 4
        %s680 = scalar_lea.vmem %s6, %s679
      $region56: #{scorenet_forward.8} parent=51 // pred_fallthru
        _
    $region52: #{scorenet_forward.8} parent=5 // pred_fallthru
      _
  $region6: #{scorenet_forward.8} parent=0 // loop_footer
    %s16 = sadd.s32 1, %s12
  $region7: #{scorenet_forward.8} parent=0 // loop_footer_branch
    %11 = sbr.rel target = $region3
  $region8: #{scorenet_forward.8} parent=0 // loop_exit
    _

// kernel: scorenet_forward.9
$region0: #{scorenet_forward.9}
  #allocation0 [shape = 'u32[]', space=smem, size = 0x4, offset = 0x4, fixed_abs, tag = 'smem constant byte address 0x4 - core index']
  #allocation1 [shape = 'u32[72,128]{1,0:T(1,128)}', space=vmem, size = 0x9000, scoped, tag = 'internal scratch']
  %s0 = inlined_call_operand.vmem [shape: bf16[2,25,288], index: 0, kind: input, shape index: {}]
  %s1 = inlined_call_operand.vmem [shape: bf16[288,64], index: 1, kind: input, shape index: {}]
  %s2 = inlined_call_operand.vmem [shape: f32[128,64], index: 2, kind: input, shape index: {}]
  %s3 = inlined_call_operand.vmem [shape: f32[64,128], index: 3, kind: input, shape index: {}]
  %s4 = inlined_call_operand.vmem [shape: f32[1,64], index: 4, kind: input, shape index: {}]
  %s5 = inlined_call_operand.vmem [shape: f32[1,64], index: 5, kind: input, shape index: {}]
  %s6 = inlined_call_operand.vmem [shape: bf16[2,25,64], index: 6, kind: output, shape index: {}]
  %s7 = sld [smem:[#allocation0]]
  $region57: #{scorenet_forward.9} parent=0
    _
  %s9 = ssub.s32 1, %s7
  %s10 = scalar_select 0, %s9, %s7
  loop: start=0, step=1, limit=4
  $region2: #{scorenet_forward.9} parent=0 // loop_pre_header
    _
  $region3: #{scorenet_forward.9} parent=0 // loop_header
    %s12 = sphi 0, %s16
    %p13 = scmp.ge.s32.totalorder %s12, 4
    %s22 = sphi 0, %s24
    %s25 = sphi 0, %s22
    %s26 = sphi 0, %s25
    %s42 = sphi 0, %s26
    %s46 = sphi 0, %s46
    %s48 = sphi 0, %s46
    %s49 = sphi 0, %s48
    %s63 = sphi 0, %s49
    %s67 = sphi 0, %s67
    %s69 = sphi 0, %s67
    %s70 = sphi 0, %s69
    %s84 = sphi 0, %s70
    %s88 = sphi 0, %s88
    %s90 = sphi 0, %s88
    %s91 = sphi 0, %s90
    %s105 = sphi 0, %s91
    %s109 = sphi 0, %s109
    %s111 = sphi 0, %s109
    %s112 = sphi 0, %s111
    %s126 = sphi 0, %s112
    %s130 = sphi 0, %s130
    %s132 = sphi 0, %s130
    %s133 = sphi 0, %s132
    %s147 = sphi 0, %s133
    %s153 = sphi 0, %s155
    %s156 = sphi 0, %s153
    %s157 = sphi 0, %s156
    %s173 = sphi 0, %s157
  $region4: #{scorenet_forward.9} parent=0 // loop_header_branch
    %15 = sbr.rel (%p13) target = $region8
  $region5: #{scorenet_forward.9} parent=0 // loop_body
    %s17 = ssub.s32 %s12, 1
    %s18 = ssub.s32 %s12, 2
    %s19 = sadd.s32 %s12, 1
    %s20 = ssub.s32 %s12, %s19
    %p21 = scmp.eq.s32.totalorder %s20, 0
    %s23 = sadd.s32 %s22, 1
    %s24 = scalar_select %p21, %s22, %s23
    %p27 = pneg %p21
    %p28 = scmp.eq.s32.totalorder %s12, 1
    %p29 = por %p27, %p28
    %p30 = scmp.ne.s32.totalorder %s22, %s25
    %p31 = scmp.eq.s32.totalorder %s12, 0
    %p32 = por %p30, %p31
    %p33 = scmp.ne.s32.totalorder %s22, %s25
    %p34 = scmp.eq.s32.totalorder %s17, 1
    %p35 = por %p33, %p34
    %p36 = scmp.ne.s32.totalorder %s25, %s26
    %p37 = scmp.eq.s32.totalorder %s17, 0
    %p38 = por %p36, %p37
    %p39 = scmp.ne.s32.totalorder %s25, %s26
    %p40 = scmp.eq.s32.totalorder %s18, 1
    %p41 = por %p39, %p40
    %p43 = scmp.ne.s32.totalorder %s26, %s42
    %p44 = scmp.eq.s32.totalorder %s18, 0
    %p45 = por %p43, %p44
    %s47 = sadd.s32 %s46, 1
    %p50 = scmp.eq.s32.totalorder %s12, 1
    %p51 = scmp.ne.s32.totalorder %s46, %s48
    %p52 = scmp.eq.s32.totalorder %s12, 0
    %p53 = por %p51, %p52
    %p54 = scmp.ne.s32.totalorder %s46, %s48
    %p55 = scmp.eq.s32.totalorder %s17, 1
    %p56 = por %p54, %p55
    %p57 = scmp.ne.s32.totalorder %s48, %s49
    %p58 = scmp.eq.s32.totalorder %s17, 0
    %p59 = por %p57, %p58
    %p60 = scmp.ne.s32.totalorder %s48, %s49
    %p61 = scmp.eq.s32.totalorder %s18, 1
    %p62 = por %p60, %p61
    %p64 = scmp.ne.s32.totalorder %s49, %s63
    %p65 = scmp.eq.s32.totalorder %s18, 0
    %p66 = por %p64, %p65
    %s68 = sadd.s32 %s67, 1
    %p71 = scmp.eq.s32.totalorder %s12, 1
    %p72 = scmp.ne.s32.totalorder %s67, %s69
    %p73 = scmp.eq.s32.totalorder %s12, 0
    %p74 = por %p72, %p73
    %p75 = scmp.ne.s32.totalorder %s67, %s69
    %p76 = scmp.eq.s32.totalorder %s17, 1
    %p77 = por %p75, %p76
    %p78 = scmp.ne.s32.totalorder %s69, %s70
    %p79 = scmp.eq.s32.totalorder %s17, 0
    %p80 = por %p78, %p79
    %p81 = scmp.ne.s32.totalorder %s69, %s70
    %p82 = scmp.eq.s32.totalorder %s18, 1
    %p83 = por %p81, %p82
    %p85 = scmp.ne.s32.totalorder %s70, %s84
    %p86 = scmp.eq.s32.totalorder %s18, 0
    %p87 = por %p85, %p86
    %s89 = sadd.s32 %s88, 1
    %p92 = scmp.eq.s32.totalorder %s12, 1
    %p93 = scmp.ne.s32.totalorder %s88, %s90
    %p94 = scmp.eq.s32.totalorder %s12, 0
    %p95 = por %p93, %p94
    %p96 = scmp.ne.s32.totalorder %s88, %s90
    %p97 = scmp.eq.s32.totalorder %s17, 1
    %p98 = por %p96, %p97
    %p99 = scmp.ne.s32.totalorder %s90, %s91
    %p100 = scmp.eq.s32.totalorder %s17, 0
    %p101 = por %p99, %p100
    %p102 = scmp.ne.s32.totalorder %s90, %s91
    %p103 = scmp.eq.s32.totalorder %s18, 1
    %p104 = por %p102, %p103
    %p106 = scmp.ne.s32.totalorder %s91, %s105
    %p107 = scmp.eq.s32.totalorder %s18, 0
    %p108 = por %p106, %p107
    %s110 = sadd.s32 %s109, 1
    %p113 = scmp.eq.s32.totalorder %s12, 1
    %p114 = scmp.ne.s32.totalorder %s109, %s111
    %p115 = scmp.eq.s32.totalorder %s12, 0
    %p116 = por %p114, %p115
    %p117 = scmp.ne.s32.totalorder %s109, %s111
    %p118 = scmp.eq.s32.totalorder %s17, 1
    %p119 = por %p117, %p118
    %p120 = scmp.ne.s32.totalorder %s111, %s112
    %p121 = scmp.eq.s32.totalorder %s17, 0
    %p122 = por %p120, %p121
    %p123 = scmp.ne.s32.totalorder %s111, %s112
    %p124 = scmp.eq.s32.totalorder %s18, 1
    %p125 = por %p123, %p124
    %p127 = scmp.ne.s32.totalorder %s112, %s126
    %p128 = scmp.eq.s32.totalorder %s18, 0
    %p129 = por %p127, %p128
    %s131 = sadd.s32 %s130, 1
    %p134 = scmp.eq.s32.totalorder %s12, 1
    %p135 = scmp.ne.s32.totalorder %s130, %s132
    %p136 = scmp.eq.s32.totalorder %s12, 0
    %p137 = por %p135, %p136
    %p138 = scmp.ne.s32.totalorder %s130, %s132
    %p139 = scmp.eq.s32.totalorder %s17, 1
    %p140 = por %p138, %p139
    %p141 = scmp.ne.s32.totalorder %s132, %s133
    %p142 = scmp.eq.s32.totalorder %s17, 0
    %p143 = por %p141, %p142
    %p144 = scmp.ne.s32.totalorder %s132, %s133
    %p145 = scmp.eq.s32.totalorder %s18, 1
    %p146 = por %p144, %p145
    %p148 = scmp.ne.s32.totalorder %s133, %s147
    %p149 = scmp.eq.s32.totalorder %s18, 0
    %p150 = por %p148, %p149
    %s151 = ssub.s32 %s12, %s19
    %p152 = scmp.eq.s32.totalorder %s151, 0
    %s154 = sadd.s32 %s153, 1
    %s155 = scalar_select %p152, %s153, %s154
    %p158 = pneg %p152
    %p159 = scmp.eq.s32.totalorder %s12, 1
    %p160 = por %p158, %p159
    %p161 = scmp.ne.s32.totalorder %s153, %s156
    %p162 = scmp.eq.s32.totalorder %s12, 0
    %p163 = por %p161, %p162
    %p164 = scmp.ne.s32.totalorder %s153, %s156
    %p165 = scmp.eq.s32.totalorder %s17, 1
    %p166 = por %p164, %p165
    %p167 = scmp.ne.s32.totalorder %s156, %s157
    %p168 = scmp.eq.s32.totalorder %s17, 0
    %p169 = por %p167, %p168
    %p170 = scmp.ne.s32.totalorder %s156, %s157
    %p171 = scmp.eq.s32.totalorder %s18, 1
    %p172 = por %p170, %p171
    %p174 = scmp.ne.s32.totalorder %s157, %s173
    %p175 = scmp.eq.s32.totalorder %s18, 0
    %p176 = por %p174, %p175
    %p177 = scmp.le.s32.totalorder 1, %s12
    %p178 = scmp.lt.s32.totalorder %s12, 3
    %p179 = pnand %p177, %p178
    %p180 = pneg %p179
    // Predicated region
    $region9: #{scorenet_forward.9} parent=5 // pred_check
      _
    $region10: #{scorenet_forward.9} parent=5 // pred_check_branch
      %182 = sbr.rel (%p179) target = $region12
    $region11: #{scorenet_forward.9} parent=5 // pred_region
      %s183 = ssub.s32 %s12, 1
      // Predicated region
      $region13: #{scorenet_forward.9} parent=11 // pred_check
        %p184 = pneg %p59
      $region14: #{scorenet_forward.9} parent=11 // pred_check_branch
        %186 = sbr.rel (%p184) target = $region16
      $region15: #{scorenet_forward.9} parent=11 // pred_region
        _
      $region16: #{scorenet_forward.9} parent=11 // pred_fallthru
        _
      // Predicated region
      $region17: #{scorenet_forward.9} parent=11 // pred_check
        %p187 = pneg %p80
      $region18: #{scorenet_forward.9} parent=11 // pred_check_branch
        %189 = sbr.rel (%p187) target = $region20
      $region19: #{scorenet_forward.9} parent=11 // pred_region
        _
      $region20: #{scorenet_forward.9} parent=11 // pred_fallthru
        _
      // Predicated region
      $region21: #{scorenet_forward.9} parent=11 // pred_check
        %p190 = pneg %p101
      $region22: #{scorenet_forward.9} parent=11 // pred_check_branch
        %192 = sbr.rel (%p190) target = $region24
      $region23: #{scorenet_forward.9} parent=11 // pred_region
        _
      $region24: #{scorenet_forward.9} parent=11 // pred_fallthru
        _
      // Predicated region
      $region25: #{scorenet_forward.9} parent=11 // pred_check
        %p193 = pneg %p122
      $region26: #{scorenet_forward.9} parent=11 // pred_check_branch
        %195 = sbr.rel (%p193) target = $region28
      $region27: #{scorenet_forward.9} parent=11 // pred_region
        _
      $region28: #{scorenet_forward.9} parent=11 // pred_fallthru
        _
      // Predicated region
      $region29: #{scorenet_forward.9} parent=11 // pred_check
        %p196 = pneg %p143
      $region30: #{scorenet_forward.9} parent=11 // pred_check_branch
        %198 = sbr.rel (%p196) target = $region32
      $region31: #{scorenet_forward.9} parent=11 // pred_region
        _
      $region32: #{scorenet_forward.9} parent=11 // pred_fallthru
        _
    $region12: #{scorenet_forward.9} parent=5 // pred_fallthru
      _
    %p199 = scmp.lt.s32.totalorder %s12, 2
    // Predicated region
    $region33: #{scorenet_forward.9} parent=5 // pred_check
      %p200 = pneg %p199
    $region34: #{scorenet_forward.9} parent=5 // pred_check_branch
      %202 = sbr.rel (%p200) target = $region36
    $region35: #{scorenet_forward.9} parent=5 // pred_region
      // Predicated region
      $region37: #{scorenet_forward.9} parent=35 // pred_check
        %p203 = pneg %p32
      $region38: #{scorenet_forward.9} parent=35 // pred_check_branch
        %205 = sbr.rel (%p203) target = $region40
      $region39: #{scorenet_forward.9} parent=35 // pred_region
        %p206 = scmp.lt.s32.totalorder %s12, 1
        %s207 = scalar_select %p206, %s12, 1
        %s208 = smul.addr %s207, 12
        %s209 = smul.addr %s208, 4
        %s210 = scalar_lea.vmem %s0, %s209
      $region40: #{scorenet_forward.9} parent=35 // pred_fallthru
        _
    $region36: #{scorenet_forward.9} parent=5 // pred_fallthru
      _
    %p211 = scmp.le.s32.totalorder 1, %s12
    %p212 = scmp.lt.s32.totalorder %s12, 3
    %p213 = pnand %p211, %p212
    %p214 = pneg %p213
    // Predicated region
    $region41: #{scorenet_forward.9} parent=5 // pred_check
      _
    $region42: #{scorenet_forward.9} parent=5 // pred_check_branch
      %216 = sbr.rel (%p213) target = $region44
    $region43: #{scorenet_forward.9} parent=5 // pred_region
      %s217 = ssub.s32 %s12, 1
      %p218 = scmp.lt.s32.totalorder %s17, 1
      %s219 = scalar_select %p218, %s17, 1
      %s220 = smul.addr %s219, 12
      %s221 = smul.addr %s220, 4
      %s222 = scalar_lea.vmem %s0, %s221
      %p223 = pneg %p38
      %p224 = pneg %p35
      %p225 = pneg %p59
      %p226 = pneg %p56
      %p227 = pneg %p80
      %p228 = pneg %p77
      %p229 = pneg %p101
      %p230 = pneg %p98
      %p231 = pneg %p122
      %p232 = pneg %p119
      %p233 = pneg %p143
      %p234 = pneg %p140
      %p235 = pneg %p169
      %p236 = pneg %p166
      %p237 = scmp.lt.s32.totalorder %s17, 1
      %s238 = scalar_select %p237, %s17, 1
      %s239 = smul.addr %s238, 4
      %s240 = smul.addr %s239, 4
      %s241 = scalar_lea.vmem %s6, %s240
      %p242 = scmp.lt.s32.totalorder %s17, 1
      %s243 = scalar_select %p242, %s17, 1
      %s244 = smul.addr %s243, 12
      %s245 = smul.addr %s244, 4
      %s246 = scalar_lea.vmem %s0, %s245
      %p247 = scmp.lt.s32.totalorder %s17, 1
      %s248 = scalar_select %p247, %s17, 1
      %s249 = smul.addr %s248, 4
      %s250 = smul.addr %s249, 4
      %s251 = scalar_lea.vmem %s6, %s250
      %v253 = vld [vmem:[%s246] sm:$0xff]
      %v254 = vld [vmem:[%s246 + $0x8] sm:$0xf]
      %v255 = vld [vmem:[%s246 + $0xc] sm:$0xff]
      %v256 = vld [vmem:[%s246 + $0x14] sm:$0xf]
      %v257 = vld [vmem:[%s246 + $0x18] sm:$0xff]
      %v258 = vld [vmem:[%s246 + $0x20] sm:$0xf]
      %v259 = vld [vmem:[%s246 + $0x24] sm:$0x11]
      %v260 = vld [vmem:[%s246 + $0x2c] sm:$0x1]
      %v261 = vld [vmem:[%s1] sm:$0xf]
      %v262 = vld [vmem:[%s1 + $0x4] sm:$0xf]
      %v263 = vld [vmem:[%s1 + $0x8] sm:$0xf]
      %v264 = vld [vmem:[%s1 + $0xc] sm:$0xf]
      %v265 = vld [vmem:[%s1 + $0x10] sm:$0xf]
      %v266 = vld [vmem:[%s1 + $0x14] sm:$0xf]
      %v267 = vld [vmem:[%s1 + $0x18] sm:$0xf]
      %v268 = vld [vmem:[%s1 + $0x1c] sm:$0xf]
      %v269 = vld [vmem:[%s1 + $0x20] sm:$0xf]
      %v270 = vld [vmem:[%s1 + $0x24] sm:$0xf]
      %v271 = vld [vmem:[%s1 + $0x28] sm:$0xf]
      %v272 = vld [vmem:[%s1 + $0x2c] sm:$0xf]
      %v273 = vld [vmem:[%s1 + $0x30] sm:$0xf]
      %v274 = vld [vmem:[%s1 + $0x34] sm:$0xf]
      %v275 = vld [vmem:[%s1 + $0x38] sm:$0xf]
      %v276 = vld [vmem:[%s1 + $0x3c] sm:$0xf]
      %v277 = vld [vmem:[%s1 + $0x40] sm:$0xf]
      %v278 = vld [vmem:[%s1 + $0x44] sm:$0xf]
      %v279 = vld [vmem:[%s1 + $0x48] sm:$0xf]
      %v280 = vld [vmem:[%s1 + $0x4c] sm:$0xf]
      %v281 = vld [vmem:[%s1 + $0x50] sm:$0xf]
      %v282 = vld [vmem:[%s1 + $0x54] sm:$0xf]
      %v283 = vld [vmem:[%s1 + $0x58] sm:$0xf]
      %v284 = vld [vmem:[%s1 + $0x5c] sm:$0xf]
      %v285 = vld [vmem:[%s1 + $0x60] sm:$0xf]
      %v286 = vld [vmem:[%s1 + $0x64] sm:$0xf]
      %v287 = vld [vmem:[%s1 + $0x68] sm:$0xf]
      %v288 = vld [vmem:[%s1 + $0x6c] sm:$0xf]
      %v289 = vld [vmem:[%s1 + $0x70] sm:$0xf]
      %v290 = vld [vmem:[%s1 + $0x74] sm:$0xf]
      %v291 = vld [vmem:[%s1 + $0x78] sm:$0xf]
      %v292 = vld [vmem:[%s1 + $0x7c] sm:$0xf]
      %v293 = vld [vmem:[%s1 + $0x80] sm:$0xf]
      %v294 = vld [vmem:[%s1 + $0x84] sm:$0xf]
      %v295 = vld [vmem:[%s1 + $0x88] sm:$0xf]
      %v296 = vld [vmem:[%s1 + $0x8c] sm:$0xf]
      %v305 = vunpack.c.l.b16 %v253
      %v306 = vunpack.c.h.b16 %v253
      %v307 = vunpack.c.l.b16 %v254
      %v308 = vunpack.c.l.b16 %v255
      %v309 = vunpack.c.h.b16 %v255
      %v310 = vunpack.c.l.b16 %v256
      %v311 = vunpack.c.l.b16 %v257
      %v312 = vunpack.c.h.b16 %v257
      %v313 = vunpack.c.l.b16 %v258
      %v314 = vunpack.c.l.b16 %v259
      %v315 = vunpack.c.h.b16 %v259
      %v316 = vunpack.c.l.b16 %v260
      %v317 = vpack.c.b16 %v308, %v305
      %v318 = vpack.c.b16 %v309, %v306
      %v319 = vpack.c.b16 %v310, %v307
      %v320 = vpack.c.b16 %v314, %v311
      %v321 = vpack.c.b16 %v315, %v312
      %v322 = vpack.c.b16 %v316, %v313
      %v363 = vunpack.c.l.b16 %v261
      %v364 = vunpack.c.l.b16 %v262
      %v365 = vunpack.c.l.b16 %v263
      %v366 = vunpack.c.l.b16 %v264
      %v367 = vunpack.c.l.b16 %v265
      %v368 = vunpack.c.l.b16 %v266
      %v369 = vunpack.c.l.b16 %v267
      %v370 = vunpack.c.l.b16 %v268
      %v371 = vunpack.c.l.b16 %v269
      %v372 = vunpack.c.l.b16 %v270
      %v373 = vunpack.c.l.b16 %v271
      %v374 = vunpack.c.l.b16 %v272
      %v375 = vunpack.c.l.b16 %v273
      %v376 = vunpack.c.l.b16 %v274
      %v377 = vunpack.c.l.b16 %v275
      %v378 = vunpack.c.l.b16 %v276
      %v379 = vunpack.c.l.b16 %v277
      %v380 = vunpack.c.l.b16 %v278
      %v381 = vunpack.c.l.b16 %v279
      %v382 = vunpack.c.l.b16 %v280
      %v383 = vunpack.c.l.b16 %v281
      %v384 = vunpack.c.l.b16 %v282
      %v385 = vunpack.c.l.b16 %v283
      %v386 = vunpack.c.l.b16 %v284
      %v387 = vunpack.c.l.b16 %v285
      %v388 = vunpack.c.l.b16 %v286
      %v389 = vunpack.c.l.b16 %v287
      %v390 = vunpack.c.l.b16 %v288
      %v391 = vunpack.c.l.b16 %v289
      %v392 = vunpack.c.l.b16 %v290
      %v393 = vunpack.c.l.b16 %v291
      %v394 = vunpack.c.l.b16 %v292
      %v395 = vunpack.c.l.b16 %v293
      %v396 = vunpack.c.l.b16 %v294
      %v397 = vunpack.c.l.b16 %v295
      %v398 = vunpack.c.l.b16 %v296
      %v399 = vpack.c.b16 %v364, %v363
      %v400 = vpack.c.b16 %v366, %v365
      %v401 = vpack.c.b16 %v368, %v367
      %v402 = vpack.c.b16 %v370, %v369
      %v403 = vpack.c.b16 %v372, %v371
      %v404 = vpack.c.b16 %v374, %v373
      %v405 = vpack.c.b16 %v376, %v375
      %v406 = vpack.c.b16 %v378, %v377
      %v407 = vpack.c.b16 %v380, %v379
      %v408 = vpack.c.b16 %v382, %v381
      %v409 = vpack.c.b16 %v384, %v383
      %v410 = vpack.c.b16 %v386, %v385
      %v411 = vpack.c.b16 %v388, %v387
      %v412 = vpack.c.b16 %v390, %v389
      %v413 = vpack.c.b16 %v392, %v391
      %v414 = vpack.c.b16 %v394, %v393
      %v415 = vpack.c.b16 %v396, %v395
      %v416 = vpack.c.b16 %v398, %v397
      %vm435 = vcmask 261120
      %v437 = vsel %vm435, %v319, 0
      %v440 = vsel %vm435, %v322, 0
      %442 = vmatpush.bf16.msra.mxu0 %v406
      %443 = vmatpush.bf16.msra.mxu0 %v405
      %444 = vmatpush.bf16.msra.mxu0 %v404
      %445 = vmatpush.bf16.msra.mxu0 %v403
      %446 = vmatpush.bf16.msra.mxu0 %v402
      %447 = vmatpush.bf16.msra.mxu0 %v401
      %448 = vmatpush.bf16.msra.mxu0 %v400
      %449 = vmatpush.bf16.msra.mxu0 %v399
      %450 = vmatmul.bf16.gmra.mxu0 %v317
      %v451 = vpop.f32.mrf.mxu0
      %v452 = vadd.f32 0.0, %v451
      %v453 = vpop.f32.mrf.mxu0
      %v454 = vadd.f32 0.0, %v453
      %455 = vmatmul.bf16.gmra.mxu0 %v320
      %v456 = vpop.f32.mrf.mxu0
      %v457 = vadd.f32 0.0, %v456
      %v458 = vpop.f32.mrf.mxu0
      %v459 = vadd.f32 0.0, %v458
      %460 = vdwg.mxu0
      %461 = vmatpush.bf16.msra.mxu0 %v414
      %462 = vmatpush.bf16.msra.mxu0 %v413
      %463 = vmatpush.bf16.msra.mxu0 %v412
      %464 = vmatpush.bf16.msra.mxu0 %v411
      %465 = vmatpush.bf16.msra.mxu0 %v410
      %466 = vmatpush.bf16.msra.mxu0 %v409
      %467 = vmatpush.bf16.msra.mxu0 %v408
      %468 = vmatpush.bf16.msra.mxu0 %v407
      %469 = vmatmul.bf16.gmra.mxu0 %v318
      %v470 = vpop.f32.mrf.mxu0
      %v471 = vadd.f32 %v452, %v470
      %v472 = vpop.f32.mrf.mxu0
      %v473 = vadd.f32 %v454, %v472
      %474 = vmatmul.bf16.gmra.mxu0 %v321
      %v475 = vpop.f32.mrf.mxu0
      %v476 = vadd.f32 %v457, %v475
      %v477 = vpop.f32.mrf.mxu0
      %v478 = vadd.f32 %v459, %v477
      %479 = vdwg.mxu0
      %480 = vmatpush.bf16.msra.mxu0 0
      %481 = vmatpush.bf16.msra.mxu0 0
      %482 = vmatpush.bf16.msra.mxu0 0
      %483 = vmatpush.bf16.msra.mxu0 0
      %484 = vmatpush.bf16.msra.mxu0 0
      %485 = vmatpush.bf16.msra.mxu0 0
      %486 = vmatpush.bf16.msra.mxu0 %v416
      %487 = vmatpush.bf16.msra.mxu0 %v415
      %488 = vmatmul.bf16.gmra.mxu0 %v437
      %v489 = vpop.f32.mrf.mxu0
      %v490 = vadd.f32 %v471, %v489
      %v491 = vpop.f32.mrf.mxu0
      %v492 = vadd.f32 %v473, %v491
      %493 = vmatmul.bf16.gmra.mxu0 %v440
      %v494 = vpop.f32.mrf.mxu0
      %v495 = vadd.f32 %v476, %v494
      %v496 = vpop.f32.mrf.mxu0
      %v497 = vadd.f32 %v478, %v496
      %498 = vdwg.mxu0
      %vm499 = vcmask 523264
      %v500 = vsel %vm499, %v490, 0.0
      %v501 = vsel %vm499, %v492, 0.0
      %v502 = vadd.f32 %v500, %v501
      %v503 = vsel %vm499, %v495, 0.0
      %v504 = vadd.f32 %v502, %v503
      %vm505 = vcmask 516096
      %v506 = vsel %vm505, %v497, 0.0
      %v507 = vadd.f32 %v504, %v506
      %v508 = vrot.slane %v507, 4
      %v509 = vadd.f32 %v507, %v508
      %v510 = vrot.slane %v509, 2
      %v511 = vadd.f32 %v509, %v510
      %v512 = vrot.slane %v511, 1
      %v513 = vadd.f32 %v511, %v512
      %v514 = vmul.f32 %v490, %v490
      %v515 = vmul.f32 %v492, %v492
      %v516 = vmul.f32 %v495, %v495
      %v517 = vmul.f32 %v497, %v497
      %v518 = vsel %vm499, %v514, 0.0
      %v519 = vsel %vm499, %v515, 0.0
      %v520 = vadd.f32 %v518, %v519
      %v521 = vsel %vm499, %v516, 0.0
      %v522 = vadd.f32 %v520, %v521
      %v523 = vsel %vm505, %v517, 0.0
      %v524 = vadd.f32 %v522, %v523
      %v525 = vrot.slane %v524, 4
      %v526 = vadd.f32 %v524, %v525
      %v527 = vrot.slane %v526, 2
      %v528 = vadd.f32 %v526, %v527
      %v529 = vrot.slane %v528, 1
      %v530 = vadd.f32 %v528, %v529
      %532 = vrot.lane.b32.xlu0 %v530, 64
      %v533 = vpop.permute.xlu0 %532
      %v535 = vsel %vm499, %v513, %v533
      %v536 = vld [vmem:[%s2] sm:$0xff]
      %v537 = vld [vmem:[%s2 + $0x8] sm:$0xff]
      %v538 = vld [vmem:[%s2 + $0x10] sm:$0xff]
      %v539 = vld [vmem:[%s2 + $0x18] sm:$0xff]
      %v540 = vld [vmem:[%s2 + $0x20] sm:$0xff]
      %v541 = vld [vmem:[%s2 + $0x28] sm:$0xff]
      %v542 = vld [vmem:[%s2 + $0x30] sm:$0xff]
      %v543 = vld [vmem:[%s2 + $0x38] sm:$0xff]
      %v544 = vld [vmem:[%s2 + $0x40] sm:$0xff]
      %v545 = vld [vmem:[%s2 + $0x48] sm:$0xff]
      %v546 = vld [vmem:[%s2 + $0x50] sm:$0xff]
      %v547 = vld [vmem:[%s2 + $0x58] sm:$0xff]
      %v548 = vld [vmem:[%s2 + $0x60] sm:$0xff]
      %v549 = vld [vmem:[%s2 + $0x68] sm:$0xff]
      %v550 = vld [vmem:[%s2 + $0x70] sm:$0xff]
      %v551 = vld [vmem:[%s2 + $0x78] sm:$0xff]
      %552 = vmatpush.msra.mxu0 %v551
      %553 = vmatpush.msra.mxu0 %v550
      %554 = vmatpush.msra.mxu0 %v549
      %555 = vmatpush.msra.mxu0 %v548
      %556 = vmatpush.msra.mxu0 %v547
      %557 = vmatpush.msra.mxu0 %v546
      %558 = vmatpush.msra.mxu0 %v545
      %559 = vmatpush.msra.mxu0 %v544
      %560 = vmatpush.msra.mxu0 %v543
      %561 = vmatpush.msra.mxu0 %v542
      %562 = vmatpush.msra.mxu0 %v541
      %563 = vmatpush.msra.mxu0 %v540
      %564 = vmatpush.msra.mxu0 %v539
      %565 = vmatpush.msra.mxu0 %v538
      %566 = vmatpush.msra.mxu0 %v537
      %567 = vmatpush.msra.mxu0 %v536
      %568 = vmatmul.f32.gmra.mxu0 %v535
      %v569 = vpop.f32.mrf.mxu0
      %v570 = vadd.f32 0.0, %v569
      %571 = vdwg.mxu0
      %v572 = vmul.f32 %v570, 0.02
      %v573 = vmul.f32 %v572, %v572
      %575 = vrot.lane.b32.xlu0 %v573, 32
      %v576 = vpop.permute.xlu0 %575
      %v578 = vsub.f32 %v572, %v576
      %v579 = vmax.f32 %v578, 0.0
      %v580 = vadd.f32 %v579, 1e-05
      %v581 = vrsqrt.pop %v580
      %v582 = vmul.f32 %v581, %v580
      %v583 = vmul.f32 %v582, %v581
      %v584 = vmul.f32 0.5, %v583
      %v585 = vsub.f32 1.5, %v584
      %v586 = vmul.f32 %v581, %v585
      %vm587 = vweird.f32 %v580
      %vm588 = vweird.f32 %v581
      %vm589 = vmor %vm587, %vm588
      %v590 = vsel %vm589, %v581, %v586
      %v591 = vsel %vm435, %v572, %v590
      %v592 = vld [vmem:[%s3] sm:$0xff]
      %v593 = vld [vmem:[%s3 + $0x8] sm:$0xff]
      %v594 = vld [vmem:[%s3 + $0x10] sm:$0xff]
      %v595 = vld [vmem:[%s3 + $0x18] sm:$0xff]
      %v596 = vld [vmem:[%s3 + $0x20] sm:$0xff]
      %v597 = vld [vmem:[%s3 + $0x28] sm:$0xff]
      %v598 = vld [vmem:[%s3 + $0x30] sm:$0xff]
      %v599 = vld [vmem:[%s3 + $0x38] sm:$0xff]
      %v601 = vsel %vm499, %v591, 0
      %603 = vmatpush.msra.mxu0 0.0
      %604 = vmatpush.msra.mxu0 0.0
      %605 = vmatpush.msra.mxu0 0.0
      %606 = vmatpush.msra.mxu0 0.0
      %607 = vmatpush.msra.mxu0 0.0
      %608 = vmatpush.msra.mxu0 0.0
      %609 = vmatpush.msra.mxu0 0.0
      %610 = vmatpush.msra.mxu0 0.0
      %611 = vmatpush.msra.mxu0 %v599
      %612 = vmatpush.msra.mxu0 %v598
      %613 = vmatpush.msra.mxu0 %v597
      %614 = vmatpush.msra.mxu0 %v596
      %615 = vmatpush.msra.mxu0 %v595
      %616 = vmatpush.msra.mxu0 %v594
      %617 = vmatpush.msra.mxu0 %v593
      %618 = vmatpush.msra.mxu0 %v592
      %619 = vmatmul.f32.gmra.mxu0 %v601
      %v620 = vpop.f32.mrf.mxu0
      %v621 = vadd.f32 0.0, %v620
      %622 = vdwg.mxu0
      %v623 = vld [vmem:[%s4] sm:$0x1]
      %625 = vrot.lane.b32.xlu0 %v621, 64
      %v626 = vpop.permute.xlu0 %625
      %v628 = vmul.f32 %v623, %v626
      %v629 = vld [vmem:[%s5] sm:$0x1]
      %v630 = vmul.f32 %v621, %v628
      %v631 = vsub.f32 %v629, %v630
      %v633 = vperm.slane %v628, 0
      %v635 = vmul.f32 %v490, %v633
      %v636 = vmul.f32 %v492, %v633
      %v637 = vmul.f32 %v495, %v633
      %v638 = vmul.f32 %v497, %v633
      %v640 = vperm.slane %v631, 0
      %v642 = vadd.f32 %v635, %v640
      %v643 = vadd.f32 %v636, %v640
      %v644 = vadd.f32 %v637, %v640
      %v645 = vadd.f32 %v638, %v640
      %v646 = vmul.f32 %v642, 0.5
      %v647 = vmul.f32 %v643, 0.5
      %v648 = vmul.f32 %v644, 0.5
      %v649 = vmul.f32 %v645, 0.5
      %v650 = vtanh.pop %v646
      %v651 = vtanh.pop %v647
      %v652 = vtanh.pop %v648
      %v653 = vtanh.pop %v649
      %v654 = vmul.f32 %v650, 0.5
      %v655 = vmul.f32 %v651, 0.5
      %v656 = vmul.f32 %v652, 0.5
      %v657 = vmul.f32 %v653, 0.5
      %v658 = vadd.f32 %v654, 0.5
      %v659 = vadd.f32 %v655, 0.5
      %v660 = vadd.f32 %v656, 0.5
      %v661 = vadd.f32 %v657, 0.5
      %v662 = vmul.f32 %v642, %v658
      %v663 = vmul.f32 %v643, %v659
      %v664 = vmul.f32 %v644, %v660
      %v665 = vmul.f32 %v645, %v661
      %v666 = vpack.c.bf16 %v662, %v662
      %v667 = vpack.c.bf16 %v663, %v663
      %v668 = vpack.c.bf16 %v664, %v664
      %v669 = vpack.c.bf16 %v665, %v665
      %vm670 = vcmask 519168
      %671 = vst.msk [vmem:[%s251] sm:$0xf] %vm670, %v666
      %672 = vst.msk [vmem:[%s251 + $0x4] sm:$0xf] %vm670, %v667
      %673 = vst.msk [vmem:[%s251 + $0x8] sm:$0xf] %vm670, %v668
      %vm674 = vcmask 516096
      %vm675 = vsmask.f32 256
      %vm676 = vmand %vm674, %vm675
      %v677 = vld [vmem:[%s251 + $0xc] sm:$0x1]
      %v678 = vsel %vm676, %v669, %v677
      %679 = vst [vmem:[%s251 + $0xc] sm:$0x1] %v678
      %p680 = scmp.lt.s32.totalorder %s17, 1
      %s681 = scalar_select %p680, %s17, 1
      %s682 = smul.addr %s681, 4
      %s683 = smul.addr %s682, 4
      %s684 = scalar_lea.vmem %s6, %s683
      // Predicated region
      $region45: #{scorenet_forward.9} parent=43 // pred_check
        %p685 = pneg %p166
      $region46: #{scorenet_forward.9} parent=43 // pred_check_branch
        %687 = sbr.rel (%p685) target = $region48
      $region47: #{scorenet_forward.9} parent=43 // pred_region
        _
      $region48: #{scorenet_forward.9} parent=43 // pred_fallthru
        _
    $region44: #{scorenet_forward.9} parent=5 // pred_fallthru
      _
    %p688 = scmp.le.s32.totalorder 2, %s12
    // Predicated region
    $region49: #{scorenet_forward.9} parent=5 // pred_check
      %p689 = pneg %p688
    $region50: #{scorenet_forward.9} parent=5 // pred_check_branch
      %691 = sbr.rel (%p689) target = $region52
    $region51: #{scorenet_forward.9} parent=5 // pred_region
      %s692 = ssub.s32 %s12, 2
      // Predicated region
      $region53: #{scorenet_forward.9} parent=51 // pred_check
        %p693 = pneg %p172
      $region54: #{scorenet_forward.9} parent=51 // pred_check_branch
        %695 = sbr.rel (%p693) target = $region56
      $region55: #{scorenet_forward.9} parent=51 // pred_region
        %p696 = scmp.lt.s32.totalorder %s18, 1
        %s697 = scalar_select %p696, %s18, 1
        %s698 = smul.addr %s697, 4
        %s699 = smul.addr %s698, 4
        %s700 = scalar_lea.vmem %s6, %s699
      $region56: #{scorenet_forward.9} parent=51 // pred_fallthru
        _
    $region52: #{scorenet_forward.9} parent=5 // pred_fallthru
      _
  $region6: #{scorenet_forward.9} parent=0 // loop_footer
    %s16 = sadd.s32 1, %s12
  $region7: #{scorenet_forward.9} parent=0 // loop_footer_branch
    %11 = sbr.rel target = $region3
  $region8: #{scorenet_forward.9} parent=0 // loop_exit
    _

// kernel: scorenet_forward.10
$region0: #{scorenet_forward.10}
  #allocation0 [shape = 'u32[]', space=smem, size = 0x4, offset = 0x4, fixed_abs, tag = 'smem constant byte address 0x4 - core index']
  #allocation1 [shape = 'u32[72,128]{1,0:T(1,128)}', space=vmem, size = 0x9000, scoped, tag = 'internal scratch']
  %s0 = inlined_call_operand.vmem [shape: bf16[2,9,576], index: 0, kind: input, shape index: {}]
  %s1 = inlined_call_operand.vmem [shape: bf16[576,128], index: 1, kind: input, shape index: {}]
  %s2 = inlined_call_operand.vmem [shape: f32[256,64], index: 2, kind: input, shape index: {}]
  %s3 = inlined_call_operand.vmem [shape: f32[64,256], index: 3, kind: input, shape index: {}]
  %s4 = inlined_call_operand.vmem [shape: f32[1,128], index: 4, kind: input, shape index: {}]
  %s5 = inlined_call_operand.vmem [shape: f32[1,128], index: 5, kind: input, shape index: {}]
  %s6 = inlined_call_operand.vmem [shape: bf16[2,9,128], index: 6, kind: output, shape index: {}]
  %s7 = sld [smem:[#allocation0]]
  $region57: #{scorenet_forward.10} parent=0
    _
  %s9 = ssub.s32 1, %s7
  %s10 = scalar_select 0, %s9, %s7
  loop: start=0, step=1, limit=4
  $region2: #{scorenet_forward.10} parent=0 // loop_pre_header
    _
  $region3: #{scorenet_forward.10} parent=0 // loop_header
    %s12 = sphi 0, %s16
    %p13 = scmp.ge.s32.totalorder %s12, 4
    %s22 = sphi 0, %s24
    %s25 = sphi 0, %s22
    %s26 = sphi 0, %s25
    %s42 = sphi 0, %s26
    %s46 = sphi 0, %s46
    %s48 = sphi 0, %s46
    %s49 = sphi 0, %s48
    %s63 = sphi 0, %s49
    %s67 = sphi 0, %s67
    %s69 = sphi 0, %s67
    %s70 = sphi 0, %s69
    %s84 = sphi 0, %s70
    %s88 = sphi 0, %s88
    %s90 = sphi 0, %s88
    %s91 = sphi 0, %s90
    %s105 = sphi 0, %s91
    %s109 = sphi 0, %s109
    %s111 = sphi 0, %s109
    %s112 = sphi 0, %s111
    %s126 = sphi 0, %s112
    %s130 = sphi 0, %s130
    %s132 = sphi 0, %s130
    %s133 = sphi 0, %s132
    %s147 = sphi 0, %s133
    %s153 = sphi 0, %s155
    %s156 = sphi 0, %s153
    %s157 = sphi 0, %s156
    %s173 = sphi 0, %s157
  $region4: #{scorenet_forward.10} parent=0 // loop_header_branch
    %15 = sbr.rel (%p13) target = $region8
  $region5: #{scorenet_forward.10} parent=0 // loop_body
    %s17 = ssub.s32 %s12, 1
    %s18 = ssub.s32 %s12, 2
    %s19 = sadd.s32 %s12, 1
    %s20 = ssub.s32 %s12, %s19
    %p21 = scmp.eq.s32.totalorder %s20, 0
    %s23 = sadd.s32 %s22, 1
    %s24 = scalar_select %p21, %s22, %s23
    %p27 = pneg %p21
    %p28 = scmp.eq.s32.totalorder %s12, 1
    %p29 = por %p27, %p28
    %p30 = scmp.ne.s32.totalorder %s22, %s25
    %p31 = scmp.eq.s32.totalorder %s12, 0
    %p32 = por %p30, %p31
    %p33 = scmp.ne.s32.totalorder %s22, %s25
    %p34 = scmp.eq.s32.totalorder %s17, 1
    %p35 = por %p33, %p34
    %p36 = scmp.ne.s32.totalorder %s25, %s26
    %p37 = scmp.eq.s32.totalorder %s17, 0
    %p38 = por %p36, %p37
    %p39 = scmp.ne.s32.totalorder %s25, %s26
    %p40 = scmp.eq.s32.totalorder %s18, 1
    %p41 = por %p39, %p40
    %p43 = scmp.ne.s32.totalorder %s26, %s42
    %p44 = scmp.eq.s32.totalorder %s18, 0
    %p45 = por %p43, %p44
    %s47 = sadd.s32 %s46, 1
    %p50 = scmp.eq.s32.totalorder %s12, 1
    %p51 = scmp.ne.s32.totalorder %s46, %s48
    %p52 = scmp.eq.s32.totalorder %s12, 0
    %p53 = por %p51, %p52
    %p54 = scmp.ne.s32.totalorder %s46, %s48
    %p55 = scmp.eq.s32.totalorder %s17, 1
    %p56 = por %p54, %p55
    %p57 = scmp.ne.s32.totalorder %s48, %s49
    %p58 = scmp.eq.s32.totalorder %s17, 0
    %p59 = por %p57, %p58
    %p60 = scmp.ne.s32.totalorder %s48, %s49
    %p61 = scmp.eq.s32.totalorder %s18, 1
    %p62 = por %p60, %p61
    %p64 = scmp.ne.s32.totalorder %s49, %s63
    %p65 = scmp.eq.s32.totalorder %s18, 0
    %p66 = por %p64, %p65
    %s68 = sadd.s32 %s67, 1
    %p71 = scmp.eq.s32.totalorder %s12, 1
    %p72 = scmp.ne.s32.totalorder %s67, %s69
    %p73 = scmp.eq.s32.totalorder %s12, 0
    %p74 = por %p72, %p73
    %p75 = scmp.ne.s32.totalorder %s67, %s69
    %p76 = scmp.eq.s32.totalorder %s17, 1
    %p77 = por %p75, %p76
    %p78 = scmp.ne.s32.totalorder %s69, %s70
    %p79 = scmp.eq.s32.totalorder %s17, 0
    %p80 = por %p78, %p79
    %p81 = scmp.ne.s32.totalorder %s69, %s70
    %p82 = scmp.eq.s32.totalorder %s18, 1
    %p83 = por %p81, %p82
    %p85 = scmp.ne.s32.totalorder %s70, %s84
    %p86 = scmp.eq.s32.totalorder %s18, 0
    %p87 = por %p85, %p86
    %s89 = sadd.s32 %s88, 1
    %p92 = scmp.eq.s32.totalorder %s12, 1
    %p93 = scmp.ne.s32.totalorder %s88, %s90
    %p94 = scmp.eq.s32.totalorder %s12, 0
    %p95 = por %p93, %p94
    %p96 = scmp.ne.s32.totalorder %s88, %s90
    %p97 = scmp.eq.s32.totalorder %s17, 1
    %p98 = por %p96, %p97
    %p99 = scmp.ne.s32.totalorder %s90, %s91
    %p100 = scmp.eq.s32.totalorder %s17, 0
    %p101 = por %p99, %p100
    %p102 = scmp.ne.s32.totalorder %s90, %s91
    %p103 = scmp.eq.s32.totalorder %s18, 1
    %p104 = por %p102, %p103
    %p106 = scmp.ne.s32.totalorder %s91, %s105
    %p107 = scmp.eq.s32.totalorder %s18, 0
    %p108 = por %p106, %p107
    %s110 = sadd.s32 %s109, 1
    %p113 = scmp.eq.s32.totalorder %s12, 1
    %p114 = scmp.ne.s32.totalorder %s109, %s111
    %p115 = scmp.eq.s32.totalorder %s12, 0
    %p116 = por %p114, %p115
    %p117 = scmp.ne.s32.totalorder %s109, %s111
    %p118 = scmp.eq.s32.totalorder %s17, 1
    %p119 = por %p117, %p118
    %p120 = scmp.ne.s32.totalorder %s111, %s112
    %p121 = scmp.eq.s32.totalorder %s17, 0
    %p122 = por %p120, %p121
    %p123 = scmp.ne.s32.totalorder %s111, %s112
    %p124 = scmp.eq.s32.totalorder %s18, 1
    %p125 = por %p123, %p124
    %p127 = scmp.ne.s32.totalorder %s112, %s126
    %p128 = scmp.eq.s32.totalorder %s18, 0
    %p129 = por %p127, %p128
    %s131 = sadd.s32 %s130, 1
    %p134 = scmp.eq.s32.totalorder %s12, 1
    %p135 = scmp.ne.s32.totalorder %s130, %s132
    %p136 = scmp.eq.s32.totalorder %s12, 0
    %p137 = por %p135, %p136
    %p138 = scmp.ne.s32.totalorder %s130, %s132
    %p139 = scmp.eq.s32.totalorder %s17, 1
    %p140 = por %p138, %p139
    %p141 = scmp.ne.s32.totalorder %s132, %s133
    %p142 = scmp.eq.s32.totalorder %s17, 0
    %p143 = por %p141, %p142
    %p144 = scmp.ne.s32.totalorder %s132, %s133
    %p145 = scmp.eq.s32.totalorder %s18, 1
    %p146 = por %p144, %p145
    %p148 = scmp.ne.s32.totalorder %s133, %s147
    %p149 = scmp.eq.s32.totalorder %s18, 0
    %p150 = por %p148, %p149
    %s151 = ssub.s32 %s12, %s19
    %p152 = scmp.eq.s32.totalorder %s151, 0
    %s154 = sadd.s32 %s153, 1
    %s155 = scalar_select %p152, %s153, %s154
    %p158 = pneg %p152
    %p159 = scmp.eq.s32.totalorder %s12, 1
    %p160 = por %p158, %p159
    %p161 = scmp.ne.s32.totalorder %s153, %s156
    %p162 = scmp.eq.s32.totalorder %s12, 0
    %p163 = por %p161, %p162
    %p164 = scmp.ne.s32.totalorder %s153, %s156
    %p165 = scmp.eq.s32.totalorder %s17, 1
    %p166 = por %p164, %p165
    %p167 = scmp.ne.s32.totalorder %s156, %s157
    %p168 = scmp.eq.s32.totalorder %s17, 0
    %p169 = por %p167, %p168
    %p170 = scmp.ne.s32.totalorder %s156, %s157
    %p171 = scmp.eq.s32.totalorder %s18, 1
    %p172 = por %p170, %p171
    %p174 = scmp.ne.s32.totalorder %s157, %s173
    %p175 = scmp.eq.s32.totalorder %s18, 0
    %p176 = por %p174, %p175
    %p177 = scmp.le.s32.totalorder 1, %s12
    %p178 = scmp.lt.s32.totalorder %s12, 3
    %p179 = pnand %p177, %p178
    %p180 = pneg %p179
    // Predicated region
    $region9: #{scorenet_forward.10} parent=5 // pred_check
      _
    $region10: #{scorenet_forward.10} parent=5 // pred_check_branch
      %182 = sbr.rel (%p179) target = $region12
    $region11: #{scorenet_forward.10} parent=5 // pred_region
      %s183 = ssub.s32 %s12, 1
      // Predicated region
      $region13: #{scorenet_forward.10} parent=11 // pred_check
        %p184 = pneg %p59
      $region14: #{scorenet_forward.10} parent=11 // pred_check_branch
        %186 = sbr.rel (%p184) target = $region16
      $region15: #{scorenet_forward.10} parent=11 // pred_region
        _
      $region16: #{scorenet_forward.10} parent=11 // pred_fallthru
        _
      // Predicated region
      $region17: #{scorenet_forward.10} parent=11 // pred_check
        %p187 = pneg %p80
      $region18: #{scorenet_forward.10} parent=11 // pred_check_branch
        %189 = sbr.rel (%p187) target = $region20
      $region19: #{scorenet_forward.10} parent=11 // pred_region
        _
      $region20: #{scorenet_forward.10} parent=11 // pred_fallthru
        _
      // Predicated region
      $region21: #{scorenet_forward.10} parent=11 // pred_check
        %p190 = pneg %p101
      $region22: #{scorenet_forward.10} parent=11 // pred_check_branch
        %192 = sbr.rel (%p190) target = $region24
      $region23: #{scorenet_forward.10} parent=11 // pred_region
        _
      $region24: #{scorenet_forward.10} parent=11 // pred_fallthru
        _
      // Predicated region
      $region25: #{scorenet_forward.10} parent=11 // pred_check
        %p193 = pneg %p122
      $region26: #{scorenet_forward.10} parent=11 // pred_check_branch
        %195 = sbr.rel (%p193) target = $region28
      $region27: #{scorenet_forward.10} parent=11 // pred_region
        _
      $region28: #{scorenet_forward.10} parent=11 // pred_fallthru
        _
      // Predicated region
      $region29: #{scorenet_forward.10} parent=11 // pred_check
        %p196 = pneg %p143
      $region30: #{scorenet_forward.10} parent=11 // pred_check_branch
        %198 = sbr.rel (%p196) target = $region32
      $region31: #{scorenet_forward.10} parent=11 // pred_region
        _
      $region32: #{scorenet_forward.10} parent=11 // pred_fallthru
        _
    $region12: #{scorenet_forward.10} parent=5 // pred_fallthru
      _
    %p199 = scmp.lt.s32.totalorder %s12, 2
    // Predicated region
    $region33: #{scorenet_forward.10} parent=5 // pred_check
      %p200 = pneg %p199
    $region34: #{scorenet_forward.10} parent=5 // pred_check_branch
      %202 = sbr.rel (%p200) target = $region36
    $region35: #{scorenet_forward.10} parent=5 // pred_region
      // Predicated region
      $region37: #{scorenet_forward.10} parent=35 // pred_check
        %p203 = pneg %p32
      $region38: #{scorenet_forward.10} parent=35 // pred_check_branch
        %205 = sbr.rel (%p203) target = $region40
      $region39: #{scorenet_forward.10} parent=35 // pred_region
        %p206 = scmp.lt.s32.totalorder %s12, 1
        %s207 = scalar_select %p206, %s12, 1
        %s208 = smul.addr %s207, 10
        %s209 = smul.addr %s208, 4
        %s210 = scalar_lea.vmem %s0, %s209
      $region40: #{scorenet_forward.10} parent=35 // pred_fallthru
        _
    $region36: #{scorenet_forward.10} parent=5 // pred_fallthru
      _
    %p211 = scmp.le.s32.totalorder 1, %s12
    %p212 = scmp.lt.s32.totalorder %s12, 3
    %p213 = pnand %p211, %p212
    %p214 = pneg %p213
    // Predicated region
    $region41: #{scorenet_forward.10} parent=5 // pred_check
      _
    $region42: #{scorenet_forward.10} parent=5 // pred_check_branch
      %216 = sbr.rel (%p213) target = $region44
    $region43: #{scorenet_forward.10} parent=5 // pred_region
      %s217 = ssub.s32 %s12, 1
      %p218 = scmp.lt.s32.totalorder %s17, 1
      %s219 = scalar_select %p218, %s17, 1
      %s220 = smul.addr %s219, 10
      %s221 = smul.addr %s220, 4
      %s222 = scalar_lea.vmem %s0, %s221
      %p223 = pneg %p38
      %p224 = pneg %p35
      %p225 = pneg %p59
      %p226 = pneg %p56
      %p227 = pneg %p80
      %p228 = pneg %p77
      %p229 = pneg %p101
      %p230 = pneg %p98
      %p231 = pneg %p122
      %p232 = pneg %p119
      %p233 = pneg %p143
      %p234 = pneg %p140
      %p235 = pneg %p169
      %p236 = pneg %p166
      %p237 = scmp.lt.s32.totalorder %s17, 1
      %s238 = scalar_select %p237, %s17, 1
      %s239 = smul.addr %s238, 2
      %s240 = smul.addr %s239, 4
      %s241 = scalar_lea.vmem %s6, %s240
      %p242 = scmp.lt.s32.totalorder %s17, 1
      %s243 = scalar_select %p242, %s17, 1
      %s244 = smul.addr %s243, 10
      %s245 = smul.addr %s244, 4
      %s246 = scalar_lea.vmem %s0, %s245
      %p247 = scmp.lt.s32.totalorder %s17, 1
      %s248 = scalar_select %p247, %s17, 1
      %s249 = smul.addr %s248, 2
      %s250 = smul.addr %s249, 4
      %s251 = scalar_lea.vmem %s6, %s250
      %v253 = vld [vmem:[%s246] sm:$0xff]
      %v254 = vld [vmem:[%s246 + $0x8] sm:$0xff]
      %v255 = vld [vmem:[%s246 + $0x10] sm:$0xf]
      %v256 = vld [vmem:[%s246 + $0x14] sm:$0x11]
      %v257 = vld [vmem:[%s246 + $0x1c] sm:$0x11]
      %v258 = vld [vmem:[%s246 + $0x24] sm:$0x1]
      %v259 = vld [vmem:[%s1] sm:$0xf]
      %v260 = vld [vmem:[%s1 + $0x4] sm:$0xf]
      %v261 = vld [vmem:[%s1 + $0x8] sm:$0xf]
      %v262 = vld [vmem:[%s1 + $0xc] sm:$0xf]
      %v263 = vld [vmem:[%s1 + $0x10] sm:$0xf]
      %v264 = vld [vmem:[%s1 + $0x14] sm:$0xf]
      %v265 = vld [vmem:[%s1 + $0x18] sm:$0xf]
      %v266 = vld [vmem:[%s1 + $0x1c] sm:$0xf]
      %v267 = vld [vmem:[%s1 + $0x20] sm:$0xf]
      %v268 = vld [vmem:[%s1 + $0x24] sm:$0xf]
      %v269 = vld [vmem:[%s1 + $0x28] sm:$0xf]
      %v270 = vld [vmem:[%s1 + $0x2c] sm:$0xf]
      %v271 = vld [vmem:[%s1 + $0x30] sm:$0xf]
      %v272 = vld [vmem:[%s1 + $0x34] sm:$0xf]
      %v273 = vld [vmem:[%s1 + $0x38] sm:$0xf]
      %v274 = vld [vmem:[%s1 + $0x3c] sm:$0xf]
      %v275 = vld [vmem:[%s1 + $0x40] sm:$0xf]
      %v276 = vld [vmem:[%s1 + $0x44] sm:$0xf]
      %v277 = vld [vmem:[%s1 + $0x48] sm:$0xf]
      %v278 = vld [vmem:[%s1 + $0x4c] sm:$0xf]
      %v279 = vld [vmem:[%s1 + $0x50] sm:$0xf]
      %v280 = vld [vmem:[%s1 + $0x54] sm:$0xf]
      %v281 = vld [vmem:[%s1 + $0x58] sm:$0xf]
      %v282 = vld [vmem:[%s1 + $0x5c] sm:$0xf]
      %v283 = vld [vmem:[%s1 + $0x60] sm:$0xf]
      %v284 = vld [vmem:[%s1 + $0x64] sm:$0xf]
      %v285 = vld [vmem:[%s1 + $0x68] sm:$0xf]
      %v286 = vld [vmem:[%s1 + $0x6c] sm:$0xf]
      %v287 = vld [vmem:[%s1 + $0x70] sm:$0xf]
      %v288 = vld [vmem:[%s1 + $0x74] sm:$0xf]
      %v289 = vld [vmem:[%s1 + $0x78] sm:$0xf]
      %v290 = vld [vmem:[%s1 + $0x7c] sm:$0xf]
      %v291 = vld [vmem:[%s1 + $0x80] sm:$0xf]
      %v292 = vld [vmem:[%s1 + $0x84] sm:$0xf]
      %v293 = vld [vmem:[%s1 + $0x88] sm:$0xf]
      %v294 = vld [vmem:[%s1 + $0x8c] sm:$0xf]
      %v295 = vld [vmem:[%s1 + $0x90] sm:$0xf]
      %v296 = vld [vmem:[%s1 + $0x94] sm:$0xf]
      %v297 = vld [vmem:[%s1 + $0x98] sm:$0xf]
      %v298 = vld [vmem:[%s1 + $0x9c] sm:$0xf]
      %v299 = vld [vmem:[%s1 + $0xa0] sm:$0xf]
      %v300 = vld [vmem:[%s1 + $0xa4] sm:$0xf]
      %v301 = vld [vmem:[%s1 + $0xa8] sm:$0xf]
      %v302 = vld [vmem:[%s1 + $0xac] sm:$0xf]
      %v303 = vld [vmem:[%s1 + $0xb0] sm:$0xf]
      %v304 = vld [vmem:[%s1 + $0xb4] sm:$0xf]
      %v305 = vld [vmem:[%s1 + $0xb8] sm:$0xf]
      %v306 = vld [vmem:[%s1 + $0xbc] sm:$0xf]
      %v307 = vld [vmem:[%s1 + $0xc0] sm:$0xf]
      %v308 = vld [vmem:[%s1 + $0xc4] sm:$0xf]
      %v309 = vld [vmem:[%s1 + $0xc8] sm:$0xf]
      %v310 = vld [vmem:[%s1 + $0xcc] sm:$0xf]
      %v311 = vld [vmem:[%s1 + $0xd0] sm:$0xf]
      %v312 = vld [vmem:[%s1 + $0xd4] sm:$0xf]
      %v313 = vld [vmem:[%s1 + $0xd8] sm:$0xf]
      %v314 = vld [vmem:[%s1 + $0xdc] sm:$0xf]
      %v315 = vld [vmem:[%s1 + $0xe0] sm:$0xf]
      %v316 = vld [vmem:[%s1 + $0xe4] sm:$0xf]
      %v317 = vld [vmem:[%s1 + $0xe8] sm:$0xf]
      %v318 = vld [vmem:[%s1 + $0xec] sm:$0xf]
      %v319 = vld [vmem:[%s1 + $0xf0] sm:$0xf]
      %v320 = vld [vmem:[%s1 + $0xf4] sm:$0xf]
      %v321 = vld [vmem:[%s1 + $0xf8] sm:$0xf]
      %v322 = vld [vmem:[%s1 + $0xfc] sm:$0xf]
      %v323 = vld [vmem:[%s1 + $0x100] sm:$0xf]
      %v324 = vld [vmem:[%s1 + $0x104] sm:$0xf]
      %v325 = vld [vmem:[%s1 + $0x108] sm:$0xf]
      %v326 = vld [vmem:[%s1 + $0x10c] sm:$0xf]
      %v327 = vld [vmem:[%s1 + $0x110] sm:$0xf]
      %v328 = vld [vmem:[%s1 + $0x114] sm:$0xf]
      %v329 = vld [vmem:[%s1 + $0x118] sm:$0xf]
      %v330 = vld [vmem:[%s1 + $0x11c] sm:$0xf]
      %v337 = vunpack.c.l.b16 %v253
      %v338 = vunpack.c.h.b16 %v253
      %v339 = vunpack.c.l.b16 %v254
      %v340 = vunpack.c.h.b16 %v254
      %v341 = vunpack.c.l.b16 %v255
      %v342 = vunpack.c.l.b16 %v256
      %v343 = vunpack.c.h.b16 %v256
      %v344 = vunpack.c.l.b16 %v257
      %v345 = vunpack.c.h.b16 %v257
      %v346 = vunpack.c.l.b16 %v258
      %v347 = vpack.c.b16 %v342, %v337
      %v348 = vpack.c.b16 %v343, %v338
      %v349 = vpack.c.b16 %v344, %v339
      %v350 = vpack.c.b16 %v345, %v340
      %v351 = vpack.c.b16 %v346, %v341
      %v428 = vunpack.c.l.b16 %v259
      %v429 = vunpack.c.l.b16 %v260
      %v430 = vunpack.c.l.b16 %v261
      %v431 = vunpack.c.l.b16 %v262
      %v432 = vunpack.c.l.b16 %v263
      %v433 = vunpack.c.l.b16 %v264
      %v434 = vunpack.c.l.b16 %v265
      %v435 = vunpack.c.l.b16 %v266
      %v436 = vunpack.c.l.b16 %v267
      %v437 = vunpack.c.l.b16 %v268
      %v438 = vunpack.c.l.b16 %v269
      %v439 = vunpack.c.l.b16 %v270
      %v440 = vunpack.c.l.b16 %v271
      %v441 = vunpack.c.l.b16 %v272
      %v442 = vunpack.c.l.b16 %v273
      %v443 = vunpack.c.l.b16 %v274
      %v444 = vunpack.c.l.b16 %v275
      %v445 = vunpack.c.l.b16 %v276
      %v446 = vunpack.c.l.b16 %v277
      %v447 = vunpack.c.l.b16 %v278
      %v448 = vunpack.c.l.b16 %v279
      %v449 = vunpack.c.l.b16 %v280
      %v450 = vunpack.c.l.b16 %v281
      %v451 = vunpack.c.l.b16 %v282
      %v452 = vunpack.c.l.b16 %v283
      %v453 = vunpack.c.l.b16 %v284
      %v454 = vunpack.c.l.b16 %v285
      %v455 = vunpack.c.l.b16 %v286
      %v456 = vunpack.c.l.b16 %v287
      %v457 = vunpack.c.l.b16 %v288
      %v458 = vunpack.c.l.b16 %v289
      %v459 = vunpack.c.l.b16 %v290
      %v460 = vunpack.c.l.b16 %v291
      %v461 = vunpack.c.l.b16 %v292
      %v462 = vunpack.c.l.b16 %v293
      %v463 = vunpack.c.l.b16 %v294
      %v464 = vunpack.c.l.b16 %v295
      %v465 = vunpack.c.l.b16 %v296
      %v466 = vunpack.c.l.b16 %v297
      %v467 = vunpack.c.l.b16 %v298
      %v468 = vunpack.c.l.b16 %v299
      %v469 = vunpack.c.l.b16 %v300
      %v470 = vunpack.c.l.b16 %v301
      %v471 = vunpack.c.l.b16 %v302
      %v472 = vunpack.c.l.b16 %v303
      %v473 = vunpack.c.l.b16 %v304
      %v474 = vunpack.c.l.b16 %v305
      %v475 = vunpack.c.l.b16 %v306
      %v476 = vunpack.c.l.b16 %v307
      %v477 = vunpack.c.l.b16 %v308
      %v478 = vunpack.c.l.b16 %v309
      %v479 = vunpack.c.l.b16 %v310
      %v480 = vunpack.c.l.b16 %v311
      %v481 = vunpack.c.l.b16 %v312
      %v482 = vunpack.c.l.b16 %v313
      %v483 = vunpack.c.l.b16 %v314
      %v484 = vunpack.c.l.b16 %v315
      %v485 = vunpack.c.l.b16 %v316
      %v486 = vunpack.c.l.b16 %v317
      %v487 = vunpack.c.l.b16 %v318
      %v488 = vunpack.c.l.b16 %v319
      %v489 = vunpack.c.l.b16 %v320
      %v490 = vunpack.c.l.b16 %v321
      %v491 = vunpack.c.l.b16 %v322
      %v492 = vunpack.c.l.b16 %v323
      %v493 = vunpack.c.l.b16 %v324
      %v494 = vunpack.c.l.b16 %v325
      %v495 = vunpack.c.l.b16 %v326
      %v496 = vunpack.c.l.b16 %v327
      %v497 = vunpack.c.l.b16 %v328
      %v498 = vunpack.c.l.b16 %v329
      %v499 = vunpack.c.l.b16 %v330
      %v500 = vpack.c.b16 %v429, %v428
      %v501 = vpack.c.b16 %v431, %v430
      %v502 = vpack.c.b16 %v433, %v432
      %v503 = vpack.c.b16 %v435, %v434
      %v504 = vpack.c.b16 %v437, %v436
      %v505 = vpack.c.b16 %v439, %v438
      %v506 = vpack.c.b16 %v441, %v440
      %v507 = vpack.c.b16 %v443, %v442
      %v508 = vpack.c.b16 %v445, %v444
      %v509 = vpack.c.b16 %v447, %v446
      %v510 = vpack.c.b16 %v449, %v448
      %v511 = vpack.c.b16 %v451, %v450
      %v512 = vpack.c.b16 %v453, %v452
      %v513 = vpack.c.b16 %v455, %v454
      %v514 = vpack.c.b16 %v457, %v456
      %v515 = vpack.c.b16 %v459, %v458
      %v516 = vpack.c.b16 %v461, %v460
      %v517 = vpack.c.b16 %v463, %v462
      %v518 = vpack.c.b16 %v465, %v464
      %v519 = vpack.c.b16 %v467, %v466
      %v520 = vpack.c.b16 %v469, %v468
      %v521 = vpack.c.b16 %v471, %v470
      %v522 = vpack.c.b16 %v473, %v472
      %v523 = vpack.c.b16 %v475, %v474
      %v524 = vpack.c.b16 %v477, %v476
      %v525 = vpack.c.b16 %v479, %v478
      %v526 = vpack.c.b16 %v481, %v480
      %v527 = vpack.c.b16 %v483, %v482
      %v528 = vpack.c.b16 %v485, %v484
      %v529 = vpack.c.b16 %v487, %v486
      %v530 = vpack.c.b16 %v489, %v488
      %v531 = vpack.c.b16 %v491, %v490
      %v532 = vpack.c.b16 %v493, %v492
      %v533 = vpack.c.b16 %v495, %v494
      %v534 = vpack.c.b16 %v497, %v496
      %v535 = vpack.c.b16 %v499, %v498
      %vm572 = vcmask 523264
      %v574 = vsel %vm572, %v351, 0
      %576 = vmatpush.bf16.msra.mxu0 %v507
      %577 = vmatpush.bf16.msra.mxu0 %v506
      %578 = vmatpush.bf16.msra.mxu0 %v505
      %579 = vmatpush.bf16.msra.mxu0 %v504
      %580 = vmatpush.bf16.msra.mxu0 %v503
      %581 = vmatpush.bf16.msra.mxu0 %v502
      %582 = vmatpush.bf16.msra.mxu0 %v501
      %583 = vmatpush.bf16.msra.mxu0 %v500
      %584 = vmatmul.bf16.gmra.mxu0 %v347
      %v585 = vpop.f32.mrf.mxu0
      %v586 = vadd.f32 0.0, %v585
      %v587 = vpop.f32.mrf.mxu0
      %v588 = vadd.f32 0.0, %v587
      %589 = vdwg.mxu0
      %590 = vmatpush.bf16.msra.mxu0 %v515
      %591 = vmatpush.bf16.msra.mxu0 %v514
      %592 = vmatpush.bf16.msra.mxu0 %v513
      %593 = vmatpush.bf16.msra.mxu0 %v512
      %594 = vmatpush.bf16.msra.mxu0 %v511
      %595 = vmatpush.bf16.msra.mxu0 %v510
      %596 = vmatpush.bf16.msra.mxu0 %v509
      %597 = vmatpush.bf16.msra.mxu0 %v508
      %598 = vmatmul.bf16.gmra.mxu0 %v348
      %v599 = vpop.f32.mrf.mxu0
      %v600 = vadd.f32 %v586, %v599
      %v601 = vpop.f32.mrf.mxu0
      %v602 = vadd.f32 %v588, %v601
      %603 = vdwg.mxu0
      %604 = vmatpush.bf16.msra.mxu0 %v523
      %605 = vmatpush.bf16.msra.mxu0 %v522
      %606 = vmatpush.bf16.msra.mxu0 %v521
      %607 = vmatpush.bf16.msra.mxu0 %v520
      %608 = vmatpush.bf16.msra.mxu0 %v519
      %609 = vmatpush.bf16.msra.mxu0 %v518
      %610 = vmatpush.bf16.msra.mxu0 %v517
      %611 = vmatpush.bf16.msra.mxu0 %v516
      %612 = vmatmul.bf16.gmra.mxu0 %v349
      %v613 = vpop.f32.mrf.mxu0
      %v614 = vadd.f32 %v600, %v613
      %v615 = vpop.f32.mrf.mxu0
      %v616 = vadd.f32 %v602, %v615
      %617 = vdwg.mxu0
      %618 = vmatpush.bf16.msra.mxu0 %v531
      %619 = vmatpush.bf16.msra.mxu0 %v530
      %620 = vmatpush.bf16.msra.mxu0 %v529
      %621 = vmatpush.bf16.msra.mxu0 %v528
      %622 = vmatpush.bf16.msra.mxu0 %v527
      %623 = vmatpush.bf16.msra.mxu0 %v526
      %624 = vmatpush.bf16.msra.mxu0 %v525
      %625 = vmatpush.bf16.msra.mxu0 %v524
      %626 = vmatmul.bf16.gmra.mxu0 %v350
      %v627 = vpop.f32.mrf.mxu0
      %v628 = vadd.f32 %v614, %v627
      %v629 = vpop.f32.mrf.mxu0
      %v630 = vadd.f32 %v616, %v629
      %631 = vdwg.mxu0
      %632 = vmatpush.bf16.msra.mxu0 0
      %633 = vmatpush.bf16.msra.mxu0 0
      %634 = vmatpush.bf16.msra.mxu0 0
      %635 = vmatpush.bf16.msra.mxu0 0
      %636 = vmatpush.bf16.msra.mxu0 %v535
      %637 = vmatpush.bf16.msra.mxu0 %v534
      %638 = vmatpush.bf16.msra.mxu0 %v533
      %639 = vmatpush.bf16.msra.mxu0 %v532
      %640 = vmatmul.bf16.gmra.mxu0 %v574
      %v641 = vpop.f32.mrf.mxu0
      %v642 = vadd.f32 %v628, %v641
      %v643 = vpop.f32.mrf.mxu0
      %v644 = vadd.f32 %v630, %v643
      %645 = vdwg.mxu0
      %vm646 = vcmask 1040384
      %v647 = vsel %vm646, %v644, 0.0
      %v648 = vadd.f32 %v642, %v647
      %v649 = vrot.slane %v648, 4
      %v650 = vadd.f32 %v648, %v649
      %v651 = vrot.slane %v650, 2
      %v652 = vadd.f32 %v650, %v651
      %v653 = vrot.slane %v652, 1
      %v654 = vadd.f32 %v652, %v653
      %v655 = vmul.f32 %v642, %v642
      %v656 = vmul.f32 %v644, %v644
      %v657 = vsel %vm646, %v656, 0.0
      %v658 = vadd.f32 %v655, %v657
      %v659 = vrot.slane %v658, 4
      %v660 = vadd.f32 %v658, %v659
      %v661 = vrot.slane %v660, 2
      %v662 = vadd.f32 %v660, %v661
      %v663 = vrot.slane %v662, 1
      %v664 = vadd.f32 %v662, %v663
      %v665 = vld [vmem:[%s2] sm:$0xff]
      %v666 = vld [vmem:[%s2 + $0x8] sm:$0xff]
      %v667 = vld [vmem:[%s2 + $0x10] sm:$0xff]
      %v668 = vld [vmem:[%s2 + $0x18] sm:$0xff]
      %v669 = vld [vmem:[%s2 + $0x20] sm:$0xff]
      %v670 = vld [vmem:[%s2 + $0x28] sm:$0xff]
      %v671 = vld [vmem:[%s2 + $0x30] sm:$0xff]
      %v672 = vld [vmem:[%s2 + $0x38] sm:$0xff]
      %v673 = vld [vmem:[%s2 + $0x40] sm:$0xff]
      %v674 = vld [vmem:[%s2 + $0x48] sm:$0xff]
      %v675 = vld [vmem:[%s2 + $0x50] sm:$0xff]
      %v676 = vld [vmem:[%s2 + $0x58] sm:$0xff]
      %v677 = vld [vmem:[%s2 + $0x60] sm:$0xff]
      %v678 = vld [vmem:[%s2 + $0x68] sm:$0xff]
      %v679 = vld [vmem:[%s2 + $0x70] sm:$0xff]
      %v680 = vld [vmem:[%s2 + $0x78] sm:$0xff]
      %v681 = vld [vmem:[%s2 + $0x80] sm:$0xff]
      %v682 = vld [vmem:[%s2 + $0x88] sm:$0xff]
      %v683 = vld [vmem:[%s2 + $0x90] sm:$0xff]
      %v684 = vld [vmem:[%s2 + $0x98] sm:$0xff]
      %v685 = vld [vmem:[%s2 + $0xa0] sm:$0xff]
      %v686 = vld [vmem:[%s2 + $0xa8] sm:$0xff]
      %v687 = vld [vmem:[%s2 + $0xb0] sm:$0xff]
      %v688 = vld [vmem:[%s2 + $0xb8] sm:$0xff]
      %v689 = vld [vmem:[%s2 + $0xc0] sm:$0xff]
      %v690 = vld [vmem:[%s2 + $0xc8] sm:$0xff]
      %v691 = vld [vmem:[%s2 + $0xd0] sm:$0xff]
      %v692 = vld [vmem:[%s2 + $0xd8] sm:$0xff]
      %v693 = vld [vmem:[%s2 + $0xe0] sm:$0xff]
      %v694 = vld [vmem:[%s2 + $0xe8] sm:$0xff]
      %v695 = vld [vmem:[%s2 + $0xf0] sm:$0xff]
      %v696 = vld [vmem:[%s2 + $0xf8] sm:$0xff]
      %697 = vmatpush.msra.mxu0 %v680
      %698 = vmatpush.msra.mxu0 %v679
      %699 = vmatpush.msra.mxu0 %v678
      %700 = vmatpush.msra.mxu0 %v677
      %701 = vmatpush.msra.mxu0 %v676
      %702 = vmatpush.msra.mxu0 %v675
      %703 = vmatpush.msra.mxu0 %v674
      %704 = vmatpush.msra.mxu0 %v673
      %705 = vmatpush.msra.mxu0 %v672
      %706 = vmatpush.msra.mxu0 %v671
      %707 = vmatpush.msra.mxu0 %v670
      %708 = vmatpush.msra.mxu0 %v669
      %709 = vmatpush.msra.mxu0 %v668
      %710 = vmatpush.msra.mxu0 %v667
      %711 = vmatpush.msra.mxu0 %v666
      %712 = vmatpush.msra.mxu0 %v665
      %713 = vmatmul.f32.gmra.mxu0 %v654
      %v714 = vpop.f32.mrf.mxu0
      %v715 = vadd.f32 0.0, %v714
      %716 = vdwg.mxu0
      %717 = vmatpush.msra.mxu0 %v696
      %718 = vmatpush.msra.mxu0 %v695
      %719 = vmatpush.msra.mxu0 %v694
      %720 = vmatpush.msra.mxu0 %v693
      %721 = vmatpush.msra.mxu0 %v692
      %722 = vmatpush.msra.mxu0 %v691
      %723 = vmatpush.msra.mxu0 %v690
      %724 = vmatpush.msra.mxu0 %v689
      %725 = vmatpush.msra.mxu0 %v688
      %726 = vmatpush.msra.mxu0 %v687
      %727 = vmatpush.msra.mxu0 %v686
      %728 = vmatpush.msra.mxu0 %v685
      %729 = vmatpush.msra.mxu0 %v684
      %730 = vmatpush.msra.mxu0 %v683
      %731 = vmatpush.msra.mxu0 %v682
      %732 = vmatpush.msra.mxu0 %v681
      %733 = vmatmul.f32.gmra.mxu0 %v664
      %v734 = vpop.f32.mrf.mxu0
      %v735 = vadd.f32 %v715, %v734
      %736 = vdwg.mxu0
      %v737 = vmul.f32 %v735, 0.027777778
      %v738 = vmul.f32 %v737, %v737
      %740 = vrot.lane.b32.xlu0 %v738, 32
      %v741 = vpop.permute.xlu0 %740
      %v743 = vsub.f32 %v737, %v741
      %v744 = vmax.f32 %v743, 0.0
      %v745 = vadd.f32 %v744, 1e-05
      %v746 = vrsqrt.pop %v745
      %v747 = vmul.f32 %v746, %v745
      %v748 = vmul.f32 %v747, %v746
      %v749 = vmul.f32 0.5, %v748
      %v750 = vsub.f32 1.5, %v749
      %v751 = vmul.f32 %v746, %v750
      %vm752 = vweird.f32 %v745
      %vm753 = vweird.f32 %v746
      %vm754 = vmor %vm752, %vm753
      %v755 = vsel %vm754, %v746, %v751
      %vm756 = vcmask 261120
      %v757 = vsel %vm756, %v737, %v755
      %v758 = vld [vmem:[%s3] sm:$0xff]
      %v759 = vld [vmem:[%s3 + $0x8] sm:$0xff]
      %v760 = vld [vmem:[%s3 + $0x10] sm:$0xff]
      %v761 = vld [vmem:[%s3 + $0x18] sm:$0xff]
      %v762 = vld [vmem:[%s3 + $0x20] sm:$0xff]
      %v763 = vld [vmem:[%s3 + $0x28] sm:$0xff]
      %v764 = vld [vmem:[%s3 + $0x30] sm:$0xff]
      %v765 = vld [vmem:[%s3 + $0x38] sm:$0xff]
      %v766 = vld [vmem:[%s3 + $0x40] sm:$0xff]
      %v767 = vld [vmem:[%s3 + $0x48] sm:$0xff]
      %v768 = vld [vmem:[%s3 + $0x50] sm:$0xff]
      %v769 = vld [vmem:[%s3 + $0x58] sm:$0xff]
      %v770 = vld [vmem:[%s3 + $0x60] sm:$0xff]
      %v771 = vld [vmem:[%s3 + $0x68] sm:$0xff]
      %v772 = vld [vmem:[%s3 + $0x70] sm:$0xff]
      %v773 = vld [vmem:[%s3 + $0x78] sm:$0xff]
      %v775 = vsel %vm572, %v757, 0
      %777 = vmatpush.msra.mxu0 0.0
      %778 = vmatpush.msra.mxu0 0.0
      %779 = vmatpush.msra.mxu0 0.0
      %780 = vmatpush.msra.mxu0 0.0
      %781 = vmatpush.msra.mxu0 0.0
      %782 = vmatpush.msra.mxu0 0.0
      %783 = vmatpush.msra.mxu0 0.0
      %784 = vmatpush.msra.mxu0 0.0
      %785 = vmatpush.msra.mxu0 %v772
      %786 = vmatpush.msra.mxu0 %v770
      %787 = vmatpush.msra.mxu0 %v768
      %788 = vmatpush.msra.mxu0 %v766
      %789 = vmatpush.msra.mxu0 %v764
      %790 = vmatpush.msra.mxu0 %v762
      %791 = vmatpush.msra.mxu0 %v760
      %792 = vmatpush.msra.mxu0 %v758
      %793 = vmatmul.f32.gmra.mxu0 %v775
      %v794 = vpop.f32.mrf.mxu0
      %v795 = vadd.f32 0.0, %v794
      %796 = vdwg.mxu0
      %797 = vmatpush.msra.mxu0 0.0
      %798 = vmatpush.msra.mxu0 0.0
      %799 = vmatpush.msra.mxu0 0.0
      %800 = vmatpush.msra.mxu0 0.0
      %801 = vmatpush.msra.mxu0 0.0
      %802 = vmatpush.msra.mxu0 0.0
      %803 = vmatpush.msra.mxu0 0.0
      %804 = vmatpush.msra.mxu0 0.0
      %805 = vmatpush.msra.mxu0 %v773
      %806 = vmatpush.msra.mxu0 %v771
      %807 = vmatpush.msra.mxu0 %v769
      %808 = vmatpush.msra.mxu0 %v767
      %809 = vmatpush.msra.mxu0 %v765
      %810 = vmatpush.msra.mxu0 %v763
      %811 = vmatpush.msra.mxu0 %v761
      %812 = vmatpush.msra.mxu0 %v759
      %813 = vmatmul.f32.gmra.mxu0 %v775
      %v814 = vpop.f32.mrf.mxu0
      %v815 = vadd.f32 0.0, %v814
      %816 = vdwg.mxu0
      %v817 = vld [vmem:[%s4] sm:$0x1]
      %v818 = vmul.f32 %v817, %v815
      %v819 = vld [vmem:[%s5] sm:$0x1]
      %v820 = vmul.f32 %v795, %v818
      %v821 = vsub.f32 %v819, %v820
      %v823 = vperm.slane %v818, 0
      %v825 = vmul.f32 %v642, %v823
      %v826 = vmul.f32 %v644, %v823
      %v828 = vperm.slane %v821, 0
      %v830 = vadd.f32 %v825, %v828
      %v831 = vadd.f32 %v826, %v828
      %v832 = vmul.f32 %v830, 0.5
      %v833 = vmul.f32 %v831, 0.5
      %v834 = vtanh.pop %v832
      %v835 = vtanh.pop %v833
      %v836 = vmul.f32 %v834, 0.5
      %v837 = vmul.f32 %v835, 0.5
      %v838 = vadd.f32 %v836, 0.5
      %v839 = vadd.f32 %v837, 0.5
      %v840 = vmul.f32 %v830, %v838
      %v841 = vmul.f32 %v831, %v839
      %v842 = vpack.c.bf16 %v840, %v840
      %v843 = vpack.c.bf16 %v841, %v841
      %844 = vst [vmem:[%s251] sm:$0xf] %v842
      %vm845 = vcmask 1040384
      %vm846 = vsmask.f32 256
      %vm847 = vmand %vm845, %vm846
      %v848 = vld [vmem:[%s251 + $0x4] sm:$0x1]
      %v849 = vsel %vm847, %v843, %v848
      %850 = vst [vmem:[%s251 + $0x4] sm:$0x1] %v849
      %p851 = scmp.lt.s32.totalorder %s17, 1
      %s852 = scalar_select %p851, %s17, 1
      %s853 = smul.addr %s852, 2
      %s854 = smul.addr %s853, 4
      %s855 = scalar_lea.vmem %s6, %s854
      // Predicated region
      $region45: #{scorenet_forward.10} parent=43 // pred_check
        %p856 = pneg %p166
      $region46: #{scorenet_forward.10} parent=43 // pred_check_branch
        %858 = sbr.rel (%p856) target = $region48
      $region47: #{scorenet_forward.10} parent=43 // pred_region
        _
      $region48: #{scorenet_forward.10} parent=43 // pred_fallthru
        _
    $region44: #{scorenet_forward.10} parent=5 // pred_fallthru
      _
    %p859 = scmp.le.s32.totalorder 2, %s12
    // Predicated region
    $region49: #{scorenet_forward.10} parent=5 // pred_check
      %p860 = pneg %p859
    $region50: #{scorenet_forward.10} parent=5 // pred_check_branch
      %862 = sbr.rel (%p860) target = $region52
    $region51: #{scorenet_forward.10} parent=5 // pred_region
      %s863 = ssub.s32 %s12, 2
      // Predicated region
      $region53: #{scorenet_forward.10} parent=51 // pred_check
        %p864 = pneg %p172
      $region54: #{scorenet_forward.10} parent=51 // pred_check_branch
        %866 = sbr.rel (%p864) target = $region56
      $region55: #{scorenet_forward.10} parent=51 // pred_region
        %p867 = scmp.lt.s32.totalorder %s18, 1
        %s868 = scalar_select %p867, %s18, 1
        %s869 = smul.addr %s868, 2
        %s870 = smul.addr %s869, 4
        %s871 = scalar_lea.vmem %s6, %s870
      $region56: #{scorenet_forward.10} parent=51 // pred_fallthru
        _
    $region52: #{scorenet_forward.10} parent=5 // pred_fallthru
      _
  $region6: #{scorenet_forward.10} parent=0 // loop_footer
    %s16 = sadd.s32 1, %s12
  $region7: #{scorenet_forward.10} parent=0 // loop_footer_branch
    %11 = sbr.rel target = $region3
  $region8: #{scorenet_forward.10} parent=0 // loop_exit
    _

// kernel: scorenet_forward.11
$region0: #{scorenet_forward.11}
  #allocation0 [shape = 'u32[]', space=smem, size = 0x4, offset = 0x4, fixed_abs, tag = 'smem constant byte address 0x4 - core index']
  #allocation1 [shape = 'u32[72,128]{1,0:T(1,128)}', space=vmem, size = 0x9000, scoped, tag = 'internal scratch']
  %s0 = inlined_call_operand.vmem [shape: bf16[2,4,1152], index: 0, kind: input, shape index: {}]
  %s1 = inlined_call_operand.vmem [shape: bf16[1152,256], index: 1, kind: input, shape index: {}]
  %s2 = inlined_call_operand.vmem [shape: f32[512,64], index: 2, kind: input, shape index: {}]
  %s3 = inlined_call_operand.vmem [shape: f32[64,512], index: 3, kind: input, shape index: {}]
  %s4 = inlined_call_operand.vmem [shape: f32[1,256], index: 4, kind: input, shape index: {}]
  %s5 = inlined_call_operand.vmem [shape: f32[1,256], index: 5, kind: input, shape index: {}]
  %s6 = inlined_call_operand.vmem [shape: bf16[2,4,256], index: 6, kind: output, shape index: {}]
  %s7 = sld [smem:[#allocation0]]
  $region57: #{scorenet_forward.11} parent=0
    _
  %s9 = ssub.s32 1, %s7
  %s10 = scalar_select 0, %s9, %s7
  loop: start=0, step=1, limit=4
  $region2: #{scorenet_forward.11} parent=0 // loop_pre_header
    _
  $region3: #{scorenet_forward.11} parent=0 // loop_header
    %s12 = sphi 0, %s16
    %p13 = scmp.ge.s32.totalorder %s12, 4
    %s22 = sphi 0, %s24
    %s25 = sphi 0, %s22
    %s26 = sphi 0, %s25
    %s42 = sphi 0, %s26
    %s46 = sphi 0, %s46
    %s48 = sphi 0, %s46
    %s49 = sphi 0, %s48
    %s63 = sphi 0, %s49
    %s67 = sphi 0, %s67
    %s69 = sphi 0, %s67
    %s70 = sphi 0, %s69
    %s84 = sphi 0, %s70
    %s88 = sphi 0, %s88
    %s90 = sphi 0, %s88
    %s91 = sphi 0, %s90
    %s105 = sphi 0, %s91
    %s109 = sphi 0, %s109
    %s111 = sphi 0, %s109
    %s112 = sphi 0, %s111
    %s126 = sphi 0, %s112
    %s130 = sphi 0, %s130
    %s132 = sphi 0, %s130
    %s133 = sphi 0, %s132
    %s147 = sphi 0, %s133
    %s153 = sphi 0, %s155
    %s156 = sphi 0, %s153
    %s157 = sphi 0, %s156
    %s173 = sphi 0, %s157
  $region4: #{scorenet_forward.11} parent=0 // loop_header_branch
    %15 = sbr.rel (%p13) target = $region8
  $region5: #{scorenet_forward.11} parent=0 // loop_body
    %s17 = ssub.s32 %s12, 1
    %s18 = ssub.s32 %s12, 2
    %s19 = sadd.s32 %s12, 1
    %s20 = ssub.s32 %s12, %s19
    %p21 = scmp.eq.s32.totalorder %s20, 0
    %s23 = sadd.s32 %s22, 1
    %s24 = scalar_select %p21, %s22, %s23
    %p27 = pneg %p21
    %p28 = scmp.eq.s32.totalorder %s12, 1
    %p29 = por %p27, %p28
    %p30 = scmp.ne.s32.totalorder %s22, %s25
    %p31 = scmp.eq.s32.totalorder %s12, 0
    %p32 = por %p30, %p31
    %p33 = scmp.ne.s32.totalorder %s22, %s25
    %p34 = scmp.eq.s32.totalorder %s17, 1
    %p35 = por %p33, %p34
    %p36 = scmp.ne.s32.totalorder %s25, %s26
    %p37 = scmp.eq.s32.totalorder %s17, 0
    %p38 = por %p36, %p37
    %p39 = scmp.ne.s32.totalorder %s25, %s26
    %p40 = scmp.eq.s32.totalorder %s18, 1
    %p41 = por %p39, %p40
    %p43 = scmp.ne.s32.totalorder %s26, %s42
    %p44 = scmp.eq.s32.totalorder %s18, 0
    %p45 = por %p43, %p44
    %s47 = sadd.s32 %s46, 1
    %p50 = scmp.eq.s32.totalorder %s12, 1
    %p51 = scmp.ne.s32.totalorder %s46, %s48
    %p52 = scmp.eq.s32.totalorder %s12, 0
    %p53 = por %p51, %p52
    %p54 = scmp.ne.s32.totalorder %s46, %s48
    %p55 = scmp.eq.s32.totalorder %s17, 1
    %p56 = por %p54, %p55
    %p57 = scmp.ne.s32.totalorder %s48, %s49
    %p58 = scmp.eq.s32.totalorder %s17, 0
    %p59 = por %p57, %p58
    %p60 = scmp.ne.s32.totalorder %s48, %s49
    %p61 = scmp.eq.s32.totalorder %s18, 1
    %p62 = por %p60, %p61
    %p64 = scmp.ne.s32.totalorder %s49, %s63
    %p65 = scmp.eq.s32.totalorder %s18, 0
    %p66 = por %p64, %p65
    %s68 = sadd.s32 %s67, 1
    %p71 = scmp.eq.s32.totalorder %s12, 1
    %p72 = scmp.ne.s32.totalorder %s67, %s69
    %p73 = scmp.eq.s32.totalorder %s12, 0
    %p74 = por %p72, %p73
    %p75 = scmp.ne.s32.totalorder %s67, %s69
    %p76 = scmp.eq.s32.totalorder %s17, 1
    %p77 = por %p75, %p76
    %p78 = scmp.ne.s32.totalorder %s69, %s70
    %p79 = scmp.eq.s32.totalorder %s17, 0
    %p80 = por %p78, %p79
    %p81 = scmp.ne.s32.totalorder %s69, %s70
    %p82 = scmp.eq.s32.totalorder %s18, 1
    %p83 = por %p81, %p82
    %p85 = scmp.ne.s32.totalorder %s70, %s84
    %p86 = scmp.eq.s32.totalorder %s18, 0
    %p87 = por %p85, %p86
    %s89 = sadd.s32 %s88, 1
    %p92 = scmp.eq.s32.totalorder %s12, 1
    %p93 = scmp.ne.s32.totalorder %s88, %s90
    %p94 = scmp.eq.s32.totalorder %s12, 0
    %p95 = por %p93, %p94
    %p96 = scmp.ne.s32.totalorder %s88, %s90
    %p97 = scmp.eq.s32.totalorder %s17, 1
    %p98 = por %p96, %p97
    %p99 = scmp.ne.s32.totalorder %s90, %s91
    %p100 = scmp.eq.s32.totalorder %s17, 0
    %p101 = por %p99, %p100
    %p102 = scmp.ne.s32.totalorder %s90, %s91
    %p103 = scmp.eq.s32.totalorder %s18, 1
    %p104 = por %p102, %p103
    %p106 = scmp.ne.s32.totalorder %s91, %s105
    %p107 = scmp.eq.s32.totalorder %s18, 0
    %p108 = por %p106, %p107
    %s110 = sadd.s32 %s109, 1
    %p113 = scmp.eq.s32.totalorder %s12, 1
    %p114 = scmp.ne.s32.totalorder %s109, %s111
    %p115 = scmp.eq.s32.totalorder %s12, 0
    %p116 = por %p114, %p115
    %p117 = scmp.ne.s32.totalorder %s109, %s111
    %p118 = scmp.eq.s32.totalorder %s17, 1
    %p119 = por %p117, %p118
    %p120 = scmp.ne.s32.totalorder %s111, %s112
    %p121 = scmp.eq.s32.totalorder %s17, 0
    %p122 = por %p120, %p121
    %p123 = scmp.ne.s32.totalorder %s111, %s112
    %p124 = scmp.eq.s32.totalorder %s18, 1
    %p125 = por %p123, %p124
    %p127 = scmp.ne.s32.totalorder %s112, %s126
    %p128 = scmp.eq.s32.totalorder %s18, 0
    %p129 = por %p127, %p128
    %s131 = sadd.s32 %s130, 1
    %p134 = scmp.eq.s32.totalorder %s12, 1
    %p135 = scmp.ne.s32.totalorder %s130, %s132
    %p136 = scmp.eq.s32.totalorder %s12, 0
    %p137 = por %p135, %p136
    %p138 = scmp.ne.s32.totalorder %s130, %s132
    %p139 = scmp.eq.s32.totalorder %s17, 1
    %p140 = por %p138, %p139
    %p141 = scmp.ne.s32.totalorder %s132, %s133
    %p142 = scmp.eq.s32.totalorder %s17, 0
    %p143 = por %p141, %p142
    %p144 = scmp.ne.s32.totalorder %s132, %s133
    %p145 = scmp.eq.s32.totalorder %s18, 1
    %p146 = por %p144, %p145
    %p148 = scmp.ne.s32.totalorder %s133, %s147
    %p149 = scmp.eq.s32.totalorder %s18, 0
    %p150 = por %p148, %p149
    %s151 = ssub.s32 %s12, %s19
    %p152 = scmp.eq.s32.totalorder %s151, 0
    %s154 = sadd.s32 %s153, 1
    %s155 = scalar_select %p152, %s153, %s154
    %p158 = pneg %p152
    %p159 = scmp.eq.s32.totalorder %s12, 1
    %p160 = por %p158, %p159
    %p161 = scmp.ne.s32.totalorder %s153, %s156
    %p162 = scmp.eq.s32.totalorder %s12, 0
    %p163 = por %p161, %p162
    %p164 = scmp.ne.s32.totalorder %s153, %s156
    %p165 = scmp.eq.s32.totalorder %s17, 1
    %p166 = por %p164, %p165
    %p167 = scmp.ne.s32.totalorder %s156, %s157
    %p168 = scmp.eq.s32.totalorder %s17, 0
    %p169 = por %p167, %p168
    %p170 = scmp.ne.s32.totalorder %s156, %s157
    %p171 = scmp.eq.s32.totalorder %s18, 1
    %p172 = por %p170, %p171
    %p174 = scmp.ne.s32.totalorder %s157, %s173
    %p175 = scmp.eq.s32.totalorder %s18, 0
    %p176 = por %p174, %p175
    %p177 = scmp.le.s32.totalorder 1, %s12
    %p178 = scmp.lt.s32.totalorder %s12, 3
    %p179 = pnand %p177, %p178
    %p180 = pneg %p179
    // Predicated region
    $region9: #{scorenet_forward.11} parent=5 // pred_check
      _
    $region10: #{scorenet_forward.11} parent=5 // pred_check_branch
      %182 = sbr.rel (%p179) target = $region12
    $region11: #{scorenet_forward.11} parent=5 // pred_region
      %s183 = ssub.s32 %s12, 1
      // Predicated region
      $region13: #{scorenet_forward.11} parent=11 // pred_check
        %p184 = pneg %p59
      $region14: #{scorenet_forward.11} parent=11 // pred_check_branch
        %186 = sbr.rel (%p184) target = $region16
      $region15: #{scorenet_forward.11} parent=11 // pred_region
        _
      $region16: #{scorenet_forward.11} parent=11 // pred_fallthru
        _
      // Predicated region
      $region17: #{scorenet_forward.11} parent=11 // pred_check
        %p187 = pneg %p80
      $region18: #{scorenet_forward.11} parent=11 // pred_check_branch
        %189 = sbr.rel (%p187) target = $region20
      $region19: #{scorenet_forward.11} parent=11 // pred_region
        _
      $region20: #{scorenet_forward.11} parent=11 // pred_fallthru
        _
      // Predicated region
      $region21: #{scorenet_forward.11} parent=11 // pred_check
        %p190 = pneg %p101
      $region22: #{scorenet_forward.11} parent=11 // pred_check_branch
        %192 = sbr.rel (%p190) target = $region24
      $region23: #{scorenet_forward.11} parent=11 // pred_region
        _
      $region24: #{scorenet_forward.11} parent=11 // pred_fallthru
        _
      // Predicated region
      $region25: #{scorenet_forward.11} parent=11 // pred_check
        %p193 = pneg %p122
      $region26: #{scorenet_forward.11} parent=11 // pred_check_branch
        %195 = sbr.rel (%p193) target = $region28
      $region27: #{scorenet_forward.11} parent=11 // pred_region
        _
      $region28: #{scorenet_forward.11} parent=11 // pred_fallthru
        _
      // Predicated region
      $region29: #{scorenet_forward.11} parent=11 // pred_check
        %p196 = pneg %p143
      $region30: #{scorenet_forward.11} parent=11 // pred_check_branch
        %198 = sbr.rel (%p196) target = $region32
      $region31: #{scorenet_forward.11} parent=11 // pred_region
        _
      $region32: #{scorenet_forward.11} parent=11 // pred_fallthru
        _
    $region12: #{scorenet_forward.11} parent=5 // pred_fallthru
      _
    %p199 = scmp.lt.s32.totalorder %s12, 2
    // Predicated region
    $region33: #{scorenet_forward.11} parent=5 // pred_check
      %p200 = pneg %p199
    $region34: #{scorenet_forward.11} parent=5 // pred_check_branch
      %202 = sbr.rel (%p200) target = $region36
    $region35: #{scorenet_forward.11} parent=5 // pred_region
      // Predicated region
      $region37: #{scorenet_forward.11} parent=35 // pred_check
        %p203 = pneg %p32
      $region38: #{scorenet_forward.11} parent=35 // pred_check_branch
        %205 = sbr.rel (%p203) target = $region40
      $region39: #{scorenet_forward.11} parent=35 // pred_region
        %p206 = scmp.lt.s32.totalorder %s12, 1
        %s207 = scalar_select %p206, %s12, 1
        %s208 = smul.addr %s207, 9
        %s209 = smul.addr %s208, 2
        %s210 = scalar_lea.vmem %s0, %s209
      $region40: #{scorenet_forward.11} parent=35 // pred_fallthru
        _
    $region36: #{scorenet_forward.11} parent=5 // pred_fallthru
      _
    %p211 = scmp.le.s32.totalorder 1, %s12
    %p212 = scmp.lt.s32.totalorder %s12, 3
    %p213 = pnand %p211, %p212
    %p214 = pneg %p213
    // Predicated region
    $region41: #{scorenet_forward.11} parent=5 // pred_check
      _
    $region42: #{scorenet_forward.11} parent=5 // pred_check_branch
      %216 = sbr.rel (%p213) target = $region44
    $region43: #{scorenet_forward.11} parent=5 // pred_region
      %s217 = ssub.s32 %s12, 1
      %p218 = scmp.lt.s32.totalorder %s17, 1
      %s219 = scalar_select %p218, %s17, 1
      %s220 = smul.addr %s219, 9
      %s221 = smul.addr %s220, 2
      %s222 = scalar_lea.vmem %s0, %s221
      %p223 = pneg %p38
      %p224 = pneg %p35
      %p225 = pneg %p59
      %p226 = pneg %p56
      %p227 = pneg %p80
      %p228 = pneg %p77
      %p229 = pneg %p101
      %p230 = pneg %p98
      %p231 = pneg %p122
      %p232 = pneg %p119
      %p233 = pneg %p143
      %p234 = pneg %p140
      %p235 = pneg %p169
      %p236 = pneg %p166
      %p237 = scmp.lt.s32.totalorder %s17, 1
      %s238 = scalar_select %p237, %s17, 1
      %s239 = smul.addr %s238, 2
      %s240 = smul.addr %s239, 2
      %s241 = scalar_lea.vmem %s6, %s240
      %p242 = scmp.lt.s32.totalorder %s17, 1
      %s243 = scalar_select %p242, %s17, 1
      %s244 = smul.addr %s243, 9
      %s245 = smul.addr %s244, 2
      %s246 = scalar_lea.vmem %s0, %s245
      %p247 = scmp.lt.s32.totalorder %s17, 1
      %s248 = scalar_select %p247, %s17, 1
      %s249 = smul.addr %s248, 2
      %s250 = smul.addr %s249, 2
      %s251 = scalar_lea.vmem %s6, %s250
      %v252 = vld [vmem:[%s246] sm:$0xff]
      %v253 = vld [vmem:[%s246 + $0x8] sm:$0xff]
      %v254 = vld [vmem:[%s246 + $0x10] sm:$0x3]
      %v255 = vld [vmem:[%s1] sm:$0xff]
      %v256 = vld [vmem:[%s1 + $0x8] sm:$0xff]
      %v257 = vld [vmem:[%s1 + $0x10] sm:$0xff]
      %v258 = vld [vmem:[%s1 + $0x18] sm:$0xff]
      %v259 = vld [vmem:[%s1 + $0x20] sm:$0xff]
      %v260 = vld [vmem:[%s1 + $0x28] sm:$0xff]
      %v261 = vld [vmem:[%s1 + $0x30] sm:$0xff]
      %v262 = vld [vmem:[%s1 + $0x38] sm:$0xff]
      %v263 = vld [vmem:[%s1 + $0x40] sm:$0xff]
      %v264 = vld [vmem:[%s1 + $0x48] sm:$0xff]
      %v265 = vld [vmem:[%s1 + $0x50] sm:$0xff]
      %v266 = vld [vmem:[%s1 + $0x58] sm:$0xff]
      %v267 = vld [vmem:[%s1 + $0x60] sm:$0xff]
      %v268 = vld [vmem:[%s1 + $0x68] sm:$0xff]
      %v269 = vld [vmem:[%s1 + $0x70] sm:$0xff]
      %v270 = vld [vmem:[%s1 + $0x78] sm:$0xff]
      %v271 = vld [vmem:[%s1 + $0x80] sm:$0xff]
      %v272 = vld [vmem:[%s1 + $0x88] sm:$0xff]
      %v273 = vld [vmem:[%s1 + $0x90] sm:$0xff]
      %v274 = vld [vmem:[%s1 + $0x98] sm:$0xff]
      %v275 = vld [vmem:[%s1 + $0xa0] sm:$0xff]
      %v276 = vld [vmem:[%s1 + $0xa8] sm:$0xff]
      %v277 = vld [vmem:[%s1 + $0xb0] sm:$0xff]
      %v278 = vld [vmem:[%s1 + $0xb8] sm:$0xff]
      %v279 = vld [vmem:[%s1 + $0xc0] sm:$0xff]
      %v280 = vld [vmem:[%s1 + $0xc8] sm:$0xff]
      %v281 = vld [vmem:[%s1 + $0xd0] sm:$0xff]
      %v282 = vld [vmem:[%s1 + $0xd8] sm:$0xff]
      %v283 = vld [vmem:[%s1 + $0xe0] sm:$0xff]
      %v284 = vld [vmem:[%s1 + $0xe8] sm:$0xff]
      %v285 = vld [vmem:[%s1 + $0xf0] sm:$0xff]
      %v286 = vld [vmem:[%s1 + $0xf8] sm:$0xff]
      %v287 = vld [vmem:[%s1 + $0x100] sm:$0xff]
      %v288 = vld [vmem:[%s1 + $0x108] sm:$0xff]
      %v289 = vld [vmem:[%s1 + $0x110] sm:$0xff]
      %v290 = vld [vmem:[%s1 + $0x118] sm:$0xff]
      %v291 = vld [vmem:[%s1 + $0x120] sm:$0xff]
      %v292 = vld [vmem:[%s1 + $0x128] sm:$0xff]
      %v293 = vld [vmem:[%s1 + $0x130] sm:$0xff]
      %v294 = vld [vmem:[%s1 + $0x138] sm:$0xff]
      %v295 = vld [vmem:[%s1 + $0x140] sm:$0xff]
      %v296 = vld [vmem:[%s1 + $0x148] sm:$0xff]
      %v297 = vld [vmem:[%s1 + $0x150] sm:$0xff]
      %v298 = vld [vmem:[%s1 + $0x158] sm:$0xff]
      %v299 = vld [vmem:[%s1 + $0x160] sm:$0xff]
      %v300 = vld [vmem:[%s1 + $0x168] sm:$0xff]
      %v301 = vld [vmem:[%s1 + $0x170] sm:$0xff]
      %v302 = vld [vmem:[%s1 + $0x178] sm:$0xff]
      %v303 = vld [vmem:[%s1 + $0x180] sm:$0xff]
      %v304 = vld [vmem:[%s1 + $0x188] sm:$0xff]
      %v305 = vld [vmem:[%s1 + $0x190] sm:$0xff]
      %v306 = vld [vmem:[%s1 + $0x198] sm:$0xff]
      %v307 = vld [vmem:[%s1 + $0x1a0] sm:$0xff]
      %v308 = vld [vmem:[%s1 + $0x1a8] sm:$0xff]
      %v309 = vld [vmem:[%s1 + $0x1b0] sm:$0xff]
      %v310 = vld [vmem:[%s1 + $0x1b8] sm:$0xff]
      %v311 = vld [vmem:[%s1 + $0x1c0] sm:$0xff]
      %v312 = vld [vmem:[%s1 + $0x1c8] sm:$0xff]
      %v313 = vld [vmem:[%s1 + $0x1d0] sm:$0xff]
      %v314 = vld [vmem:[%s1 + $0x1d8] sm:$0xff]
      %v315 = vld [vmem:[%s1 + $0x1e0] sm:$0xff]
      %v316 = vld [vmem:[%s1 + $0x1e8] sm:$0xff]
      %v317 = vld [vmem:[%s1 + $0x1f0] sm:$0xff]
      %v318 = vld [vmem:[%s1 + $0x1f8] sm:$0xff]
      %v319 = vld [vmem:[%s1 + $0x200] sm:$0xff]
      %v320 = vld [vmem:[%s1 + $0x208] sm:$0xff]
      %v321 = vld [vmem:[%s1 + $0x210] sm:$0xff]
      %v322 = vld [vmem:[%s1 + $0x218] sm:$0xff]
      %v323 = vld [vmem:[%s1 + $0x220] sm:$0xff]
      %v324 = vld [vmem:[%s1 + $0x228] sm:$0xff]
      %v325 = vld [vmem:[%s1 + $0x230] sm:$0xff]
      %v326 = vld [vmem:[%s1 + $0x238] sm:$0xff]
      %v327 = vld [vmem:[%s1 + $0x240] sm:$0xff]
      %v328 = vld [vmem:[%s1 + $0x248] sm:$0xff]
      %v329 = vld [vmem:[%s1 + $0x250] sm:$0xff]
      %v330 = vld [vmem:[%s1 + $0x258] sm:$0xff]
      %v331 = vld [vmem:[%s1 + $0x260] sm:$0xff]
      %v332 = vld [vmem:[%s1 + $0x268] sm:$0xff]
      %v333 = vld [vmem:[%s1 + $0x270] sm:$0xff]
      %v334 = vld [vmem:[%s1 + $0x278] sm:$0xff]
      %v335 = vld [vmem:[%s1 + $0x280] sm:$0xff]
      %v336 = vld [vmem:[%s1 + $0x288] sm:$0xff]
      %v337 = vld [vmem:[%s1 + $0x290] sm:$0xff]
      %v338 = vld [vmem:[%s1 + $0x298] sm:$0xff]
      %v339 = vld [vmem:[%s1 + $0x2a0] sm:$0xff]
      %v340 = vld [vmem:[%s1 + $0x2a8] sm:$0xff]
      %v341 = vld [vmem:[%s1 + $0x2b0] sm:$0xff]
      %v342 = vld [vmem:[%s1 + $0x2b8] sm:$0xff]
      %v343 = vld [vmem:[%s1 + $0x2c0] sm:$0xff]
      %v344 = vld [vmem:[%s1 + $0x2c8] sm:$0xff]
      %v345 = vld [vmem:[%s1 + $0x2d0] sm:$0xff]
      %v346 = vld [vmem:[%s1 + $0x2d8] sm:$0xff]
      %v347 = vld [vmem:[%s1 + $0x2e0] sm:$0xff]
      %v348 = vld [vmem:[%s1 + $0x2e8] sm:$0xff]
      %v349 = vld [vmem:[%s1 + $0x2f0] sm:$0xff]
      %v350 = vld [vmem:[%s1 + $0x2f8] sm:$0xff]
      %v351 = vld [vmem:[%s1 + $0x300] sm:$0xff]
      %v352 = vld [vmem:[%s1 + $0x308] sm:$0xff]
      %v353 = vld [vmem:[%s1 + $0x310] sm:$0xff]
      %v354 = vld [vmem:[%s1 + $0x318] sm:$0xff]
      %v355 = vld [vmem:[%s1 + $0x320] sm:$0xff]
      %v356 = vld [vmem:[%s1 + $0x328] sm:$0xff]
      %v357 = vld [vmem:[%s1 + $0x330] sm:$0xff]
      %v358 = vld [vmem:[%s1 + $0x338] sm:$0xff]
      %v359 = vld [vmem:[%s1 + $0x340] sm:$0xff]
      %v360 = vld [vmem:[%s1 + $0x348] sm:$0xff]
      %v361 = vld [vmem:[%s1 + $0x350] sm:$0xff]
      %v362 = vld [vmem:[%s1 + $0x358] sm:$0xff]
      %v363 = vld [vmem:[%s1 + $0x360] sm:$0xff]
      %v364 = vld [vmem:[%s1 + $0x368] sm:$0xff]
      %v365 = vld [vmem:[%s1 + $0x370] sm:$0xff]
      %v366 = vld [vmem:[%s1 + $0x378] sm:$0xff]
      %v367 = vld [vmem:[%s1 + $0x380] sm:$0xff]
      %v368 = vld [vmem:[%s1 + $0x388] sm:$0xff]
      %v369 = vld [vmem:[%s1 + $0x390] sm:$0xff]
      %v370 = vld [vmem:[%s1 + $0x398] sm:$0xff]
      %v371 = vld [vmem:[%s1 + $0x3a0] sm:$0xff]
      %v372 = vld [vmem:[%s1 + $0x3a8] sm:$0xff]
      %v373 = vld [vmem:[%s1 + $0x3b0] sm:$0xff]
      %v374 = vld [vmem:[%s1 + $0x3b8] sm:$0xff]
      %v375 = vld [vmem:[%s1 + $0x3c0] sm:$0xff]
      %v376 = vld [vmem:[%s1 + $0x3c8] sm:$0xff]
      %v377 = vld [vmem:[%s1 + $0x3d0] sm:$0xff]
      %v378 = vld [vmem:[%s1 + $0x3d8] sm:$0xff]
      %v379 = vld [vmem:[%s1 + $0x3e0] sm:$0xff]
      %v380 = vld [vmem:[%s1 + $0x3e8] sm:$0xff]
      %v381 = vld [vmem:[%s1 + $0x3f0] sm:$0xff]
      %v382 = vld [vmem:[%s1 + $0x3f8] sm:$0xff]
      %v383 = vld [vmem:[%s1 + $0x400] sm:$0xff]
      %v384 = vld [vmem:[%s1 + $0x408] sm:$0xff]
      %v385 = vld [vmem:[%s1 + $0x410] sm:$0xff]
      %v386 = vld [vmem:[%s1 + $0x418] sm:$0xff]
      %v387 = vld [vmem:[%s1 + $0x420] sm:$0xff]
      %v388 = vld [vmem:[%s1 + $0x428] sm:$0xff]
      %v389 = vld [vmem:[%s1 + $0x430] sm:$0xff]
      %v390 = vld [vmem:[%s1 + $0x438] sm:$0xff]
      %v391 = vld [vmem:[%s1 + $0x440] sm:$0xff]
      %v392 = vld [vmem:[%s1 + $0x448] sm:$0xff]
      %v393 = vld [vmem:[%s1 + $0x450] sm:$0xff]
      %v394 = vld [vmem:[%s1 + $0x458] sm:$0xff]
      %v395 = vld [vmem:[%s1 + $0x460] sm:$0xff]
      %v396 = vld [vmem:[%s1 + $0x468] sm:$0xff]
      %v397 = vld [vmem:[%s1 + $0x470] sm:$0xff]
      %v398 = vld [vmem:[%s1 + $0x478] sm:$0xff]
      %400 = vst [vmem:[#allocation1] ss:$4 sm:$0xff] %v252
      %s402 = scalar_lea.vmem [#allocation1], 32
      %403 = vst [vmem:[%s402] ss:$4 sm:$0xff] %v253
      %v404 = vld.sshfl [vmem:[#allocation1] sm:$0xff pattern:$0x73625140]
      %v405 = vld.sshfl [vmem:[#allocation1 + $0x8] sm:$0xff pattern:$0x73625140]
      %v406 = vld.sshfl [vmem:[#allocation1 + $0x10] sm:$0xff pattern:$0x73625140]
      %v407 = vld.sshfl [vmem:[#allocation1 + $0x18] sm:$0xff pattern:$0x73625140]
      %v408 = vld.sshfl [vmem:[#allocation1 + $0x20] sm:$0xff pattern:$0x73625140]
      %v409 = vld.sshfl [vmem:[#allocation1 + $0x28] sm:$0xff pattern:$0x73625140]
      %v410 = vld.sshfl [vmem:[#allocation1 + $0x30] sm:$0xff pattern:$0x73625140]
      %v411 = vld.sshfl [vmem:[#allocation1 + $0x38] sm:$0xff pattern:$0x73625140]
      %413 = vst [vmem:[#allocation1] ss:$4 sm:$0xff] %v254
      %v414 = vld.sshfl [vmem:[#allocation1] sm:$0xff pattern:$0x73625140]
      %v568 = vunpack.c.l.b16 %v255
      %v569 = vunpack.c.h.b16 %v255
      %v570 = vunpack.c.l.b16 %v256
      %v571 = vunpack.c.h.b16 %v256
      %v572 = vunpack.c.l.b16 %v257
      %v573 = vunpack.c.h.b16 %v257
      %v574 = vunpack.c.l.b16 %v258
      %v575 = vunpack.c.h.b16 %v258
      %v576 = vunpack.c.l.b16 %v259
      %v577 = vunpack.c.h.b16 %v259
      %v578 = vunpack.c.l.b16 %v260
      %v579 = vunpack.c.h.b16 %v260
      %v580 = vunpack.c.l.b16 %v261
      %v581 = vunpack.c.h.b16 %v261
      %v582 = vunpack.c.l.b16 %v262
      %v583 = vunpack.c.h.b16 %v262
      %v584 = vunpack.c.l.b16 %v263
      %v585 = vunpack.c.h.b16 %v263
      %v586 = vunpack.c.l.b16 %v264
      %v587 = vunpack.c.h.b16 %v264
      %v588 = vunpack.c.l.b16 %v265
      %v589 = vunpack.c.h.b16 %v265
      %v590 = vunpack.c.l.b16 %v266
      %v591 = vunpack.c.h.b16 %v266
      %v592 = vunpack.c.l.b16 %v267
      %v593 = vunpack.c.h.b16 %v267
      %v594 = vunpack.c.l.b16 %v268
      %v595 = vunpack.c.h.b16 %v268
      %v596 = vunpack.c.l.b16 %v269
      %v597 = vunpack.c.h.b16 %v269
      %v598 = vunpack.c.l.b16 %v270
      %v599 = vunpack.c.h.b16 %v270
      %v600 = vunpack.c.l.b16 %v271
      %v601 = vunpack.c.h.b16 %v271
      %v602 = vunpack.c.l.b16 %v272
      %v603 = vunpack.c.h.b16 %v272
      %v604 = vunpack.c.l.b16 %v273
      %v605 = vunpack.c.h.b16 %v273
      %v606 = vunpack.c.l.b16 %v274
      %v607 = vunpack.c.h.b16 %v274
      %v608 = vunpack.c.l.b16 %v275
      %v609 = vunpack.c.h.b16 %v275
      %v610 = vunpack.c.l.b16 %v276
      %v611 = vunpack.c.h.b16 %v276
      %v612 = vunpack.c.l.b16 %v277
      %v613 = vunpack.c.h.b16 %v277
      %v614 = vunpack.c.l.b16 %v278
      %v615 = vunpack.c.h.b16 %v278
      %v616 = vunpack.c.l.b16 %v279
      %v617 = vunpack.c.h.b16 %v279
      %v618 = vunpack.c.l.b16 %v280
      %v619 = vunpack.c.h.b16 %v280
      %v620 = vunpack.c.l.b16 %v281
      %v621 = vunpack.c.h.b16 %v281
      %v622 = vunpack.c.l.b16 %v282
      %v623 = vunpack.c.h.b16 %v282
      %v624 = vunpack.c.l.b16 %v283
      %v625 = vunpack.c.h.b16 %v283
      %v626 = vunpack.c.l.b16 %v284
      %v627 = vunpack.c.h.b16 %v284
      %v628 = vunpack.c.l.b16 %v285
      %v629 = vunpack.c.h.b16 %v285
      %v630 = vunpack.c.l.b16 %v286
      %v631 = vunpack.c.h.b16 %v286
      %v632 = vunpack.c.l.b16 %v287
      %v633 = vunpack.c.h.b16 %v287
      %v634 = vunpack.c.l.b16 %v288
      %v635 = vunpack.c.h.b16 %v288
      %v636 = vunpack.c.l.b16 %v289
      %v637 = vunpack.c.h.b16 %v289
      %v638 = vunpack.c.l.b16 %v290
      %v639 = vunpack.c.h.b16 %v290
      %v640 = vunpack.c.l.b16 %v291
      %v641 = vunpack.c.h.b16 %v291
      %v642 = vunpack.c.l.b16 %v292
      %v643 = vunpack.c.h.b16 %v292
      %v644 = vunpack.c.l.b16 %v293
      %v645 = vunpack.c.h.b16 %v293
      %v646 = vunpack.c.l.b16 %v294
      %v647 = vunpack.c.h.b16 %v294
      %v648 = vunpack.c.l.b16 %v295
      %v649 = vunpack.c.h.b16 %v295
      %v650 = vunpack.c.l.b16 %v296
      %v651 = vunpack.c.h.b16 %v296
      %v652 = vunpack.c.l.b16 %v297
      %v653 = vunpack.c.h.b16 %v297
      %v654 = vunpack.c.l.b16 %v298
      %v655 = vunpack.c.h.b16 %v298
      %v656 = vunpack.c.l.b16 %v299
      %v657 = vunpack.c.h.b16 %v299
      %v658 = vunpack.c.l.b16 %v300
      %v659 = vunpack.c.h.b16 %v300
      %v660 = vunpack.c.l.b16 %v301
      %v661 = vunpack.c.h.b16 %v301
      %v662 = vunpack.c.l.b16 %v302
      %v663 = vunpack.c.h.b16 %v302
      %v664 = vunpack.c.l.b16 %v303
      %v665 = vunpack.c.h.b16 %v303
      %v666 = vunpack.c.l.b16 %v304
      %v667 = vunpack.c.h.b16 %v304
      %v668 = vunpack.c.l.b16 %v305
      %v669 = vunpack.c.h.b16 %v305
      %v670 = vunpack.c.l.b16 %v306
      %v671 = vunpack.c.h.b16 %v306
      %v672 = vunpack.c.l.b16 %v307
      %v673 = vunpack.c.h.b16 %v307
      %v674 = vunpack.c.l.b16 %v308
      %v675 = vunpack.c.h.b16 %v308
      %v676 = vunpack.c.l.b16 %v309
      %v677 = vunpack.c.h.b16 %v309
      %v678 = vunpack.c.l.b16 %v310
      %v679 = vunpack.c.h.b16 %v310
      %v680 = vunpack.c.l.b16 %v311
      %v681 = vunpack.c.h.b16 %v311
      %v682 = vunpack.c.l.b16 %v312
      %v683 = vunpack.c.h.b16 %v312
      %v684 = vunpack.c.l.b16 %v313
      %v685 = vunpack.c.h.b16 %v313
      %v686 = vunpack.c.l.b16 %v314
      %v687 = vunpack.c.h.b16 %v314
      %v688 = vunpack.c.l.b16 %v315
      %v689 = vunpack.c.h.b16 %v315
      %v690 = vunpack.c.l.b16 %v316
      %v691 = vunpack.c.h.b16 %v316
      %v692 = vunpack.c.l.b16 %v317
      %v693 = vunpack.c.h.b16 %v317
      %v694 = vunpack.c.l.b16 %v318
      %v695 = vunpack.c.h.b16 %v318
      %v696 = vunpack.c.l.b16 %v319
      %v697 = vunpack.c.h.b16 %v319
      %v698 = vunpack.c.l.b16 %v320
      %v699 = vunpack.c.h.b16 %v320
      %v700 = vunpack.c.l.b16 %v321
      %v701 = vunpack.c.h.b16 %v321
      %v702 = vunpack.c.l.b16 %v322
      %v703 = vunpack.c.h.b16 %v322
      %v704 = vunpack.c.l.b16 %v323
      %v705 = vunpack.c.h.b16 %v323
      %v706 = vunpack.c.l.b16 %v324
      %v707 = vunpack.c.h.b16 %v324
      %v708 = vunpack.c.l.b16 %v325
      %v709 = vunpack.c.h.b16 %v325
      %v710 = vunpack.c.l.b16 %v326
      %v711 = vunpack.c.h.b16 %v326
      %v712 = vunpack.c.l.b16 %v327
      %v713 = vunpack.c.h.b16 %v327
      %v714 = vunpack.c.l.b16 %v328
      %v715 = vunpack.c.h.b16 %v328
      %v716 = vunpack.c.l.b16 %v329
      %v717 = vunpack.c.h.b16 %v329
      %v718 = vunpack.c.l.b16 %v330
      %v719 = vunpack.c.h.b16 %v330
      %v720 = vunpack.c.l.b16 %v331
      %v721 = vunpack.c.h.b16 %v331
      %v722 = vunpack.c.l.b16 %v332
      %v723 = vunpack.c.h.b16 %v332
      %v724 = vunpack.c.l.b16 %v333
      %v725 = vunpack.c.h.b16 %v333
      %v726 = vunpack.c.l.b16 %v334
      %v727 = vunpack.c.h.b16 %v334
      %v728 = vunpack.c.l.b16 %v335
      %v729 = vunpack.c.h.b16 %v335
      %v730 = vunpack.c.l.b16 %v336
      %v731 = vunpack.c.h.b16 %v336
      %v732 = vunpack.c.l.b16 %v337
      %v733 = vunpack.c.h.b16 %v337
      %v734 = vunpack.c.l.b16 %v338
      %v735 = vunpack.c.h.b16 %v338
      %v736 = vunpack.c.l.b16 %v339
      %v737 = vunpack.c.h.b16 %v339
      %v738 = vunpack.c.l.b16 %v340
      %v739 = vunpack.c.h.b16 %v340
      %v740 = vunpack.c.l.b16 %v341
      %v741 = vunpack.c.h.b16 %v341
      %v742 = vunpack.c.l.b16 %v342
      %v743 = vunpack.c.h.b16 %v342
      %v744 = vunpack.c.l.b16 %v343
      %v745 = vunpack.c.h.b16 %v343
      %v746 = vunpack.c.l.b16 %v344
      %v747 = vunpack.c.h.b16 %v344
      %v748 = vunpack.c.l.b16 %v345
      %v749 = vunpack.c.h.b16 %v345
      %v750 = vunpack.c.l.b16 %v346
      %v751 = vunpack.c.h.b16 %v346
      %v752 = vunpack.c.l.b16 %v347
      %v753 = vunpack.c.h.b16 %v347
      %v754 = vunpack.c.l.b16 %v348
      %v755 = vunpack.c.h.b16 %v348
      %v756 = vunpack.c.l.b16 %v349
      %v757 = vunpack.c.h.b16 %v349
      %v758 = vunpack.c.l.b16 %v350
      %v759 = vunpack.c.h.b16 %v350
      %v760 = vunpack.c.l.b16 %v351
      %v761 = vunpack.c.h.b16 %v351
      %v762 = vunpack.c.l.b16 %v352
      %v763 = vunpack.c.h.b16 %v352
      %v764 = vunpack.c.l.b16 %v353
      %v765 = vunpack.c.h.b16 %v353
      %v766 = vunpack.c.l.b16 %v354
      %v767 = vunpack.c.h.b16 %v354
      %v768 = vunpack.c.l.b16 %v355
      %v769 = vunpack.c.h.b16 %v355
      %v770 = vunpack.c.l.b16 %v356
      %v771 = vunpack.c.h.b16 %v356
      %v772 = vunpack.c.l.b16 %v357
      %v773 = vunpack.c.h.b16 %v357
      %v774 = vunpack.c.l.b16 %v358
      %v775 = vunpack.c.h.b16 %v358
      %v776 = vunpack.c.l.b16 %v359
      %v777 = vunpack.c.h.b16 %v359
      %v778 = vunpack.c.l.b16 %v360
      %v779 = vunpack.c.h.b16 %v360
      %v780 = vunpack.c.l.b16 %v361
      %v781 = vunpack.c.h.b16 %v361
      %v782 = vunpack.c.l.b16 %v362
      %v783 = vunpack.c.h.b16 %v362
      %v784 = vunpack.c.l.b16 %v363
      %v785 = vunpack.c.h.b16 %v363
      %v786 = vunpack.c.l.b16 %v364
      %v787 = vunpack.c.h.b16 %v364
      %v788 = vunpack.c.l.b16 %v365
      %v789 = vunpack.c.h.b16 %v365
      %v790 = vunpack.c.l.b16 %v366
      %v791 = vunpack.c.h.b16 %v366
      %v792 = vunpack.c.l.b16 %v367
      %v793 = vunpack.c.h.b16 %v367
      %v794 = vunpack.c.l.b16 %v368
      %v795 = vunpack.c.h.b16 %v368
      %v796 = vunpack.c.l.b16 %v369
      %v797 = vunpack.c.h.b16 %v369
      %v798 = vunpack.c.l.b16 %v370
      %v799 = vunpack.c.h.b16 %v370
      %v800 = vunpack.c.l.b16 %v371
      %v801 = vunpack.c.h.b16 %v371
      %v802 = vunpack.c.l.b16 %v372
      %v803 = vunpack.c.h.b16 %v372
      %v804 = vunpack.c.l.b16 %v373
      %v805 = vunpack.c.h.b16 %v373
      %v806 = vunpack.c.l.b16 %v374
      %v807 = vunpack.c.h.b16 %v374
      %v808 = vunpack.c.l.b16 %v375
      %v809 = vunpack.c.h.b16 %v375
      %v810 = vunpack.c.l.b16 %v376
      %v811 = vunpack.c.h.b16 %v376
      %v812 = vunpack.c.l.b16 %v377
      %v813 = vunpack.c.h.b16 %v377
      %v814 = vunpack.c.l.b16 %v378
      %v815 = vunpack.c.h.b16 %v378
      %v816 = vunpack.c.l.b16 %v379
      %v817 = vunpack.c.h.b16 %v379
      %v818 = vunpack.c.l.b16 %v380
      %v819 = vunpack.c.h.b16 %v380
      %v820 = vunpack.c.l.b16 %v381
      %v821 = vunpack.c.h.b16 %v381
      %v822 = vunpack.c.l.b16 %v382
      %v823 = vunpack.c.h.b16 %v382
      %v824 = vunpack.c.l.b16 %v383
      %v825 = vunpack.c.h.b16 %v383
      %v826 = vunpack.c.l.b16 %v384
      %v827 = vunpack.c.h.b16 %v384
      %v828 = vunpack.c.l.b16 %v385
      %v829 = vunpack.c.h.b16 %v385
      %v830 = vunpack.c.l.b16 %v386
      %v831 = vunpack.c.h.b16 %v386
      %v832 = vunpack.c.l.b16 %v387
      %v833 = vunpack.c.h.b16 %v387
      %v834 = vunpack.c.l.b16 %v388
      %v835 = vunpack.c.h.b16 %v388
      %v836 = vunpack.c.l.b16 %v389
      %v837 = vunpack.c.h.b16 %v389
      %v838 = vunpack.c.l.b16 %v390
      %v839 = vunpack.c.h.b16 %v390
      %v840 = vunpack.c.l.b16 %v391
      %v841 = vunpack.c.h.b16 %v391
      %v842 = vunpack.c.l.b16 %v392
      %v843 = vunpack.c.h.b16 %v392
      %v844 = vunpack.c.l.b16 %v393
      %v845 = vunpack.c.h.b16 %v393
      %v846 = vunpack.c.l.b16 %v394
      %v847 = vunpack.c.h.b16 %v394
      %v848 = vunpack.c.l.b16 %v395
      %v849 = vunpack.c.h.b16 %v395
      %v850 = vunpack.c.l.b16 %v396
      %v851 = vunpack.c.h.b16 %v396
      %v852 = vunpack.c.l.b16 %v397
      %v853 = vunpack.c.h.b16 %v397
      %v854 = vunpack.c.l.b16 %v398
      %v855 = vunpack.c.h.b16 %v398
      %v856 = vpack.c.b16 %v570, %v568
      %v857 = vpack.c.b16 %v571, %v569
      %v858 = vpack.c.b16 %v574, %v572
      %v859 = vpack.c.b16 %v575, %v573
      %v860 = vpack.c.b16 %v578, %v576
      %v861 = vpack.c.b16 %v579, %v577
      %v862 = vpack.c.b16 %v582, %v580
      %v863 = vpack.c.b16 %v583, %v581
      %v864 = vpack.c.b16 %v586, %v584
      %v865 = vpack.c.b16 %v587, %v585
      %v866 = vpack.c.b16 %v590, %v588
      %v867 = vpack.c.b16 %v591, %v589
      %v868 = vpack.c.b16 %v594, %v592
      %v869 = vpack.c.b16 %v595, %v593
      %v870 = vpack.c.b16 %v598, %v596
      %v871 = vpack.c.b16 %v599, %v597
      %v872 = vpack.c.b16 %v602, %v600
      %v873 = vpack.c.b16 %v603, %v601
      %v874 = vpack.c.b16 %v606, %v604
      %v875 = vpack.c.b16 %v607, %v605
      %v876 = vpack.c.b16 %v610, %v608
      %v877 = vpack.c.b16 %v611, %v609
      %v878 = vpack.c.b16 %v614, %v612
      %v879 = vpack.c.b16 %v615, %v613
      %v880 = vpack.c.b16 %v618, %v616
      %v881 = vpack.c.b16 %v619, %v617
      %v882 = vpack.c.b16 %v622, %v620
      %v883 = vpack.c.b16 %v623, %v621
      %v884 = vpack.c.b16 %v626, %v624
      %v885 = vpack.c.b16 %v627, %v625
      %v886 = vpack.c.b16 %v630, %v628
      %v887 = vpack.c.b16 %v631, %v629
      %v888 = vpack.c.b16 %v634, %v632
      %v889 = vpack.c.b16 %v635, %v633
      %v890 = vpack.c.b16 %v638, %v636
      %v891 = vpack.c.b16 %v639, %v637
      %v892 = vpack.c.b16 %v642, %v640
      %v893 = vpack.c.b16 %v643, %v641
      %v894 = vpack.c.b16 %v646, %v644
      %v895 = vpack.c.b16 %v647, %v645
      %v896 = vpack.c.b16 %v650, %v648
      %v897 = vpack.c.b16 %v651, %v649
      %v898 = vpack.c.b16 %v654, %v652
      %v899 = vpack.c.b16 %v655, %v653
      %v900 = vpack.c.b16 %v658, %v656
      %v901 = vpack.c.b16 %v659, %v657
      %v902 = vpack.c.b16 %v662, %v660
      %v903 = vpack.c.b16 %v663, %v661
      %v904 = vpack.c.b16 %v666, %v664
      %v905 = vpack.c.b16 %v667, %v665
      %v906 = vpack.c.b16 %v670, %v668
      %v907 = vpack.c.b16 %v671, %v669
      %v908 = vpack.c.b16 %v674, %v672
      %v909 = vpack.c.b16 %v675, %v673
      %v910 = vpack.c.b16 %v678, %v676
      %v911 = vpack.c.b16 %v679, %v677
      %v912 = vpack.c.b16 %v682, %v680
      %v913 = vpack.c.b16 %v683, %v681
      %v914 = vpack.c.b16 %v686, %v684
      %v915 = vpack.c.b16 %v687, %v685
      %v916 = vpack.c.b16 %v690, %v688
      %v917 = vpack.c.b16 %v691, %v689
      %v918 = vpack.c.b16 %v694, %v692
      %v919 = vpack.c.b16 %v695, %v693
      %v920 = vpack.c.b16 %v698, %v696
      %v921 = vpack.c.b16 %v699, %v697
      %v922 = vpack.c.b16 %v702, %v700
      %v923 = vpack.c.b16 %v703, %v701
      %v924 = vpack.c.b16 %v706, %v704
      %v925 = vpack.c.b16 %v707, %v705
      %v926 = vpack.c.b16 %v710, %v708
      %v927 = vpack.c.b16 %v711, %v709
      %v928 = vpack.c.b16 %v714, %v712
      %v929 = vpack.c.b16 %v715, %v713
      %v930 = vpack.c.b16 %v718, %v716
      %v931 = vpack.c.b16 %v719, %v717
      %v932 = vpack.c.b16 %v722, %v720
      %v933 = vpack.c.b16 %v723, %v721
      %v934 = vpack.c.b16 %v726, %v724
      %v935 = vpack.c.b16 %v727, %v725
      %v936 = vpack.c.b16 %v730, %v728
      %v937 = vpack.c.b16 %v731, %v729
      %v938 = vpack.c.b16 %v734, %v732
      %v939 = vpack.c.b16 %v735, %v733
      %v940 = vpack.c.b16 %v738, %v736
      %v941 = vpack.c.b16 %v739, %v737
      %v942 = vpack.c.b16 %v742, %v740
      %v943 = vpack.c.b16 %v743, %v741
      %v944 = vpack.c.b16 %v746, %v744
      %v945 = vpack.c.b16 %v747, %v745
      %v946 = vpack.c.b16 %v750, %v748
      %v947 = vpack.c.b16 %v751, %v749
      %v948 = vpack.c.b16 %v754, %v752
      %v949 = vpack.c.b16 %v755, %v753
      %v950 = vpack.c.b16 %v758, %v756
      %v951 = vpack.c.b16 %v759, %v757
      %v952 = vpack.c.b16 %v762, %v760
      %v953 = vpack.c.b16 %v763, %v761
      %v954 = vpack.c.b16 %v766, %v764
      %v955 = vpack.c.b16 %v767, %v765
      %v956 = vpack.c.b16 %v770, %v768
      %v957 = vpack.c.b16 %v771, %v769
      %v958 = vpack.c.b16 %v774, %v772
      %v959 = vpack.c.b16 %v775, %v773
      %v960 = vpack.c.b16 %v778, %v776
      %v961 = vpack.c.b16 %v779, %v777
      %v962 = vpack.c.b16 %v782, %v780
      %v963 = vpack.c.b16 %v783, %v781
      %v964 = vpack.c.b16 %v786, %v784
      %v965 = vpack.c.b16 %v787, %v785
      %v966 = vpack.c.b16 %v790, %v788
      %v967 = vpack.c.b16 %v791, %v789
      %v968 = vpack.c.b16 %v794, %v792
      %v969 = vpack.c.b16 %v795, %v793
      %v970 = vpack.c.b16 %v798, %v796
      %v971 = vpack.c.b16 %v799, %v797
      %v972 = vpack.c.b16 %v802, %v800
      %v973 = vpack.c.b16 %v803, %v801
      %v974 = vpack.c.b16 %v806, %v804
      %v975 = vpack.c.b16 %v807, %v805
      %v976 = vpack.c.b16 %v810, %v808
      %v977 = vpack.c.b16 %v811, %v809
      %v978 = vpack.c.b16 %v814, %v812
      %v979 = vpack.c.b16 %v815, %v813
      %v980 = vpack.c.b16 %v818, %v816
      %v981 = vpack.c.b16 %v819, %v817
      %v982 = vpack.c.b16 %v822, %v820
      %v983 = vpack.c.b16 %v823, %v821
      %v984 = vpack.c.b16 %v826, %v824
      %v985 = vpack.c.b16 %v827, %v825
      %v986 = vpack.c.b16 %v830, %v828
      %v987 = vpack.c.b16 %v831, %v829
      %v988 = vpack.c.b16 %v834, %v832
      %v989 = vpack.c.b16 %v835, %v833
      %v990 = vpack.c.b16 %v838, %v836
      %v991 = vpack.c.b16 %v839, %v837
      %v992 = vpack.c.b16 %v842, %v840
      %v993 = vpack.c.b16 %v843, %v841
      %v994 = vpack.c.b16 %v846, %v844
      %v995 = vpack.c.b16 %v847, %v845
      %v996 = vpack.c.b16 %v850, %v848
      %v997 = vpack.c.b16 %v851, %v849
      %v998 = vpack.c.b16 %v854, %v852
      %v999 = vpack.c.b16 %v855, %v853
      %1144 = vmatpush.bf16.msra.mxu0 %v870
      %1145 = vmatpush.bf16.msra.mxu0 %v868
      %1146 = vmatpush.bf16.msra.mxu0 %v866
      %1147 = vmatpush.bf16.msra.mxu0 %v864
      %1148 = vmatpush.bf16.msra.mxu0 %v862
      %1149 = vmatpush.bf16.msra.mxu0 %v860
      %1150 = vmatpush.bf16.msra.mxu0 %v858
      %1151 = vmatpush.bf16.msra.mxu0 %v856
      %1152 = vmatmul.bf16.gmra.mxu0 %v404
      %v1153 = vpop.f32.mrf.mxu0
      %v1154 = vadd.f32 0.0, %v1153
      %v1155 = vpop.f32.mrf.mxu0
      %1156 = vdwg.mxu0
      %1157 = vmatpush.bf16.msra.mxu0 %v886
      %1158 = vmatpush.bf16.msra.mxu0 %v884
      %1159 = vmatpush.bf16.msra.mxu0 %v882
      %1160 = vmatpush.bf16.msra.mxu0 %v880
      %1161 = vmatpush.bf16.msra.mxu0 %v878
      %1162 = vmatpush.bf16.msra.mxu0 %v876
      %1163 = vmatpush.bf16.msra.mxu0 %v874
      %1164 = vmatpush.bf16.msra.mxu0 %v872
      %1165 = vmatmul.bf16.gmra.mxu0 %v405
      %v1166 = vpop.f32.mrf.mxu0
      %v1167 = vadd.f32 %v1154, %v1166
      %v1168 = vpop.f32.mrf.mxu0
      %1169 = vdwg.mxu0
      %1170 = vmatpush.bf16.msra.mxu0 %v902
      %1171 = vmatpush.bf16.msra.mxu0 %v900
      %1172 = vmatpush.bf16.msra.mxu0 %v898
      %1173 = vmatpush.bf16.msra.mxu0 %v896
      %1174 = vmatpush.bf16.msra.mxu0 %v894
      %1175 = vmatpush.bf16.msra.mxu0 %v892
      %1176 = vmatpush.bf16.msra.mxu0 %v890
      %1177 = vmatpush.bf16.msra.mxu0 %v888
      %1178 = vmatmul.bf16.gmra.mxu0 %v406
      %v1179 = vpop.f32.mrf.mxu0
      %v1180 = vadd.f32 %v1167, %v1179
      %v1181 = vpop.f32.mrf.mxu0
      %1182 = vdwg.mxu0
      %1183 = vmatpush.bf16.msra.mxu0 %v918
      %1184 = vmatpush.bf16.msra.mxu0 %v916
      %1185 = vmatpush.bf16.msra.mxu0 %v914
      %1186 = vmatpush.bf16.msra.mxu0 %v912
      %1187 = vmatpush.bf16.msra.mxu0 %v910
      %1188 = vmatpush.bf16.msra.mxu0 %v908
      %1189 = vmatpush.bf16.msra.mxu0 %v906
      %1190 = vmatpush.bf16.msra.mxu0 %v904
      %1191 = vmatmul.bf16.gmra.mxu0 %v407
      %v1192 = vpop.f32.mrf.mxu0
      %v1193 = vadd.f32 %v1180, %v1192
      %v1194 = vpop.f32.mrf.mxu0
      %1195 = vdwg.mxu0
      %1196 = vmatpush.bf16.msra.mxu0 %v934
      %1197 = vmatpush.bf16.msra.mxu0 %v932
      %1198 = vmatpush.bf16.msra.mxu0 %v930
      %1199 = vmatpush.bf16.msra.mxu0 %v928
      %1200 = vmatpush.bf16.msra.mxu0 %v926
      %1201 = vmatpush.bf16.msra.mxu0 %v924
      %1202 = vmatpush.bf16.msra.mxu0 %v922
      %1203 = vmatpush.bf16.msra.mxu0 %v920
      %1204 = vmatmul.bf16.gmra.mxu0 %v408
      %v1205 = vpop.f32.mrf.mxu0
      %v1206 = vadd.f32 %v1193, %v1205
      %v1207 = vpop.f32.mrf.mxu0
      %1208 = vdwg.mxu0
      %1209 = vmatpush.bf16.msra.mxu0 %v950
      %1210 = vmatpush.bf16.msra.mxu0 %v948
      %1211 = vmatpush.bf16.msra.mxu0 %v946
      %1212 = vmatpush.bf16.msra.mxu0 %v944
      %1213 = vmatpush.bf16.msra.mxu0 %v942
      %1214 = vmatpush.bf16.msra.mxu0 %v940
      %1215 = vmatpush.bf16.msra.mxu0 %v938
      %1216 = vmatpush.bf16.msra.mxu0 %v936
      %1217 = vmatmul.bf16.gmra.mxu0 %v409
      %v1218 = vpop.f32.mrf.mxu0
      %v1219 = vadd.f32 %v1206, %v1218
      %v1220 = vpop.f32.mrf.mxu0
      %1221 = vdwg.mxu0
      %1222 = vmatpush.bf16.msra.mxu0 %v966
      %1223 = vmatpush.bf16.msra.mxu0 %v964
      %1224 = vmatpush.bf16.msra.mxu0 %v962
      %1225 = vmatpush.bf16.msra.mxu0 %v960
      %1226 = vmatpush.bf16.msra.mxu0 %v958
      %1227 = vmatpush.bf16.msra.mxu0 %v956
      %1228 = vmatpush.bf16.msra.mxu0 %v954
      %1229 = vmatpush.bf16.msra.mxu0 %v952
      %1230 = vmatmul.bf16.gmra.mxu0 %v410
      %v1231 = vpop.f32.mrf.mxu0
      %v1232 = vadd.f32 %v1219, %v1231
      %v1233 = vpop.f32.mrf.mxu0
      %1234 = vdwg.mxu0
      %1235 = vmatpush.bf16.msra.mxu0 %v982
      %1236 = vmatpush.bf16.msra.mxu0 %v980
      %1237 = vmatpush.bf16.msra.mxu0 %v978
      %1238 = vmatpush.bf16.msra.mxu0 %v976
      %1239 = vmatpush.bf16.msra.mxu0 %v974
      %1240 = vmatpush.bf16.msra.mxu0 %v972
      %1241 = vmatpush.bf16.msra.mxu0 %v970
      %1242 = vmatpush.bf16.msra.mxu0 %v968
      %1243 = vmatmul.bf16.gmra.mxu0 %v411
      %v1244 = vpop.f32.mrf.mxu0
      %v1245 = vadd.f32 %v1232, %v1244
      %v1246 = vpop.f32.mrf.mxu0
      %1247 = vdwg.mxu0
      %1248 = vmatpush.bf16.msra.mxu0 %v998
      %1249 = vmatpush.bf16.msra.mxu0 %v996
      %1250 = vmatpush.bf16.msra.mxu0 %v994
      %1251 = vmatpush.bf16.msra.mxu0 %v992
      %1252 = vmatpush.bf16.msra.mxu0 %v990
      %1253 = vmatpush.bf16.msra.mxu0 %v988
      %1254 = vmatpush.bf16.msra.mxu0 %v986
      %1255 = vmatpush.bf16.msra.mxu0 %v984
      %1256 = vmatmul.bf16.gmra.mxu0 %v414
      %v1257 = vpop.f32.mrf.mxu0
      %v1258 = vadd.f32 %v1245, %v1257
      %v1259 = vpop.f32.mrf.mxu0
      %1260 = vdwg.mxu0
      %1261 = vmatpush.bf16.msra.mxu0 %v871
      %1262 = vmatpush.bf16.msra.mxu0 %v869
      %1263 = vmatpush.bf16.msra.mxu0 %v867
      %1264 = vmatpush.bf16.msra.mxu0 %v865
      %1265 = vmatpush.bf16.msra.mxu0 %v863
      %1266 = vmatpush.bf16.msra.mxu0 %v861
      %1267 = vmatpush.bf16.msra.mxu0 %v859
      %1268 = vmatpush.bf16.msra.mxu0 %v857
      %1269 = vmatmul.bf16.gmra.mxu0 %v404
      %v1270 = vpop.f32.mrf.mxu0
      %v1271 = vadd.f32 0.0, %v1270
      %v1272 = vpop.f32.mrf.mxu0
      %1273 = vdwg.mxu0
      %1274 = vmatpush.bf16.msra.mxu0 %v887
      %1275 = vmatpush.bf16.msra.mxu0 %v885
      %1276 = vmatpush.bf16.msra.mxu0 %v883
      %1277 = vmatpush.bf16.msra.mxu0 %v881
      %1278 = vmatpush.bf16.msra.mxu0 %v879
      %1279 = vmatpush.bf16.msra.mxu0 %v877
      %1280 = vmatpush.bf16.msra.mxu0 %v875
      %1281 = vmatpush.bf16.msra.mxu0 %v873
      %1282 = vmatmul.bf16.gmra.mxu0 %v405
      %v1283 = vpop.f32.mrf.mxu0
      %v1284 = vadd.f32 %v1271, %v1283
      %v1285 = vpop.f32.mrf.mxu0
      %1286 = vdwg.mxu0
      %1287 = vmatpush.bf16.msra.mxu0 %v903
      %1288 = vmatpush.bf16.msra.mxu0 %v901
      %1289 = vmatpush.bf16.msra.mxu0 %v899
      %1290 = vmatpush.bf16.msra.mxu0 %v897
      %1291 = vmatpush.bf16.msra.mxu0 %v895
      %1292 = vmatpush.bf16.msra.mxu0 %v893
      %1293 = vmatpush.bf16.msra.mxu0 %v891
      %1294 = vmatpush.bf16.msra.mxu0 %v889
      %1295 = vmatmul.bf16.gmra.mxu0 %v406
      %v1296 = vpop.f32.mrf.mxu0
      %v1297 = vadd.f32 %v1284, %v1296
      %v1298 = vpop.f32.mrf.mxu0
      %1299 = vdwg.mxu0
      %1300 = vmatpush.bf16.msra.mxu0 %v919
      %1301 = vmatpush.bf16.msra.mxu0 %v917
      %1302 = vmatpush.bf16.msra.mxu0 %v915
      %1303 = vmatpush.bf16.msra.mxu0 %v913
      %1304 = vmatpush.bf16.msra.mxu0 %v911
      %1305 = vmatpush.bf16.msra.mxu0 %v909
      %1306 = vmatpush.bf16.msra.mxu0 %v907
      %1307 = vmatpush.bf16.msra.mxu0 %v905
      %1308 = vmatmul.bf16.gmra.mxu0 %v407
      %v1309 = vpop.f32.mrf.mxu0
      %v1310 = vadd.f32 %v1297, %v1309
      %v1311 = vpop.f32.mrf.mxu0
      %1312 = vdwg.mxu0
      %1313 = vmatpush.bf16.msra.mxu0 %v935
      %1314 = vmatpush.bf16.msra.mxu0 %v933
      %1315 = vmatpush.bf16.msra.mxu0 %v931
      %1316 = vmatpush.bf16.msra.mxu0 %v929
      %1317 = vmatpush.bf16.msra.mxu0 %v927
      %1318 = vmatpush.bf16.msra.mxu0 %v925
      %1319 = vmatpush.bf16.msra.mxu0 %v923
      %1320 = vmatpush.bf16.msra.mxu0 %v921
      %1321 = vmatmul.bf16.gmra.mxu0 %v408
      %v1322 = vpop.f32.mrf.mxu0
      %v1323 = vadd.f32 %v1310, %v1322
      %v1324 = vpop.f32.mrf.mxu0
      %1325 = vdwg.mxu0
      %1326 = vmatpush.bf16.msra.mxu0 %v951
      %1327 = vmatpush.bf16.msra.mxu0 %v949
      %1328 = vmatpush.bf16.msra.mxu0 %v947
      %1329 = vmatpush.bf16.msra.mxu0 %v945
      %1330 = vmatpush.bf16.msra.mxu0 %v943
      %1331 = vmatpush.bf16.msra.mxu0 %v941
      %1332 = vmatpush.bf16.msra.mxu0 %v939
      %1333 = vmatpush.bf16.msra.mxu0 %v937
      %1334 = vmatmul.bf16.gmra.mxu0 %v409
      %v1335 = vpop.f32.mrf.mxu0
      %v1336 = vadd.f32 %v1323, %v1335
      %v1337 = vpop.f32.mrf.mxu0
      %1338 = vdwg.mxu0
      %1339 = vmatpush.bf16.msra.mxu0 %v967
      %1340 = vmatpush.bf16.msra.mxu0 %v965
      %1341 = vmatpush.bf16.msra.mxu0 %v963
      %1342 = vmatpush.bf16.msra.mxu0 %v961
      %1343 = vmatpush.bf16.msra.mxu0 %v959
      %1344 = vmatpush.bf16.msra.mxu0 %v957
      %1345 = vmatpush.bf16.msra.mxu0 %v955
      %1346 = vmatpush.bf16.msra.mxu0 %v953
      %1347 = vmatmul.bf16.gmra.mxu0 %v410
      %v1348 = vpop.f32.mrf.mxu0
      %v1349 = vadd.f32 %v1336, %v1348
      %v1350 = vpop.f32.mrf.mxu0
      %1351 = vdwg.mxu0
      %1352 = vmatpush.bf16.msra.mxu0 %v983
      %1353 = vmatpush.bf16.msra.mxu0 %v981
      %1354 = vmatpush.bf16.msra.mxu0 %v979
      %1355 = vmatpush.bf16.msra.mxu0 %v977
      %1356 = vmatpush.bf16.msra.mxu0 %v975
      %1357 = vmatpush.bf16.msra.mxu0 %v973
      %1358 = vmatpush.bf16.msra.mxu0 %v971
      %1359 = vmatpush.bf16.msra.mxu0 %v969
      %1360 = vmatmul.bf16.gmra.mxu0 %v411
      %v1361 = vpop.f32.mrf.mxu0
      %v1362 = vadd.f32 %v1349, %v1361
      %v1363 = vpop.f32.mrf.mxu0
      %1364 = vdwg.mxu0
      %1365 = vmatpush.bf16.msra.mxu0 %v999
      %1366 = vmatpush.bf16.msra.mxu0 %v997
      %1367 = vmatpush.bf16.msra.mxu0 %v995
      %1368 = vmatpush.bf16.msra.mxu0 %v993
      %1369 = vmatpush.bf16.msra.mxu0 %v991
      %1370 = vmatpush.bf16.msra.mxu0 %v989
      %1371 = vmatpush.bf16.msra.mxu0 %v987
      %1372 = vmatpush.bf16.msra.mxu0 %v985
      %1373 = vmatmul.bf16.gmra.mxu0 %v414
      %v1374 = vpop.f32.mrf.mxu0
      %v1375 = vadd.f32 %v1362, %v1374
      %v1376 = vpop.f32.mrf.mxu0
      %1377 = vdwg.mxu0
      %vm1378 = vcmask 1043456
      %v1379 = vsel %vm1378, %v1258, 0.0
      %v1380 = vrot.slane %v1379, 4
      %v1381 = vadd.f32 %v1379, %v1380
      %v1382 = vrot.slane %v1381, 2
      %v1383 = vadd.f32 %v1381, %v1382
      %v1384 = vrot.slane %v1383, 1
      %v1385 = vadd.f32 %v1383, %v1384
      %v1386 = vsel %vm1378, %v1375, 0.0
      %v1387 = vrot.slane %v1386, 4
      %v1388 = vadd.f32 %v1386, %v1387
      %v1389 = vrot.slane %v1388, 2
      %v1390 = vadd.f32 %v1388, %v1389
      %v1391 = vrot.slane %v1390, 1
      %v1392 = vadd.f32 %v1390, %v1391
      %v1393 = vmul.f32 %v1258, %v1258
      %v1394 = vmul.f32 %v1375, %v1375
      %v1395 = vsel %vm1378, %v1393, 0.0
      %v1396 = vrot.slane %v1395, 4
      %v1397 = vadd.f32 %v1395, %v1396
      %v1398 = vrot.slane %v1397, 2
      %v1399 = vadd.f32 %v1397, %v1398
      %v1400 = vrot.slane %v1399, 1
      %v1401 = vadd.f32 %v1399, %v1400
      %v1402 = vsel %vm1378, %v1394, 0.0
      %v1403 = vrot.slane %v1402, 4
      %v1404 = vadd.f32 %v1402, %v1403
      %v1405 = vrot.slane %v1404, 2
      %v1406 = vadd.f32 %v1404, %v1405
      %v1407 = vrot.slane %v1406, 1
      %v1408 = vadd.f32 %v1406, %v1407
      %v1409 = vld [vmem:[%s2] sm:$0xff]
      %v1410 = vld [vmem:[%s2 + $0x8] sm:$0xff]
      %v1411 = vld [vmem:[%s2 + $0x10] sm:$0xff]
      %v1412 = vld [vmem:[%s2 + $0x18] sm:$0xff]
      %v1413 = vld [vmem:[%s2 + $0x20] sm:$0xff]
      %v1414 = vld [vmem:[%s2 + $0x28] sm:$0xff]
      %v1415 = vld [vmem:[%s2 + $0x30] sm:$0xff]
      %v1416 = vld [vmem:[%s2 + $0x38] sm:$0xff]
      %v1417 = vld [vmem:[%s2 + $0x40] sm:$0xff]
      %v1418 = vld [vmem:[%s2 + $0x48] sm:$0xff]
      %v1419 = vld [vmem:[%s2 + $0x50] sm:$0xff]
      %v1420 = vld [vmem:[%s2 + $0x58] sm:$0xff]
      %v1421 = vld [vmem:[%s2 + $0x60] sm:$0xff]
      %v1422 = vld [vmem:[%s2 + $0x68] sm:$0xff]
      %v1423 = vld [vmem:[%s2 + $0x70] sm:$0xff]
      %v1424 = vld [vmem:[%s2 + $0x78] sm:$0xff]
      %v1425 = vld [vmem:[%s2 + $0x80] sm:$0xff]
      %v1426 = vld [vmem:[%s2 + $0x88] sm:$0xff]
      %v1427 = vld [vmem:[%s2 + $0x90] sm:$0xff]
      %v1428 = vld [vmem:[%s2 + $0x98] sm:$0xff]
      %v1429 = vld [vmem:[%s2 + $0xa0] sm:$0xff]
      %v1430 = vld [vmem:[%s2 + $0xa8] sm:$0xff]
      %v1431 = vld [vmem:[%s2 + $0xb0] sm:$0xff]
      %v1432 = vld [vmem:[%s2 + $0xb8] sm:$0xff]
      %v1433 = vld [vmem:[%s2 + $0xc0] sm:$0xff]
      %v1434 = vld [vmem:[%s2 + $0xc8] sm:$0xff]
      %v1435 = vld [vmem:[%s2 + $0xd0] sm:$0xff]
      %v1436 = vld [vmem:[%s2 + $0xd8] sm:$0xff]
      %v1437 = vld [vmem:[%s2 + $0xe0] sm:$0xff]
      %v1438 = vld [vmem:[%s2 + $0xe8] sm:$0xff]
      %v1439 = vld [vmem:[%s2 + $0xf0] sm:$0xff]
      %v1440 = vld [vmem:[%s2 + $0xf8] sm:$0xff]
      %v1441 = vld [vmem:[%s2 + $0x100] sm:$0xff]
      %v1442 = vld [vmem:[%s2 + $0x108] sm:$0xff]
      %v1443 = vld [vmem:[%s2 + $0x110] sm:$0xff]
      %v1444 = vld [vmem:[%s2 + $0x118] sm:$0xff]
      %v1445 = vld [vmem:[%s2 + $0x120] sm:$0xff]
      %v1446 = vld [vmem:[%s2 + $0x128] sm:$0xff]
      %v1447 = vld [vmem:[%s2 + $0x130] sm:$0xff]
      %v1448 = vld [vmem:[%s2 + $0x138] sm:$0xff]
      %v1449 = vld [vmem:[%s2 + $0x140] sm:$0xff]
      %v1450 = vld [vmem:[%s2 + $0x148] sm:$0xff]
      %v1451 = vld [vmem:[%s2 + $0x150] sm:$0xff]
      %v1452 = vld [vmem:[%s2 + $0x158] sm:$0xff]
      %v1453 = vld [vmem:[%s2 + $0x160] sm:$0xff]
      %v1454 = vld [vmem:[%s2 + $0x168] sm:$0xff]
      %v1455 = vld [vmem:[%s2 + $0x170] sm:$0xff]
      %v1456 = vld [vmem:[%s2 + $0x178] sm:$0xff]
      %v1457 = vld [vmem:[%s2 + $0x180] sm:$0xff]
      %v1458 = vld [vmem:[%s2 + $0x188] sm:$0xff]
      %v1459 = vld [vmem:[%s2 + $0x190] sm:$0xff]
      %v1460 = vld [vmem:[%s2 + $0x198] sm:$0xff]
      %v1461 = vld [vmem:[%s2 + $0x1a0] sm:$0xff]
      %v1462 = vld [vmem:[%s2 + $0x1a8] sm:$0xff]
      %v1463 = vld [vmem:[%s2 + $0x1b0] sm:$0xff]
      %v1464 = vld [vmem:[%s2 + $0x1b8] sm:$0xff]
      %v1465 = vld [vmem:[%s2 + $0x1c0] sm:$0xff]
      %v1466 = vld [vmem:[%s2 + $0x1c8] sm:$0xff]
      %v1467 = vld [vmem:[%s2 + $0x1d0] sm:$0xff]
      %v1468 = vld [vmem:[%s2 + $0x1d8] sm:$0xff]
      %v1469 = vld [vmem:[%s2 + $0x1e0] sm:$0xff]
      %v1470 = vld [vmem:[%s2 + $0x1e8] sm:$0xff]
      %v1471 = vld [vmem:[%s2 + $0x1f0] sm:$0xff]
      %v1472 = vld [vmem:[%s2 + $0x1f8] sm:$0xff]
      %1473 = vmatpush.msra.mxu0 %v1424
      %1474 = vmatpush.msra.mxu0 %v1423
      %1475 = vmatpush.msra.mxu0 %v1422
      %1476 = vmatpush.msra.mxu0 %v1421
      %1477 = vmatpush.msra.mxu0 %v1420
      %1478 = vmatpush.msra.mxu0 %v1419
      %1479 = vmatpush.msra.mxu0 %v1418
      %1480 = vmatpush.msra.mxu0 %v1417
      %1481 = vmatpush.msra.mxu0 %v1416
      %1482 = vmatpush.msra.mxu0 %v1415
      %1483 = vmatpush.msra.mxu0 %v1414
      %1484 = vmatpush.msra.mxu0 %v1413
      %1485 = vmatpush.msra.mxu0 %v1412
      %1486 = vmatpush.msra.mxu0 %v1411
      %1487 = vmatpush.msra.mxu0 %v1410
      %1488 = vmatpush.msra.mxu0 %v1409
      %1489 = vmatmul.f32.gmra.mxu0 %v1385
      %v1490 = vpop.f32.mrf.mxu0
      %v1491 = vadd.f32 0.0, %v1490
      %1492 = vdwg.mxu0
      %1493 = vmatpush.msra.mxu0 %v1440
      %1494 = vmatpush.msra.mxu0 %v1439
      %1495 = vmatpush.msra.mxu0 %v1438
      %1496 = vmatpush.msra.mxu0 %v1437
      %1497 = vmatpush.msra.mxu0 %v1436
      %1498 = vmatpush.msra.mxu0 %v1435
      %1499 = vmatpush.msra.mxu0 %v1434
      %1500 = vmatpush.msra.mxu0 %v1433
      %1501 = vmatpush.msra.mxu0 %v1432
      %1502 = vmatpush.msra.mxu0 %v1431
      %1503 = vmatpush.msra.mxu0 %v1430
      %1504 = vmatpush.msra.mxu0 %v1429
      %1505 = vmatpush.msra.mxu0 %v1428
      %1506 = vmatpush.msra.mxu0 %v1427
      %1507 = vmatpush.msra.mxu0 %v1426
      %1508 = vmatpush.msra.mxu0 %v1425
      %1509 = vmatmul.f32.gmra.mxu0 %v1392
      %v1510 = vpop.f32.mrf.mxu0
      %v1511 = vadd.f32 %v1491, %v1510
      %1512 = vdwg.mxu0
      %1513 = vmatpush.msra.mxu0 %v1456
      %1514 = vmatpush.msra.mxu0 %v1455
      %1515 = vmatpush.msra.mxu0 %v1454
      %1516 = vmatpush.msra.mxu0 %v1453
      %1517 = vmatpush.msra.mxu0 %v1452
      %1518 = vmatpush.msra.mxu0 %v1451
      %1519 = vmatpush.msra.mxu0 %v1450
      %1520 = vmatpush.msra.mxu0 %v1449
      %1521 = vmatpush.msra.mxu0 %v1448
      %1522 = vmatpush.msra.mxu0 %v1447
      %1523 = vmatpush.msra.mxu0 %v1446
      %1524 = vmatpush.msra.mxu0 %v1445
      %1525 = vmatpush.msra.mxu0 %v1444
      %1526 = vmatpush.msra.mxu0 %v1443
      %1527 = vmatpush.msra.mxu0 %v1442
      %1528 = vmatpush.msra.mxu0 %v1441
      %1529 = vmatmul.f32.gmra.mxu0 %v1401
      %v1530 = vpop.f32.mrf.mxu0
      %v1531 = vadd.f32 %v1511, %v1530
      %1532 = vdwg.mxu0
      %1533 = vmatpush.msra.mxu0 %v1472
      %1534 = vmatpush.msra.mxu0 %v1471
      %1535 = vmatpush.msra.mxu0 %v1470
      %1536 = vmatpush.msra.mxu0 %v1469
      %1537 = vmatpush.msra.mxu0 %v1468
      %1538 = vmatpush.msra.mxu0 %v1467
      %1539 = vmatpush.msra.mxu0 %v1466
      %1540 = vmatpush.msra.mxu0 %v1465
      %1541 = vmatpush.msra.mxu0 %v1464
      %1542 = vmatpush.msra.mxu0 %v1463
      %1543 = vmatpush.msra.mxu0 %v1462
      %1544 = vmatpush.msra.mxu0 %v1461
      %1545 = vmatpush.msra.mxu0 %v1460
      %1546 = vmatpush.msra.mxu0 %v1459
      %1547 = vmatpush.msra.mxu0 %v1458
      %1548 = vmatpush.msra.mxu0 %v1457
      %1549 = vmatmul.f32.gmra.mxu0 %v1408
      %v1550 = vpop.f32.mrf.mxu0
      %v1551 = vadd.f32 %v1531, %v1550
      %1552 = vdwg.mxu0
      %v1553 = vmul.f32 %v1551, 0.03125
      %v1554 = vmul.f32 %v1553, %v1553
      %1556 = vrot.lane.b32.xlu0 %v1554, 32
      %v1557 = vpop.permute.xlu0 %1556
      %v1559 = vsub.f32 %v1553, %v1557
      %v1560 = vmax.f32 %v1559, 0.0
      %v1561 = vadd.f32 %v1560, 1e-05
      %v1562 = vrsqrt.pop %v1561
      %v1563 = vmul.f32 %v1562, %v1561
      %v1564 = vmul.f32 %v1563, %v1562
      %v1565 = vmul.f32 0.5, %v1564
      %v1566 = vsub.f32 1.5, %v1565
      %v1567 = vmul.f32 %v1562, %v1566
      %vm1568 = vweird.f32 %v1561
      %vm1569 = vweird.f32 %v1562
      %vm1570 = vmor %vm1568, %vm1569
      %v1571 = vsel %vm1570, %v1562, %v1567
      %vm1572 = vcmask 261120
      %v1573 = vsel %vm1572, %v1553, %v1571
      %v1574 = vld [vmem:[%s3] sm:$0xff]
      %v1575 = vld [vmem:[%s3 + $0x8] sm:$0xff]
      %v1576 = vld [vmem:[%s3 + $0x10] sm:$0xff]
      %v1577 = vld [vmem:[%s3 + $0x18] sm:$0xff]
      %v1578 = vld [vmem:[%s3 + $0x20] sm:$0xff]
      %v1579 = vld [vmem:[%s3 + $0x28] sm:$0xff]
      %v1580 = vld [vmem:[%s3 + $0x30] sm:$0xff]
      %v1581 = vld [vmem:[%s3 + $0x38] sm:$0xff]
      %v1582 = vld [vmem:[%s3 + $0x40] sm:$0xff]
      %v1583 = vld [vmem:[%s3 + $0x48] sm:$0xff]
      %v1584 = vld [vmem:[%s3 + $0x50] sm:$0xff]
      %v1585 = vld [vmem:[%s3 + $0x58] sm:$0xff]
      %v1586 = vld [vmem:[%s3 + $0x60] sm:$0xff]
      %v1587 = vld [vmem:[%s3 + $0x68] sm:$0xff]
      %v1588 = vld [vmem:[%s3 + $0x70] sm:$0xff]
      %v1589 = vld [vmem:[%s3 + $0x78] sm:$0xff]
      %v1590 = vld [vmem:[%s3 + $0x80] sm:$0xff]
      %v1591 = vld [vmem:[%s3 + $0x88] sm:$0xff]
      %v1592 = vld [vmem:[%s3 + $0x90] sm:$0xff]
      %v1593 = vld [vmem:[%s3 + $0x98] sm:$0xff]
      %v1594 = vld [vmem:[%s3 + $0xa0] sm:$0xff]
      %v1595 = vld [vmem:[%s3 + $0xa8] sm:$0xff]
      %v1596 = vld [vmem:[%s3 + $0xb0] sm:$0xff]
      %v1597 = vld [vmem:[%s3 + $0xb8] sm:$0xff]
      %v1598 = vld [vmem:[%s3 + $0xc0] sm:$0xff]
      %v1599 = vld [vmem:[%s3 + $0xc8] sm:$0xff]
      %v1600 = vld [vmem:[%s3 + $0xd0] sm:$0xff]
      %v1601 = vld [vmem:[%s3 + $0xd8] sm:$0xff]
      %v1602 = vld [vmem:[%s3 + $0xe0] sm:$0xff]
      %v1603 = vld [vmem:[%s3 + $0xe8] sm:$0xff]
      %v1604 = vld [vmem:[%s3 + $0xf0] sm:$0xff]
      %v1605 = vld [vmem:[%s3 + $0xf8] sm:$0xff]
      %vm1606 = vcmask 523264
      %v1608 = vsel %vm1606, %v1573, 0
      %1610 = vmatpush.msra.mxu0 0.0
      %1611 = vmatpush.msra.mxu0 0.0
      %1612 = vmatpush.msra.mxu0 0.0
      %1613 = vmatpush.msra.mxu0 0.0
      %1614 = vmatpush.msra.mxu0 0.0
      %1615 = vmatpush.msra.mxu0 0.0
      %1616 = vmatpush.msra.mxu0 0.0
      %1617 = vmatpush.msra.mxu0 0.0
      %1618 = vmatpush.msra.mxu0 %v1602
      %1619 = vmatpush.msra.mxu0 %v1598
      %1620 = vmatpush.msra.mxu0 %v1594
      %1621 = vmatpush.msra.mxu0 %v1590
      %1622 = vmatpush.msra.mxu0 %v1586
      %1623 = vmatpush.msra.mxu0 %v1582
      %1624 = vmatpush.msra.mxu0 %v1578
      %1625 = vmatpush.msra.mxu0 %v1574
      %1626 = vmatmul.f32.gmra.mxu0 %v1608
      %v1627 = vpop.f32.mrf.mxu0
      %v1628 = vadd.f32 0.0, %v1627
      %1629 = vdwg.mxu0
      %1630 = vmatpush.msra.mxu0 0.0
      %1631 = vmatpush.msra.mxu0 0.0
      %1632 = vmatpush.msra.mxu0 0.0
      %1633 = vmatpush.msra.mxu0 0.0
      %1634 = vmatpush.msra.mxu0 0.0
      %1635 = vmatpush.msra.mxu0 0.0
      %1636 = vmatpush.msra.mxu0 0.0
      %1637 = vmatpush.msra.mxu0 0.0
      %1638 = vmatpush.msra.mxu0 %v1603
      %1639 = vmatpush.msra.mxu0 %v1599
      %1640 = vmatpush.msra.mxu0 %v1595
      %1641 = vmatpush.msra.mxu0 %v1591
      %1642 = vmatpush.msra.mxu0 %v1587
      %1643 = vmatpush.msra.mxu0 %v1583
      %1644 = vmatpush.msra.mxu0 %v1579
      %1645 = vmatpush.msra.mxu0 %v1575
      %1646 = vmatmul.f32.gmra.mxu0 %v1608
      %v1647 = vpop.f32.mrf.mxu0
      %v1648 = vadd.f32 0.0, %v1647
      %1649 = vdwg.mxu0
      %1650 = vmatpush.msra.mxu0 0.0
      %1651 = vmatpush.msra.mxu0 0.0
      %1652 = vmatpush.msra.mxu0 0.0
      %1653 = vmatpush.msra.mxu0 0.0
      %1654 = vmatpush.msra.mxu0 0.0
      %1655 = vmatpush.msra.mxu0 0.0
      %1656 = vmatpush.msra.mxu0 0.0
      %1657 = vmatpush.msra.mxu0 0.0
      %1658 = vmatpush.msra.mxu0 %v1604
      %1659 = vmatpush.msra.mxu0 %v1600
      %1660 = vmatpush.msra.mxu0 %v1596
      %1661 = vmatpush.msra.mxu0 %v1592
      %1662 = vmatpush.msra.mxu0 %v1588
      %1663 = vmatpush.msra.mxu0 %v1584
      %1664 = vmatpush.msra.mxu0 %v1580
      %1665 = vmatpush.msra.mxu0 %v1576
      %1666 = vmatmul.f32.gmra.mxu0 %v1608
      %v1667 = vpop.f32.mrf.mxu0
      %v1668 = vadd.f32 0.0, %v1667
      %1669 = vdwg.mxu0
      %1670 = vmatpush.msra.mxu0 0.0
      %1671 = vmatpush.msra.mxu0 0.0
      %1672 = vmatpush.msra.mxu0 0.0
      %1673 = vmatpush.msra.mxu0 0.0
      %1674 = vmatpush.msra.mxu0 0.0
      %1675 = vmatpush.msra.mxu0 0.0
      %1676 = vmatpush.msra.mxu0 0.0
      %1677 = vmatpush.msra.mxu0 0.0
      %1678 = vmatpush.msra.mxu0 %v1605
      %1679 = vmatpush.msra.mxu0 %v1601
      %1680 = vmatpush.msra.mxu0 %v1597
      %1681 = vmatpush.msra.mxu0 %v1593
      %1682 = vmatpush.msra.mxu0 %v1589
      %1683 = vmatpush.msra.mxu0 %v1585
      %1684 = vmatpush.msra.mxu0 %v1581
      %1685 = vmatpush.msra.mxu0 %v1577
      %1686 = vmatmul.f32.gmra.mxu0 %v1608
      %v1687 = vpop.f32.mrf.mxu0
      %v1688 = vadd.f32 0.0, %v1687
      %1689 = vdwg.mxu0
      %v1690 = vld [vmem:[%s4] sm:$0x3]
      %v1693 = vrot.slane %v1688, 7
      %vm1694 = vcmask 1040384
      %v1695 = vsel %vm1694, %v1668, %v1693
      %v1697 = vmul.f32 %v1690, %v1695
      %v1698 = vld [vmem:[%s5] sm:$0x3]
      %v1700 = vperm.slane %v1697, 0
      %v1701 = vperm.slane %v1697, 1
      %v1704 = vmul.f32 %v1628, %v1700
      %v1705 = vmul.f32 %v1648, %v1701
      %v1708 = vrot.slane %v1705, 7
      %v1709 = vsel %vm1694, %v1704, %v1708
      %v1711 = vsub.f32 %v1698, %v1709
      %v1712 = vmul.f32 %v1258, %v1700
      %v1713 = vmul.f32 %v1375, %v1701
      %v1715 = vperm.slane %v1711, 0
      %v1716 = vperm.slane %v1711, 1
      %v1719 = vadd.f32 %v1712, %v1715
      %v1720 = vadd.f32 %v1713, %v1716
      %v1721 = vmul.f32 %v1719, 0.5
      %v1722 = vmul.f32 %v1720, 0.5
      %v1723 = vtanh.pop %v1721
      %v1724 = vtanh.pop %v1722
      %v1725 = vmul.f32 %v1723, 0.5
      %v1726 = vmul.f32 %v1724, 0.5
      %v1727 = vadd.f32 %v1725, 0.5
      %v1728 = vadd.f32 %v1726, 0.5
      %v1729 = vmul.f32 %v1719, %v1727
      %v1730 = vmul.f32 %v1720, %v1728
      %v1731 = vpack.c.bf16 %v1730, %v1729
      %v1733 = vrot.slane %v1731, 2
      %vm1734 = vcmask 1041408
      %v1737 = vsel %vm1734, %v1731, %v1733
      %1739 = vst [vmem:[%s251] sm:$0xf] %v1737
      %p1740 = scmp.lt.s32.totalorder %s17, 1
      %s1741 = scalar_select %p1740, %s17, 1
      %s1742 = smul.addr %s1741, 2
      %s1743 = smul.addr %s1742, 2
      %s1744 = scalar_lea.vmem %s6, %s1743
      // Predicated region
      $region45: #{scorenet_forward.11} parent=43 // pred_check
        %p1745 = pneg %p166
      $region46: #{scorenet_forward.11} parent=43 // pred_check_branch
        %1747 = sbr.rel (%p1745) target = $region48
      $region47: #{scorenet_forward.11} parent=43 // pred_region
        _
      $region48: #{scorenet_forward.11} parent=43 // pred_fallthru
        _
    $region44: #{scorenet_forward.11} parent=5 // pred_fallthru
      _
    %p1748 = scmp.le.s32.totalorder 2, %s12
    // Predicated region
    $region49: #{scorenet_forward.11} parent=5 // pred_check
      %p1749 = pneg %p1748
    $region50: #{scorenet_forward.11} parent=5 // pred_check_branch
      %1751 = sbr.rel (%p1749) target = $region52
    $region51: #{scorenet_forward.11} parent=5 // pred_region
      %s1752 = ssub.s32 %s12, 2
      // Predicated region
      $region53: #{scorenet_forward.11} parent=51 // pred_check
        %p1753 = pneg %p172
      $region54: #{scorenet_forward.11} parent=51 // pred_check_branch
        %1755 = sbr.rel (%p1753) target = $region56
      $region55: #{scorenet_forward.11} parent=51 // pred_region
        %p1756 = scmp.lt.s32.totalorder %s18, 1
        %s1757 = scalar_select %p1756, %s18, 1
        %s1758 = smul.addr %s1757, 2
        %s1759 = smul.addr %s1758, 2
        %s1760 = scalar_lea.vmem %s6, %s1759
      $region56: #{scorenet_forward.11} parent=51 // pred_fallthru
        _
    $region52: #{scorenet_forward.11} parent=5 // pred_fallthru
      _
  $region6: #{scorenet_forward.11} parent=0 // loop_footer
    %s16 = sadd.s32 1, %s12
  $region7: #{scorenet_forward.11} parent=0 // loop_footer_branch
    %11 = sbr.rel target = $region3
  $region8: #{scorenet_forward.11} parent=0 // loop_exit
    _

// kernel: scorenet_forward.12
$region0: #{scorenet_forward.12}
  #allocation0 [shape = 'u32[]', space=smem, size = 0x4, offset = 0x4, fixed_abs, tag = 'smem constant byte address 0x4 - core index']
  #allocation1 [shape = 'u32[72,128]{1,0:T(1,128)}', space=vmem, size = 0x9000, scoped, tag = 'internal scratch']
  %s0 = inlined_call_operand.vmem [shape: bf16[2,9,2304], index: 0, kind: input, shape index: {}]
  %s1 = inlined_call_operand.vmem [shape: bf16[2304,128], index: 1, kind: input, shape index: {}]
  %s2 = inlined_call_operand.vmem [shape: f32[256,64], index: 2, kind: input, shape index: {}]
  %s3 = inlined_call_operand.vmem [shape: f32[64,256], index: 3, kind: input, shape index: {}]
  %s4 = inlined_call_operand.vmem [shape: f32[1,128], index: 4, kind: input, shape index: {}]
  %s5 = inlined_call_operand.vmem [shape: f32[1,128], index: 5, kind: input, shape index: {}]
  %s6 = inlined_call_operand.vmem [shape: bf16[2,9,128], index: 6, kind: output, shape index: {}]
  %s7 = sld [smem:[#allocation0]]
  $region57: #{scorenet_forward.12} parent=0
    _
  %s9 = ssub.s32 1, %s7
  %s10 = scalar_select 0, %s9, %s7
  loop: start=0, step=1, limit=4
  $region2: #{scorenet_forward.12} parent=0 // loop_pre_header
    _
  $region3: #{scorenet_forward.12} parent=0 // loop_header
    %s12 = sphi 0, %s16
    %p13 = scmp.ge.s32.totalorder %s12, 4
    %s22 = sphi 0, %s24
    %s25 = sphi 0, %s22
    %s26 = sphi 0, %s25
    %s42 = sphi 0, %s26
    %s46 = sphi 0, %s46
    %s48 = sphi 0, %s46
    %s49 = sphi 0, %s48
    %s63 = sphi 0, %s49
    %s67 = sphi 0, %s67
    %s69 = sphi 0, %s67
    %s70 = sphi 0, %s69
    %s84 = sphi 0, %s70
    %s88 = sphi 0, %s88
    %s90 = sphi 0, %s88
    %s91 = sphi 0, %s90
    %s105 = sphi 0, %s91
    %s109 = sphi 0, %s109
    %s111 = sphi 0, %s109
    %s112 = sphi 0, %s111
    %s126 = sphi 0, %s112
    %s130 = sphi 0, %s130
    %s132 = sphi 0, %s130
    %s133 = sphi 0, %s132
    %s147 = sphi 0, %s133
    %s153 = sphi 0, %s155
    %s156 = sphi 0, %s153
    %s157 = sphi 0, %s156
    %s173 = sphi 0, %s157
  $region4: #{scorenet_forward.12} parent=0 // loop_header_branch
    %15 = sbr.rel (%p13) target = $region8
  $region5: #{scorenet_forward.12} parent=0 // loop_body
    %s17 = ssub.s32 %s12, 1
    %s18 = ssub.s32 %s12, 2
    %s19 = sadd.s32 %s12, 1
    %s20 = ssub.s32 %s12, %s19
    %p21 = scmp.eq.s32.totalorder %s20, 0
    %s23 = sadd.s32 %s22, 1
    %s24 = scalar_select %p21, %s22, %s23
    %p27 = pneg %p21
    %p28 = scmp.eq.s32.totalorder %s12, 1
    %p29 = por %p27, %p28
    %p30 = scmp.ne.s32.totalorder %s22, %s25
    %p31 = scmp.eq.s32.totalorder %s12, 0
    %p32 = por %p30, %p31
    %p33 = scmp.ne.s32.totalorder %s22, %s25
    %p34 = scmp.eq.s32.totalorder %s17, 1
    %p35 = por %p33, %p34
    %p36 = scmp.ne.s32.totalorder %s25, %s26
    %p37 = scmp.eq.s32.totalorder %s17, 0
    %p38 = por %p36, %p37
    %p39 = scmp.ne.s32.totalorder %s25, %s26
    %p40 = scmp.eq.s32.totalorder %s18, 1
    %p41 = por %p39, %p40
    %p43 = scmp.ne.s32.totalorder %s26, %s42
    %p44 = scmp.eq.s32.totalorder %s18, 0
    %p45 = por %p43, %p44
    %s47 = sadd.s32 %s46, 1
    %p50 = scmp.eq.s32.totalorder %s12, 1
    %p51 = scmp.ne.s32.totalorder %s46, %s48
    %p52 = scmp.eq.s32.totalorder %s12, 0
    %p53 = por %p51, %p52
    %p54 = scmp.ne.s32.totalorder %s46, %s48
    %p55 = scmp.eq.s32.totalorder %s17, 1
    %p56 = por %p54, %p55
    %p57 = scmp.ne.s32.totalorder %s48, %s49
    %p58 = scmp.eq.s32.totalorder %s17, 0
    %p59 = por %p57, %p58
    %p60 = scmp.ne.s32.totalorder %s48, %s49
    %p61 = scmp.eq.s32.totalorder %s18, 1
    %p62 = por %p60, %p61
    %p64 = scmp.ne.s32.totalorder %s49, %s63
    %p65 = scmp.eq.s32.totalorder %s18, 0
    %p66 = por %p64, %p65
    %s68 = sadd.s32 %s67, 1
    %p71 = scmp.eq.s32.totalorder %s12, 1
    %p72 = scmp.ne.s32.totalorder %s67, %s69
    %p73 = scmp.eq.s32.totalorder %s12, 0
    %p74 = por %p72, %p73
    %p75 = scmp.ne.s32.totalorder %s67, %s69
    %p76 = scmp.eq.s32.totalorder %s17, 1
    %p77 = por %p75, %p76
    %p78 = scmp.ne.s32.totalorder %s69, %s70
    %p79 = scmp.eq.s32.totalorder %s17, 0
    %p80 = por %p78, %p79
    %p81 = scmp.ne.s32.totalorder %s69, %s70
    %p82 = scmp.eq.s32.totalorder %s18, 1
    %p83 = por %p81, %p82
    %p85 = scmp.ne.s32.totalorder %s70, %s84
    %p86 = scmp.eq.s32.totalorder %s18, 0
    %p87 = por %p85, %p86
    %s89 = sadd.s32 %s88, 1
    %p92 = scmp.eq.s32.totalorder %s12, 1
    %p93 = scmp.ne.s32.totalorder %s88, %s90
    %p94 = scmp.eq.s32.totalorder %s12, 0
    %p95 = por %p93, %p94
    %p96 = scmp.ne.s32.totalorder %s88, %s90
    %p97 = scmp.eq.s32.totalorder %s17, 1
    %p98 = por %p96, %p97
    %p99 = scmp.ne.s32.totalorder %s90, %s91
    %p100 = scmp.eq.s32.totalorder %s17, 0
    %p101 = por %p99, %p100
    %p102 = scmp.ne.s32.totalorder %s90, %s91
    %p103 = scmp.eq.s32.totalorder %s18, 1
    %p104 = por %p102, %p103
    %p106 = scmp.ne.s32.totalorder %s91, %s105
    %p107 = scmp.eq.s32.totalorder %s18, 0
    %p108 = por %p106, %p107
    %s110 = sadd.s32 %s109, 1
    %p113 = scmp.eq.s32.totalorder %s12, 1
    %p114 = scmp.ne.s32.totalorder %s109, %s111
    %p115 = scmp.eq.s32.totalorder %s12, 0
    %p116 = por %p114, %p115
    %p117 = scmp.ne.s32.totalorder %s109, %s111
    %p118 = scmp.eq.s32.totalorder %s17, 1
    %p119 = por %p117, %p118
    %p120 = scmp.ne.s32.totalorder %s111, %s112
    %p121 = scmp.eq.s32.totalorder %s17, 0
    %p122 = por %p120, %p121
    %p123 = scmp.ne.s32.totalorder %s111, %s112
    %p124 = scmp.eq.s32.totalorder %s18, 1
    %p125 = por %p123, %p124
    %p127 = scmp.ne.s32.totalorder %s112, %s126
    %p128 = scmp.eq.s32.totalorder %s18, 0
    %p129 = por %p127, %p128
    %s131 = sadd.s32 %s130, 1
    %p134 = scmp.eq.s32.totalorder %s12, 1
    %p135 = scmp.ne.s32.totalorder %s130, %s132
    %p136 = scmp.eq.s32.totalorder %s12, 0
    %p137 = por %p135, %p136
    %p138 = scmp.ne.s32.totalorder %s130, %s132
    %p139 = scmp.eq.s32.totalorder %s17, 1
    %p140 = por %p138, %p139
    %p141 = scmp.ne.s32.totalorder %s132, %s133
    %p142 = scmp.eq.s32.totalorder %s17, 0
    %p143 = por %p141, %p142
    %p144 = scmp.ne.s32.totalorder %s132, %s133
    %p145 = scmp.eq.s32.totalorder %s18, 1
    %p146 = por %p144, %p145
    %p148 = scmp.ne.s32.totalorder %s133, %s147
    %p149 = scmp.eq.s32.totalorder %s18, 0
    %p150 = por %p148, %p149
    %s151 = ssub.s32 %s12, %s19
    %p152 = scmp.eq.s32.totalorder %s151, 0
    %s154 = sadd.s32 %s153, 1
    %s155 = scalar_select %p152, %s153, %s154
    %p158 = pneg %p152
    %p159 = scmp.eq.s32.totalorder %s12, 1
    %p160 = por %p158, %p159
    %p161 = scmp.ne.s32.totalorder %s153, %s156
    %p162 = scmp.eq.s32.totalorder %s12, 0
    %p163 = por %p161, %p162
    %p164 = scmp.ne.s32.totalorder %s153, %s156
    %p165 = scmp.eq.s32.totalorder %s17, 1
    %p166 = por %p164, %p165
    %p167 = scmp.ne.s32.totalorder %s156, %s157
    %p168 = scmp.eq.s32.totalorder %s17, 0
    %p169 = por %p167, %p168
    %p170 = scmp.ne.s32.totalorder %s156, %s157
    %p171 = scmp.eq.s32.totalorder %s18, 1
    %p172 = por %p170, %p171
    %p174 = scmp.ne.s32.totalorder %s157, %s173
    %p175 = scmp.eq.s32.totalorder %s18, 0
    %p176 = por %p174, %p175
    %p177 = scmp.le.s32.totalorder 1, %s12
    %p178 = scmp.lt.s32.totalorder %s12, 3
    %p179 = pnand %p177, %p178
    %p180 = pneg %p179
    // Predicated region
    $region9: #{scorenet_forward.12} parent=5 // pred_check
      _
    $region10: #{scorenet_forward.12} parent=5 // pred_check_branch
      %182 = sbr.rel (%p179) target = $region12
    $region11: #{scorenet_forward.12} parent=5 // pred_region
      %s183 = ssub.s32 %s12, 1
      // Predicated region
      $region13: #{scorenet_forward.12} parent=11 // pred_check
        %p184 = pneg %p59
      $region14: #{scorenet_forward.12} parent=11 // pred_check_branch
        %186 = sbr.rel (%p184) target = $region16
      $region15: #{scorenet_forward.12} parent=11 // pred_region
        _
      $region16: #{scorenet_forward.12} parent=11 // pred_fallthru
        _
      // Predicated region
      $region17: #{scorenet_forward.12} parent=11 // pred_check
        %p187 = pneg %p80
      $region18: #{scorenet_forward.12} parent=11 // pred_check_branch
        %189 = sbr.rel (%p187) target = $region20
      $region19: #{scorenet_forward.12} parent=11 // pred_region
        _
      $region20: #{scorenet_forward.12} parent=11 // pred_fallthru
        _
      // Predicated region
      $region21: #{scorenet_forward.12} parent=11 // pred_check
        %p190 = pneg %p101
      $region22: #{scorenet_forward.12} parent=11 // pred_check_branch
        %192 = sbr.rel (%p190) target = $region24
      $region23: #{scorenet_forward.12} parent=11 // pred_region
        _
      $region24: #{scorenet_forward.12} parent=11 // pred_fallthru
        _
      // Predicated region
      $region25: #{scorenet_forward.12} parent=11 // pred_check
        %p193 = pneg %p122
      $region26: #{scorenet_forward.12} parent=11 // pred_check_branch
        %195 = sbr.rel (%p193) target = $region28
      $region27: #{scorenet_forward.12} parent=11 // pred_region
        _
      $region28: #{scorenet_forward.12} parent=11 // pred_fallthru
        _
      // Predicated region
      $region29: #{scorenet_forward.12} parent=11 // pred_check
        %p196 = pneg %p143
      $region30: #{scorenet_forward.12} parent=11 // pred_check_branch
        %198 = sbr.rel (%p196) target = $region32
      $region31: #{scorenet_forward.12} parent=11 // pred_region
        _
      $region32: #{scorenet_forward.12} parent=11 // pred_fallthru
        _
    $region12: #{scorenet_forward.12} parent=5 // pred_fallthru
      _
    %p199 = scmp.lt.s32.totalorder %s12, 2
    // Predicated region
    $region33: #{scorenet_forward.12} parent=5 // pred_check
      %p200 = pneg %p199
    $region34: #{scorenet_forward.12} parent=5 // pred_check_branch
      %202 = sbr.rel (%p200) target = $region36
    $region35: #{scorenet_forward.12} parent=5 // pred_region
      // Predicated region
      $region37: #{scorenet_forward.12} parent=35 // pred_check
        %p203 = pneg %p32
      $region38: #{scorenet_forward.12} parent=35 // pred_check_branch
        %205 = sbr.rel (%p203) target = $region40
      $region39: #{scorenet_forward.12} parent=35 // pred_region
        %p206 = scmp.lt.s32.totalorder %s12, 1
        %s207 = scalar_select %p206, %s12, 1
        %s208 = smul.addr %s207, 36
        %s209 = smul.addr %s208, 4
        %s210 = scalar_lea.vmem %s0, %s209
      $region40: #{scorenet_forward.12} parent=35 // pred_fallthru
        _
    $region36: #{scorenet_forward.12} parent=5 // pred_fallthru
      _
    %p211 = scmp.le.s32.totalorder 1, %s12
    %p212 = scmp.lt.s32.totalorder %s12, 3
    %p213 = pnand %p211, %p212
    %p214 = pneg %p213
    // Predicated region
    $region41: #{scorenet_forward.12} parent=5 // pred_check
      _
    $region42: #{scorenet_forward.12} parent=5 // pred_check_branch
      %216 = sbr.rel (%p213) target = $region44
    $region43: #{scorenet_forward.12} parent=5 // pred_region
      %s217 = ssub.s32 %s12, 1
      %p218 = scmp.lt.s32.totalorder %s17, 1
      %s219 = scalar_select %p218, %s17, 1
      %s220 = smul.addr %s219, 36
      %s221 = smul.addr %s220, 4
      %s222 = scalar_lea.vmem %s0, %s221
      %p223 = pneg %p38
      %p224 = pneg %p35
      %p225 = pneg %p59
      %p226 = pneg %p56
      %p227 = pneg %p80
      %p228 = pneg %p77
      %p229 = pneg %p101
      %p230 = pneg %p98
      %p231 = pneg %p122
      %p232 = pneg %p119
      %p233 = pneg %p143
      %p234 = pneg %p140
      %p235 = pneg %p169
      %p236 = pneg %p166
      %p237 = scmp.lt.s32.totalorder %s17, 1
      %s238 = scalar_select %p237, %s17, 1
      %s239 = smul.addr %s238, 2
      %s240 = smul.addr %s239, 4
      %s241 = scalar_lea.vmem %s6, %s240
      %p242 = scmp.lt.s32.totalorder %s17, 1
      %s243 = scalar_select %p242, %s17, 1
      %s244 = smul.addr %s243, 36
      %s245 = smul.addr %s244, 4
      %s246 = scalar_lea.vmem %s0, %s245
      %p247 = scmp.lt.s32.totalorder %s17, 1
      %s248 = scalar_select %p247, %s17, 1
      %s249 = smul.addr %s248, 2
      %s250 = smul.addr %s249, 4
      %s251 = scalar_lea.vmem %s6, %s250
      %v252 = vld [vmem:[%s246] sm:$0xff]
      %v253 = vld [vmem:[%s246 + $0x8] sm:$0xff]
      %v254 = vld [vmem:[%s246 + $0x10] sm:$0xff]
      %v255 = vld [vmem:[%s246 + $0x18] sm:$0xff]
      %v256 = vld [vmem:[%s246 + $0x20] sm:$0xff]
      %v257 = vld [vmem:[%s246 + $0x28] sm:$0xff]
      %v258 = vld [vmem:[%s246 + $0x30] sm:$0xff]
      %v259 = vld [vmem:[%s246 + $0x38] sm:$0xff]
      %v260 = vld [vmem:[%s246 + $0x40] sm:$0xff]
      %v261 = vld [vmem:[%s246 + $0x48] sm:$0x11]
      %v262 = vld [vmem:[%s246 + $0x50] sm:$0x11]
      %v263 = vld [vmem:[%s246 + $0x58] sm:$0x11]
      %v264 = vld [vmem:[%s246 + $0x60] sm:$0x11]
      %v265 = vld [vmem:[%s246 + $0x68] sm:$0x11]
      %v266 = vld [vmem:[%s246 + $0x70] sm:$0x11]
      %v267 = vld [vmem:[%s246 + $0x78] sm:$0x11]
      %v268 = vld [vmem:[%s246 + $0x80] sm:$0x11]
      %v269 = vld [vmem:[%s246 + $0x88] sm:$0x11]
      %v270 = vld [vmem:[%s1] sm:$0xf]
      %v271 = vld [vmem:[%s1 + $0x4] sm:$0xf]
      %v272 = vld [vmem:[%s1 + $0x8] sm:$0xf]
      %v273 = vld [vmem:[%s1 + $0xc] sm:$0xf]
      %v274 = vld [vmem:[%s1 + $0x10] sm:$0xf]
      %v275 = vld [vmem:[%s1 + $0x14] sm:$0xf]
      %v276 = vld [vmem:[%s1 + $0x18] sm:$0xf]
      %v277 = vld [vmem:[%s1 + $0x1c] sm:$0xf]
      %v278 = vld [vmem:[%s1 + $0x20] sm:$0xf]
      %v279 = vld [vmem:[%s1 + $0x24] sm:$0xf]
      %v280 = vld [vmem:[%s1 + $0x28] sm:$0xf]
      %v281 = vld [vmem:[%s1 + $0x2c] sm:$0xf]
      %v282 = vld [vmem:[%s1 + $0x30] sm:$0xf]
      %v283 = vld [vmem:[%s1 + $0x34] sm:$0xf]
      %v284 = vld [vmem:[%s1 + $0x38] sm:$0xf]
      %v285 = vld [vmem:[%s1 + $0x3c] sm:$0xf]
      %v286 = vld [vmem:[%s1 + $0x40] sm:$0xf]
      %v287 = vld [vmem:[%s1 + $0x44] sm:$0xf]
      %v288 = vld [vmem:[%s1 + $0x48] sm:$0xf]
      %v289 = vld [vmem:[%s1 + $0x4c] sm:$0xf]
      %v290 = vld [vmem:[%s1 + $0x50] sm:$0xf]
      %v291 = vld [vmem:[%s1 + $0x54] sm:$0xf]
      %v292 = vld [vmem:[%s1 + $0x58] sm:$0xf]
      %v293 = vld [vmem:[%s1 + $0x5c] sm:$0xf]
      %v294 = vld [vmem:[%s1 + $0x60] sm:$0xf]
      %v295 = vld [vmem:[%s1 + $0x64] sm:$0xf]
      %v296 = vld [vmem:[%s1 + $0x68] sm:$0xf]
      %v297 = vld [vmem:[%s1 + $0x6c] sm:$0xf]
      %v298 = vld [vmem:[%s1 + $0x70] sm:$0xf]
      %v299 = vld [vmem:[%s1 + $0x74] sm:$0xf]
      %v300 = vld [vmem:[%s1 + $0x78] sm:$0xf]
      %v301 = vld [vmem:[%s1 + $0x7c] sm:$0xf]
      %v302 = vld [vmem:[%s1 + $0x80] sm:$0xf]
      %v303 = vld [vmem:[%s1 + $0x84] sm:$0xf]
      %v304 = vld [vmem:[%s1 + $0x88] sm:$0xf]
      %v305 = vld [vmem:[%s1 + $0x8c] sm:$0xf]
      %v306 = vld [vmem:[%s1 + $0x90] sm:$0xf]
      %v307 = vld [vmem:[%s1 + $0x94] sm:$0xf]
      %v308 = vld [vmem:[%s1 + $0x98] sm:$0xf]
      %v309 = vld [vmem:[%s1 + $0x9c] sm:$0xf]
      %v310 = vld [vmem:[%s1 + $0xa0] sm:$0xf]
      %v311 = vld [vmem:[%s1 + $0xa4] sm:$0xf]
      %v312 = vld [vmem:[%s1 + $0xa8] sm:$0xf]
      %v313 = vld [vmem:[%s1 + $0xac] sm:$0xf]
      %v314 = vld [vmem:[%s1 + $0xb0] sm:$0xf]
      %v315 = vld [vmem:[%s1 + $0xb4] sm:$0xf]
      %v316 = vld [vmem:[%s1 + $0xb8] sm:$0xf]
      %v317 = vld [vmem:[%s1 + $0xbc] sm:$0xf]
      %v318 = vld [vmem:[%s1 + $0xc0] sm:$0xf]
      %v319 = vld [vmem:[%s1 + $0xc4] sm:$0xf]
      %v320 = vld [vmem:[%s1 + $0xc8] sm:$0xf]
      %v321 = vld [vmem:[%s1 + $0xcc] sm:$0xf]
      %v322 = vld [vmem:[%s1 + $0xd0] sm:$0xf]
      %v323 = vld [vmem:[%s1 + $0xd4] sm:$0xf]
      %v324 = vld [vmem:[%s1 + $0xd8] sm:$0xf]
      %v325 = vld [vmem:[%s1 + $0xdc] sm:$0xf]
      %v326 = vld [vmem:[%s1 + $0xe0] sm:$0xf]
      %v327 = vld [vmem:[%s1 + $0xe4] sm:$0xf]
      %v328 = vld [vmem:[%s1 + $0xe8] sm:$0xf]
      %v329 = vld [vmem:[%s1 + $0xec] sm:$0xf]
      %v330 = vld [vmem:[%s1 + $0xf0] sm:$0xf]
      %v331 = vld [vmem:[%s1 + $0xf4] sm:$0xf]
      %v332 = vld [vmem:[%s1 + $0xf8] sm:$0xf]
      %v333 = vld [vmem:[%s1 + $0xfc] sm:$0xf]
      %v334 = vld [vmem:[%s1 + $0x100] sm:$0xf]
      %v335 = vld [vmem:[%s1 + $0x104] sm:$0xf]
      %v336 = vld [vmem:[%s1 + $0x108] sm:$0xf]
      %v337 = vld [vmem:[%s1 + $0x10c] sm:$0xf]
      %v338 = vld [vmem:[%s1 + $0x110] sm:$0xf]
      %v339 = vld [vmem:[%s1 + $0x114] sm:$0xf]
      %v340 = vld [vmem:[%s1 + $0x118] sm:$0xf]
      %v341 = vld [vmem:[%s1 + $0x11c] sm:$0xf]
      %v342 = vld [vmem:[%s1 + $0x120] sm:$0xf]
      %v343 = vld [vmem:[%s1 + $0x124] sm:$0xf]
      %v344 = vld [vmem:[%s1 + $0x128] sm:$0xf]
      %v345 = vld [vmem:[%s1 + $0x12c] sm:$0xf]
      %v346 = vld [vmem:[%s1 + $0x130] sm:$0xf]
      %v347 = vld [vmem:[%s1 + $0x134] sm:$0xf]
      %v348 = vld [vmem:[%s1 + $0x138] sm:$0xf]
      %v349 = vld [vmem:[%s1 + $0x13c] sm:$0xf]
      %v350 = vld [vmem:[%s1 + $0x140] sm:$0xf]
      %v351 = vld [vmem:[%s1 + $0x144] sm:$0xf]
      %v352 = vld [vmem:[%s1 + $0x148] sm:$0xf]
      %v353 = vld [vmem:[%s1 + $0x14c] sm:$0xf]
      %v354 = vld [vmem:[%s1 + $0x150] sm:$0xf]
      %v355 = vld [vmem:[%s1 + $0x154] sm:$0xf]
      %v356 = vld [vmem:[%s1 + $0x158] sm:$0xf]
      %v357 = vld [vmem:[%s1 + $0x15c] sm:$0xf]
      %v358 = vld [vmem:[%s1 + $0x160] sm:$0xf]
      %v359 = vld [vmem:[%s1 + $0x164] sm:$0xf]
      %v360 = vld [vmem:[%s1 + $0x168] sm:$0xf]
      %v361 = vld [vmem:[%s1 + $0x16c] sm:$0xf]
      %v362 = vld [vmem:[%s1 + $0x170] sm:$0xf]
      %v363 = vld [vmem:[%s1 + $0x174] sm:$0xf]
      %v364 = vld [vmem:[%s1 + $0x178] sm:$0xf]
      %v365 = vld [vmem:[%s1 + $0x17c] sm:$0xf]
      %v366 = vld [vmem:[%s1 + $0x180] sm:$0xf]
      %v367 = vld [vmem:[%s1 + $0x184] sm:$0xf]
      %v368 = vld [vmem:[%s1 + $0x188] sm:$0xf]
      %v369 = vld [vmem:[%s1 + $0x18c] sm:$0xf]
      %v370 = vld [vmem:[%s1 + $0x190] sm:$0xf]
      %v371 = vld [vmem:[%s1 + $0x194] sm:$0xf]
      %v372 = vld [vmem:[%s1 + $0x198] sm:$0xf]
      %v373 = vld [vmem:[%s1 + $0x19c] sm:$0xf]
      %v374 = vld [vmem:[%s1 + $0x1a0] sm:$0xf]
      %v375 = vld [vmem:[%s1 + $0x1a4] sm:$0xf]
      %v376 = vld [vmem:[%s1 + $0x1a8] sm:$0xf]
      %v377 = vld [vmem:[%s1 + $0x1ac] sm:$0xf]
      %v378 = vld [vmem:[%s1 + $0x1b0] sm:$0xf]
      %v379 = vld [vmem:[%s1 + $0x1b4] sm:$0xf]
      %v380 = vld [vmem:[%s1 + $0x1b8] sm:$0xf]
      %v381 = vld [vmem:[%s1 + $0x1bc] sm:$0xf]
      %v382 = vld [vmem:[%s1 + $0x1c0] sm:$0xf]
      %v383 = vld [vmem:[%s1 + $0x1c4] sm:$0xf]
      %v384 = vld [vmem:[%s1 + $0x1c8] sm:$0xf]
      %v385 = vld [vmem:[%s1 + $0x1cc] sm:$0xf]
      %v386 = vld [vmem:[%s1 + $0x1d0] sm:$0xf]
      %v387 = vld [vmem:[%s1 + $0x1d4] sm:$0xf]
      %v388 = vld [vmem:[%s1 + $0x1d8] sm:$0xf]
      %v389 = vld [vmem:[%s1 + $0x1dc] sm:$0xf]
      %v390 = vld [vmem:[%s1 + $0x1e0] sm:$0xf]
      %v391 = vld [vmem:[%s1 + $0x1e4] sm:$0xf]
      %v392 = vld [vmem:[%s1 + $0x1e8] sm:$0xf]
      %v393 = vld [vmem:[%s1 + $0x1ec] sm:$0xf]
      %v394 = vld [vmem:[%s1 + $0x1f0] sm:$0xf]
      %v395 = vld [vmem:[%s1 + $0x1f4] sm:$0xf]
      %v396 = vld [vmem:[%s1 + $0x1f8] sm:$0xf]
      %v397 = vld [vmem:[%s1 + $0x1fc] sm:$0xf]
      %v398 = vld [vmem:[%s1 + $0x200] sm:$0xf]
      %v399 = vld [vmem:[%s1 + $0x204] sm:$0xf]
      %v400 = vld [vmem:[%s1 + $0x208] sm:$0xf]
      %v401 = vld [vmem:[%s1 + $0x20c] sm:$0xf]
      %v402 = vld [vmem:[%s1 + $0x210] sm:$0xf]
      %v403 = vld [vmem:[%s1 + $0x214] sm:$0xf]
      %v404 = vld [vmem:[%s1 + $0x218] sm:$0xf]
      %v405 = vld [vmem:[%s1 + $0x21c] sm:$0xf]
      %v406 = vld [vmem:[%s1 + $0x220] sm:$0xf]
      %v407 = vld [vmem:[%s1 + $0x224] sm:$0xf]
      %v408 = vld [vmem:[%s1 + $0x228] sm:$0xf]
      %v409 = vld [vmem:[%s1 + $0x22c] sm:$0xf]
      %v410 = vld [vmem:[%s1 + $0x230] sm:$0xf]
      %v411 = vld [vmem:[%s1 + $0x234] sm:$0xf]
      %v412 = vld [vmem:[%s1 + $0x238] sm:$0xf]
      %v413 = vld [vmem:[%s1 + $0x23c] sm:$0xf]
      %v414 = vld [vmem:[%s1 + $0x240] sm:$0xf]
      %v415 = vld [vmem:[%s1 + $0x244] sm:$0xf]
      %v416 = vld [vmem:[%s1 + $0x248] sm:$0xf]
      %v417 = vld [vmem:[%s1 + $0x24c] sm:$0xf]
      %v418 = vld [vmem:[%s1 + $0x250] sm:$0xf]
      %v419 = vld [vmem:[%s1 + $0x254] sm:$0xf]
      %v420 = vld [vmem:[%s1 + $0x258] sm:$0xf]
      %v421 = vld [vmem:[%s1 + $0x25c] sm:$0xf]
      %v422 = vld [vmem:[%s1 + $0x260] sm:$0xf]
      %v423 = vld [vmem:[%s1 + $0x264] sm:$0xf]
      %v424 = vld [vmem:[%s1 + $0x268] sm:$0xf]
      %v425 = vld [vmem:[%s1 + $0x26c] sm:$0xf]
      %v426 = vld [vmem:[%s1 + $0x270] sm:$0xf]
      %v427 = vld [vmem:[%s1 + $0x274] sm:$0xf]
      %v428 = vld [vmem:[%s1 + $0x278] sm:$0xf]
      %v429 = vld [vmem:[%s1 + $0x27c] sm:$0xf]
      %v430 = vld [vmem:[%s1 + $0x280] sm:$0xf]
      %v431 = vld [vmem:[%s1 + $0x284] sm:$0xf]
      %v432 = vld [vmem:[%s1 + $0x288] sm:$0xf]
      %v433 = vld [vmem:[%s1 + $0x28c] sm:$0xf]
      %v434 = vld [vmem:[%s1 + $0x290] sm:$0xf]
      %v435 = vld [vmem:[%s1 + $0x294] sm:$0xf]
      %v436 = vld [vmem:[%s1 + $0x298] sm:$0xf]
      %v437 = vld [vmem:[%s1 + $0x29c] sm:$0xf]
      %v438 = vld [vmem:[%s1 + $0x2a0] sm:$0xf]
      %v439 = vld [vmem:[%s1 + $0x2a4] sm:$0xf]
      %v440 = vld [vmem:[%s1 + $0x2a8] sm:$0xf]
      %v441 = vld [vmem:[%s1 + $0x2ac] sm:$0xf]
      %v442 = vld [vmem:[%s1 + $0x2b0] sm:$0xf]
      %v443 = vld [vmem:[%s1 + $0x2b4] sm:$0xf]
      %v444 = vld [vmem:[%s1 + $0x2b8] sm:$0xf]
      %v445 = vld [vmem:[%s1 + $0x2bc] sm:$0xf]
      %v446 = vld [vmem:[%s1 + $0x2c0] sm:$0xf]
      %v447 = vld [vmem:[%s1 + $0x2c4] sm:$0xf]
      %v448 = vld [vmem:[%s1 + $0x2c8] sm:$0xf]
      %v449 = vld [vmem:[%s1 + $0x2cc] sm:$0xf]
      %v450 = vld [vmem:[%s1 + $0x2d0] sm:$0xf]
      %v451 = vld [vmem:[%s1 + $0x2d4] sm:$0xf]
      %v452 = vld [vmem:[%s1 + $0x2d8] sm:$0xf]
      %v453 = vld [vmem:[%s1 + $0x2dc] sm:$0xf]
      %v454 = vld [vmem:[%s1 + $0x2e0] sm:$0xf]
      %v455 = vld [vmem:[%s1 + $0x2e4] sm:$0xf]
      %v456 = vld [vmem:[%s1 + $0x2e8] sm:$0xf]
      %v457 = vld [vmem:[%s1 + $0x2ec] sm:$0xf]
      %v458 = vld [vmem:[%s1 + $0x2f0] sm:$0xf]
      %v459 = vld [vmem:[%s1 + $0x2f4] sm:$0xf]
      %v460 = vld [vmem:[%s1 + $0x2f8] sm:$0xf]
      %v461 = vld [vmem:[%s1 + $0x2fc] sm:$0xf]
      %v462 = vld [vmem:[%s1 + $0x300] sm:$0xf]
      %v463 = vld [vmem:[%s1 + $0x304] sm:$0xf]
      %v464 = vld [vmem:[%s1 + $0x308] sm:$0xf]
      %v465 = vld [vmem:[%s1 + $0x30c] sm:$0xf]
      %v466 = vld [vmem:[%s1 + $0x310] sm:$0xf]
      %v467 = vld [vmem:[%s1 + $0x314] sm:$0xf]
      %v468 = vld [vmem:[%s1 + $0x318] sm:$0xf]
      %v469 = vld [vmem:[%s1 + $0x31c] sm:$0xf]
      %v470 = vld [vmem:[%s1 + $0x320] sm:$0xf]
      %v471 = vld [vmem:[%s1 + $0x324] sm:$0xf]
      %v472 = vld [vmem:[%s1 + $0x328] sm:$0xf]
      %v473 = vld [vmem:[%s1 + $0x32c] sm:$0xf]
      %v474 = vld [vmem:[%s1 + $0x330] sm:$0xf]
      %v475 = vld [vmem:[%s1 + $0x334] sm:$0xf]
      %v476 = vld [vmem:[%s1 + $0x338] sm:$0xf]
      %v477 = vld [vmem:[%s1 + $0x33c] sm:$0xf]
      %v478 = vld [vmem:[%s1 + $0x340] sm:$0xf]
      %v479 = vld [vmem:[%s1 + $0x344] sm:$0xf]
      %v480 = vld [vmem:[%s1 + $0x348] sm:$0xf]
      %v481 = vld [vmem:[%s1 + $0x34c] sm:$0xf]
      %v482 = vld [vmem:[%s1 + $0x350] sm:$0xf]
      %v483 = vld [vmem:[%s1 + $0x354] sm:$0xf]
      %v484 = vld [vmem:[%s1 + $0x358] sm:$0xf]
      %v485 = vld [vmem:[%s1 + $0x35c] sm:$0xf]
      %v486 = vld [vmem:[%s1 + $0x360] sm:$0xf]
      %v487 = vld [vmem:[%s1 + $0x364] sm:$0xf]
      %v488 = vld [vmem:[%s1 + $0x368] sm:$0xf]
      %v489 = vld [vmem:[%s1 + $0x36c] sm:$0xf]
      %v490 = vld [vmem:[%s1 + $0x370] sm:$0xf]
      %v491 = vld [vmem:[%s1 + $0x374] sm:$0xf]
      %v492 = vld [vmem:[%s1 + $0x378] sm:$0xf]
      %v493 = vld [vmem:[%s1 + $0x37c] sm:$0xf]
      %v494 = vld [vmem:[%s1 + $0x380] sm:$0xf]
      %v495 = vld [vmem:[%s1 + $0x384] sm:$0xf]
      %v496 = vld [vmem:[%s1 + $0x388] sm:$0xf]
      %v497 = vld [vmem:[%s1 + $0x38c] sm:$0xf]
      %v498 = vld [vmem:[%s1 + $0x390] sm:$0xf]
      %v499 = vld [vmem:[%s1 + $0x394] sm:$0xf]
      %v500 = vld [vmem:[%s1 + $0x398] sm:$0xf]
      %v501 = vld [vmem:[%s1 + $0x39c] sm:$0xf]
      %v502 = vld [vmem:[%s1 + $0x3a0] sm:$0xf]
      %v503 = vld [vmem:[%s1 + $0x3a4] sm:$0xf]
      %v504 = vld [vmem:[%s1 + $0x3a8] sm:$0xf]
      %v505 = vld [vmem:[%s1 + $0x3ac] sm:$0xf]
      %v506 = vld [vmem:[%s1 + $0x3b0] sm:$0xf]
      %v507 = vld [vmem:[%s1 + $0x3b4] sm:$0xf]
      %v508 = vld [vmem:[%s1 + $0x3b8] sm:$0xf]
      %v509 = vld [vmem:[%s1 + $0x3bc] sm:$0xf]
      %v510 = vld [vmem:[%s1 + $0x3c0] sm:$0xf]
      %v511 = vld [vmem:[%s1 + $0x3c4] sm:$0xf]
      %v512 = vld [vmem:[%s1 + $0x3c8] sm:$0xf]
      %v513 = vld [vmem:[%s1 + $0x3cc] sm:$0xf]
      %v514 = vld [vmem:[%s1 + $0x3d0] sm:$0xf]
      %v515 = vld [vmem:[%s1 + $0x3d4] sm:$0xf]
      %v516 = vld [vmem:[%s1 + $0x3d8] sm:$0xf]
      %v517 = vld [vmem:[%s1 + $0x3dc] sm:$0xf]
      %v518 = vld [vmem:[%s1 + $0x3e0] sm:$0xf]
      %v519 = vld [vmem:[%s1 + $0x3e4] sm:$0xf]
      %v520 = vld [vmem:[%s1 + $0x3e8] sm:$0xf]
      %v521 = vld [vmem:[%s1 + $0x3ec] sm:$0xf]
      %v522 = vld [vmem:[%s1 + $0x3f0] sm:$0xf]
      %v523 = vld [vmem:[%s1 + $0x3f4] sm:$0xf]
      %v524 = vld [vmem:[%s1 + $0x3f8] sm:$0xf]
      %v525 = vld [vmem:[%s1 + $0x3fc] sm:$0xf]
      %v526 = vld [vmem:[%s1 + $0x400] sm:$0xf]
      %v527 = vld [vmem:[%s1 + $0x404] sm:$0xf]
      %v528 = vld [vmem:[%s1 + $0x408] sm:$0xf]
      %v529 = vld [vmem:[%s1 + $0x40c] sm:$0xf]
      %v530 = vld [vmem:[%s1 + $0x410] sm:$0xf]
      %v531 = vld [vmem:[%s1 + $0x414] sm:$0xf]
      %v532 = vld [vmem:[%s1 + $0x418] sm:$0xf]
      %v533 = vld [vmem:[%s1 + $0x41c] sm:$0xf]
      %v534 = vld [vmem:[%s1 + $0x420] sm:$0xf]
      %v535 = vld [vmem:[%s1 + $0x424] sm:$0xf]
      %v536 = vld [vmem:[%s1 + $0x428] sm:$0xf]
      %v537 = vld [vmem:[%s1 + $0x42c] sm:$0xf]
      %v538 = vld [vmem:[%s1 + $0x430] sm:$0xf]
      %v539 = vld [vmem:[%s1 + $0x434] sm:$0xf]
      %v540 = vld [vmem:[%s1 + $0x438] sm:$0xf]
      %v541 = vld [vmem:[%s1 + $0x43c] sm:$0xf]
      %v542 = vld [vmem:[%s1 + $0x440] sm:$0xf]
      %v543 = vld [vmem:[%s1 + $0x444] sm:$0xf]
      %v544 = vld [vmem:[%s1 + $0x448] sm:$0xf]
      %v545 = vld [vmem:[%s1 + $0x44c] sm:$0xf]
      %v546 = vld [vmem:[%s1 + $0x450] sm:$0xf]
      %v547 = vld [vmem:[%s1 + $0x454] sm:$0xf]
      %v548 = vld [vmem:[%s1 + $0x458] sm:$0xf]
      %v549 = vld [vmem:[%s1 + $0x45c] sm:$0xf]
      %v550 = vld [vmem:[%s1 + $0x460] sm:$0xf]
      %v551 = vld [vmem:[%s1 + $0x464] sm:$0xf]
      %v552 = vld [vmem:[%s1 + $0x468] sm:$0xf]
      %v553 = vld [vmem:[%s1 + $0x46c] sm:$0xf]
      %v554 = vld [vmem:[%s1 + $0x470] sm:$0xf]
      %v555 = vld [vmem:[%s1 + $0x474] sm:$0xf]
      %v556 = vld [vmem:[%s1 + $0x478] sm:$0xf]
      %v557 = vld [vmem:[%s1 + $0x47c] sm:$0xf]
      %v576 = vunpack.c.l.b16 %v252
      %v577 = vunpack.c.h.b16 %v252
      %v578 = vunpack.c.l.b16 %v253
      %v579 = vunpack.c.h.b16 %v253
      %v580 = vunpack.c.l.b16 %v254
      %v581 = vunpack.c.h.b16 %v254
      %v582 = vunpack.c.l.b16 %v255
      %v583 = vunpack.c.h.b16 %v255
      %v584 = vunpack.c.l.b16 %v256
      %v585 = vunpack.c.h.b16 %v256
      %v586 = vunpack.c.l.b16 %v257
      %v587 = vunpack.c.h.b16 %v257
      %v588 = vunpack.c.l.b16 %v258
      %v589 = vunpack.c.h.b16 %v258
      %v590 = vunpack.c.l.b16 %v259
      %v591 = vunpack.c.h.b16 %v259
      %v592 = vunpack.c.l.b16 %v260
      %v593 = vunpack.c.h.b16 %v260
      %v594 = vunpack.c.l.b16 %v261
      %v595 = vunpack.c.h.b16 %v261
      %v596 = vunpack.c.l.b16 %v262
      %v597 = vunpack.c.h.b16 %v262
      %v598 = vunpack.c.l.b16 %v263
      %v599 = vunpack.c.h.b16 %v263
      %v600 = vunpack.c.l.b16 %v264
      %v601 = vunpack.c.h.b16 %v264
      %v602 = vunpack.c.l.b16 %v265
      %v603 = vunpack.c.h.b16 %v265
      %v604 = vunpack.c.l.b16 %v266
      %v605 = vunpack.c.h.b16 %v266
      %v606 = vunpack.c.l.b16 %v267
      %v607 = vunpack.c.h.b16 %v267
      %v608 = vunpack.c.l.b16 %v268
      %v609 = vunpack.c.h.b16 %v268
      %v610 = vunpack.c.l.b16 %v269
      %v611 = vunpack.c.h.b16 %v269
      %v612 = vpack.c.b16 %v594, %v576
      %v613 = vpack.c.b16 %v595, %v577
      %v614 = vpack.c.b16 %v596, %v578
      %v615 = vpack.c.b16 %v597, %v579
      %v616 = vpack.c.b16 %v598, %v580
      %v617 = vpack.c.b16 %v599, %v581
      %v618 = vpack.c.b16 %v600, %v582
      %v619 = vpack.c.b16 %v601, %v583
      %v620 = vpack.c.b16 %v602, %v584
      %v621 = vpack.c.b16 %v603, %v585
      %v622 = vpack.c.b16 %v604, %v586
      %v623 = vpack.c.b16 %v605, %v587
      %v624 = vpack.c.b16 %v606, %v588
      %v625 = vpack.c.b16 %v607, %v589
      %v626 = vpack.c.b16 %v608, %v590
      %v627 = vpack.c.b16 %v609, %v591
      %v628 = vpack.c.b16 %v610, %v592
      %v629 = vpack.c.b16 %v611, %v593
      %v936 = vunpack.c.l.b16 %v270
      %v937 = vunpack.c.l.b16 %v271
      %v938 = vunpack.c.l.b16 %v272
      %v939 = vunpack.c.l.b16 %v273
      %v940 = vunpack.c.l.b16 %v274
      %v941 = vunpack.c.l.b16 %v275
      %v942 = vunpack.c.l.b16 %v276
      %v943 = vunpack.c.l.b16 %v277
      %v944 = vunpack.c.l.b16 %v278
      %v945 = vunpack.c.l.b16 %v279
      %v946 = vunpack.c.l.b16 %v280
      %v947 = vunpack.c.l.b16 %v281
      %v948 = vunpack.c.l.b16 %v282
      %v949 = vunpack.c.l.b16 %v283
      %v950 = vunpack.c.l.b16 %v284
      %v951 = vunpack.c.l.b16 %v285
      %v952 = vunpack.c.l.b16 %v286
      %v953 = vunpack.c.l.b16 %v287
      %v954 = vunpack.c.l.b16 %v288
      %v955 = vunpack.c.l.b16 %v289
      %v956 = vunpack.c.l.b16 %v290
      %v957 = vunpack.c.l.b16 %v291
      %v958 = vunpack.c.l.b16 %v292
      %v959 = vunpack.c.l.b16 %v293
      %v960 = vunpack.c.l.b16 %v294
      %v961 = vunpack.c.l.b16 %v295
      %v962 = vunpack.c.l.b16 %v296
      %v963 = vunpack.c.l.b16 %v297
      %v964 = vunpack.c.l.b16 %v298
      %v965 = vunpack.c.l.b16 %v299
      %v966 = vunpack.c.l.b16 %v300
      %v967 = vunpack.c.l.b16 %v301
      %v968 = vunpack.c.l.b16 %v302
      %v969 = vunpack.c.l.b16 %v303
      %v970 = vunpack.c.l.b16 %v304
      %v971 = vunpack.c.l.b16 %v305
      %v972 = vunpack.c.l.b16 %v306
      %v973 = vunpack.c.l.b16 %v307
      %v974 = vunpack.c.l.b16 %v308
      %v975 = vunpack.c.l.b16 %v309
      %v976 = vunpack.c.l.b16 %v310
      %v977 = vunpack.c.l.b16 %v311
      %v978 = vunpack.c.l.b16 %v312
      %v979 = vunpack.c.l.b16 %v313
      %v980 = vunpack.c.l.b16 %v314
      %v981 = vunpack.c.l.b16 %v315
      %v982 = vunpack.c.l.b16 %v316
      %v983 = vunpack.c.l.b16 %v317
      %v984 = vunpack.c.l.b16 %v318
      %v985 = vunpack.c.l.b16 %v319
      %v986 = vunpack.c.l.b16 %v320
      %v987 = vunpack.c.l.b16 %v321
      %v988 = vunpack.c.l.b16 %v322
      %v989 = vunpack.c.l.b16 %v323
      %v990 = vunpack.c.l.b16 %v324
      %v991 = vunpack.c.l.b16 %v325
      %v992 = vunpack.c.l.b16 %v326
      %v993 = vunpack.c.l.b16 %v327
      %v994 = vunpack.c.l.b16 %v328
      %v995 = vunpack.c.l.b16 %v329
      %v996 = vunpack.c.l.b16 %v330
      %v997 = vunpack.c.l.b16 %v331
      %v998 = vunpack.c.l.b16 %v332
      %v999 = vunpack.c.l.b16 %v333
      %v1000 = vunpack.c.l.b16 %v334
      %v1001 = vunpack.c.l.b16 %v335
      %v1002 = vunpack.c.l.b16 %v336
      %v1003 = vunpack.c.l.b16 %v337
      %v1004 = vunpack.c.l.b16 %v338
      %v1005 = vunpack.c.l.b16 %v339
      %v1006 = vunpack.c.l.b16 %v340
      %v1007 = vunpack.c.l.b16 %v341
      %v1008 = vunpack.c.l.b16 %v342
      %v1009 = vunpack.c.l.b16 %v343
      %v1010 = vunpack.c.l.b16 %v344
      %v1011 = vunpack.c.l.b16 %v345
      %v1012 = vunpack.c.l.b16 %v346
      %v1013 = vunpack.c.l.b16 %v347
      %v1014 = vunpack.c.l.b16 %v348
      %v1015 = vunpack.c.l.b16 %v349
      %v1016 = vunpack.c.l.b16 %v350
      %v1017 = vunpack.c.l.b16 %v351
      %v1018 = vunpack.c.l.b16 %v352
      %v1019 = vunpack.c.l.b16 %v353
      %v1020 = vunpack.c.l.b16 %v354
      %v1021 = vunpack.c.l.b16 %v355
      %v1022 = vunpack.c.l.b16 %v356
      %v1023 = vunpack.c.l.b16 %v357
      %v1024 = vunpack.c.l.b16 %v358
      %v1025 = vunpack.c.l.b16 %v359
      %v1026 = vunpack.c.l.b16 %v360
      %v1027 = vunpack.c.l.b16 %v361
      %v1028 = vunpack.c.l.b16 %v362
      %v1029 = vunpack.c.l.b16 %v363
      %v1030 = vunpack.c.l.b16 %v364
      %v1031 = vunpack.c.l.b16 %v365
      %v1032 = vunpack.c.l.b16 %v366
      %v1033 = vunpack.c.l.b16 %v367
      %v1034 = vunpack.c.l.b16 %v368
      %v1035 = vunpack.c.l.b16 %v369
      %v1036 = vunpack.c.l.b16 %v370
      %v1037 = vunpack.c.l.b16 %v371
      %v1038 = vunpack.c.l.b16 %v372
      %v1039 = vunpack.c.l.b16 %v373
      %v1040 = vunpack.c.l.b16 %v374
      %v1041 = vunpack.c.l.b16 %v375
      %v1042 = vunpack.c.l.b16 %v376
      %v1043 = vunpack.c.l.b16 %v377
      %v1044 = vunpack.c.l.b16 %v378
      %v1045 = vunpack.c.l.b16 %v379
      %v1046 = vunpack.c.l.b16 %v380
      %v1047 = vunpack.c.l.b16 %v381
      %v1048 = vunpack.c.l.b16 %v382
      %v1049 = vunpack.c.l.b16 %v383
      %v1050 = vunpack.c.l.b16 %v384
      %v1051 = vunpack.c.l.b16 %v385
      %v1052 = vunpack.c.l.b16 %v386
      %v1053 = vunpack.c.l.b16 %v387
      %v1054 = vunpack.c.l.b16 %v388
      %v1055 = vunpack.c.l.b16 %v389
      %v1056 = vunpack.c.l.b16 %v390
      %v1057 = vunpack.c.l.b16 %v391
      %v1058 = vunpack.c.l.b16 %v392
      %v1059 = vunpack.c.l.b16 %v393
      %v1060 = vunpack.c.l.b16 %v394
      %v1061 = vunpack.c.l.b16 %v395
      %v1062 = vunpack.c.l.b16 %v396
      %v1063 = vunpack.c.l.b16 %v397
      %v1064 = vunpack.c.l.b16 %v398
      %v1065 = vunpack.c.l.b16 %v399
      %v1066 = vunpack.c.l.b16 %v400
      %v1067 = vunpack.c.l.b16 %v401
      %v1068 = vunpack.c.l.b16 %v402
      %v1069 = vunpack.c.l.b16 %v403
      %v1070 = vunpack.c.l.b16 %v404
      %v1071 = vunpack.c.l.b16 %v405
      %v1072 = vunpack.c.l.b16 %v406
      %v1073 = vunpack.c.l.b16 %v407
      %v1074 = vunpack.c.l.b16 %v408
      %v1075 = vunpack.c.l.b16 %v409
      %v1076 = vunpack.c.l.b16 %v410
      %v1077 = vunpack.c.l.b16 %v411
      %v1078 = vunpack.c.l.b16 %v412
      %v1079 = vunpack.c.l.b16 %v413
      %v1080 = vunpack.c.l.b16 %v414
      %v1081 = vunpack.c.l.b16 %v415
      %v1082 = vunpack.c.l.b16 %v416
      %v1083 = vunpack.c.l.b16 %v417
      %v1084 = vunpack.c.l.b16 %v418
      %v1085 = vunpack.c.l.b16 %v419
      %v1086 = vunpack.c.l.b16 %v420
      %v1087 = vunpack.c.l.b16 %v421
      %v1088 = vunpack.c.l.b16 %v422
      %v1089 = vunpack.c.l.b16 %v423
      %v1090 = vunpack.c.l.b16 %v424
      %v1091 = vunpack.c.l.b16 %v425
      %v1092 = vunpack.c.l.b16 %v426
      %v1093 = vunpack.c.l.b16 %v427
      %v1094 = vunpack.c.l.b16 %v428
      %v1095 = vunpack.c.l.b16 %v429
      %v1096 = vunpack.c.l.b16 %v430
      %v1097 = vunpack.c.l.b16 %v431
      %v1098 = vunpack.c.l.b16 %v432
      %v1099 = vunpack.c.l.b16 %v433
      %v1100 = vunpack.c.l.b16 %v434
      %v1101 = vunpack.c.l.b16 %v435
      %v1102 = vunpack.c.l.b16 %v436
      %v1103 = vunpack.c.l.b16 %v437
      %v1104 = vunpack.c.l.b16 %v438
      %v1105 = vunpack.c.l.b16 %v439
      %v1106 = vunpack.c.l.b16 %v440
      %v1107 = vunpack.c.l.b16 %v441
      %v1108 = vunpack.c.l.b16 %v442
      %v1109 = vunpack.c.l.b16 %v443
      %v1110 = vunpack.c.l.b16 %v444
      %v1111 = vunpack.c.l.b16 %v445
      %v1112 = vunpack.c.l.b16 %v446
      %v1113 = vunpack.c.l.b16 %v447
      %v1114 = vunpack.c.l.b16 %v448
      %v1115 = vunpack.c.l.b16 %v449
      %v1116 = vunpack.c.l.b16 %v450
      %v1117 = vunpack.c.l.b16 %v451
      %v1118 = vunpack.c.l.b16 %v452
      %v1119 = vunpack.c.l.b16 %v453
      %v1120 = vunpack.c.l.b16 %v454
      %v1121 = vunpack.c.l.b16 %v455
      %v1122 = vunpack.c.l.b16 %v456
      %v1123 = vunpack.c.l.b16 %v457
      %v1124 = vunpack.c.l.b16 %v458
      %v1125 = vunpack.c.l.b16 %v459
      %v1126 = vunpack.c.l.b16 %v460
      %v1127 = vunpack.c.l.b16 %v461
      %v1128 = vunpack.c.l.b16 %v462
      %v1129 = vunpack.c.l.b16 %v463
      %v1130 = vunpack.c.l.b16 %v464
      %v1131 = vunpack.c.l.b16 %v465
      %v1132 = vunpack.c.l.b16 %v466
      %v1133 = vunpack.c.l.b16 %v467
      %v1134 = vunpack.c.l.b16 %v468
      %v1135 = vunpack.c.l.b16 %v469
      %v1136 = vunpack.c.l.b16 %v470
      %v1137 = vunpack.c.l.b16 %v471
      %v1138 = vunpack.c.l.b16 %v472
      %v1139 = vunpack.c.l.b16 %v473
      %v1140 = vunpack.c.l.b16 %v474
      %v1141 = vunpack.c.l.b16 %v475
      %v1142 = vunpack.c.l.b16 %v476
      %v1143 = vunpack.c.l.b16 %v477
      %v1144 = vunpack.c.l.b16 %v478
      %v1145 = vunpack.c.l.b16 %v479
      %v1146 = vunpack.c.l.b16 %v480
      %v1147 = vunpack.c.l.b16 %v481
      %v1148 = vunpack.c.l.b16 %v482
      %v1149 = vunpack.c.l.b16 %v483
      %v1150 = vunpack.c.l.b16 %v484
      %v1151 = vunpack.c.l.b16 %v485
      %v1152 = vunpack.c.l.b16 %v486
      %v1153 = vunpack.c.l.b16 %v487
      %v1154 = vunpack.c.l.b16 %v488
      %v1155 = vunpack.c.l.b16 %v489
      %v1156 = vunpack.c.l.b16 %v490
      %v1157 = vunpack.c.l.b16 %v491
      %v1158 = vunpack.c.l.b16 %v492
      %v1159 = vunpack.c.l.b16 %v493
      %v1160 = vunpack.c.l.b16 %v494
      %v1161 = vunpack.c.l.b16 %v495
      %v1162 = vunpack.c.l.b16 %v496
      %v1163 = vunpack.c.l.b16 %v497
      %v1164 = vunpack.c.l.b16 %v498
      %v1165 = vunpack.c.l.b16 %v499
      %v1166 = vunpack.c.l.b16 %v500
      %v1167 = vunpack.c.l.b16 %v501
      %v1168 = vunpack.c.l.b16 %v502
      %v1169 = vunpack.c.l.b16 %v503
      %v1170 = vunpack.c.l.b16 %v504
      %v1171 = vunpack.c.l.b16 %v505
      %v1172 = vunpack.c.l.b16 %v506
      %v1173 = vunpack.c.l.b16 %v507
      %v1174 = vunpack.c.l.b16 %v508
      %v1175 = vunpack.c.l.b16 %v509
      %v1176 = vunpack.c.l.b16 %v510
      %v1177 = vunpack.c.l.b16 %v511
      %v1178 = vunpack.c.l.b16 %v512
      %v1179 = vunpack.c.l.b16 %v513
      %v1180 = vunpack.c.l.b16 %v514
      %v1181 = vunpack.c.l.b16 %v515
      %v1182 = vunpack.c.l.b16 %v516
      %v1183 = vunpack.c.l.b16 %v517
      %v1184 = vunpack.c.l.b16 %v518
      %v1185 = vunpack.c.l.b16 %v519
      %v1186 = vunpack.c.l.b16 %v520
      %v1187 = vunpack.c.l.b16 %v521
      %v1188 = vunpack.c.l.b16 %v522
      %v1189 = vunpack.c.l.b16 %v523
      %v1190 = vunpack.c.l.b16 %v524
      %v1191 = vunpack.c.l.b16 %v525
      %v1192 = vunpack.c.l.b16 %v526
      %v1193 = vunpack.c.l.b16 %v527
      %v1194 = vunpack.c.l.b16 %v528
      %v1195 = vunpack.c.l.b16 %v529
      %v1196 = vunpack.c.l.b16 %v530
      %v1197 = vunpack.c.l.b16 %v531
      %v1198 = vunpack.c.l.b16 %v532
      %v1199 = vunpack.c.l.b16 %v533
      %v1200 = vunpack.c.l.b16 %v534
      %v1201 = vunpack.c.l.b16 %v535
      %v1202 = vunpack.c.l.b16 %v536
      %v1203 = vunpack.c.l.b16 %v537
      %v1204 = vunpack.c.l.b16 %v538
      %v1205 = vunpack.c.l.b16 %v539
      %v1206 = vunpack.c.l.b16 %v540
      %v1207 = vunpack.c.l.b16 %v541
      %v1208 = vunpack.c.l.b16 %v542
      %v1209 = vunpack.c.l.b16 %v543
      %v1210 = vunpack.c.l.b16 %v544
      %v1211 = vunpack.c.l.b16 %v545
      %v1212 = vunpack.c.l.b16 %v546
      %v1213 = vunpack.c.l.b16 %v547
      %v1214 = vunpack.c.l.b16 %v548
      %v1215 = vunpack.c.l.b16 %v549
      %v1216 = vunpack.c.l.b16 %v550
      %v1217 = vunpack.c.l.b16 %v551
      %v1218 = vunpack.c.l.b16 %v552
      %v1219 = vunpack.c.l.b16 %v553
      %v1220 = vunpack.c.l.b16 %v554
      %v1221 = vunpack.c.l.b16 %v555
      %v1222 = vunpack.c.l.b16 %v556
      %v1223 = vunpack.c.l.b16 %v557
      %v1224 = vpack.c.b16 %v937, %v936
      %v1225 = vpack.c.b16 %v939, %v938
      %v1226 = vpack.c.b16 %v941, %v940
      %v1227 = vpack.c.b16 %v943, %v942
      %v1228 = vpack.c.b16 %v945, %v944
      %v1229 = vpack.c.b16 %v947, %v946
      %v1230 = vpack.c.b16 %v949, %v948
      %v1231 = vpack.c.b16 %v951, %v950
      %v1232 = vpack.c.b16 %v953, %v952
      %v1233 = vpack.c.b16 %v955, %v954
      %v1234 = vpack.c.b16 %v957, %v956
      %v1235 = vpack.c.b16 %v959, %v958
      %v1236 = vpack.c.b16 %v961, %v960
      %v1237 = vpack.c.b16 %v963, %v962
      %v1238 = vpack.c.b16 %v965, %v964
      %v1239 = vpack.c.b16 %v967, %v966
      %v1240 = vpack.c.b16 %v969, %v968
      %v1241 = vpack.c.b16 %v971, %v970
      %v1242 = vpack.c.b16 %v973, %v972
      %v1243 = vpack.c.b16 %v975, %v974
      %v1244 = vpack.c.b16 %v977, %v976
      %v1245 = vpack.c.b16 %v979, %v978
      %v1246 = vpack.c.b16 %v981, %v980
      %v1247 = vpack.c.b16 %v983, %v982
      %v1248 = vpack.c.b16 %v985, %v984
      %v1249 = vpack.c.b16 %v987, %v986
      %v1250 = vpack.c.b16 %v989, %v988
      %v1251 = vpack.c.b16 %v991, %v990
      %v1252 = vpack.c.b16 %v993, %v992
      %v1253 = vpack.c.b16 %v995, %v994
      %v1254 = vpack.c.b16 %v997, %v996
      %v1255 = vpack.c.b16 %v999, %v998
      %v1256 = vpack.c.b16 %v1001, %v1000
      %v1257 = vpack.c.b16 %v1003, %v1002
      %v1258 = vpack.c.b16 %v1005, %v1004
      %v1259 = vpack.c.b16 %v1007, %v1006
      %v1260 = vpack.c.b16 %v1009, %v1008
      %v1261 = vpack.c.b16 %v1011, %v1010
      %v1262 = vpack.c.b16 %v1013, %v1012
      %v1263 = vpack.c.b16 %v1015, %v1014
      %v1264 = vpack.c.b16 %v1017, %v1016
      %v1265 = vpack.c.b16 %v1019, %v1018
      %v1266 = vpack.c.b16 %v1021, %v1020
      %v1267 = vpack.c.b16 %v1023, %v1022
      %v1268 = vpack.c.b16 %v1025, %v1024
      %v1269 = vpack.c.b16 %v1027, %v1026
      %v1270 = vpack.c.b16 %v1029, %v1028
      %v1271 = vpack.c.b16 %v1031, %v1030
      %v1272 = vpack.c.b16 %v1033, %v1032
      %v1273 = vpack.c.b16 %v1035, %v1034
      %v1274 = vpack.c.b16 %v1037, %v1036
      %v1275 = vpack.c.b16 %v1039, %v1038
      %v1276 = vpack.c.b16 %v1041, %v1040
      %v1277 = vpack.c.b16 %v1043, %v1042
      %v1278 = vpack.c.b16 %v1045, %v1044
      %v1279 = vpack.c.b16 %v1047, %v1046
      %v1280 = vpack.c.b16 %v1049, %v1048
      %v1281 = vpack.c.b16 %v1051, %v1050
      %v1282 = vpack.c.b16 %v1053, %v1052
      %v1283 = vpack.c.b16 %v1055, %v1054
      %v1284 = vpack.c.b16 %v1057, %v1056
      %v1285 = vpack.c.b16 %v1059, %v1058
      %v1286 = vpack.c.b16 %v1061, %v1060
      %v1287 = vpack.c.b16 %v1063, %v1062
      %v1288 = vpack.c.b16 %v1065, %v1064
      %v1289 = vpack.c.b16 %v1067, %v1066
      %v1290 = vpack.c.b16 %v1069, %v1068
      %v1291 = vpack.c.b16 %v1071, %v1070
      %v1292 = vpack.c.b16 %v1073, %v1072
      %v1293 = vpack.c.b16 %v1075, %v1074
      %v1294 = vpack.c.b16 %v1077, %v1076
      %v1295 = vpack.c.b16 %v1079, %v1078
      %v1296 = vpack.c.b16 %v1081, %v1080
      %v1297 = vpack.c.b16 %v1083, %v1082
      %v1298 = vpack.c.b16 %v1085, %v1084
      %v1299 = vpack.c.b16 %v1087, %v1086
      %v1300 = vpack.c.b16 %v1089, %v1088
      %v1301 = vpack.c.b16 %v1091, %v1090
      %v1302 = vpack.c.b16 %v1093, %v1092
      %v1303 = vpack.c.b16 %v1095, %v1094
      %v1304 = vpack.c.b16 %v1097, %v1096
      %v1305 = vpack.c.b16 %v1099, %v1098
      %v1306 = vpack.c.b16 %v1101, %v1100
      %v1307 = vpack.c.b16 %v1103, %v1102
      %v1308 = vpack.c.b16 %v1105, %v1104
      %v1309 = vpack.c.b16 %v1107, %v1106
      %v1310 = vpack.c.b16 %v1109, %v1108
      %v1311 = vpack.c.b16 %v1111, %v1110
      %v1312 = vpack.c.b16 %v1113, %v1112
      %v1313 = vpack.c.b16 %v1115, %v1114
      %v1314 = vpack.c.b16 %v1117, %v1116
      %v1315 = vpack.c.b16 %v1119, %v1118
      %v1316 = vpack.c.b16 %v1121, %v1120
      %v1317 = vpack.c.b16 %v1123, %v1122
      %v1318 = vpack.c.b16 %v1125, %v1124
      %v1319 = vpack.c.b16 %v1127, %v1126
      %v1320 = vpack.c.b16 %v1129, %v1128
      %v1321 = vpack.c.b16 %v1131, %v1130
      %v1322 = vpack.c.b16 %v1133, %v1132
      %v1323 = vpack.c.b16 %v1135, %v1134
      %v1324 = vpack.c.b16 %v1137, %v1136
      %v1325 = vpack.c.b16 %v1139, %v1138
      %v1326 = vpack.c.b16 %v1141, %v1140
      %v1327 = vpack.c.b16 %v1143, %v1142
      %v1328 = vpack.c.b16 %v1145, %v1144
      %v1329 = vpack.c.b16 %v1147, %v1146
      %v1330 = vpack.c.b16 %v1149, %v1148
      %v1331 = vpack.c.b16 %v1151, %v1150
      %v1332 = vpack.c.b16 %v1153, %v1152
      %v1333 = vpack.c.b16 %v1155, %v1154
      %v1334 = vpack.c.b16 %v1157, %v1156
      %v1335 = vpack.c.b16 %v1159, %v1158
      %v1336 = vpack.c.b16 %v1161, %v1160
      %v1337 = vpack.c.b16 %v1163, %v1162
      %v1338 = vpack.c.b16 %v1165, %v1164
      %v1339 = vpack.c.b16 %v1167, %v1166
      %v1340 = vpack.c.b16 %v1169, %v1168
      %v1341 = vpack.c.b16 %v1171, %v1170
      %v1342 = vpack.c.b16 %v1173, %v1172
      %v1343 = vpack.c.b16 %v1175, %v1174
      %v1344 = vpack.c.b16 %v1177, %v1176
      %v1345 = vpack.c.b16 %v1179, %v1178
      %v1346 = vpack.c.b16 %v1181, %v1180
      %v1347 = vpack.c.b16 %v1183, %v1182
      %v1348 = vpack.c.b16 %v1185, %v1184
      %v1349 = vpack.c.b16 %v1187, %v1186
      %v1350 = vpack.c.b16 %v1189, %v1188
      %v1351 = vpack.c.b16 %v1191, %v1190
      %v1352 = vpack.c.b16 %v1193, %v1192
      %v1353 = vpack.c.b16 %v1195, %v1194
      %v1354 = vpack.c.b16 %v1197, %v1196
      %v1355 = vpack.c.b16 %v1199, %v1198
      %v1356 = vpack.c.b16 %v1201, %v1200
      %v1357 = vpack.c.b16 %v1203, %v1202
      %v1358 = vpack.c.b16 %v1205, %v1204
      %v1359 = vpack.c.b16 %v1207, %v1206
      %v1360 = vpack.c.b16 %v1209, %v1208
      %v1361 = vpack.c.b16 %v1211, %v1210
      %v1362 = vpack.c.b16 %v1213, %v1212
      %v1363 = vpack.c.b16 %v1215, %v1214
      %v1364 = vpack.c.b16 %v1217, %v1216
      %v1365 = vpack.c.b16 %v1219, %v1218
      %v1366 = vpack.c.b16 %v1221, %v1220
      %v1367 = vpack.c.b16 %v1223, %v1222
      %1512 = vmatpush.bf16.msra.mxu0 %v1231
      %1513 = vmatpush.bf16.msra.mxu0 %v1230
      %1514 = vmatpush.bf16.msra.mxu0 %v1229
      %1515 = vmatpush.bf16.msra.mxu0 %v1228
      %1516 = vmatpush.bf16.msra.mxu0 %v1227
      %1517 = vmatpush.bf16.msra.mxu0 %v1226
      %1518 = vmatpush.bf16.msra.mxu0 %v1225
      %1519 = vmatpush.bf16.msra.mxu0 %v1224
      %1520 = vmatmul.bf16.gmra.mxu0 %v612
      %v1521 = vpop.f32.mrf.mxu0
      %v1522 = vadd.f32 0.0, %v1521
      %v1523 = vpop.f32.mrf.mxu0
      %v1524 = vadd.f32 0.0, %v1523
      %1525 = vdwg.mxu0
      %1526 = vmatpush.bf16.msra.mxu0 %v1239
      %1527 = vmatpush.bf16.msra.mxu0 %v1238
      %1528 = vmatpush.bf16.msra.mxu0 %v1237
      %1529 = vmatpush.bf16.msra.mxu0 %v1236
      %1530 = vmatpush.bf16.msra.mxu0 %v1235
      %1531 = vmatpush.bf16.msra.mxu0 %v1234
      %1532 = vmatpush.bf16.msra.mxu0 %v1233
      %1533 = vmatpush.bf16.msra.mxu0 %v1232
      %1534 = vmatmul.bf16.gmra.mxu0 %v613
      %v1535 = vpop.f32.mrf.mxu0
      %v1536 = vadd.f32 %v1522, %v1535
      %v1537 = vpop.f32.mrf.mxu0
      %v1538 = vadd.f32 %v1524, %v1537
      %1539 = vdwg.mxu0
      %1540 = vmatpush.bf16.msra.mxu0 %v1247
      %1541 = vmatpush.bf16.msra.mxu0 %v1246
      %1542 = vmatpush.bf16.msra.mxu0 %v1245
      %1543 = vmatpush.bf16.msra.mxu0 %v1244
      %1544 = vmatpush.bf16.msra.mxu0 %v1243
      %1545 = vmatpush.bf16.msra.mxu0 %v1242
      %1546 = vmatpush.bf16.msra.mxu0 %v1241
      %1547 = vmatpush.bf16.msra.mxu0 %v1240
      %1548 = vmatmul.bf16.gmra.mxu0 %v614
      %v1549 = vpop.f32.mrf.mxu0
      %v1550 = vadd.f32 %v1536, %v1549
      %v1551 = vpop.f32.mrf.mxu0
      %v1552 = vadd.f32 %v1538, %v1551
      %1553 = vdwg.mxu0
      %1554 = vmatpush.bf16.msra.mxu0 %v1255
      %1555 = vmatpush.bf16.msra.mxu0 %v1254
      %1556 = vmatpush.bf16.msra.mxu0 %v1253
      %1557 = vmatpush.bf16.msra.mxu0 %v1252
      %1558 = vmatpush.bf16.msra.mxu0 %v1251
      %1559 = vmatpush.bf16.msra.mxu0 %v1250
      %1560 = vmatpush.bf16.msra.mxu0 %v1249
      %1561 = vmatpush.bf16.msra.mxu0 %v1248
      %1562 = vmatmul.bf16.gmra.mxu0 %v615
      %v1563 = vpop.f32.mrf.mxu0
      %v1564 = vadd.f32 %v1550, %v1563
      %v1565 = vpop.f32.mrf.mxu0
      %v1566 = vadd.f32 %v1552, %v1565
      %1567 = vdwg.mxu0
      %1568 = vmatpush.bf16.msra.mxu0 %v1263
      %1569 = vmatpush.bf16.msra.mxu0 %v1262
      %1570 = vmatpush.bf16.msra.mxu0 %v1261
      %1571 = vmatpush.bf16.msra.mxu0 %v1260
      %1572 = vmatpush.bf16.msra.mxu0 %v1259
      %1573 = vmatpush.bf16.msra.mxu0 %v1258
      %1574 = vmatpush.bf16.msra.mxu0 %v1257
      %1575 = vmatpush.bf16.msra.mxu0 %v1256
      %1576 = vmatmul.bf16.gmra.mxu0 %v616
      %v1577 = vpop.f32.mrf.mxu0
      %v1578 = vadd.f32 %v1564, %v1577
      %v1579 = vpop.f32.mrf.mxu0
      %v1580 = vadd.f32 %v1566, %v1579
      %1581 = vdwg.mxu0
      %1582 = vmatpush.bf16.msra.mxu0 %v1271
      %1583 = vmatpush.bf16.msra.mxu0 %v1270
      %1584 = vmatpush.bf16.msra.mxu0 %v1269
      %1585 = vmatpush.bf16.msra.mxu0 %v1268
      %1586 = vmatpush.bf16.msra.mxu0 %v1267
      %1587 = vmatpush.bf16.msra.mxu0 %v1266
      %1588 = vmatpush.bf16.msra.mxu0 %v1265
      %1589 = vmatpush.bf16.msra.mxu0 %v1264
      %1590 = vmatmul.bf16.gmra.mxu0 %v617
      %v1591 = vpop.f32.mrf.mxu0
      %v1592 = vadd.f32 %v1578, %v1591
      %v1593 = vpop.f32.mrf.mxu0
      %v1594 = vadd.f32 %v1580, %v1593
      %1595 = vdwg.mxu0
      %1596 = vmatpush.bf16.msra.mxu0 %v1279
      %1597 = vmatpush.bf16.msra.mxu0 %v1278
      %1598 = vmatpush.bf16.msra.mxu0 %v1277
      %1599 = vmatpush.bf16.msra.mxu0 %v1276
      %1600 = vmatpush.bf16.msra.mxu0 %v1275
      %1601 = vmatpush.bf16.msra.mxu0 %v1274
      %1602 = vmatpush.bf16.msra.mxu0 %v1273
      %1603 = vmatpush.bf16.msra.mxu0 %v1272
      %1604 = vmatmul.bf16.gmra.mxu0 %v618
      %v1605 = vpop.f32.mrf.mxu0
      %v1606 = vadd.f32 %v1592, %v1605
      %v1607 = vpop.f32.mrf.mxu0
      %v1608 = vadd.f32 %v1594, %v1607
      %1609 = vdwg.mxu0
      %1610 = vmatpush.bf16.msra.mxu0 %v1287
      %1611 = vmatpush.bf16.msra.mxu0 %v1286
      %1612 = vmatpush.bf16.msra.mxu0 %v1285
      %1613 = vmatpush.bf16.msra.mxu0 %v1284
      %1614 = vmatpush.bf16.msra.mxu0 %v1283
      %1615 = vmatpush.bf16.msra.mxu0 %v1282
      %1616 = vmatpush.bf16.msra.mxu0 %v1281
      %1617 = vmatpush.bf16.msra.mxu0 %v1280
      %1618 = vmatmul.bf16.gmra.mxu0 %v619
      %v1619 = vpop.f32.mrf.mxu0
      %v1620 = vadd.f32 %v1606, %v1619
      %v1621 = vpop.f32.mrf.mxu0
      %v1622 = vadd.f32 %v1608, %v1621
      %1623 = vdwg.mxu0
      %1624 = vmatpush.bf16.msra.mxu0 %v1295
      %1625 = vmatpush.bf16.msra.mxu0 %v1294
      %1626 = vmatpush.bf16.msra.mxu0 %v1293
      %1627 = vmatpush.bf16.msra.mxu0 %v1292
      %1628 = vmatpush.bf16.msra.mxu0 %v1291
      %1629 = vmatpush.bf16.msra.mxu0 %v1290
      %1630 = vmatpush.bf16.msra.mxu0 %v1289
      %1631 = vmatpush.bf16.msra.mxu0 %v1288
      %1632 = vmatmul.bf16.gmra.mxu0 %v620
      %v1633 = vpop.f32.mrf.mxu0
      %v1634 = vadd.f32 %v1620, %v1633
      %v1635 = vpop.f32.mrf.mxu0
      %v1636 = vadd.f32 %v1622, %v1635
      %1637 = vdwg.mxu0
      %1638 = vmatpush.bf16.msra.mxu0 %v1303
      %1639 = vmatpush.bf16.msra.mxu0 %v1302
      %1640 = vmatpush.bf16.msra.mxu0 %v1301
      %1641 = vmatpush.bf16.msra.mxu0 %v1300
      %1642 = vmatpush.bf16.msra.mxu0 %v1299
      %1643 = vmatpush.bf16.msra.mxu0 %v1298
      %1644 = vmatpush.bf16.msra.mxu0 %v1297
      %1645 = vmatpush.bf16.msra.mxu0 %v1296
      %1646 = vmatmul.bf16.gmra.mxu0 %v621
      %v1647 = vpop.f32.mrf.mxu0
      %v1648 = vadd.f32 %v1634, %v1647
      %v1649 = vpop.f32.mrf.mxu0
      %v1650 = vadd.f32 %v1636, %v1649
      %1651 = vdwg.mxu0
      %1652 = vmatpush.bf16.msra.mxu0 %v1311
      %1653 = vmatpush.bf16.msra.mxu0 %v1310
      %1654 = vmatpush.bf16.msra.mxu0 %v1309
      %1655 = vmatpush.bf16.msra.mxu0 %v1308
      %1656 = vmatpush.bf16.msra.mxu0 %v1307
      %1657 = vmatpush.bf16.msra.mxu0 %v1306
      %1658 = vmatpush.bf16.msra.mxu0 %v1305
      %1659 = vmatpush.bf16.msra.mxu0 %v1304
      %1660 = vmatmul.bf16.gmra.mxu0 %v622
      %v1661 = vpop.f32.mrf.mxu0
      %v1662 = vadd.f32 %v1648, %v1661
      %v1663 = vpop.f32.mrf.mxu0
      %v1664 = vadd.f32 %v1650, %v1663
      %1665 = vdwg.mxu0
      %1666 = vmatpush.bf16.msra.mxu0 %v1319
      %1667 = vmatpush.bf16.msra.mxu0 %v1318
      %1668 = vmatpush.bf16.msra.mxu0 %v1317
      %1669 = vmatpush.bf16.msra.mxu0 %v1316
      %1670 = vmatpush.bf16.msra.mxu0 %v1315
      %1671 = vmatpush.bf16.msra.mxu0 %v1314
      %1672 = vmatpush.bf16.msra.mxu0 %v1313
      %1673 = vmatpush.bf16.msra.mxu0 %v1312
      %1674 = vmatmul.bf16.gmra.mxu0 %v623
      %v1675 = vpop.f32.mrf.mxu0
      %v1676 = vadd.f32 %v1662, %v1675
      %v1677 = vpop.f32.mrf.mxu0
      %v1678 = vadd.f32 %v1664, %v1677
      %1679 = vdwg.mxu0
      %1680 = vmatpush.bf16.msra.mxu0 %v1327
      %1681 = vmatpush.bf16.msra.mxu0 %v1326
      %1682 = vmatpush.bf16.msra.mxu0 %v1325
      %1683 = vmatpush.bf16.msra.mxu0 %v1324
      %1684 = vmatpush.bf16.msra.mxu0 %v1323
      %1685 = vmatpush.bf16.msra.mxu0 %v1322
      %1686 = vmatpush.bf16.msra.mxu0 %v1321
      %1687 = vmatpush.bf16.msra.mxu0 %v1320
      %1688 = vmatmul.bf16.gmra.mxu0 %v624
      %v1689 = vpop.f32.mrf.mxu0
      %v1690 = vadd.f32 %v1676, %v1689
      %v1691 = vpop.f32.mrf.mxu0
      %v1692 = vadd.f32 %v1678, %v1691
      %1693 = vdwg.mxu0
      %1694 = vmatpush.bf16.msra.mxu0 %v1335
      %1695 = vmatpush.bf16.msra.mxu0 %v1334
      %1696 = vmatpush.bf16.msra.mxu0 %v1333
      %1697 = vmatpush.bf16.msra.mxu0 %v1332
      %1698 = vmatpush.bf16.msra.mxu0 %v1331
      %1699 = vmatpush.bf16.msra.mxu0 %v1330
      %1700 = vmatpush.bf16.msra.mxu0 %v1329
      %1701 = vmatpush.bf16.msra.mxu0 %v1328
      %1702 = vmatmul.bf16.gmra.mxu0 %v625
      %v1703 = vpop.f32.mrf.mxu0
      %v1704 = vadd.f32 %v1690, %v1703
      %v1705 = vpop.f32.mrf.mxu0
      %v1706 = vadd.f32 %v1692, %v1705
      %1707 = vdwg.mxu0
      %1708 = vmatpush.bf16.msra.mxu0 %v1343
      %1709 = vmatpush.bf16.msra.mxu0 %v1342
      %1710 = vmatpush.bf16.msra.mxu0 %v1341
      %1711 = vmatpush.bf16.msra.mxu0 %v1340
      %1712 = vmatpush.bf16.msra.mxu0 %v1339
      %1713 = vmatpush.bf16.msra.mxu0 %v1338
      %1714 = vmatpush.bf16.msra.mxu0 %v1337
      %1715 = vmatpush.bf16.msra.mxu0 %v1336
      %1716 = vmatmul.bf16.gmra.mxu0 %v626
      %v1717 = vpop.f32.mrf.mxu0
      %v1718 = vadd.f32 %v1704, %v1717
      %v1719 = vpop.f32.mrf.mxu0
      %v1720 = vadd.f32 %v1706, %v1719
      %1721 = vdwg.mxu0
      %1722 = vmatpush.bf16.msra.mxu0 %v1351
      %1723 = vmatpush.bf16.msra.mxu0 %v1350
      %1724 = vmatpush.bf16.msra.mxu0 %v1349
      %1725 = vmatpush.bf16.msra.mxu0 %v1348
      %1726 = vmatpush.bf16.msra.mxu0 %v1347
      %1727 = vmatpush.bf16.msra.mxu0 %v1346
      %1728 = vmatpush.bf16.msra.mxu0 %v1345
      %1729 = vmatpush.bf16.msra.mxu0 %v1344
      %1730 = vmatmul.bf16.gmra.mxu0 %v627
      %v1731 = vpop.f32.mrf.mxu0
      %v1732 = vadd.f32 %v1718, %v1731
      %v1733 = vpop.f32.mrf.mxu0
      %v1734 = vadd.f32 %v1720, %v1733
      %1735 = vdwg.mxu0
      %1736 = vmatpush.bf16.msra.mxu0 %v1359
      %1737 = vmatpush.bf16.msra.mxu0 %v1358
      %1738 = vmatpush.bf16.msra.mxu0 %v1357
      %1739 = vmatpush.bf16.msra.mxu0 %v1356
      %1740 = vmatpush.bf16.msra.mxu0 %v1355
      %1741 = vmatpush.bf16.msra.mxu0 %v1354
      %1742 = vmatpush.bf16.msra.mxu0 %v1353
      %1743 = vmatpush.bf16.msra.mxu0 %v1352
      %1744 = vmatmul.bf16.gmra.mxu0 %v628
      %v1745 = vpop.f32.mrf.mxu0
      %v1746 = vadd.f32 %v1732, %v1745
      %v1747 = vpop.f32.mrf.mxu0
      %v1748 = vadd.f32 %v1734, %v1747
      %1749 = vdwg.mxu0
      %1750 = vmatpush.bf16.msra.mxu0 %v1367
      %1751 = vmatpush.bf16.msra.mxu0 %v1366
      %1752 = vmatpush.bf16.msra.mxu0 %v1365
      %1753 = vmatpush.bf16.msra.mxu0 %v1364
      %1754 = vmatpush.bf16.msra.mxu0 %v1363
      %1755 = vmatpush.bf16.msra.mxu0 %v1362
      %1756 = vmatpush.bf16.msra.mxu0 %v1361
      %1757 = vmatpush.bf16.msra.mxu0 %v1360
      %1758 = vmatmul.bf16.gmra.mxu0 %v629
      %v1759 = vpop.f32.mrf.mxu0
      %v1760 = vadd.f32 %v1746, %v1759
      %v1761 = vpop.f32.mrf.mxu0
      %v1762 = vadd.f32 %v1748, %v1761
      %1763 = vdwg.mxu0
      %vm1764 = vcmask 1040384
      %v1765 = vsel %vm1764, %v1762, 0.0
      %v1766 = vadd.f32 %v1760, %v1765
      %v1767 = vrot.slane %v1766, 4
      %v1768 = vadd.f32 %v1766, %v1767
      %v1769 = vrot.slane %v1768, 2
      %v1770 = vadd.f32 %v1768, %v1769
      %v1771 = vrot.slane %v1770, 1
      %v1772 = vadd.f32 %v1770, %v1771
      %v1773 = vmul.f32 %v1760, %v1760
      %v1774 = vmul.f32 %v1762, %v1762
      %v1775 = vsel %vm1764, %v1774, 0.0
      %v1776 = vadd.f32 %v1773, %v1775
      %v1777 = vrot.slane %v1776, 4
      %v1778 = vadd.f32 %v1776, %v1777
      %v1779 = vrot.slane %v1778, 2
      %v1780 = vadd.f32 %v1778, %v1779
      %v1781 = vrot.slane %v1780, 1
      %v1782 = vadd.f32 %v1780, %v1781
      %v1783 = vld [vmem:[%s2] sm:$0xff]
      %v1784 = vld [vmem:[%s2 + $0x8] sm:$0xff]
      %v1785 = vld [vmem:[%s2 + $0x10] sm:$0xff]
      %v1786 = vld [vmem:[%s2 + $0x18] sm:$0xff]
      %v1787 = vld [vmem:[%s2 + $0x20] sm:$0xff]
      %v1788 = vld [vmem:[%s2 + $0x28] sm:$0xff]
      %v1789 = vld [vmem:[%s2 + $0x30] sm:$0xff]
      %v1790 = vld [vmem:[%s2 + $0x38] sm:$0xff]
      %v1791 = vld [vmem:[%s2 + $0x40] sm:$0xff]
      %v1792 = vld [vmem:[%s2 + $0x48] sm:$0xff]
      %v1793 = vld [vmem:[%s2 + $0x50] sm:$0xff]
      %v1794 = vld [vmem:[%s2 + $0x58] sm:$0xff]
      %v1795 = vld [vmem:[%s2 + $0x60] sm:$0xff]
      %v1796 = vld [vmem:[%s2 + $0x68] sm:$0xff]
      %v1797 = vld [vmem:[%s2 + $0x70] sm:$0xff]
      %v1798 = vld [vmem:[%s2 + $0x78] sm:$0xff]
      %v1799 = vld [vmem:[%s2 + $0x80] sm:$0xff]
      %v1800 = vld [vmem:[%s2 + $0x88] sm:$0xff]
      %v1801 = vld [vmem:[%s2 + $0x90] sm:$0xff]
      %v1802 = vld [vmem:[%s2 + $0x98] sm:$0xff]
      %v1803 = vld [vmem:[%s2 + $0xa0] sm:$0xff]
      %v1804 = vld [vmem:[%s2 + $0xa8] sm:$0xff]
      %v1805 = vld [vmem:[%s2 + $0xb0] sm:$0xff]
      %v1806 = vld [vmem:[%s2 + $0xb8] sm:$0xff]
      %v1807 = vld [vmem:[%s2 + $0xc0] sm:$0xff]
      %v1808 = vld [vmem:[%s2 + $0xc8] sm:$0xff]
      %v1809 = vld [vmem:[%s2 + $0xd0] sm:$0xff]
      %v1810 = vld [vmem:[%s2 + $0xd8] sm:$0xff]
      %v1811 = vld [vmem:[%s2 + $0xe0] sm:$0xff]
      %v1812 = vld [vmem:[%s2 + $0xe8] sm:$0xff]
      %v1813 = vld [vmem:[%s2 + $0xf0] sm:$0xff]
      %v1814 = vld [vmem:[%s2 + $0xf8] sm:$0xff]
      %1815 = vmatpush.msra.mxu0 %v1798
      %1816 = vmatpush.msra.mxu0 %v1797
      %1817 = vmatpush.msra.mxu0 %v1796
      %1818 = vmatpush.msra.mxu0 %v1795
      %1819 = vmatpush.msra.mxu0 %v1794
      %1820 = vmatpush.msra.mxu0 %v1793
      %1821 = vmatpush.msra.mxu0 %v1792
      %1822 = vmatpush.msra.mxu0 %v1791
      %1823 = vmatpush.msra.mxu0 %v1790
      %1824 = vmatpush.msra.mxu0 %v1789
      %1825 = vmatpush.msra.mxu0 %v1788
      %1826 = vmatpush.msra.mxu0 %v1787
      %1827 = vmatpush.msra.mxu0 %v1786
      %1828 = vmatpush.msra.mxu0 %v1785
      %1829 = vmatpush.msra.mxu0 %v1784
      %1830 = vmatpush.msra.mxu0 %v1783
      %1831 = vmatmul.f32.gmra.mxu0 %v1772
      %v1832 = vpop.f32.mrf.mxu0
      %v1833 = vadd.f32 0.0, %v1832
      %1834 = vdwg.mxu0
      %1835 = vmatpush.msra.mxu0 %v1814
      %1836 = vmatpush.msra.mxu0 %v1813
      %1837 = vmatpush.msra.mxu0 %v1812
      %1838 = vmatpush.msra.mxu0 %v1811
      %1839 = vmatpush.msra.mxu0 %v1810
      %1840 = vmatpush.msra.mxu0 %v1809
      %1841 = vmatpush.msra.mxu0 %v1808
      %1842 = vmatpush.msra.mxu0 %v1807
      %1843 = vmatpush.msra.mxu0 %v1806
      %1844 = vmatpush.msra.mxu0 %v1805
      %1845 = vmatpush.msra.mxu0 %v1804
      %1846 = vmatpush.msra.mxu0 %v1803
      %1847 = vmatpush.msra.mxu0 %v1802
      %1848 = vmatpush.msra.mxu0 %v1801
      %1849 = vmatpush.msra.mxu0 %v1800
      %1850 = vmatpush.msra.mxu0 %v1799
      %1851 = vmatmul.f32.gmra.mxu0 %v1782
      %v1852 = vpop.f32.mrf.mxu0
      %v1853 = vadd.f32 %v1833, %v1852
      %1854 = vdwg.mxu0
      %v1855 = vmul.f32 %v1853, 0.027777778
      %v1856 = vmul.f32 %v1855, %v1855
      %1858 = vrot.lane.b32.xlu0 %v1856, 32
      %v1859 = vpop.permute.xlu0 %1858
      %v1861 = vsub.f32 %v1855, %v1859
      %v1862 = vmax.f32 %v1861, 0.0
      %v1863 = vadd.f32 %v1862, 1e-05
      %v1864 = vrsqrt.pop %v1863
      %v1865 = vmul.f32 %v1864, %v1863
      %v1866 = vmul.f32 %v1865, %v1864
      %v1867 = vmul.f32 0.5, %v1866
      %v1868 = vsub.f32 1.5, %v1867
      %v1869 = vmul.f32 %v1864, %v1868
      %vm1870 = vweird.f32 %v1863
      %vm1871 = vweird.f32 %v1864
      %vm1872 = vmor %vm1870, %vm1871
      %v1873 = vsel %vm1872, %v1864, %v1869
      %vm1874 = vcmask 261120
      %v1875 = vsel %vm1874, %v1855, %v1873
      %v1876 = vld [vmem:[%s3] sm:$0xff]
      %v1877 = vld [vmem:[%s3 + $0x8] sm:$0xff]
      %v1878 = vld [vmem:[%s3 + $0x10] sm:$0xff]
      %v1879 = vld [vmem:[%s3 + $0x18] sm:$0xff]
      %v1880 = vld [vmem:[%s3 + $0x20] sm:$0xff]
      %v1881 = vld [vmem:[%s3 + $0x28] sm:$0xff]
      %v1882 = vld [vmem:[%s3 + $0x30] sm:$0xff]
      %v1883 = vld [vmem:[%s3 + $0x38] sm:$0xff]
      %v1884 = vld [vmem:[%s3 + $0x40] sm:$0xff]
      %v1885 = vld [vmem:[%s3 + $0x48] sm:$0xff]
      %v1886 = vld [vmem:[%s3 + $0x50] sm:$0xff]
      %v1887 = vld [vmem:[%s3 + $0x58] sm:$0xff]
      %v1888 = vld [vmem:[%s3 + $0x60] sm:$0xff]
      %v1889 = vld [vmem:[%s3 + $0x68] sm:$0xff]
      %v1890 = vld [vmem:[%s3 + $0x70] sm:$0xff]
      %v1891 = vld [vmem:[%s3 + $0x78] sm:$0xff]
      %vm1892 = vcmask 523264
      %v1894 = vsel %vm1892, %v1875, 0
      %1896 = vmatpush.msra.mxu0 0.0
      %1897 = vmatpush.msra.mxu0 0.0
      %1898 = vmatpush.msra.mxu0 0.0
      %1899 = vmatpush.msra.mxu0 0.0
      %1900 = vmatpush.msra.mxu0 0.0
      %1901 = vmatpush.msra.mxu0 0.0
      %1902 = vmatpush.msra.mxu0 0.0
      %1903 = vmatpush.msra.mxu0 0.0
      %1904 = vmatpush.msra.mxu0 %v1890
      %1905 = vmatpush.msra.mxu0 %v1888
      %1906 = vmatpush.msra.mxu0 %v1886
      %1907 = vmatpush.msra.mxu0 %v1884
      %1908 = vmatpush.msra.mxu0 %v1882
      %1909 = vmatpush.msra.mxu0 %v1880
      %1910 = vmatpush.msra.mxu0 %v1878
      %1911 = vmatpush.msra.mxu0 %v1876
      %1912 = vmatmul.f32.gmra.mxu0 %v1894
      %v1913 = vpop.f32.mrf.mxu0
      %v1914 = vadd.f32 0.0, %v1913
      %1915 = vdwg.mxu0
      %1916 = vmatpush.msra.mxu0 0.0
      %1917 = vmatpush.msra.mxu0 0.0
      %1918 = vmatpush.msra.mxu0 0.0
      %1919 = vmatpush.msra.mxu0 0.0
      %1920 = vmatpush.msra.mxu0 0.0
      %1921 = vmatpush.msra.mxu0 0.0
      %1922 = vmatpush.msra.mxu0 0.0
      %1923 = vmatpush.msra.mxu0 0.0
      %1924 = vmatpush.msra.mxu0 %v1891
      %1925 = vmatpush.msra.mxu0 %v1889
      %1926 = vmatpush.msra.mxu0 %v1887
      %1927 = vmatpush.msra.mxu0 %v1885
      %1928 = vmatpush.msra.mxu0 %v1883
      %1929 = vmatpush.msra.mxu0 %v1881
      %1930 = vmatpush.msra.mxu0 %v1879
      %1931 = vmatpush.msra.mxu0 %v1877
      %1932 = vmatmul.f32.gmra.mxu0 %v1894
      %v1933 = vpop.f32.mrf.mxu0
      %v1934 = vadd.f32 0.0, %v1933
      %1935 = vdwg.mxu0
      %v1936 = vld [vmem:[%s4] sm:$0x1]
      %v1937 = vmul.f32 %v1936, %v1934
      %v1938 = vld [vmem:[%s5] sm:$0x1]
      %v1939 = vmul.f32 %v1914, %v1937
      %v1940 = vsub.f32 %v1938, %v1939
      %v1942 = vperm.slane %v1937, 0
      %v1944 = vmul.f32 %v1760, %v1942
      %v1945 = vmul.f32 %v1762, %v1942
      %v1947 = vperm.slane %v1940, 0
      %v1949 = vadd.f32 %v1944, %v1947
      %v1950 = vadd.f32 %v1945, %v1947
      %v1951 = vmul.f32 %v1949, 0.5
      %v1952 = vmul.f32 %v1950, 0.5
      %v1953 = vtanh.pop %v1951
      %v1954 = vtanh.pop %v1952
      %v1955 = vmul.f32 %v1953, 0.5
      %v1956 = vmul.f32 %v1954, 0.5
      %v1957 = vadd.f32 %v1955, 0.5
      %v1958 = vadd.f32 %v1956, 0.5
      %v1959 = vmul.f32 %v1949, %v1957
      %v1960 = vmul.f32 %v1950, %v1958
      %v1961 = vpack.c.bf16 %v1959, %v1959
      %v1962 = vpack.c.bf16 %v1960, %v1960
      %1963 = vst [vmem:[%s251] sm:$0xf] %v1961
      %vm1964 = vcmask 1040384
      %vm1965 = vsmask.f32 256
      %vm1966 = vmand %vm1964, %vm1965
      %v1967 = vld [vmem:[%s251 + $0x4] sm:$0x1]
      %v1968 = vsel %vm1966, %v1962, %v1967
      %1969 = vst [vmem:[%s251 + $0x4] sm:$0x1] %v1968
      %p1970 = scmp.lt.s32.totalorder %s17, 1
      %s1971 = scalar_select %p1970, %s17, 1
      %s1972 = smul.addr %s1971, 2
      %s1973 = smul.addr %s1972, 4
      %s1974 = scalar_lea.vmem %s6, %s1973
      // Predicated region
      $region45: #{scorenet_forward.12} parent=43 // pred_check
        %p1975 = pneg %p166
      $region46: #{scorenet_forward.12} parent=43 // pred_check_branch
        %1977 = sbr.rel (%p1975) target = $region48
      $region47: #{scorenet_forward.12} parent=43 // pred_region
        _
      $region48: #{scorenet_forward.12} parent=43 // pred_fallthru
        _
    $region44: #{scorenet_forward.12} parent=5 // pred_fallthru
      _
    %p1978 = scmp.le.s32.totalorder 2, %s12
    // Predicated region
    $region49: #{scorenet_forward.12} parent=5 // pred_check
      %p1979 = pneg %p1978
    $region50: #{scorenet_forward.12} parent=5 // pred_check_branch
      %1981 = sbr.rel (%p1979) target = $region52
    $region51: #{scorenet_forward.12} parent=5 // pred_region
      %s1982 = ssub.s32 %s12, 2
      // Predicated region
      $region53: #{scorenet_forward.12} parent=51 // pred_check
        %p1983 = pneg %p172
      $region54: #{scorenet_forward.12} parent=51 // pred_check_branch
        %1985 = sbr.rel (%p1983) target = $region56
      $region55: #{scorenet_forward.12} parent=51 // pred_region
        %p1986 = scmp.lt.s32.totalorder %s18, 1
        %s1987 = scalar_select %p1986, %s18, 1
        %s1988 = smul.addr %s1987, 2
        %s1989 = smul.addr %s1988, 4
        %s1990 = scalar_lea.vmem %s6, %s1989
      $region56: #{scorenet_forward.12} parent=51 // pred_fallthru
        _
    $region52: #{scorenet_forward.12} parent=5 // pred_fallthru
      _
  $region6: #{scorenet_forward.12} parent=0 // loop_footer
    %s16 = sadd.s32 1, %s12
  $region7: #{scorenet_forward.12} parent=0 // loop_footer_branch
    %11 = sbr.rel target = $region3
  $region8: #{scorenet_forward.12} parent=0 // loop_exit
    _

// kernel: scorenet_forward.14
$region0: #{scorenet_forward.14}
  #allocation0 [shape = 'u32[]', space=smem, size = 0x4, offset = 0x4, fixed_abs, tag = 'smem constant byte address 0x4 - core index']
  #allocation1 [shape = 'u32[72,128]{1,0:T(1,128)}', space=vmem, size = 0x9000, scoped, tag = 'internal scratch']
  %s0 = inlined_call_operand.vmem [shape: bf16[2,100,576], index: 0, kind: input, shape index: {}]
  %s1 = inlined_call_operand.vmem [shape: bf16[576,32], index: 1, kind: input, shape index: {}]
  %s2 = inlined_call_operand.vmem [shape: bf16[2,100,576], index: 2, kind: input, shape index: {}]
  %s3 = inlined_call_operand.vmem [shape: bf16[576,32], index: 3, kind: input, shape index: {}]
  %s4 = inlined_call_operand.vmem [shape: f32[64,64], index: 4, kind: input, shape index: {}]
  %s5 = inlined_call_operand.vmem [shape: f32[64,64], index: 5, kind: input, shape index: {}]
  %s6 = inlined_call_operand.vmem [shape: f32[1,32], index: 6, kind: input, shape index: {}]
  %s7 = inlined_call_operand.vmem [shape: f32[1,32], index: 7, kind: input, shape index: {}]
  %s8 = inlined_call_operand.vmem [shape: bf16[2,100,32], index: 8, kind: output, shape index: {}]
  %s9 = sld [smem:[#allocation0]]
  $region65: #{scorenet_forward.14} parent=0
    _
  %s11 = ssub.s32 1, %s9
  %s12 = scalar_select 0, %s11, %s9
  loop: start=0, step=1, limit=4
  $region2: #{scorenet_forward.14} parent=0 // loop_pre_header
    _
  $region3: #{scorenet_forward.14} parent=0 // loop_header
    %s14 = sphi 0, %s18
    %p15 = scmp.ge.s32.totalorder %s14, 4
    %s24 = sphi 0, %s26
    %s27 = sphi 0, %s24
    %s28 = sphi 0, %s27
    %s44 = sphi 0, %s28
    %s48 = sphi 0, %s48
    %s50 = sphi 0, %s48
    %s51 = sphi 0, %s50
    %s65 = sphi 0, %s51
    %s71 = sphi 0, %s73
    %s74 = sphi 0, %s71
    %s75 = sphi 0, %s74
    %s91 = sphi 0, %s75
    %s95 = sphi 0, %s95
    %s97 = sphi 0, %s95
    %s98 = sphi 0, %s97
    %s112 = sphi 0, %s98
    %s116 = sphi 0, %s116
    %s118 = sphi 0, %s116
    %s119 = sphi 0, %s118
    %s133 = sphi 0, %s119
    %s137 = sphi 0, %s137
    %s139 = sphi 0, %s137
    %s140 = sphi 0, %s139
    %s154 = sphi 0, %s140
    %s158 = sphi 0, %s158
    %s160 = sphi 0, %s158
    %s161 = sphi 0, %s160
    %s175 = sphi 0, %s161
    %s179 = sphi 0, %s179
    %s181 = sphi 0, %s179
    %s182 = sphi 0, %s181
    %s196 = sphi 0, %s182
    %s202 = sphi 0, %s204
    %s205 = sphi 0, %s202
    %s206 = sphi 0, %s205
    %s222 = sphi 0, %s206
  $region4: #{scorenet_forward.14} parent=0 // loop_header_branch
    %17 = sbr.rel (%p15) target = $region8
  $region5: #{scorenet_forward.14} parent=0 // loop_body
    %s19 = ssub.s32 %s14, 1
    %s20 = ssub.s32 %s14, 2
    %s21 = sadd.s32 %s14, 1
    %s22 = ssub.s32 %s14, %s21
    %p23 = scmp.eq.s32.totalorder %s22, 0
    %s25 = sadd.s32 %s24, 1
    %s26 = scalar_select %p23, %s24, %s25
    %p29 = pneg %p23
    %p30 = scmp.eq.s32.totalorder %s14, 1
    %p31 = por %p29, %p30
    %p32 = scmp.ne.s32.totalorder %s24, %s27
    %p33 = scmp.eq.s32.totalorder %s14, 0
    %p34 = por %p32, %p33
    %p35 = scmp.ne.s32.totalorder %s24, %s27
    %p36 = scmp.eq.s32.totalorder %s19, 1
    %p37 = por %p35, %p36
    %p38 = scmp.ne.s32.totalorder %s27, %s28
    %p39 = scmp.eq.s32.totalorder %s19, 0
    %p40 = por %p38, %p39
    %p41 = scmp.ne.s32.totalorder %s27, %s28
    %p42 = scmp.eq.s32.totalorder %s20, 1
    %p43 = por %p41, %p42
    %p45 = scmp.ne.s32.totalorder %s28, %s44
    %p46 = scmp.eq.s32.totalorder %s20, 0
    %p47 = por %p45, %p46
    %s49 = sadd.s32 %s48, 1
    %p52 = scmp.eq.s32.totalorder %s14, 1
    %p53 = scmp.ne.s32.totalorder %s48, %s50
    %p54 = scmp.eq.s32.totalorder %s14, 0
    %p55 = por %p53, %p54
    %p56 = scmp.ne.s32.totalorder %s48, %s50
    %p57 = scmp.eq.s32.totalorder %s19, 1
    %p58 = por %p56, %p57
    %p59 = scmp.ne.s32.totalorder %s50, %s51
    %p60 = scmp.eq.s32.totalorder %s19, 0
    %p61 = por %p59, %p60
    %p62 = scmp.ne.s32.totalorder %s50, %s51
    %p63 = scmp.eq.s32.totalorder %s20, 1
    %p64 = por %p62, %p63
    %p66 = scmp.ne.s32.totalorder %s51, %s65
    %p67 = scmp.eq.s32.totalorder %s20, 0
    %p68 = por %p66, %p67
    %s69 = ssub.s32 %s14, %s21
    %p70 = scmp.eq.s32.totalorder %s69, 0
    %s72 = sadd.s32 %s71, 1
    %s73 = scalar_select %p70, %s71, %s72
    %p76 = pneg %p70
    %p77 = scmp.eq.s32.totalorder %s14, 1
    %p78 = por %p76, %p77
    %p79 = scmp.ne.s32.totalorder %s71, %s74
    %p80 = scmp.eq.s32.totalorder %s14, 0
    %p81 = por %p79, %p80
    %p82 = scmp.ne.s32.totalorder %s71, %s74
    %p83 = scmp.eq.s32.totalorder %s19, 1
    %p84 = por %p82, %p83
    %p85 = scmp.ne.s32.totalorder %s74, %s75
    %p86 = scmp.eq.s32.totalorder %s19, 0
    %p87 = por %p85, %p86
    %p88 = scmp.ne.s32.totalorder %s74, %s75
    %p89 = scmp.eq.s32.totalorder %s20, 1
    %p90 = por %p88, %p89
    %p92 = scmp.ne.s32.totalorder %s75, %s91
    %p93 = scmp.eq.s32.totalorder %s20, 0
    %p94 = por %p92, %p93
    %s96 = sadd.s32 %s95, 1
    %p99 = scmp.eq.s32.totalorder %s14, 1
    %p100 = scmp.ne.s32.totalorder %s95, %s97
    %p101 = scmp.eq.s32.totalorder %s14, 0
    %p102 = por %p100, %p101
    %p103 = scmp.ne.s32.totalorder %s95, %s97
    %p104 = scmp.eq.s32.totalorder %s19, 1
    %p105 = por %p103, %p104
    %p106 = scmp.ne.s32.totalorder %s97, %s98
    %p107 = scmp.eq.s32.totalorder %s19, 0
    %p108 = por %p106, %p107
    %p109 = scmp.ne.s32.totalorder %s97, %s98
    %p110 = scmp.eq.s32.totalorder %s20, 1
    %p111 = por %p109, %p110
    %p113 = scmp.ne.s32.totalorder %s98, %s112
    %p114 = scmp.eq.s32.totalorder %s20, 0
    %p115 = por %p113, %p114
    %s117 = sadd.s32 %s116, 1
    %p120 = scmp.eq.s32.totalorder %s14, 1
    %p121 = scmp.ne.s32.totalorder %s116, %s118
    %p122 = scmp.eq.s32.totalorder %s14, 0
    %p123 = por %p121, %p122
    %p124 = scmp.ne.s32.totalorder %s116, %s118
    %p125 = scmp.eq.s32.totalorder %s19, 1
    %p126 = por %p124, %p125
    %p127 = scmp.ne.s32.totalorder %s118, %s119
    %p128 = scmp.eq.s32.totalorder %s19, 0
    %p129 = por %p127, %p128
    %p130 = scmp.ne.s32.totalorder %s118, %s119
    %p131 = scmp.eq.s32.totalorder %s20, 1
    %p132 = por %p130, %p131
    %p134 = scmp.ne.s32.totalorder %s119, %s133
    %p135 = scmp.eq.s32.totalorder %s20, 0
    %p136 = por %p134, %p135
    %s138 = sadd.s32 %s137, 1
    %p141 = scmp.eq.s32.totalorder %s14, 1
    %p142 = scmp.ne.s32.totalorder %s137, %s139
    %p143 = scmp.eq.s32.totalorder %s14, 0
    %p144 = por %p142, %p143
    %p145 = scmp.ne.s32.totalorder %s137, %s139
    %p146 = scmp.eq.s32.totalorder %s19, 1
    %p147 = por %p145, %p146
    %p148 = scmp.ne.s32.totalorder %s139, %s140
    %p149 = scmp.eq.s32.totalorder %s19, 0
    %p150 = por %p148, %p149
    %p151 = scmp.ne.s32.totalorder %s139, %s140
    %p152 = scmp.eq.s32.totalorder %s20, 1
    %p153 = por %p151, %p152
    %p155 = scmp.ne.s32.totalorder %s140, %s154
    %p156 = scmp.eq.s32.totalorder %s20, 0
    %p157 = por %p155, %p156
    %s159 = sadd.s32 %s158, 1
    %p162 = scmp.eq.s32.totalorder %s14, 1
    %p163 = scmp.ne.s32.totalorder %s158, %s160
    %p164 = scmp.eq.s32.totalorder %s14, 0
    %p165 = por %p163, %p164
    %p166 = scmp.ne.s32.totalorder %s158, %s160
    %p167 = scmp.eq.s32.totalorder %s19, 1
    %p168 = por %p166, %p167
    %p169 = scmp.ne.s32.totalorder %s160, %s161
    %p170 = scmp.eq.s32.totalorder %s19, 0
    %p171 = por %p169, %p170
    %p172 = scmp.ne.s32.totalorder %s160, %s161
    %p173 = scmp.eq.s32.totalorder %s20, 1
    %p174 = por %p172, %p173
    %p176 = scmp.ne.s32.totalorder %s161, %s175
    %p177 = scmp.eq.s32.totalorder %s20, 0
    %p178 = por %p176, %p177
    %s180 = sadd.s32 %s179, 1
    %p183 = scmp.eq.s32.totalorder %s14, 1
    %p184 = scmp.ne.s32.totalorder %s179, %s181
    %p185 = scmp.eq.s32.totalorder %s14, 0
    %p186 = por %p184, %p185
    %p187 = scmp.ne.s32.totalorder %s179, %s181
    %p188 = scmp.eq.s32.totalorder %s19, 1
    %p189 = por %p187, %p188
    %p190 = scmp.ne.s32.totalorder %s181, %s182
    %p191 = scmp.eq.s32.totalorder %s19, 0
    %p192 = por %p190, %p191
    %p193 = scmp.ne.s32.totalorder %s181, %s182
    %p194 = scmp.eq.s32.totalorder %s20, 1
    %p195 = por %p193, %p194
    %p197 = scmp.ne.s32.totalorder %s182, %s196
    %p198 = scmp.eq.s32.totalorder %s20, 0
    %p199 = por %p197, %p198
    %s200 = ssub.s32 %s14, %s21
    %p201 = scmp.eq.s32.totalorder %s200, 0
    %s203 = sadd.s32 %s202, 1
    %s204 = scalar_select %p201, %s202, %s203
    %p207 = pneg %p201
    %p208 = scmp.eq.s32.totalorder %s14, 1
    %p209 = por %p207, %p208
    %p210 = scmp.ne.s32.totalorder %s202, %s205
    %p211 = scmp.eq.s32.totalorder %s14, 0
    %p212 = por %p210, %p211
    %p213 = scmp.ne.s32.totalorder %s202, %s205
    %p214 = scmp.eq.s32.totalorder %s19, 1
    %p215 = por %p213, %p214
    %p216 = scmp.ne.s32.totalorder %s205, %s206
    %p217 = scmp.eq.s32.totalorder %s19, 0
    %p218 = por %p216, %p217
    %p219 = scmp.ne.s32.totalorder %s205, %s206
    %p220 = scmp.eq.s32.totalorder %s20, 1
    %p221 = por %p219, %p220
    %p223 = scmp.ne.s32.totalorder %s206, %s222
    %p224 = scmp.eq.s32.totalorder %s20, 0
    %p225 = por %p223, %p224
    %p226 = scmp.le.s32.totalorder 1, %s14
    %p227 = scmp.lt.s32.totalorder %s14, 3
    %p228 = pnand %p226, %p227
    %p229 = pneg %p228
    // Predicated region
    $region9: #{scorenet_forward.14} parent=5 // pred_check
      _
    $region10: #{scorenet_forward.14} parent=5 // pred_check_branch
      %231 = sbr.rel (%p228) target = $region12
    $region11: #{scorenet_forward.14} parent=5 // pred_region
      %s232 = ssub.s32 %s14, 1
      // Predicated region
      $region13: #{scorenet_forward.14} parent=11 // pred_check
        %p233 = pneg %p61
      $region14: #{scorenet_forward.14} parent=11 // pred_check_branch
        %235 = sbr.rel (%p233) target = $region16
      $region15: #{scorenet_forward.14} parent=11 // pred_region
        _
      $region16: #{scorenet_forward.14} parent=11 // pred_fallthru
        _
      // Predicated region
      $region17: #{scorenet_forward.14} parent=11 // pred_check
        %p236 = pneg %p108
      $region18: #{scorenet_forward.14} parent=11 // pred_check_branch
        %238 = sbr.rel (%p236) target = $region20
      $region19: #{scorenet_forward.14} parent=11 // pred_region
        _
      $region20: #{scorenet_forward.14} parent=11 // pred_fallthru
        _
      // Predicated region
      $region21: #{scorenet_forward.14} parent=11 // pred_check
        %p239 = pneg %p129
      $region22: #{scorenet_forward.14} parent=11 // pred_check_branch
        %241 = sbr.rel (%p239) target = $region24
      $region23: #{scorenet_forward.14} parent=11 // pred_region
        _
      $region24: #{scorenet_forward.14} parent=11 // pred_fallthru
        _
      // Predicated region
      $region25: #{scorenet_forward.14} parent=11 // pred_check
        %p242 = pneg %p150
      $region26: #{scorenet_forward.14} parent=11 // pred_check_branch
        %244 = sbr.rel (%p242) target = $region28
      $region27: #{scorenet_forward.14} parent=11 // pred_region
        _
      $region28: #{scorenet_forward.14} parent=11 // pred_fallthru
        _
      // Predicated region
      $region29: #{scorenet_forward.14} parent=11 // pred_check
        %p245 = pneg %p171
      $region30: #{scorenet_forward.14} parent=11 // pred_check_branch
        %247 = sbr.rel (%p245) target = $region32
      $region31: #{scorenet_forward.14} parent=11 // pred_region
        _
      $region32: #{scorenet_forward.14} parent=11 // pred_fallthru
        _
      // Predicated region
      $region33: #{scorenet_forward.14} parent=11 // pred_check
        %p248 = pneg %p192
      $region34: #{scorenet_forward.14} parent=11 // pred_check_branch
        %250 = sbr.rel (%p248) target = $region36
      $region35: #{scorenet_forward.14} parent=11 // pred_region
        _
      $region36: #{scorenet_forward.14} parent=11 // pred_fallthru
        _
    $region12: #{scorenet_forward.14} parent=5 // pred_fallthru
      _
    %p251 = scmp.lt.s32.totalorder %s14, 2
    // Predicated region
    $region37: #{scorenet_forward.14} parent=5 // pred_check
      %p252 = pneg %p251
    $region38: #{scorenet_forward.14} parent=5 // pred_check_branch
      %254 = sbr.rel (%p252) target = $region40
    $region39: #{scorenet_forward.14} parent=5 // pred_region
      // Predicated region
      $region41: #{scorenet_forward.14} parent=39 // pred_check
        %p255 = pneg %p34
      $region42: #{scorenet_forward.14} parent=39 // pred_check_branch
        %257 = sbr.rel (%p255) target = $region44
      $region43: #{scorenet_forward.14} parent=39 // pred_region
        %p258 = scmp.lt.s32.totalorder %s14, 1
        %s259 = scalar_select %p258, %s14, 1
        %s260 = smul.addr %s259, 65
        %s261 = smul.addr %s260, 4
        %s262 = scalar_lea.vmem %s0, %s261
      $region44: #{scorenet_forward.14} parent=39 // pred_fallthru
        _
      // Predicated region
      $region45: #{scorenet_forward.14} parent=39 // pred_check
        %p263 = pneg %p81
      $region46: #{scorenet_forward.14} parent=39 // pred_check_branch
        %265 = sbr.rel (%p263) target = $region48
      $region47: #{scorenet_forward.14} parent=39 // pred_region
        %p266 = scmp.lt.s32.totalorder %s14, 1
        %s267 = scalar_select %p266, %s14, 1
        %s268 = smul.addr %s267, 65
        %s269 = smul.addr %s268, 4
        %s270 = scalar_lea.vmem %s2, %s269
      $region48: #{scorenet_forward.14} parent=39 // pred_fallthru
        _
    $region40: #{scorenet_forward.14} parent=5 // pred_fallthru
      _
    %p271 = scmp.le.s32.totalorder 1, %s14
    %p272 = scmp.lt.s32.totalorder %s14, 3
    %p273 = pnand %p271, %p272
    %p274 = pneg %p273
    // Predicated region
    $region49: #{scorenet_forward.14} parent=5 // pred_check
      _
    $region50: #{scorenet_forward.14} parent=5 // pred_check_branch
      %276 = sbr.rel (%p273) target = $region52
    $region51: #{scorenet_forward.14} parent=5 // pred_region
      %s277 = ssub.s32 %s14, 1
      %p278 = scmp.lt.s32.totalorder %s19, 1
      %s279 = scalar_select %p278, %s19, 1
      %s280 = smul.addr %s279, 65
      %s281 = smul.addr %s280, 4
      %s282 = scalar_lea.vmem %s0, %s281
      %p283 = pneg %p40
      %p284 = pneg %p37
      %p285 = pneg %p61
      %p286 = pneg %p58
      %p287 = scmp.lt.s32.totalorder %s19, 1
      %s288 = scalar_select %p287, %s19, 1
      %s289 = smul.addr %s288, 65
      %s290 = smul.addr %s289, 4
      %s291 = scalar_lea.vmem %s2, %s290
      %p292 = pneg %p87
      %p293 = pneg %p84
      %p294 = pneg %p108
      %p295 = pneg %p105
      %p296 = pneg %p129
      %p297 = pneg %p126
      %p298 = pneg %p150
      %p299 = pneg %p147
      %p300 = pneg %p171
      %p301 = pneg %p168
      %p302 = pneg %p192
      %p303 = pneg %p189
      %p304 = pneg %p218
      %p305 = pneg %p215
      %p306 = scmp.lt.s32.totalorder %s19, 1
      %s307 = scalar_select %p306, %s19, 1
      %s308 = smul.addr %s307, 13
      %s309 = smul.addr %s308, 4
      %s310 = scalar_lea.vmem %s8, %s309
      %p311 = scmp.lt.s32.totalorder %s19, 1
      %s312 = scalar_select %p311, %s19, 1
      %s313 = smul.addr %s312, 65
      %s314 = smul.addr %s313, 4
      %s315 = scalar_lea.vmem %s0, %s314
      %p316 = scmp.lt.s32.totalorder %s19, 1
      %s317 = scalar_select %p316, %s19, 1
      %s318 = smul.addr %s317, 65
      %s319 = smul.addr %s318, 4
      %s320 = scalar_lea.vmem %s2, %s319
      %p321 = scmp.lt.s32.totalorder %s19, 1
      %s322 = scalar_select %p321, %s19, 1
      %s323 = smul.addr %s322, 13
      %s324 = smul.addr %s323, 4
      %s325 = scalar_lea.vmem %s8, %s324
      %v327 = vld [vmem:[%s315] sm:$0xff]
      %v328 = vld [vmem:[%s315 + $0x8] sm:$0xff]
      %v329 = vld [vmem:[%s315 + $0x10] sm:$0xf]
      %v330 = vld [vmem:[%s315 + $0x14] sm:$0xff]
      %v331 = vld [vmem:[%s315 + $0x1c] sm:$0xff]
      %v332 = vld [vmem:[%s315 + $0x24] sm:$0xf]
      %v333 = vld [vmem:[%s315 + $0x28] sm:$0xff]
      %v334 = vld [vmem:[%s315 + $0x30] sm:$0xff]
      %v335 = vld [vmem:[%s315 + $0x38] sm:$0xf]
      %v336 = vld [vmem:[%s315 + $0x3c] sm:$0xff]
      %v337 = vld [vmem:[%s315 + $0x44] sm:$0xff]
      %v338 = vld [vmem:[%s315 + $0x4c] sm:$0xf]
      %v339 = vld [vmem:[%s315 + $0x50] sm:$0xff]
      %v340 = vld [vmem:[%s315 + $0x58] sm:$0xff]
      %v341 = vld [vmem:[%s315 + $0x60] sm:$0xf]
      %v342 = vld [vmem:[%s315 + $0x64] sm:$0xff]
      %v343 = vld [vmem:[%s315 + $0x6c] sm:$0xff]
      %v344 = vld [vmem:[%s315 + $0x74] sm:$0xf]
      %v345 = vld [vmem:[%s315 + $0x78] sm:$0xff]
      %v346 = vld [vmem:[%s315 + $0x80] sm:$0xff]
      %v347 = vld [vmem:[%s315 + $0x88] sm:$0xf]
      %v348 = vld [vmem:[%s315 + $0x8c] sm:$0xff]
      %v349 = vld [vmem:[%s315 + $0x94] sm:$0xff]
      %v350 = vld [vmem:[%s315 + $0x9c] sm:$0xf]
      %v351 = vld [vmem:[%s315 + $0xa0] sm:$0xff]
      %v352 = vld [vmem:[%s315 + $0xa8] sm:$0xff]
      %v353 = vld [vmem:[%s315 + $0xb0] sm:$0xf]
      %v354 = vld [vmem:[%s315 + $0xb4] sm:$0xff]
      %v355 = vld [vmem:[%s315 + $0xbc] sm:$0xff]
      %v356 = vld [vmem:[%s315 + $0xc4] sm:$0xf]
      %v357 = vld [vmem:[%s315 + $0xc8] sm:$0xff]
      %v358 = vld [vmem:[%s315 + $0xd0] sm:$0xff]
      %v359 = vld [vmem:[%s315 + $0xd8] sm:$0xf]
      %v360 = vld [vmem:[%s315 + $0xdc] sm:$0xff]
      %v361 = vld [vmem:[%s315 + $0xe4] sm:$0xff]
      %v362 = vld [vmem:[%s315 + $0xec] sm:$0xf]
      %v363 = vld [vmem:[%s315 + $0xf0] sm:$0x33]
      %v364 = vld [vmem:[%s315 + $0xf8] sm:$0x33]
      %v365 = vld [vmem:[%s315 + $0x100] sm:$0x3]
      %v366 = vld [vmem:[%s1] sm:$0xf]
      %v367 = vld [vmem:[%s1 + $0x4] sm:$0xf]
      %v368 = vld [vmem:[%s1 + $0x8] sm:$0xf]
      %v369 = vld [vmem:[%s1 + $0xc] sm:$0xf]
      %v370 = vld [vmem:[%s1 + $0x10] sm:$0xf]
      %v371 = vld [vmem:[%s1 + $0x14] sm:$0xf]
      %v372 = vld [vmem:[%s1 + $0x18] sm:$0xf]
      %v373 = vld [vmem:[%s1 + $0x1c] sm:$0xf]
      %v374 = vld [vmem:[%s1 + $0x20] sm:$0xf]
      %v375 = vld [vmem:[%s1 + $0x24] sm:$0xf]
      %v376 = vld [vmem:[%s1 + $0x28] sm:$0xf]
      %v377 = vld [vmem:[%s1 + $0x2c] sm:$0xf]
      %v378 = vld [vmem:[%s1 + $0x30] sm:$0xf]
      %v379 = vld [vmem:[%s1 + $0x34] sm:$0xf]
      %v380 = vld [vmem:[%s1 + $0x38] sm:$0xf]
      %v381 = vld [vmem:[%s1 + $0x3c] sm:$0xf]
      %v382 = vld [vmem:[%s1 + $0x40] sm:$0xf]
      %v383 = vld [vmem:[%s1 + $0x44] sm:$0xf]
      %v384 = vld [vmem:[%s1 + $0x48] sm:$0xf]
      %v385 = vld [vmem:[%s1 + $0x4c] sm:$0xf]
      %v386 = vld [vmem:[%s1 + $0x50] sm:$0xf]
      %v387 = vld [vmem:[%s1 + $0x54] sm:$0xf]
      %v388 = vld [vmem:[%s1 + $0x58] sm:$0xf]
      %v389 = vld [vmem:[%s1 + $0x5c] sm:$0xf]
      %v390 = vld [vmem:[%s1 + $0x60] sm:$0xf]
      %v391 = vld [vmem:[%s1 + $0x64] sm:$0xf]
      %v392 = vld [vmem:[%s1 + $0x68] sm:$0xf]
      %v393 = vld [vmem:[%s1 + $0x6c] sm:$0xf]
      %v394 = vld [vmem:[%s1 + $0x70] sm:$0xf]
      %v395 = vld [vmem:[%s1 + $0x74] sm:$0xf]
      %v396 = vld [vmem:[%s1 + $0x78] sm:$0xf]
      %v397 = vld [vmem:[%s1 + $0x7c] sm:$0xf]
      %v398 = vld [vmem:[%s1 + $0x80] sm:$0xf]
      %v399 = vld [vmem:[%s1 + $0x84] sm:$0xf]
      %v400 = vld [vmem:[%s1 + $0x88] sm:$0xf]
      %v401 = vld [vmem:[%s1 + $0x8c] sm:$0xf]
      %v402 = vld [vmem:[%s1 + $0x90] sm:$0xf]
      %v403 = vld [vmem:[%s1 + $0x94] sm:$0xf]
      %v404 = vld [vmem:[%s1 + $0x98] sm:$0xf]
      %v405 = vld [vmem:[%s1 + $0x9c] sm:$0xf]
      %v406 = vld [vmem:[%s1 + $0xa0] sm:$0xf]
      %v407 = vld [vmem:[%s1 + $0xa4] sm:$0xf]
      %v408 = vld [vmem:[%s1 + $0xa8] sm:$0xf]
      %v409 = vld [vmem:[%s1 + $0xac] sm:$0xf]
      %v410 = vld [vmem:[%s1 + $0xb0] sm:$0xf]
      %v411 = vld [vmem:[%s1 + $0xb4] sm:$0xf]
      %v412 = vld [vmem:[%s1 + $0xb8] sm:$0xf]
      %v413 = vld [vmem:[%s1 + $0xbc] sm:$0xf]
      %v414 = vld [vmem:[%s1 + $0xc0] sm:$0xf]
      %v415 = vld [vmem:[%s1 + $0xc4] sm:$0xf]
      %v416 = vld [vmem:[%s1 + $0xc8] sm:$0xf]
      %v417 = vld [vmem:[%s1 + $0xcc] sm:$0xf]
      %v418 = vld [vmem:[%s1 + $0xd0] sm:$0xf]
      %v419 = vld [vmem:[%s1 + $0xd4] sm:$0xf]
      %v420 = vld [vmem:[%s1 + $0xd8] sm:$0xf]
      %v421 = vld [vmem:[%s1 + $0xdc] sm:$0xf]
      %v422 = vld [vmem:[%s1 + $0xe0] sm:$0xf]
      %v423 = vld [vmem:[%s1 + $0xe4] sm:$0xf]
      %v424 = vld [vmem:[%s1 + $0xe8] sm:$0xf]
      %v425 = vld [vmem:[%s1 + $0xec] sm:$0xf]
      %v426 = vld [vmem:[%s1 + $0xf0] sm:$0xf]
      %v427 = vld [vmem:[%s1 + $0xf4] sm:$0xf]
      %v428 = vld [vmem:[%s1 + $0xf8] sm:$0xf]
      %v429 = vld [vmem:[%s1 + $0xfc] sm:$0xf]
      %v430 = vld [vmem:[%s1 + $0x100] sm:$0xf]
      %v431 = vld [vmem:[%s1 + $0x104] sm:$0xf]
      %v432 = vld [vmem:[%s1 + $0x108] sm:$0xf]
      %v433 = vld [vmem:[%s1 + $0x10c] sm:$0xf]
      %v434 = vld [vmem:[%s1 + $0x110] sm:$0xf]
      %v435 = vld [vmem:[%s1 + $0x114] sm:$0xf]
      %v436 = vld [vmem:[%s1 + $0x118] sm:$0xf]
      %v437 = vld [vmem:[%s1 + $0x11c] sm:$0xf]
      %v438 = vld [vmem:[%s320] sm:$0xff]
      %v439 = vld [vmem:[%s320 + $0x8] sm:$0xff]
      %v440 = vld [vmem:[%s320 + $0x10] sm:$0xf]
      %v441 = vld [vmem:[%s320 + $0x14] sm:$0xff]
      %v442 = vld [vmem:[%s320 + $0x1c] sm:$0xff]
      %v443 = vld [vmem:[%s320 + $0x24] sm:$0xf]
      %v444 = vld [vmem:[%s320 + $0x28] sm:$0xff]
      %v445 = vld [vmem:[%s320 + $0x30] sm:$0xff]
      %v446 = vld [vmem:[%s320 + $0x38] sm:$0xf]
      %v447 = vld [vmem:[%s320 + $0x3c] sm:$0xff]
      %v448 = vld [vmem:[%s320 + $0x44] sm:$0xff]
      %v449 = vld [vmem:[%s320 + $0x4c] sm:$0xf]
      %v450 = vld [vmem:[%s320 + $0x50] sm:$0xff]
      %v451 = vld [vmem:[%s320 + $0x58] sm:$0xff]
      %v452 = vld [vmem:[%s320 + $0x60] sm:$0xf]
      %v453 = vld [vmem:[%s320 + $0x64] sm:$0xff]
      %v454 = vld [vmem:[%s320 + $0x6c] sm:$0xff]
      %v455 = vld [vmem:[%s320 + $0x74] sm:$0xf]
      %v456 = vld [vmem:[%s320 + $0x78] sm:$0xff]
      %v457 = vld [vmem:[%s320 + $0x80] sm:$0xff]
      %v458 = vld [vmem:[%s320 + $0x88] sm:$0xf]
      %v459 = vld [vmem:[%s320 + $0x8c] sm:$0xff]
      %v460 = vld [vmem:[%s320 + $0x94] sm:$0xff]
      %v461 = vld [vmem:[%s320 + $0x9c] sm:$0xf]
      %v462 = vld [vmem:[%s320 + $0xa0] sm:$0xff]
      %v463 = vld [vmem:[%s320 + $0xa8] sm:$0xff]
      %v464 = vld [vmem:[%s320 + $0xb0] sm:$0xf]
      %v465 = vld [vmem:[%s320 + $0xb4] sm:$0xff]
      %v466 = vld [vmem:[%s320 + $0xbc] sm:$0xff]
      %v467 = vld [vmem:[%s320 + $0xc4] sm:$0xf]
      %v468 = vld [vmem:[%s320 + $0xc8] sm:$0xff]
      %v469 = vld [vmem:[%s320 + $0xd0] sm:$0xff]
      %v470 = vld [vmem:[%s320 + $0xd8] sm:$0xf]
      %v471 = vld [vmem:[%s320 + $0xdc] sm:$0xff]
      %v472 = vld [vmem:[%s320 + $0xe4] sm:$0xff]
      %v473 = vld [vmem:[%s320 + $0xec] sm:$0xf]
      %v474 = vld [vmem:[%s320 + $0xf0] sm:$0x33]
      %v475 = vld [vmem:[%s320 + $0xf8] sm:$0x33]
      %v476 = vld [vmem:[%s320 + $0x100] sm:$0x3]
      %v477 = vld [vmem:[%s3] sm:$0xf]
      %v478 = vld [vmem:[%s3 + $0x4] sm:$0xf]
      %v479 = vld [vmem:[%s3 + $0x8] sm:$0xf]
      %v480 = vld [vmem:[%s3 + $0xc] sm:$0xf]
      %v481 = vld [vmem:[%s3 + $0x10] sm:$0xf]
      %v482 = vld [vmem:[%s3 + $0x14] sm:$0xf]
      %v483 = vld [vmem:[%s3 + $0x18] sm:$0xf]
      %v484 = vld [vmem:[%s3 + $0x1c] sm:$0xf]
      %v485 = vld [vmem:[%s3 + $0x20] sm:$0xf]
      %v486 = vld [vmem:[%s3 + $0x24] sm:$0xf]
      %v487 = vld [vmem:[%s3 + $0x28] sm:$0xf]
      %v488 = vld [vmem:[%s3 + $0x2c] sm:$0xf]
      %v489 = vld [vmem:[%s3 + $0x30] sm:$0xf]
      %v490 = vld [vmem:[%s3 + $0x34] sm:$0xf]
      %v491 = vld [vmem:[%s3 + $0x38] sm:$0xf]
      %v492 = vld [vmem:[%s3 + $0x3c] sm:$0xf]
      %v493 = vld [vmem:[%s3 + $0x40] sm:$0xf]
      %v494 = vld [vmem:[%s3 + $0x44] sm:$0xf]
      %v495 = vld [vmem:[%s3 + $0x48] sm:$0xf]
      %v496 = vld [vmem:[%s3 + $0x4c] sm:$0xf]
      %v497 = vld [vmem:[%s3 + $0x50] sm:$0xf]
      %v498 = vld [vmem:[%s3 + $0x54] sm:$0xf]
      %v499 = vld [vmem:[%s3 + $0x58] sm:$0xf]
      %v500 = vld [vmem:[%s3 + $0x5c] sm:$0xf]
      %v501 = vld [vmem:[%s3 + $0x60] sm:$0xf]
      %v502 = vld [vmem:[%s3 + $0x64] sm:$0xf]
      %v503 = vld [vmem:[%s3 + $0x68] sm:$0xf]
      %v504 = vld [vmem:[%s3 + $0x6c] sm:$0xf]
      %v505 = vld [vmem:[%s3 + $0x70] sm:$0xf]
      %v506 = vld [vmem:[%s3 + $0x74] sm:$0xf]
      %v507 = vld [vmem:[%s3 + $0x78] sm:$0xf]
      %v508 = vld [vmem:[%s3 + $0x7c] sm:$0xf]
      %v509 = vld [vmem:[%s3 + $0x80] sm:$0xf]
      %v510 = vld [vmem:[%s3 + $0x84] sm:$0xf]
      %v511 = vld [vmem:[%s3 + $0x88] sm:$0xf]
      %v512 = vld [vmem:[%s3 + $0x8c] sm:$0xf]
      %v513 = vld [vmem:[%s3 + $0x90] sm:$0xf]
      %v514 = vld [vmem:[%s3 + $0x94] sm:$0xf]
      %v515 = vld [vmem:[%s3 + $0x98] sm:$0xf]
      %v516 = vld [vmem:[%s3 + $0x9c] sm:$0xf]
      %v517 = vld [vmem:[%s3 + $0xa0] sm:$0xf]
      %v518 = vld [vmem:[%s3 + $0xa4] sm:$0xf]
      %v519 = vld [vmem:[%s3 + $0xa8] sm:$0xf]
      %v520 = vld [vmem:[%s3 + $0xac] sm:$0xf]
      %v521 = vld [vmem:[%s3 + $0xb0] sm:$0xf]
      %v522 = vld [vmem:[%s3 + $0xb4] sm:$0xf]
      %v523 = vld [vmem:[%s3 + $0xb8] sm:$0xf]
      %v524 = vld [vmem:[%s3 + $0xbc] sm:$0xf]
      %v525 = vld [vmem:[%s3 + $0xc0] sm:$0xf]
      %v526 = vld [vmem:[%s3 + $0xc4] sm:$0xf]
      %v527 = vld [vmem:[%s3 + $0xc8] sm:$0xf]
      %v528 = vld [vmem:[%s3 + $0xcc] sm:$0xf]
      %v529 = vld [vmem:[%s3 + $0xd0] sm:$0xf]
      %v530 = vld [vmem:[%s3 + $0xd4] sm:$0xf]
      %v531 = vld [vmem:[%s3 + $0xd8] sm:$0xf]
      %v532 = vld [vmem:[%s3 + $0xdc] sm:$0xf]
      %v533 = vld [vmem:[%s3 + $0xe0] sm:$0xf]
      %v534 = vld [vmem:[%s3 + $0xe4] sm:$0xf]
      %v535 = vld [vmem:[%s3 + $0xe8] sm:$0xf]
      %v536 = vld [vmem:[%s3 + $0xec] sm:$0xf]
      %v537 = vld [vmem:[%s3 + $0xf0] sm:$0xf]
      %v538 = vld [vmem:[%s3 + $0xf4] sm:$0xf]
      %v539 = vld [vmem:[%s3 + $0xf8] sm:$0xf]
      %v540 = vld [vmem:[%s3 + $0xfc] sm:$0xf]
      %v541 = vld [vmem:[%s3 + $0x100] sm:$0xf]
      %v542 = vld [vmem:[%s3 + $0x104] sm:$0xf]
      %v543 = vld [vmem:[%s3 + $0x108] sm:$0xf]
      %v544 = vld [vmem:[%s3 + $0x10c] sm:$0xf]
      %v545 = vld [vmem:[%s3 + $0x110] sm:$0xf]
      %v546 = vld [vmem:[%s3 + $0x114] sm:$0xf]
      %v547 = vld [vmem:[%s3 + $0x118] sm:$0xf]
      %v548 = vld [vmem:[%s3 + $0x11c] sm:$0xf]
      %v588 = vunpack.c.l.b16 %v438
      %v589 = vunpack.c.h.b16 %v438
      %v590 = vunpack.c.l.b16 %v439
      %v591 = vunpack.c.h.b16 %v439
      %v592 = vunpack.c.l.b16 %v440
      %v593 = vunpack.c.l.b16 %v441
      %v594 = vunpack.c.h.b16 %v441
      %v595 = vunpack.c.l.b16 %v442
      %v596 = vunpack.c.h.b16 %v442
      %v597 = vunpack.c.l.b16 %v443
      %v598 = vunpack.c.l.b16 %v444
      %v599 = vunpack.c.h.b16 %v444
      %v600 = vunpack.c.l.b16 %v445
      %v601 = vunpack.c.h.b16 %v445
      %v602 = vunpack.c.l.b16 %v446
      %v603 = vunpack.c.l.b16 %v447
      %v604 = vunpack.c.h.b16 %v447
      %v605 = vunpack.c.l.b16 %v448
      %v606 = vunpack.c.h.b16 %v448
      %v607 = vunpack.c.l.b16 %v449
      %v608 = vunpack.c.l.b16 %v450
      %v609 = vunpack.c.h.b16 %v450
      %v610 = vunpack.c.l.b16 %v451
      %v611 = vunpack.c.h.b16 %v451
      %v612 = vunpack.c.l.b16 %v452
      %v613 = vunpack.c.l.b16 %v453
      %v614 = vunpack.c.h.b16 %v453
      %v615 = vunpack.c.l.b16 %v454
      %v616 = vunpack.c.h.b16 %v454
      %v617 = vunpack.c.l.b16 %v455
      %v618 = vunpack.c.l.b16 %v456
      %v619 = vunpack.c.h.b16 %v456
      %v620 = vunpack.c.l.b16 %v457
      %v621 = vunpack.c.h.b16 %v457
      %v622 = vunpack.c.l.b16 %v458
      %v623 = vunpack.c.l.b16 %v459
      %v624 = vunpack.c.h.b16 %v459
      %v625 = vunpack.c.l.b16 %v460
      %v626 = vunpack.c.h.b16 %v460
      %v627 = vunpack.c.l.b16 %v461
      %v628 = vunpack.c.l.b16 %v462
      %v629 = vunpack.c.h.b16 %v462
      %v630 = vunpack.c.l.b16 %v463
      %v631 = vunpack.c.h.b16 %v463
      %v632 = vunpack.c.l.b16 %v464
      %v633 = vunpack.c.l.b16 %v465
      %v634 = vunpack.c.h.b16 %v465
      %v635 = vunpack.c.l.b16 %v466
      %v636 = vunpack.c.h.b16 %v466
      %v637 = vunpack.c.l.b16 %v467
      %v638 = vunpack.c.l.b16 %v468
      %v639 = vunpack.c.h.b16 %v468
      %v640 = vunpack.c.l.b16 %v469
      %v641 = vunpack.c.h.b16 %v469
      %v642 = vunpack.c.l.b16 %v470
      %v643 = vunpack.c.l.b16 %v471
      %v644 = vunpack.c.h.b16 %v471
      %v645 = vunpack.c.l.b16 %v472
      %v646 = vunpack.c.h.b16 %v472
      %v647 = vunpack.c.l.b16 %v473
      %v648 = vunpack.c.l.b16 %v474
      %v649 = vunpack.c.h.b16 %v474
      %v650 = vunpack.c.l.b16 %v475
      %v651 = vunpack.c.h.b16 %v475
      %v652 = vunpack.c.l.b16 %v476
      %v653 = vpack.c.b16 %v593, %v588
      %v654 = vpack.c.b16 %v594, %v589
      %v655 = vpack.c.b16 %v595, %v590
      %v656 = vpack.c.b16 %v596, %v591
      %v657 = vpack.c.b16 %v597, %v592
      %v658 = vpack.c.b16 %v603, %v598
      %v659 = vpack.c.b16 %v604, %v599
      %v660 = vpack.c.b16 %v605, %v600
      %v661 = vpack.c.b16 %v606, %v601
      %v662 = vpack.c.b16 %v607, %v602
      %v663 = vpack.c.b16 %v613, %v608
      %v664 = vpack.c.b16 %v614, %v609
      %v665 = vpack.c.b16 %v615, %v610
      %v666 = vpack.c.b16 %v616, %v611
      %v667 = vpack.c.b16 %v617, %v612
      %v668 = vpack.c.b16 %v623, %v618
      %v669 = vpack.c.b16 %v624, %v619
      %v670 = vpack.c.b16 %v625, %v620
      %v671 = vpack.c.b16 %v626, %v621
      %v672 = vpack.c.b16 %v627, %v622
      %v673 = vpack.c.b16 %v633, %v628
      %v674 = vpack.c.b16 %v634, %v629
      %v675 = vpack.c.b16 %v635, %v630
      %v676 = vpack.c.b16 %v636, %v631
      %v677 = vpack.c.b16 %v637, %v632
      %v678 = vpack.c.b16 %v643, %v638
      %v679 = vpack.c.b16 %v644, %v639
      %v680 = vpack.c.b16 %v645, %v640
      %v681 = vpack.c.b16 %v646, %v641
      %v682 = vpack.c.b16 %v647, %v642
      %v683 = vpack.c.b16 %v648, %v648
      %v684 = vpack.c.b16 %v649, %v649
      %v685 = vpack.c.b16 %v650, %v650
      %v686 = vpack.c.b16 %v651, %v651
      %v687 = vpack.c.b16 %v652, %v652
      %v788 = vunpack.c.l.b16 %v477
      %v789 = vunpack.c.l.b16 %v478
      %v790 = vunpack.c.l.b16 %v479
      %v791 = vunpack.c.l.b16 %v480
      %v792 = vunpack.c.l.b16 %v481
      %v793 = vunpack.c.l.b16 %v482
      %v794 = vunpack.c.l.b16 %v483
      %v795 = vunpack.c.l.b16 %v484
      %v796 = vunpack.c.l.b16 %v485
      %v797 = vunpack.c.l.b16 %v486
      %v798 = vunpack.c.l.b16 %v487
      %v799 = vunpack.c.l.b16 %v488
      %v800 = vunpack.c.l.b16 %v489
      %v801 = vunpack.c.l.b16 %v490
      %v802 = vunpack.c.l.b16 %v491
      %v803 = vunpack.c.l.b16 %v492
      %v804 = vunpack.c.l.b16 %v493
      %v805 = vunpack.c.l.b16 %v494
      %v806 = vunpack.c.l.b16 %v495
      %v807 = vunpack.c.l.b16 %v496
      %v808 = vunpack.c.l.b16 %v497
      %v809 = vunpack.c.l.b16 %v498
      %v810 = vunpack.c.l.b16 %v499
      %v811 = vunpack.c.l.b16 %v500
      %v812 = vunpack.c.l.b16 %v501
      %v813 = vunpack.c.l.b16 %v502
      %v814 = vunpack.c.l.b16 %v503
      %v815 = vunpack.c.l.b16 %v504
      %v816 = vunpack.c.l.b16 %v505
      %v817 = vunpack.c.l.b16 %v506
      %v818 = vunpack.c.l.b16 %v507
      %v819 = vunpack.c.l.b16 %v508
      %v820 = vunpack.c.l.b16 %v509
      %v821 = vunpack.c.l.b16 %v510
      %v822 = vunpack.c.l.b16 %v511
      %v823 = vunpack.c.l.b16 %v512
      %v824 = vunpack.c.l.b16 %v513
      %v825 = vunpack.c.l.b16 %v514
      %v826 = vunpack.c.l.b16 %v515
      %v827 = vunpack.c.l.b16 %v516
      %v828 = vunpack.c.l.b16 %v517
      %v829 = vunpack.c.l.b16 %v518
      %v830 = vunpack.c.l.b16 %v519
      %v831 = vunpack.c.l.b16 %v520
      %v832 = vunpack.c.l.b16 %v521
      %v833 = vunpack.c.l.b16 %v522
      %v834 = vunpack.c.l.b16 %v523
      %v835 = vunpack.c.l.b16 %v524
      %v836 = vunpack.c.l.b16 %v525
      %v837 = vunpack.c.l.b16 %v526
      %v838 = vunpack.c.l.b16 %v527
      %v839 = vunpack.c.l.b16 %v528
      %v840 = vunpack.c.l.b16 %v529
      %v841 = vunpack.c.l.b16 %v530
      %v842 = vunpack.c.l.b16 %v531
      %v843 = vunpack.c.l.b16 %v532
      %v844 = vunpack.c.l.b16 %v533
      %v845 = vunpack.c.l.b16 %v534
      %v846 = vunpack.c.l.b16 %v535
      %v847 = vunpack.c.l.b16 %v536
      %v848 = vunpack.c.l.b16 %v537
      %v849 = vunpack.c.l.b16 %v538
      %v850 = vunpack.c.l.b16 %v539
      %v851 = vunpack.c.l.b16 %v540
      %v852 = vunpack.c.l.b16 %v541
      %v853 = vunpack.c.l.b16 %v542
      %v854 = vunpack.c.l.b16 %v543
      %v855 = vunpack.c.l.b16 %v544
      %v856 = vunpack.c.l.b16 %v545
      %v857 = vunpack.c.l.b16 %v546
      %v858 = vunpack.c.l.b16 %v547
      %v859 = vunpack.c.l.b16 %v548
      %v860 = vpack.c.b16 %v789, %v788
      %v861 = vpack.c.b16 %v791, %v790
      %v862 = vpack.c.b16 %v793, %v792
      %v863 = vpack.c.b16 %v795, %v794
      %v864 = vpack.c.b16 %v797, %v796
      %v865 = vpack.c.b16 %v799, %v798
      %v866 = vpack.c.b16 %v801, %v800
      %v867 = vpack.c.b16 %v803, %v802
      %v868 = vpack.c.b16 %v805, %v804
      %v869 = vpack.c.b16 %v807, %v806
      %v870 = vpack.c.b16 %v809, %v808
      %v871 = vpack.c.b16 %v811, %v810
      %v872 = vpack.c.b16 %v813, %v812
      %v873 = vpack.c.b16 %v815, %v814
      %v874 = vpack.c.b16 %v817, %v816
      %v875 = vpack.c.b16 %v819, %v818
      %v876 = vpack.c.b16 %v821, %v820
      %v877 = vpack.c.b16 %v823, %v822
      %v878 = vpack.c.b16 %v825, %v824
      %v879 = vpack.c.b16 %v827, %v826
      %v880 = vpack.c.b16 %v829, %v828
      %v881 = vpack.c.b16 %v831, %v830
      %v882 = vpack.c.b16 %v833, %v832
      %v883 = vpack.c.b16 %v835, %v834
      %v884 = vpack.c.b16 %v837, %v836
      %v885 = vpack.c.b16 %v839, %v838
      %v886 = vpack.c.b16 %v841, %v840
      %v887 = vpack.c.b16 %v843, %v842
      %v888 = vpack.c.b16 %v845, %v844
      %v889 = vpack.c.b16 %v847, %v846
      %v890 = vpack.c.b16 %v849, %v848
      %v891 = vpack.c.b16 %v851, %v850
      %v892 = vpack.c.b16 %v853, %v852
      %v893 = vpack.c.b16 %v855, %v854
      %v894 = vpack.c.b16 %v857, %v856
      %v895 = vpack.c.b16 %v859, %v858
      %vm932 = vcmask 523264
      %v934 = vsel %vm932, %v657, 0
      %v937 = vsel %vm932, %v662, 0
      %v940 = vsel %vm932, %v667, 0
      %v943 = vsel %vm932, %v672, 0
      %v946 = vsel %vm932, %v677, 0
      %v949 = vsel %vm932, %v682, 0
      %v952 = vsel %vm932, %v687, 0
      %954 = vmatpush.bf16.msra.mxu0 %v867
      %955 = vmatpush.bf16.msra.mxu0 %v866
      %956 = vmatpush.bf16.msra.mxu0 %v865
      %957 = vmatpush.bf16.msra.mxu0 %v864
      %958 = vmatpush.bf16.msra.mxu0 %v863
      %959 = vmatpush.bf16.msra.mxu0 %v862
      %960 = vmatpush.bf16.msra.mxu0 %v861
      %961 = vmatpush.bf16.msra.mxu0 %v860
      %962 = vmatmul.bf16.gmra.mxu0 %v653
      %v963 = vpop.f32.mrf.mxu0
      %v964 = vadd.f32 0.0, %v963
      %v965 = vpop.f32.mrf.mxu0
      %v966 = vadd.f32 0.0, %v965
      %967 = vmatmul.bf16.gmra.mxu0 %v658
      %v968 = vpop.f32.mrf.mxu0
      %v969 = vadd.f32 0.0, %v968
      %v970 = vpop.f32.mrf.mxu0
      %v971 = vadd.f32 0.0, %v970
      %972 = vmatmul.bf16.gmra.mxu0 %v663
      %v973 = vpop.f32.mrf.mxu0
      %v974 = vadd.f32 0.0, %v973
      %v975 = vpop.f32.mrf.mxu0
      %v976 = vadd.f32 0.0, %v975
      %977 = vmatmul.bf16.gmra.mxu0 %v668
      %v978 = vpop.f32.mrf.mxu0
      %v979 = vadd.f32 0.0, %v978
      %v980 = vpop.f32.mrf.mxu0
      %v981 = vadd.f32 0.0, %v980
      %982 = vmatmul.bf16.gmra.mxu0 %v673
      %v983 = vpop.f32.mrf.mxu0
      %v984 = vadd.f32 0.0, %v983
      %v985 = vpop.f32.mrf.mxu0
      %v986 = vadd.f32 0.0, %v985
      %987 = vmatmul.bf16.gmra.mxu0 %v678
      %v988 = vpop.f32.mrf.mxu0
      %v989 = vadd.f32 0.0, %v988
      %v990 = vpop.f32.mrf.mxu0
      %v991 = vadd.f32 0.0, %v990
      %992 = vmatmul.bf16.gmra.mxu0 %v683
      %v993 = vpop.f32.mrf.mxu0
      %v994 = vadd.f32 0.0, %v993
      %v995 = vpop.f32.mrf.mxu0
      %996 = vdwg.mxu0
      %997 = vmatpush.bf16.msra.mxu0 %v875
      %998 = vmatpush.bf16.msra.mxu0 %v874
      %999 = vmatpush.bf16.msra.mxu0 %v873
      %1000 = vmatpush.bf16.msra.mxu0 %v872
      %1001 = vmatpush.bf16.msra.mxu0 %v871
      %1002 = vmatpush.bf16.msra.mxu0 %v870
      %1003 = vmatpush.bf16.msra.mxu0 %v869
      %1004 = vmatpush.bf16.msra.mxu0 %v868
      %1005 = vmatmul.bf16.gmra.mxu0 %v654
      %v1006 = vpop.f32.mrf.mxu0
      %v1007 = vadd.f32 %v964, %v1006
      %v1008 = vpop.f32.mrf.mxu0
      %v1009 = vadd.f32 %v966, %v1008
      %1010 = vmatmul.bf16.gmra.mxu0 %v659
      %v1011 = vpop.f32.mrf.mxu0
      %v1012 = vadd.f32 %v969, %v1011
      %v1013 = vpop.f32.mrf.mxu0
      %v1014 = vadd.f32 %v971, %v1013
      %1015 = vmatmul.bf16.gmra.mxu0 %v664
      %v1016 = vpop.f32.mrf.mxu0
      %v1017 = vadd.f32 %v974, %v1016
      %v1018 = vpop.f32.mrf.mxu0
      %v1019 = vadd.f32 %v976, %v1018
      %1020 = vmatmul.bf16.gmra.mxu0 %v669
      %v1021 = vpop.f32.mrf.mxu0
      %v1022 = vadd.f32 %v979, %v1021
      %v1023 = vpop.f32.mrf.mxu0
      %v1024 = vadd.f32 %v981, %v1023
      %1025 = vmatmul.bf16.gmra.mxu0 %v674
      %v1026 = vpop.f32.mrf.mxu0
      %v1027 = vadd.f32 %v984, %v1026
      %v1028 = vpop.f32.mrf.mxu0
      %v1029 = vadd.f32 %v986, %v1028
      %1030 = vmatmul.bf16.gmra.mxu0 %v679
      %v1031 = vpop.f32.mrf.mxu0
      %v1032 = vadd.f32 %v989, %v1031
      %v1033 = vpop.f32.mrf.mxu0
      %v1034 = vadd.f32 %v991, %v1033
      %1035 = vmatmul.bf16.gmra.mxu0 %v684
      %v1036 = vpop.f32.mrf.mxu0
      %v1037 = vadd.f32 %v994, %v1036
      %v1038 = vpop.f32.mrf.mxu0
      %1039 = vdwg.mxu0
      %1040 = vmatpush.bf16.msra.mxu0 %v883
      %1041 = vmatpush.bf16.msra.mxu0 %v882
      %1042 = vmatpush.bf16.msra.mxu0 %v881
      %1043 = vmatpush.bf16.msra.mxu0 %v880
      %1044 = vmatpush.bf16.msra.mxu0 %v879
      %1045 = vmatpush.bf16.msra.mxu0 %v878
      %1046 = vmatpush.bf16.msra.mxu0 %v877
      %1047 = vmatpush.bf16.msra.mxu0 %v876
      %1048 = vmatmul.bf16.gmra.mxu0 %v655
      %v1049 = vpop.f32.mrf.mxu0
      %v1050 = vadd.f32 %v1007, %v1049
      %v1051 = vpop.f32.mrf.mxu0
      %v1052 = vadd.f32 %v1009, %v1051
      %1053 = vmatmul.bf16.gmra.mxu0 %v660
      %v1054 = vpop.f32.mrf.mxu0
      %v1055 = vadd.f32 %v1012, %v1054
      %v1056 = vpop.f32.mrf.mxu0
      %v1057 = vadd.f32 %v1014, %v1056
      %1058 = vmatmul.bf16.gmra.mxu0 %v665
      %v1059 = vpop.f32.mrf.mxu0
      %v1060 = vadd.f32 %v1017, %v1059
      %v1061 = vpop.f32.mrf.mxu0
      %v1062 = vadd.f32 %v1019, %v1061
      %1063 = vmatmul.bf16.gmra.mxu0 %v670
      %v1064 = vpop.f32.mrf.mxu0
      %v1065 = vadd.f32 %v1022, %v1064
      %v1066 = vpop.f32.mrf.mxu0
      %v1067 = vadd.f32 %v1024, %v1066
      %1068 = vmatmul.bf16.gmra.mxu0 %v675
      %v1069 = vpop.f32.mrf.mxu0
      %v1070 = vadd.f32 %v1027, %v1069
      %v1071 = vpop.f32.mrf.mxu0
      %v1072 = vadd.f32 %v1029, %v1071
      %1073 = vmatmul.bf16.gmra.mxu0 %v680
      %v1074 = vpop.f32.mrf.mxu0
      %v1075 = vadd.f32 %v1032, %v1074
      %v1076 = vpop.f32.mrf.mxu0
      %v1077 = vadd.f32 %v1034, %v1076
      %1078 = vmatmul.bf16.gmra.mxu0 %v685
      %v1079 = vpop.f32.mrf.mxu0
      %v1080 = vadd.f32 %v1037, %v1079
      %v1081 = vpop.f32.mrf.mxu0
      %1082 = vdwg.mxu0
      %1083 = vmatpush.bf16.msra.mxu0 %v891
      %1084 = vmatpush.bf16.msra.mxu0 %v890
      %1085 = vmatpush.bf16.msra.mxu0 %v889
      %1086 = vmatpush.bf16.msra.mxu0 %v888
      %1087 = vmatpush.bf16.msra.mxu0 %v887
      %1088 = vmatpush.bf16.msra.mxu0 %v886
      %1089 = vmatpush.bf16.msra.mxu0 %v885
      %1090 = vmatpush.bf16.msra.mxu0 %v884
      %1091 = vmatmul.bf16.gmra.mxu0 %v656
      %v1092 = vpop.f32.mrf.mxu0
      %v1093 = vadd.f32 %v1050, %v1092
      %v1094 = vpop.f32.mrf.mxu0
      %v1095 = vadd.f32 %v1052, %v1094
      %1096 = vmatmul.bf16.gmra.mxu0 %v661
      %v1097 = vpop.f32.mrf.mxu0
      %v1098 = vadd.f32 %v1055, %v1097
      %v1099 = vpop.f32.mrf.mxu0
      %v1100 = vadd.f32 %v1057, %v1099
      %1101 = vmatmul.bf16.gmra.mxu0 %v666
      %v1102 = vpop.f32.mrf.mxu0
      %v1103 = vadd.f32 %v1060, %v1102
      %v1104 = vpop.f32.mrf.mxu0
      %v1105 = vadd.f32 %v1062, %v1104
      %1106 = vmatmul.bf16.gmra.mxu0 %v671
      %v1107 = vpop.f32.mrf.mxu0
      %v1108 = vadd.f32 %v1065, %v1107
      %v1109 = vpop.f32.mrf.mxu0
      %v1110 = vadd.f32 %v1067, %v1109
      %1111 = vmatmul.bf16.gmra.mxu0 %v676
      %v1112 = vpop.f32.mrf.mxu0
      %v1113 = vadd.f32 %v1070, %v1112
      %v1114 = vpop.f32.mrf.mxu0
      %v1115 = vadd.f32 %v1072, %v1114
      %1116 = vmatmul.bf16.gmra.mxu0 %v681
      %v1117 = vpop.f32.mrf.mxu0
      %v1118 = vadd.f32 %v1075, %v1117
      %v1119 = vpop.f32.mrf.mxu0
      %v1120 = vadd.f32 %v1077, %v1119
      %1121 = vmatmul.bf16.gmra.mxu0 %v686
      %v1122 = vpop.f32.mrf.mxu0
      %v1123 = vadd.f32 %v1080, %v1122
      %v1124 = vpop.f32.mrf.mxu0
      %1125 = vdwg.mxu0
      %1126 = vmatpush.bf16.msra.mxu0 0
      %1127 = vmatpush.bf16.msra.mxu0 0
      %1128 = vmatpush.bf16.msra.mxu0 0
      %1129 = vmatpush.bf16.msra.mxu0 0
      %1130 = vmatpush.bf16.msra.mxu0 %v895
      %1131 = vmatpush.bf16.msra.mxu0 %v894
      %1132 = vmatpush.bf16.msra.mxu0 %v893
      %1133 = vmatpush.bf16.msra.mxu0 %v892
      %1134 = vmatmul.bf16.gmra.mxu0 %v934
      %v1135 = vpop.f32.mrf.mxu0
      %v1136 = vadd.f32 %v1093, %v1135
      %v1137 = vpop.f32.mrf.mxu0
      %v1138 = vadd.f32 %v1095, %v1137
      %1139 = vmatmul.bf16.gmra.mxu0 %v937
      %v1140 = vpop.f32.mrf.mxu0
      %v1141 = vadd.f32 %v1098, %v1140
      %v1142 = vpop.f32.mrf.mxu0
      %v1143 = vadd.f32 %v1100, %v1142
      %1144 = vmatmul.bf16.gmra.mxu0 %v940
      %v1145 = vpop.f32.mrf.mxu0
      %v1146 = vadd.f32 %v1103, %v1145
      %v1147 = vpop.f32.mrf.mxu0
      %v1148 = vadd.f32 %v1105, %v1147
      %1149 = vmatmul.bf16.gmra.mxu0 %v943
      %v1150 = vpop.f32.mrf.mxu0
      %v1151 = vadd.f32 %v1108, %v1150
      %v1152 = vpop.f32.mrf.mxu0
      %v1153 = vadd.f32 %v1110, %v1152
      %1154 = vmatmul.bf16.gmra.mxu0 %v946
      %v1155 = vpop.f32.mrf.mxu0
      %v1156 = vadd.f32 %v1113, %v1155
      %v1157 = vpop.f32.mrf.mxu0
      %v1158 = vadd.f32 %v1115, %v1157
      %1159 = vmatmul.bf16.gmra.mxu0 %v949
      %v1160 = vpop.f32.mrf.mxu0
      %v1161 = vadd.f32 %v1118, %v1160
      %v1162 = vpop.f32.mrf.mxu0
      %v1163 = vadd.f32 %v1120, %v1162
      %1164 = vmatmul.bf16.gmra.mxu0 %v952
      %v1165 = vpop.f32.mrf.mxu0
      %v1166 = vadd.f32 %v1123, %v1165
      %v1167 = vpop.f32.mrf.mxu0
      %1168 = vdwg.mxu0
      %v1208 = vunpack.c.l.b16 %v327
      %v1209 = vunpack.c.h.b16 %v327
      %v1210 = vunpack.c.l.b16 %v328
      %v1211 = vunpack.c.h.b16 %v328
      %v1212 = vunpack.c.l.b16 %v329
      %v1213 = vunpack.c.l.b16 %v330
      %v1214 = vunpack.c.h.b16 %v330
      %v1215 = vunpack.c.l.b16 %v331
      %v1216 = vunpack.c.h.b16 %v331
      %v1217 = vunpack.c.l.b16 %v332
      %v1218 = vunpack.c.l.b16 %v333
      %v1219 = vunpack.c.h.b16 %v333
      %v1220 = vunpack.c.l.b16 %v334
      %v1221 = vunpack.c.h.b16 %v334
      %v1222 = vunpack.c.l.b16 %v335
      %v1223 = vunpack.c.l.b16 %v336
      %v1224 = vunpack.c.h.b16 %v336
      %v1225 = vunpack.c.l.b16 %v337
      %v1226 = vunpack.c.h.b16 %v337
      %v1227 = vunpack.c.l.b16 %v338
      %v1228 = vunpack.c.l.b16 %v339
      %v1229 = vunpack.c.h.b16 %v339
      %v1230 = vunpack.c.l.b16 %v340
      %v1231 = vunpack.c.h.b16 %v340
      %v1232 = vunpack.c.l.b16 %v341
      %v1233 = vunpack.c.l.b16 %v342
      %v1234 = vunpack.c.h.b16 %v342
      %v1235 = vunpack.c.l.b16 %v343
      %v1236 = vunpack.c.h.b16 %v343
      %v1237 = vunpack.c.l.b16 %v344
      %v1238 = vunpack.c.l.b16 %v345
      %v1239 = vunpack.c.h.b16 %v345
      %v1240 = vunpack.c.l.b16 %v346
      %v1241 = vunpack.c.h.b16 %v346
      %v1242 = vunpack.c.l.b16 %v347
      %v1243 = vunpack.c.l.b16 %v348
      %v1244 = vunpack.c.h.b16 %v348
      %v1245 = vunpack.c.l.b16 %v349
      %v1246 = vunpack.c.h.b16 %v349
      %v1247 = vunpack.c.l.b16 %v350
      %v1248 = vunpack.c.l.b16 %v351
      %v1249 = vunpack.c.h.b16 %v351
      %v1250 = vunpack.c.l.b16 %v352
      %v1251 = vunpack.c.h.b16 %v352
      %v1252 = vunpack.c.l.b16 %v353
      %v1253 = vunpack.c.l.b16 %v354
      %v1254 = vunpack.c.h.b16 %v354
      %v1255 = vunpack.c.l.b16 %v355
      %v1256 = vunpack.c.h.b16 %v355
      %v1257 = vunpack.c.l.b16 %v356
      %v1258 = vunpack.c.l.b16 %v357
      %v1259 = vunpack.c.h.b16 %v357
      %v1260 = vunpack.c.l.b16 %v358
      %v1261 = vunpack.c.h.b16 %v358
      %v1262 = vunpack.c.l.b16 %v359
      %v1263 = vunpack.c.l.b16 %v360
      %v1264 = vunpack.c.h.b16 %v360
      %v1265 = vunpack.c.l.b16 %v361
      %v1266 = vunpack.c.h.b16 %v361
      %v1267 = vunpack.c.l.b16 %v362
      %v1268 = vunpack.c.l.b16 %v363
      %v1269 = vunpack.c.h.b16 %v363
      %v1270 = vunpack.c.l.b16 %v364
      %v1271 = vunpack.c.h.b16 %v364
      %v1272 = vunpack.c.l.b16 %v365
      %v1273 = vpack.c.b16 %v1213, %v1208
      %v1274 = vpack.c.b16 %v1214, %v1209
      %v1275 = vpack.c.b16 %v1215, %v1210
      %v1276 = vpack.c.b16 %v1216, %v1211
      %v1277 = vpack.c.b16 %v1217, %v1212
      %v1278 = vpack.c.b16 %v1223, %v1218
      %v1279 = vpack.c.b16 %v1224, %v1219
      %v1280 = vpack.c.b16 %v1225, %v1220
      %v1281 = vpack.c.b16 %v1226, %v1221
      %v1282 = vpack.c.b16 %v1227, %v1222
      %v1283 = vpack.c.b16 %v1233, %v1228
      %v1284 = vpack.c.b16 %v1234, %v1229
      %v1285 = vpack.c.b16 %v1235, %v1230
      %v1286 = vpack.c.b16 %v1236, %v1231
      %v1287 = vpack.c.b16 %v1237, %v1232
      %v1288 = vpack.c.b16 %v1243, %v1238
      %v1289 = vpack.c.b16 %v1244, %v1239
      %v1290 = vpack.c.b16 %v1245, %v1240
      %v1291 = vpack.c.b16 %v1246, %v1241
      %v1292 = vpack.c.b16 %v1247, %v1242
      %v1293 = vpack.c.b16 %v1253, %v1248
      %v1294 = vpack.c.b16 %v1254, %v1249
      %v1295 = vpack.c.b16 %v1255, %v1250
      %v1296 = vpack.c.b16 %v1256, %v1251
      %v1297 = vpack.c.b16 %v1257, %v1252
      %v1298 = vpack.c.b16 %v1263, %v1258
      %v1299 = vpack.c.b16 %v1264, %v1259
      %v1300 = vpack.c.b16 %v1265, %v1260
      %v1301 = vpack.c.b16 %v1266, %v1261
      %v1302 = vpack.c.b16 %v1267, %v1262
      %v1303 = vpack.c.b16 %v1268, %v1268
      %v1304 = vpack.c.b16 %v1269, %v1269
      %v1305 = vpack.c.b16 %v1270, %v1270
      %v1306 = vpack.c.b16 %v1271, %v1271
      %v1307 = vpack.c.b16 %v1272, %v1272
      %v1408 = vunpack.c.l.b16 %v366
      %v1409 = vunpack.c.l.b16 %v367
      %v1410 = vunpack.c.l.b16 %v368
      %v1411 = vunpack.c.l.b16 %v369
      %v1412 = vunpack.c.l.b16 %v370
      %v1413 = vunpack.c.l.b16 %v371
      %v1414 = vunpack.c.l.b16 %v372
      %v1415 = vunpack.c.l.b16 %v373
      %v1416 = vunpack.c.l.b16 %v374
      %v1417 = vunpack.c.l.b16 %v375
      %v1418 = vunpack.c.l.b16 %v376
      %v1419 = vunpack.c.l.b16 %v377
      %v1420 = vunpack.c.l.b16 %v378
      %v1421 = vunpack.c.l.b16 %v379
      %v1422 = vunpack.c.l.b16 %v380
      %v1423 = vunpack.c.l.b16 %v381
      %v1424 = vunpack.c.l.b16 %v382
      %v1425 = vunpack.c.l.b16 %v383
      %v1426 = vunpack.c.l.b16 %v384
      %v1427 = vunpack.c.l.b16 %v385
      %v1428 = vunpack.c.l.b16 %v386
      %v1429 = vunpack.c.l.b16 %v387
      %v1430 = vunpack.c.l.b16 %v388
      %v1431 = vunpack.c.l.b16 %v389
      %v1432 = vunpack.c.l.b16 %v390
      %v1433 = vunpack.c.l.b16 %v391
      %v1434 = vunpack.c.l.b16 %v392
      %v1435 = vunpack.c.l.b16 %v393
      %v1436 = vunpack.c.l.b16 %v394
      %v1437 = vunpack.c.l.b16 %v395
      %v1438 = vunpack.c.l.b16 %v396
      %v1439 = vunpack.c.l.b16 %v397
      %v1440 = vunpack.c.l.b16 %v398
      %v1441 = vunpack.c.l.b16 %v399
      %v1442 = vunpack.c.l.b16 %v400
      %v1443 = vunpack.c.l.b16 %v401
      %v1444 = vunpack.c.l.b16 %v402
      %v1445 = vunpack.c.l.b16 %v403
      %v1446 = vunpack.c.l.b16 %v404
      %v1447 = vunpack.c.l.b16 %v405
      %v1448 = vunpack.c.l.b16 %v406
      %v1449 = vunpack.c.l.b16 %v407
      %v1450 = vunpack.c.l.b16 %v408
      %v1451 = vunpack.c.l.b16 %v409
      %v1452 = vunpack.c.l.b16 %v410
      %v1453 = vunpack.c.l.b16 %v411
      %v1454 = vunpack.c.l.b16 %v412
      %v1455 = vunpack.c.l.b16 %v413
      %v1456 = vunpack.c.l.b16 %v414
      %v1457 = vunpack.c.l.b16 %v415
      %v1458 = vunpack.c.l.b16 %v416
      %v1459 = vunpack.c.l.b16 %v417
      %v1460 = vunpack.c.l.b16 %v418
      %v1461 = vunpack.c.l.b16 %v419
      %v1462 = vunpack.c.l.b16 %v420
      %v1463 = vunpack.c.l.b16 %v421
      %v1464 = vunpack.c.l.b16 %v422
      %v1465 = vunpack.c.l.b16 %v423
      %v1466 = vunpack.c.l.b16 %v424
      %v1467 = vunpack.c.l.b16 %v425
      %v1468 = vunpack.c.l.b16 %v426
      %v1469 = vunpack.c.l.b16 %v427
      %v1470 = vunpack.c.l.b16 %v428
      %v1471 = vunpack.c.l.b16 %v429
      %v1472 = vunpack.c.l.b16 %v430
      %v1473 = vunpack.c.l.b16 %v431
      %v1474 = vunpack.c.l.b16 %v432
      %v1475 = vunpack.c.l.b16 %v433
      %v1476 = vunpack.c.l.b16 %v434
      %v1477 = vunpack.c.l.b16 %v435
      %v1478 = vunpack.c.l.b16 %v436
      %v1479 = vunpack.c.l.b16 %v437
      %v1480 = vpack.c.b16 %v1409, %v1408
      %v1481 = vpack.c.b16 %v1411, %v1410
      %v1482 = vpack.c.b16 %v1413, %v1412
      %v1483 = vpack.c.b16 %v1415, %v1414
      %v1484 = vpack.c.b16 %v1417, %v1416
      %v1485 = vpack.c.b16 %v1419, %v1418
      %v1486 = vpack.c.b16 %v1421, %v1420
      %v1487 = vpack.c.b16 %v1423, %v1422
      %v1488 = vpack.c.b16 %v1425, %v1424
      %v1489 = vpack.c.b16 %v1427, %v1426
      %v1490 = vpack.c.b16 %v1429, %v1428
      %v1491 = vpack.c.b16 %v1431, %v1430
      %v1492 = vpack.c.b16 %v1433, %v1432
      %v1493 = vpack.c.b16 %v1435, %v1434
      %v1494 = vpack.c.b16 %v1437, %v1436
      %v1495 = vpack.c.b16 %v1439, %v1438
      %v1496 = vpack.c.b16 %v1441, %v1440
      %v1497 = vpack.c.b16 %v1443, %v1442
      %v1498 = vpack.c.b16 %v1445, %v1444
      %v1499 = vpack.c.b16 %v1447, %v1446
      %v1500 = vpack.c.b16 %v1449, %v1448
      %v1501 = vpack.c.b16 %v1451, %v1450
      %v1502 = vpack.c.b16 %v1453, %v1452
      %v1503 = vpack.c.b16 %v1455, %v1454
      %v1504 = vpack.c.b16 %v1457, %v1456
      %v1505 = vpack.c.b16 %v1459, %v1458
      %v1506 = vpack.c.b16 %v1461, %v1460
      %v1507 = vpack.c.b16 %v1463, %v1462
      %v1508 = vpack.c.b16 %v1465, %v1464
      %v1509 = vpack.c.b16 %v1467, %v1466
      %v1510 = vpack.c.b16 %v1469, %v1468
      %v1511 = vpack.c.b16 %v1471, %v1470
      %v1512 = vpack.c.b16 %v1473, %v1472
      %v1513 = vpack.c.b16 %v1475, %v1474
      %v1514 = vpack.c.b16 %v1477, %v1476
      %v1515 = vpack.c.b16 %v1479, %v1478
      %v1553 = vsel %vm932, %v1277, 0
      %v1556 = vsel %vm932, %v1282, 0
      %v1559 = vsel %vm932, %v1287, 0
      %v1562 = vsel %vm932, %v1292, 0
      %v1565 = vsel %vm932, %v1297, 0
      %v1568 = vsel %vm932, %v1302, 0
      %v1571 = vsel %vm932, %v1307, 0
      %1573 = vmatpush.bf16.msra.mxu0 %v1487
      %1574 = vmatpush.bf16.msra.mxu0 %v1486
      %1575 = vmatpush.bf16.msra.mxu0 %v1485
      %1576 = vmatpush.bf16.msra.mxu0 %v1484
      %1577 = vmatpush.bf16.msra.mxu0 %v1483
      %1578 = vmatpush.bf16.msra.mxu0 %v1482
      %1579 = vmatpush.bf16.msra.mxu0 %v1481
      %1580 = vmatpush.bf16.msra.mxu0 %v1480
      %1581 = vmatmul.bf16.gmra.mxu0 %v1273
      %v1582 = vpop.f32.mrf.mxu0
      %v1583 = vadd.f32 %v1136, %v1582
      %v1584 = vpop.f32.mrf.mxu0
      %v1585 = vadd.f32 %v1138, %v1584
      %1586 = vmatmul.bf16.gmra.mxu0 %v1278
      %v1587 = vpop.f32.mrf.mxu0
      %v1588 = vadd.f32 %v1141, %v1587
      %v1589 = vpop.f32.mrf.mxu0
      %v1590 = vadd.f32 %v1143, %v1589
      %1591 = vmatmul.bf16.gmra.mxu0 %v1283
      %v1592 = vpop.f32.mrf.mxu0
      %v1593 = vadd.f32 %v1146, %v1592
      %v1594 = vpop.f32.mrf.mxu0
      %v1595 = vadd.f32 %v1148, %v1594
      %1596 = vmatmul.bf16.gmra.mxu0 %v1288
      %v1597 = vpop.f32.mrf.mxu0
      %v1598 = vadd.f32 %v1151, %v1597
      %v1599 = vpop.f32.mrf.mxu0
      %v1600 = vadd.f32 %v1153, %v1599
      %1601 = vmatmul.bf16.gmra.mxu0 %v1293
      %v1602 = vpop.f32.mrf.mxu0
      %v1603 = vadd.f32 %v1156, %v1602
      %v1604 = vpop.f32.mrf.mxu0
      %v1605 = vadd.f32 %v1158, %v1604
      %1606 = vmatmul.bf16.gmra.mxu0 %v1298
      %v1607 = vpop.f32.mrf.mxu0
      %v1608 = vadd.f32 %v1161, %v1607
      %v1609 = vpop.f32.mrf.mxu0
      %v1610 = vadd.f32 %v1163, %v1609
      %1611 = vmatmul.bf16.gmra.mxu0 %v1303
      %v1612 = vpop.f32.mrf.mxu0
      %v1613 = vadd.f32 %v1166, %v1612
      %v1614 = vpop.f32.mrf.mxu0
      %1615 = vdwg.mxu0
      %1616 = vmatpush.bf16.msra.mxu0 %v1495
      %1617 = vmatpush.bf16.msra.mxu0 %v1494
      %1618 = vmatpush.bf16.msra.mxu0 %v1493
      %1619 = vmatpush.bf16.msra.mxu0 %v1492
      %1620 = vmatpush.bf16.msra.mxu0 %v1491
      %1621 = vmatpush.bf16.msra.mxu0 %v1490
      %1622 = vmatpush.bf16.msra.mxu0 %v1489
      %1623 = vmatpush.bf16.msra.mxu0 %v1488
      %1624 = vmatmul.bf16.gmra.mxu0 %v1274
      %v1625 = vpop.f32.mrf.mxu0
      %v1626 = vadd.f32 %v1583, %v1625
      %v1627 = vpop.f32.mrf.mxu0
      %v1628 = vadd.f32 %v1585, %v1627
      %1629 = vmatmul.bf16.gmra.mxu0 %v1279
      %v1630 = vpop.f32.mrf.mxu0
      %v1631 = vadd.f32 %v1588, %v1630
      %v1632 = vpop.f32.mrf.mxu0
      %v1633 = vadd.f32 %v1590, %v1632
      %1634 = vmatmul.bf16.gmra.mxu0 %v1284
      %v1635 = vpop.f32.mrf.mxu0
      %v1636 = vadd.f32 %v1593, %v1635
      %v1637 = vpop.f32.mrf.mxu0
      %v1638 = vadd.f32 %v1595, %v1637
      %1639 = vmatmul.bf16.gmra.mxu0 %v1289
      %v1640 = vpop.f32.mrf.mxu0
      %v1641 = vadd.f32 %v1598, %v1640
      %v1642 = vpop.f32.mrf.mxu0
      %v1643 = vadd.f32 %v1600, %v1642
      %1644 = vmatmul.bf16.gmra.mxu0 %v1294
      %v1645 = vpop.f32.mrf.mxu0
      %v1646 = vadd.f32 %v1603, %v1645
      %v1647 = vpop.f32.mrf.mxu0
      %v1648 = vadd.f32 %v1605, %v1647
      %1649 = vmatmul.bf16.gmra.mxu0 %v1299
      %v1650 = vpop.f32.mrf.mxu0
      %v1651 = vadd.f32 %v1608, %v1650
      %v1652 = vpop.f32.mrf.mxu0
      %v1653 = vadd.f32 %v1610, %v1652
      %1654 = vmatmul.bf16.gmra.mxu0 %v1304
      %v1655 = vpop.f32.mrf.mxu0
      %v1656 = vadd.f32 %v1613, %v1655
      %v1657 = vpop.f32.mrf.mxu0
      %1658 = vdwg.mxu0
      %1659 = vmatpush.bf16.msra.mxu0 %v1503
      %1660 = vmatpush.bf16.msra.mxu0 %v1502
      %1661 = vmatpush.bf16.msra.mxu0 %v1501
      %1662 = vmatpush.bf16.msra.mxu0 %v1500
      %1663 = vmatpush.bf16.msra.mxu0 %v1499
      %1664 = vmatpush.bf16.msra.mxu0 %v1498
      %1665 = vmatpush.bf16.msra.mxu0 %v1497
      %1666 = vmatpush.bf16.msra.mxu0 %v1496
      %1667 = vmatmul.bf16.gmra.mxu0 %v1275
      %v1668 = vpop.f32.mrf.mxu0
      %v1669 = vadd.f32 %v1626, %v1668
      %v1670 = vpop.f32.mrf.mxu0
      %v1671 = vadd.f32 %v1628, %v1670
      %1672 = vmatmul.bf16.gmra.mxu0 %v1280
      %v1673 = vpop.f32.mrf.mxu0
      %v1674 = vadd.f32 %v1631, %v1673
      %v1675 = vpop.f32.mrf.mxu0
      %v1676 = vadd.f32 %v1633, %v1675
      %1677 = vmatmul.bf16.gmra.mxu0 %v1285
      %v1678 = vpop.f32.mrf.mxu0
      %v1679 = vadd.f32 %v1636, %v1678
      %v1680 = vpop.f32.mrf.mxu0
      %v1681 = vadd.f32 %v1638, %v1680
      %1682 = vmatmul.bf16.gmra.mxu0 %v1290
      %v1683 = vpop.f32.mrf.mxu0
      %v1684 = vadd.f32 %v1641, %v1683
      %v1685 = vpop.f32.mrf.mxu0
      %v1686 = vadd.f32 %v1643, %v1685
      %1687 = vmatmul.bf16.gmra.mxu0 %v1295
      %v1688 = vpop.f32.mrf.mxu0
      %v1689 = vadd.f32 %v1646, %v1688
      %v1690 = vpop.f32.mrf.mxu0
      %v1691 = vadd.f32 %v1648, %v1690
      %1692 = vmatmul.bf16.gmra.mxu0 %v1300
      %v1693 = vpop.f32.mrf.mxu0
      %v1694 = vadd.f32 %v1651, %v1693
      %v1695 = vpop.f32.mrf.mxu0
      %v1696 = vadd.f32 %v1653, %v1695
      %1697 = vmatmul.bf16.gmra.mxu0 %v1305
      %v1698 = vpop.f32.mrf.mxu0
      %v1699 = vadd.f32 %v1656, %v1698
      %v1700 = vpop.f32.mrf.mxu0
      %1701 = vdwg.mxu0
      %1702 = vmatpush.bf16.msra.mxu0 %v1511
      %1703 = vmatpush.bf16.msra.mxu0 %v1510
      %1704 = vmatpush.bf16.msra.mxu0 %v1509
      %1705 = vmatpush.bf16.msra.mxu0 %v1508
      %1706 = vmatpush.bf16.msra.mxu0 %v1507
      %1707 = vmatpush.bf16.msra.mxu0 %v1506
      %1708 = vmatpush.bf16.msra.mxu0 %v1505
      %1709 = vmatpush.bf16.msra.mxu0 %v1504
      %1710 = vmatmul.bf16.gmra.mxu0 %v1276
      %v1711 = vpop.f32.mrf.mxu0
      %v1712 = vadd.f32 %v1669, %v1711
      %v1713 = vpop.f32.mrf.mxu0
      %v1714 = vadd.f32 %v1671, %v1713
      %1715 = vmatmul.bf16.gmra.mxu0 %v1281
      %v1716 = vpop.f32.mrf.mxu0
      %v1717 = vadd.f32 %v1674, %v1716
      %v1718 = vpop.f32.mrf.mxu0
      %v1719 = vadd.f32 %v1676, %v1718
      %1720 = vmatmul.bf16.gmra.mxu0 %v1286
      %v1721 = vpop.f32.mrf.mxu0
      %v1722 = vadd.f32 %v1679, %v1721
      %v1723 = vpop.f32.mrf.mxu0
      %v1724 = vadd.f32 %v1681, %v1723
      %1725 = vmatmul.bf16.gmra.mxu0 %v1291
      %v1726 = vpop.f32.mrf.mxu0
      %v1727 = vadd.f32 %v1684, %v1726
      %v1728 = vpop.f32.mrf.mxu0
      %v1729 = vadd.f32 %v1686, %v1728
      %1730 = vmatmul.bf16.gmra.mxu0 %v1296
      %v1731 = vpop.f32.mrf.mxu0
      %v1732 = vadd.f32 %v1689, %v1731
      %v1733 = vpop.f32.mrf.mxu0
      %v1734 = vadd.f32 %v1691, %v1733
      %1735 = vmatmul.bf16.gmra.mxu0 %v1301
      %v1736 = vpop.f32.mrf.mxu0
      %v1737 = vadd.f32 %v1694, %v1736
      %v1738 = vpop.f32.mrf.mxu0
      %v1739 = vadd.f32 %v1696, %v1738
      %1740 = vmatmul.bf16.gmra.mxu0 %v1306
      %v1741 = vpop.f32.mrf.mxu0
      %v1742 = vadd.f32 %v1699, %v1741
      %v1743 = vpop.f32.mrf.mxu0
      %1744 = vdwg.mxu0
      %1745 = vmatpush.bf16.msra.mxu0 0
      %1746 = vmatpush.bf16.msra.mxu0 0
      %1747 = vmatpush.bf16.msra.mxu0 0
      %1748 = vmatpush.bf16.msra.mxu0 0
      %1749 = vmatpush.bf16.msra.mxu0 %v1515
      %1750 = vmatpush.bf16.msra.mxu0 %v1514
      %1751 = vmatpush.bf16.msra.mxu0 %v1513
      %1752 = vmatpush.bf16.msra.mxu0 %v1512
      %1753 = vmatmul.bf16.gmra.mxu0 %v1553
      %v1754 = vpop.f32.mrf.mxu0
      %v1755 = vadd.f32 %v1712, %v1754
      %v1756 = vpop.f32.mrf.mxu0
      %v1757 = vadd.f32 %v1714, %v1756
      %1758 = vmatmul.bf16.gmra.mxu0 %v1556
      %v1759 = vpop.f32.mrf.mxu0
      %v1760 = vadd.f32 %v1717, %v1759
      %v1761 = vpop.f32.mrf.mxu0
      %v1762 = vadd.f32 %v1719, %v1761
      %1763 = vmatmul.bf16.gmra.mxu0 %v1559
      %v1764 = vpop.f32.mrf.mxu0
      %v1765 = vadd.f32 %v1722, %v1764
      %v1766 = vpop.f32.mrf.mxu0
      %v1767 = vadd.f32 %v1724, %v1766
      %1768 = vmatmul.bf16.gmra.mxu0 %v1562
      %v1769 = vpop.f32.mrf.mxu0
      %v1770 = vadd.f32 %v1727, %v1769
      %v1771 = vpop.f32.mrf.mxu0
      %v1772 = vadd.f32 %v1729, %v1771
      %1773 = vmatmul.bf16.gmra.mxu0 %v1565
      %v1774 = vpop.f32.mrf.mxu0
      %v1775 = vadd.f32 %v1732, %v1774
      %v1776 = vpop.f32.mrf.mxu0
      %v1777 = vadd.f32 %v1734, %v1776
      %1778 = vmatmul.bf16.gmra.mxu0 %v1568
      %v1779 = vpop.f32.mrf.mxu0
      %v1780 = vadd.f32 %v1737, %v1779
      %v1781 = vpop.f32.mrf.mxu0
      %v1782 = vadd.f32 %v1739, %v1781
      %1783 = vmatmul.bf16.gmra.mxu0 %v1571
      %v1784 = vpop.f32.mrf.mxu0
      %v1785 = vadd.f32 %v1742, %v1784
      %v1786 = vpop.f32.mrf.mxu0
      %1787 = vdwg.mxu0
      %vm1788 = vcmask 261120
      %v1789 = vsel %vm1788, %v1755, 0.0
      %v1790 = vsel %vm1788, %v1757, 0.0
      %v1791 = vadd.f32 %v1789, %v1790
      %v1792 = vsel %vm1788, %v1760, 0.0
      %v1793 = vadd.f32 %v1791, %v1792
      %v1794 = vsel %vm1788, %v1762, 0.0
      %v1795 = vadd.f32 %v1793, %v1794
      %v1796 = vsel %vm1788, %v1765, 0.0
      %v1797 = vadd.f32 %v1795, %v1796
      %v1798 = vsel %vm1788, %v1767, 0.0
      %v1799 = vadd.f32 %v1797, %v1798
      %v1800 = vsel %vm1788, %v1770, 0.0
      %v1801 = vadd.f32 %v1799, %v1800
      %v1802 = vsel %vm1788, %v1772, 0.0
      %v1803 = vadd.f32 %v1801, %v1802
      %v1804 = vsel %vm1788, %v1775, 0.0
      %v1805 = vadd.f32 %v1803, %v1804
      %v1806 = vsel %vm1788, %v1777, 0.0
      %v1807 = vadd.f32 %v1805, %v1806
      %v1808 = vsel %vm1788, %v1780, 0.0
      %v1809 = vadd.f32 %v1807, %v1808
      %v1810 = vsel %vm1788, %v1782, 0.0
      %v1811 = vadd.f32 %v1809, %v1810
      %vm1812 = vcmask 257024
      %v1813 = vsel %vm1812, %v1785, 0.0
      %v1814 = vadd.f32 %v1811, %v1813
      %v1815 = vrot.slane %v1814, 4
      %v1816 = vadd.f32 %v1814, %v1815
      %v1817 = vrot.slane %v1816, 2
      %v1818 = vadd.f32 %v1816, %v1817
      %v1819 = vrot.slane %v1818, 1
      %v1820 = vadd.f32 %v1818, %v1819
      %v1821 = vmul.f32 %v1755, %v1755
      %v1822 = vmul.f32 %v1757, %v1757
      %v1823 = vmul.f32 %v1760, %v1760
      %v1824 = vmul.f32 %v1762, %v1762
      %v1825 = vmul.f32 %v1765, %v1765
      %v1826 = vmul.f32 %v1767, %v1767
      %v1827 = vmul.f32 %v1770, %v1770
      %v1828 = vmul.f32 %v1772, %v1772
      %v1829 = vmul.f32 %v1775, %v1775
      %v1830 = vmul.f32 %v1777, %v1777
      %v1831 = vmul.f32 %v1780, %v1780
      %v1832 = vmul.f32 %v1782, %v1782
      %v1833 = vmul.f32 %v1785, %v1785
      %v1834 = vsel %vm1788, %v1821, 0.0
      %v1835 = vsel %vm1788, %v1822, 0.0
      %v1836 = vadd.f32 %v1834, %v1835
      %v1837 = vsel %vm1788, %v1823, 0.0
      %v1838 = vadd.f32 %v1836, %v1837
      %v1839 = vsel %vm1788, %v1824, 0.0
      %v1840 = vadd.f32 %v1838, %v1839
      %v1841 = vsel %vm1788, %v1825, 0.0
      %v1842 = vadd.f32 %v1840, %v1841
      %v1843 = vsel %vm1788, %v1826, 0.0
      %v1844 = vadd.f32 %v1842, %v1843
      %v1845 = vsel %vm1788, %v1827, 0.0
      %v1846 = vadd.f32 %v1844, %v1845
      %v1847 = vsel %vm1788, %v1828, 0.0
      %v1848 = vadd.f32 %v1846, %v1847
      %v1849 = vsel %vm1788, %v1829, 0.0
      %v1850 = vadd.f32 %v1848, %v1849
      %v1851 = vsel %vm1788, %v1830, 0.0
      %v1852 = vadd.f32 %v1850, %v1851
      %v1853 = vsel %vm1788, %v1831, 0.0
      %v1854 = vadd.f32 %v1852, %v1853
      %v1855 = vsel %vm1788, %v1832, 0.0
      %v1856 = vadd.f32 %v1854, %v1855
      %v1857 = vsel %vm1812, %v1833, 0.0
      %v1858 = vadd.f32 %v1856, %v1857
      %v1859 = vrot.slane %v1858, 4
      %v1860 = vadd.f32 %v1858, %v1859
      %v1861 = vrot.slane %v1860, 2
      %v1862 = vadd.f32 %v1860, %v1861
      %v1863 = vrot.slane %v1862, 1
      %v1864 = vadd.f32 %v1862, %v1863
      %1866 = vrot.lane.b32.xlu0 %v1864, 32
      %v1867 = vpop.permute.xlu0 %1866
      %v1869 = vsel %vm1788, %v1820, %v1867
      %v1870 = vld [vmem:[%s4] sm:$0xff]
      %v1871 = vld [vmem:[%s4 + $0x8] sm:$0xff]
      %v1872 = vld [vmem:[%s4 + $0x10] sm:$0xff]
      %v1873 = vld [vmem:[%s4 + $0x18] sm:$0xff]
      %v1874 = vld [vmem:[%s4 + $0x20] sm:$0xff]
      %v1875 = vld [vmem:[%s4 + $0x28] sm:$0xff]
      %v1876 = vld [vmem:[%s4 + $0x30] sm:$0xff]
      %v1877 = vld [vmem:[%s4 + $0x38] sm:$0xff]
      %v1879 = vsel %vm932, %v1869, 0
      %1881 = vmatpush.msra.mxu0 0.0
      %1882 = vmatpush.msra.mxu0 0.0
      %1883 = vmatpush.msra.mxu0 0.0
      %1884 = vmatpush.msra.mxu0 0.0
      %1885 = vmatpush.msra.mxu0 0.0
      %1886 = vmatpush.msra.mxu0 0.0
      %1887 = vmatpush.msra.mxu0 0.0
      %1888 = vmatpush.msra.mxu0 0.0
      %1889 = vmatpush.msra.mxu0 %v1877
      %1890 = vmatpush.msra.mxu0 %v1876
      %1891 = vmatpush.msra.mxu0 %v1875
      %1892 = vmatpush.msra.mxu0 %v1874
      %1893 = vmatpush.msra.mxu0 %v1873
      %1894 = vmatpush.msra.mxu0 %v1872
      %1895 = vmatpush.msra.mxu0 %v1871
      %1896 = vmatpush.msra.mxu0 %v1870
      %1897 = vmatmul.f32.gmra.mxu0 %v1879
      %v1898 = vpop.f32.mrf.mxu0
      %v1899 = vadd.f32 0.0, %v1898
      %1900 = vdwg.mxu0
      %v1901 = vmul.f32 %v1899, 0.01
      %v1902 = vmul.f32 %v1901, %v1901
      %1904 = vrot.lane.b32.xlu0 %v1902, 32
      %v1905 = vpop.permute.xlu0 %1904
      %v1907 = vsub.f32 %v1901, %v1905
      %v1908 = vmax.f32 %v1907, 0.0
      %v1909 = vadd.f32 %v1908, 1e-05
      %v1910 = vrsqrt.pop %v1909
      %v1911 = vmul.f32 %v1910, %v1909
      %v1912 = vmul.f32 %v1911, %v1910
      %v1913 = vmul.f32 0.5, %v1912
      %v1914 = vsub.f32 1.5, %v1913
      %v1915 = vmul.f32 %v1910, %v1914
      %vm1916 = vweird.f32 %v1909
      %vm1917 = vweird.f32 %v1910
      %vm1918 = vmor %vm1916, %vm1917
      %v1919 = vsel %vm1918, %v1910, %v1915
      %v1920 = vsel %vm1788, %v1901, %v1919
      %v1921 = vld [vmem:[%s5] sm:$0xff]
      %v1922 = vld [vmem:[%s5 + $0x8] sm:$0xff]
      %v1923 = vld [vmem:[%s5 + $0x10] sm:$0xff]
      %v1924 = vld [vmem:[%s5 + $0x18] sm:$0xff]
      %v1925 = vld [vmem:[%s5 + $0x20] sm:$0xff]
      %v1926 = vld [vmem:[%s5 + $0x28] sm:$0xff]
      %v1927 = vld [vmem:[%s5 + $0x30] sm:$0xff]
      %v1928 = vld [vmem:[%s5 + $0x38] sm:$0xff]
      %v1930 = vsel %vm932, %v1920, 0
      %1932 = vmatpush.msra.mxu0 0.0
      %1933 = vmatpush.msra.mxu0 0.0
      %1934 = vmatpush.msra.mxu0 0.0
      %1935 = vmatpush.msra.mxu0 0.0
      %1936 = vmatpush.msra.mxu0 0.0
      %1937 = vmatpush.msra.mxu0 0.0
      %1938 = vmatpush.msra.mxu0 0.0
      %1939 = vmatpush.msra.mxu0 0.0
      %1940 = vmatpush.msra.mxu0 %v1928
      %1941 = vmatpush.msra.mxu0 %v1927
      %1942 = vmatpush.msra.mxu0 %v1926
      %1943 = vmatpush.msra.mxu0 %v1925
      %1944 = vmatpush.msra.mxu0 %v1924
      %1945 = vmatpush.msra.mxu0 %v1923
      %1946 = vmatpush.msra.mxu0 %v1922
      %1947 = vmatpush.msra.mxu0 %v1921
      %1948 = vmatmul.f32.gmra.mxu0 %v1930
      %v1949 = vpop.f32.mrf.mxu0
      %v1950 = vadd.f32 0.0, %v1949
      %1951 = vdwg.mxu0
      %v1952 = vld [vmem:[%s6] sm:$0x1]
      %1954 = vrot.lane.b32.xlu0 %v1950, 96
      %v1955 = vpop.permute.xlu0 %1954
      %v1957 = vmul.f32 %v1952, %v1955
      %v1958 = vld [vmem:[%s7] sm:$0x1]
      %v1959 = vmul.f32 %v1950, %v1957
      %v1960 = vsub.f32 %v1958, %v1959
      %v1962 = vperm.slane %v1957, 0
      %v1964 = vmul.f32 %v1755, %v1962
      %v1965 = vmul.f32 %v1757, %v1962
      %v1966 = vmul.f32 %v1760, %v1962
      %v1967 = vmul.f32 %v1762, %v1962
      %v1968 = vmul.f32 %v1765, %v1962
      %v1969 = vmul.f32 %v1767, %v1962
      %v1970 = vmul.f32 %v1770, %v1962
      %v1971 = vmul.f32 %v1772, %v1962
      %v1972 = vmul.f32 %v1775, %v1962
      %v1973 = vmul.f32 %v1777, %v1962
      %v1974 = vmul.f32 %v1780, %v1962
      %v1975 = vmul.f32 %v1782, %v1962
      %v1976 = vmul.f32 %v1785, %v1962
      %v1978 = vperm.slane %v1960, 0
      %v1980 = vadd.f32 %v1964, %v1978
      %v1981 = vadd.f32 %v1965, %v1978
      %v1982 = vadd.f32 %v1966, %v1978
      %v1983 = vadd.f32 %v1967, %v1978
      %v1984 = vadd.f32 %v1968, %v1978
      %v1985 = vadd.f32 %v1969, %v1978
      %v1986 = vadd.f32 %v1970, %v1978
      %v1987 = vadd.f32 %v1971, %v1978
      %v1988 = vadd.f32 %v1972, %v1978
      %v1989 = vadd.f32 %v1973, %v1978
      %v1990 = vadd.f32 %v1974, %v1978
      %v1991 = vadd.f32 %v1975, %v1978
      %v1992 = vadd.f32 %v1976, %v1978
      %v1993 = vmul.f32 %v1980, 0.5
      %v1994 = vmul.f32 %v1981, 0.5
      %v1995 = vmul.f32 %v1982, 0.5
      %v1996 = vmul.f32 %v1983, 0.5
      %v1997 = vmul.f32 %v1984, 0.5
      %v1998 = vmul.f32 %v1985, 0.5
      %v1999 = vmul.f32 %v1986, 0.5
      %v2000 = vmul.f32 %v1987, 0.5
      %v2001 = vmul.f32 %v1988, 0.5
      %v2002 = vmul.f32 %v1989, 0.5
      %v2003 = vmul.f32 %v1990, 0.5
      %v2004 = vmul.f32 %v1991, 0.5
      %v2005 = vmul.f32 %v1992, 0.5
      %v2006 = vtanh.pop %v1993
      %v2007 = vtanh.pop %v1994
      %v2008 = vtanh.pop %v1995
      %v2009 = vtanh.pop %v1996
      %v2010 = vtanh.pop %v1997
      %v2011 = vtanh.pop %v1998
      %v2012 = vtanh.pop %v1999
      %v2013 = vtanh.pop %v2000
      %v2014 = vtanh.pop %v2001
      %v2015 = vtanh.pop %v2002
      %v2016 = vtanh.pop %v2003
      %v2017 = vtanh.pop %v2004
      %v2018 = vtanh.pop %v2005
      %v2019 = vmul.f32 %v2006, 0.5
      %v2020 = vmul.f32 %v2007, 0.5
      %v2021 = vmul.f32 %v2008, 0.5
      %v2022 = vmul.f32 %v2009, 0.5
      %v2023 = vmul.f32 %v2010, 0.5
      %v2024 = vmul.f32 %v2011, 0.5
      %v2025 = vmul.f32 %v2012, 0.5
      %v2026 = vmul.f32 %v2013, 0.5
      %v2027 = vmul.f32 %v2014, 0.5
      %v2028 = vmul.f32 %v2015, 0.5
      %v2029 = vmul.f32 %v2016, 0.5
      %v2030 = vmul.f32 %v2017, 0.5
      %v2031 = vmul.f32 %v2018, 0.5
      %v2032 = vadd.f32 %v2019, 0.5
      %v2033 = vadd.f32 %v2020, 0.5
      %v2034 = vadd.f32 %v2021, 0.5
      %v2035 = vadd.f32 %v2022, 0.5
      %v2036 = vadd.f32 %v2023, 0.5
      %v2037 = vadd.f32 %v2024, 0.5
      %v2038 = vadd.f32 %v2025, 0.5
      %v2039 = vadd.f32 %v2026, 0.5
      %v2040 = vadd.f32 %v2027, 0.5
      %v2041 = vadd.f32 %v2028, 0.5
      %v2042 = vadd.f32 %v2029, 0.5
      %v2043 = vadd.f32 %v2030, 0.5
      %v2044 = vadd.f32 %v2031, 0.5
      %v2045 = vmul.f32 %v1980, %v2032
      %v2046 = vmul.f32 %v1981, %v2033
      %v2047 = vmul.f32 %v1982, %v2034
      %v2048 = vmul.f32 %v1983, %v2035
      %v2049 = vmul.f32 %v1984, %v2036
      %v2050 = vmul.f32 %v1985, %v2037
      %v2051 = vmul.f32 %v1986, %v2038
      %v2052 = vmul.f32 %v1987, %v2039
      %v2053 = vmul.f32 %v1988, %v2040
      %v2054 = vmul.f32 %v1989, %v2041
      %v2055 = vmul.f32 %v1990, %v2042
      %v2056 = vmul.f32 %v1991, %v2043
      %v2057 = vmul.f32 %v1992, %v2044
      %v2058 = vpack.c.bf16 %v2045, %v2045
      %v2059 = vpack.c.bf16 %v2046, %v2046
      %v2060 = vpack.c.bf16 %v2047, %v2047
      %v2061 = vpack.c.bf16 %v2048, %v2048
      %v2062 = vpack.c.bf16 %v2049, %v2049
      %v2063 = vpack.c.bf16 %v2050, %v2050
      %v2064 = vpack.c.bf16 %v2051, %v2051
      %v2065 = vpack.c.bf16 %v2052, %v2052
      %v2066 = vpack.c.bf16 %v2053, %v2053
      %v2067 = vpack.c.bf16 %v2054, %v2054
      %v2068 = vpack.c.bf16 %v2055, %v2055
      %v2069 = vpack.c.bf16 %v2056, %v2056
      %v2070 = vpack.c.bf16 %v2057, %v2057
      %2071 = vst.msk [vmem:[%s325] sm:$0xf] %vm1812, %v2058
      %2072 = vst.msk [vmem:[%s325 + $0x4] sm:$0xf] %vm1812, %v2059
      %2073 = vst.msk [vmem:[%s325 + $0x8] sm:$0xf] %vm1812, %v2060
      %2074 = vst.msk [vmem:[%s325 + $0xc] sm:$0xf] %vm1812, %v2061
      %2075 = vst.msk [vmem:[%s325 + $0x10] sm:$0xf] %vm1812, %v2062
      %2076 = vst.msk [vmem:[%s325 + $0x14] sm:$0xf] %vm1812, %v2063
      %2077 = vst.msk [vmem:[%s325 + $0x18] sm:$0xf] %vm1812, %v2064
      %2078 = vst.msk [vmem:[%s325 + $0x1c] sm:$0xf] %vm1812, %v2065
      %2079 = vst.msk [vmem:[%s325 + $0x20] sm:$0xf] %vm1812, %v2066
      %2080 = vst.msk [vmem:[%s325 + $0x24] sm:$0xf] %vm1812, %v2067
      %2081 = vst.msk [vmem:[%s325 + $0x28] sm:$0xf] %vm1812, %v2068
      %2082 = vst.msk [vmem:[%s325 + $0x2c] sm:$0xf] %vm1812, %v2069
      %vm2083 = vcmask 254976
      %2084 = vst.msk [vmem:[%s325 + $0x30] sm:$0x3] %vm2083, %v2070
      %p2085 = scmp.lt.s32.totalorder %s19, 1
      %s2086 = scalar_select %p2085, %s19, 1
      %s2087 = smul.addr %s2086, 13
      %s2088 = smul.addr %s2087, 4
      %s2089 = scalar_lea.vmem %s8, %s2088
      // Predicated region
      $region53: #{scorenet_forward.14} parent=51 // pred_check
        %p2090 = pneg %p215
      $region54: #{scorenet_forward.14} parent=51 // pred_check_branch
        %2092 = sbr.rel (%p2090) target = $region56
      $region55: #{scorenet_forward.14} parent=51 // pred_region
        _
      $region56: #{scorenet_forward.14} parent=51 // pred_fallthru
        _
    $region52: #{scorenet_forward.14} parent=5 // pred_fallthru
      _
    %p2093 = scmp.le.s32.totalorder 2, %s14
    // Predicated region
    $region57: #{scorenet_forward.14} parent=5 // pred_check
      %p2094 = pneg %p2093
    $region58: #{scorenet_forward.14} parent=5 // pred_check_branch
      %2096 = sbr.rel (%p2094) target = $region60
    $region59: #{scorenet_forward.14} parent=5 // pred_region
      %s2097 = ssub.s32 %s14, 2
      // Predicated region
      $region61: #{scorenet_forward.14} parent=59 // pred_check
        %p2098 = pneg %p221
      $region62: #{scorenet_forward.14} parent=59 // pred_check_branch
        %2100 = sbr.rel (%p2098) target = $region64
      $region63: #{scorenet_forward.14} parent=59 // pred_region
        %p2101 = scmp.lt.s32.totalorder %s20, 1
        %s2102 = scalar_select %p2101, %s20, 1
        %s2103 = smul.addr %s2102, 13
        %s2104 = smul.addr %s2103, 4
        %s2105 = scalar_lea.vmem %s8, %s2104
      $region64: #{scorenet_forward.14} parent=59 // pred_fallthru
        _
    $region60: #{scorenet_forward.14} parent=5 // pred_fallthru
      _
  $region6: #{scorenet_forward.14} parent=0 // loop_footer
    %s18 = sadd.s32 1, %s14
  $region7: #{scorenet_forward.14} parent=0 // loop_footer_branch
    %13 = sbr.rel target = $region3
  $region8: #{scorenet_forward.14} parent=0 // loop_exit
    _

// kernel: scorenet_forward.13
$region0: #{scorenet_forward.13}
  #allocation0 [shape = 'u32[]', space=smem, size = 0x4, offset = 0x4, fixed_abs, tag = 'smem constant byte address 0x4 - core index']
  #allocation1 [shape = 'u32[72,128]{1,0:T(1,128)}', space=vmem, size = 0x9000, scoped, tag = 'internal scratch']
  %s0 = inlined_call_operand.vmem [shape: bf16[2,25,1152], index: 0, kind: input, shape index: {}]
  %s1 = inlined_call_operand.vmem [shape: bf16[1152,64], index: 1, kind: input, shape index: {}]
  %s2 = inlined_call_operand.vmem [shape: bf16[2,25,1152], index: 2, kind: input, shape index: {}]
  %s3 = inlined_call_operand.vmem [shape: bf16[1152,64], index: 3, kind: input, shape index: {}]
  %s4 = inlined_call_operand.vmem [shape: f32[128,64], index: 4, kind: input, shape index: {}]
  %s5 = inlined_call_operand.vmem [shape: f32[64,128], index: 5, kind: input, shape index: {}]
  %s6 = inlined_call_operand.vmem [shape: f32[1,64], index: 6, kind: input, shape index: {}]
  %s7 = inlined_call_operand.vmem [shape: f32[1,64], index: 7, kind: input, shape index: {}]
  %s8 = inlined_call_operand.vmem [shape: bf16[2,25,64], index: 8, kind: output, shape index: {}]
  %s9 = sld [smem:[#allocation0]]
  $region65: #{scorenet_forward.13} parent=0
    _
  %s11 = ssub.s32 1, %s9
  %s12 = scalar_select 0, %s11, %s9
  loop: start=0, step=1, limit=4
  $region2: #{scorenet_forward.13} parent=0 // loop_pre_header
    _
  $region3: #{scorenet_forward.13} parent=0 // loop_header
    %s14 = sphi 0, %s18
    %p15 = scmp.ge.s32.totalorder %s14, 4
    %s24 = sphi 0, %s26
    %s27 = sphi 0, %s24
    %s28 = sphi 0, %s27
    %s44 = sphi 0, %s28
    %s48 = sphi 0, %s48
    %s50 = sphi 0, %s48
    %s51 = sphi 0, %s50
    %s65 = sphi 0, %s51
    %s71 = sphi 0, %s73
    %s74 = sphi 0, %s71
    %s75 = sphi 0, %s74
    %s91 = sphi 0, %s75
    %s95 = sphi 0, %s95
    %s97 = sphi 0, %s95
    %s98 = sphi 0, %s97
    %s112 = sphi 0, %s98
    %s116 = sphi 0, %s116
    %s118 = sphi 0, %s116
    %s119 = sphi 0, %s118
    %s133 = sphi 0, %s119
    %s137 = sphi 0, %s137
    %s139 = sphi 0, %s137
    %s140 = sphi 0, %s139
    %s154 = sphi 0, %s140
    %s158 = sphi 0, %s158
    %s160 = sphi 0, %s158
    %s161 = sphi 0, %s160
    %s175 = sphi 0, %s161
    %s179 = sphi 0, %s179
    %s181 = sphi 0, %s179
    %s182 = sphi 0, %s181
    %s196 = sphi 0, %s182
    %s202 = sphi 0, %s204
    %s205 = sphi 0, %s202
    %s206 = sphi 0, %s205
    %s222 = sphi 0, %s206
  $region4: #{scorenet_forward.13} parent=0 // loop_header_branch
    %17 = sbr.rel (%p15) target = $region8
  $region5: #{scorenet_forward.13} parent=0 // loop_body
    %s19 = ssub.s32 %s14, 1
    %s20 = ssub.s32 %s14, 2
    %s21 = sadd.s32 %s14, 1
    %s22 = ssub.s32 %s14, %s21
    %p23 = scmp.eq.s32.totalorder %s22, 0
    %s25 = sadd.s32 %s24, 1
    %s26 = scalar_select %p23, %s24, %s25
    %p29 = pneg %p23
    %p30 = scmp.eq.s32.totalorder %s14, 1
    %p31 = por %p29, %p30
    %p32 = scmp.ne.s32.totalorder %s24, %s27
    %p33 = scmp.eq.s32.totalorder %s14, 0
    %p34 = por %p32, %p33
    %p35 = scmp.ne.s32.totalorder %s24, %s27
    %p36 = scmp.eq.s32.totalorder %s19, 1
    %p37 = por %p35, %p36
    %p38 = scmp.ne.s32.totalorder %s27, %s28
    %p39 = scmp.eq.s32.totalorder %s19, 0
    %p40 = por %p38, %p39
    %p41 = scmp.ne.s32.totalorder %s27, %s28
    %p42 = scmp.eq.s32.totalorder %s20, 1
    %p43 = por %p41, %p42
    %p45 = scmp.ne.s32.totalorder %s28, %s44
    %p46 = scmp.eq.s32.totalorder %s20, 0
    %p47 = por %p45, %p46
    %s49 = sadd.s32 %s48, 1
    %p52 = scmp.eq.s32.totalorder %s14, 1
    %p53 = scmp.ne.s32.totalorder %s48, %s50
    %p54 = scmp.eq.s32.totalorder %s14, 0
    %p55 = por %p53, %p54
    %p56 = scmp.ne.s32.totalorder %s48, %s50
    %p57 = scmp.eq.s32.totalorder %s19, 1
    %p58 = por %p56, %p57
    %p59 = scmp.ne.s32.totalorder %s50, %s51
    %p60 = scmp.eq.s32.totalorder %s19, 0
    %p61 = por %p59, %p60
    %p62 = scmp.ne.s32.totalorder %s50, %s51
    %p63 = scmp.eq.s32.totalorder %s20, 1
    %p64 = por %p62, %p63
    %p66 = scmp.ne.s32.totalorder %s51, %s65
    %p67 = scmp.eq.s32.totalorder %s20, 0
    %p68 = por %p66, %p67
    %s69 = ssub.s32 %s14, %s21
    %p70 = scmp.eq.s32.totalorder %s69, 0
    %s72 = sadd.s32 %s71, 1
    %s73 = scalar_select %p70, %s71, %s72
    %p76 = pneg %p70
    %p77 = scmp.eq.s32.totalorder %s14, 1
    %p78 = por %p76, %p77
    %p79 = scmp.ne.s32.totalorder %s71, %s74
    %p80 = scmp.eq.s32.totalorder %s14, 0
    %p81 = por %p79, %p80
    %p82 = scmp.ne.s32.totalorder %s71, %s74
    %p83 = scmp.eq.s32.totalorder %s19, 1
    %p84 = por %p82, %p83
    %p85 = scmp.ne.s32.totalorder %s74, %s75
    %p86 = scmp.eq.s32.totalorder %s19, 0
    %p87 = por %p85, %p86
    %p88 = scmp.ne.s32.totalorder %s74, %s75
    %p89 = scmp.eq.s32.totalorder %s20, 1
    %p90 = por %p88, %p89
    %p92 = scmp.ne.s32.totalorder %s75, %s91
    %p93 = scmp.eq.s32.totalorder %s20, 0
    %p94 = por %p92, %p93
    %s96 = sadd.s32 %s95, 1
    %p99 = scmp.eq.s32.totalorder %s14, 1
    %p100 = scmp.ne.s32.totalorder %s95, %s97
    %p101 = scmp.eq.s32.totalorder %s14, 0
    %p102 = por %p100, %p101
    %p103 = scmp.ne.s32.totalorder %s95, %s97
    %p104 = scmp.eq.s32.totalorder %s19, 1
    %p105 = por %p103, %p104
    %p106 = scmp.ne.s32.totalorder %s97, %s98
    %p107 = scmp.eq.s32.totalorder %s19, 0
    %p108 = por %p106, %p107
    %p109 = scmp.ne.s32.totalorder %s97, %s98
    %p110 = scmp.eq.s32.totalorder %s20, 1
    %p111 = por %p109, %p110
    %p113 = scmp.ne.s32.totalorder %s98, %s112
    %p114 = scmp.eq.s32.totalorder %s20, 0
    %p115 = por %p113, %p114
    %s117 = sadd.s32 %s116, 1
    %p120 = scmp.eq.s32.totalorder %s14, 1
    %p121 = scmp.ne.s32.totalorder %s116, %s118
    %p122 = scmp.eq.s32.totalorder %s14, 0
    %p123 = por %p121, %p122
    %p124 = scmp.ne.s32.totalorder %s116, %s118
    %p125 = scmp.eq.s32.totalorder %s19, 1
    %p126 = por %p124, %p125
    %p127 = scmp.ne.s32.totalorder %s118, %s119
    %p128 = scmp.eq.s32.totalorder %s19, 0
    %p129 = por %p127, %p128
    %p130 = scmp.ne.s32.totalorder %s118, %s119
    %p131 = scmp.eq.s32.totalorder %s20, 1
    %p132 = por %p130, %p131
    %p134 = scmp.ne.s32.totalorder %s119, %s133
    %p135 = scmp.eq.s32.totalorder %s20, 0
    %p136 = por %p134, %p135
    %s138 = sadd.s32 %s137, 1
    %p141 = scmp.eq.s32.totalorder %s14, 1
    %p142 = scmp.ne.s32.totalorder %s137, %s139
    %p143 = scmp.eq.s32.totalorder %s14, 0
    %p144 = por %p142, %p143
    %p145 = scmp.ne.s32.totalorder %s137, %s139
    %p146 = scmp.eq.s32.totalorder %s19, 1
    %p147 = por %p145, %p146
    %p148 = scmp.ne.s32.totalorder %s139, %s140
    %p149 = scmp.eq.s32.totalorder %s19, 0
    %p150 = por %p148, %p149
    %p151 = scmp.ne.s32.totalorder %s139, %s140
    %p152 = scmp.eq.s32.totalorder %s20, 1
    %p153 = por %p151, %p152
    %p155 = scmp.ne.s32.totalorder %s140, %s154
    %p156 = scmp.eq.s32.totalorder %s20, 0
    %p157 = por %p155, %p156
    %s159 = sadd.s32 %s158, 1
    %p162 = scmp.eq.s32.totalorder %s14, 1
    %p163 = scmp.ne.s32.totalorder %s158, %s160
    %p164 = scmp.eq.s32.totalorder %s14, 0
    %p165 = por %p163, %p164
    %p166 = scmp.ne.s32.totalorder %s158, %s160
    %p167 = scmp.eq.s32.totalorder %s19, 1
    %p168 = por %p166, %p167
    %p169 = scmp.ne.s32.totalorder %s160, %s161
    %p170 = scmp.eq.s32.totalorder %s19, 0
    %p171 = por %p169, %p170
    %p172 = scmp.ne.s32.totalorder %s160, %s161
    %p173 = scmp.eq.s32.totalorder %s20, 1
    %p174 = por %p172, %p173
    %p176 = scmp.ne.s32.totalorder %s161, %s175
    %p177 = scmp.eq.s32.totalorder %s20, 0
    %p178 = por %p176, %p177
    %s180 = sadd.s32 %s179, 1
    %p183 = scmp.eq.s32.totalorder %s14, 1
    %p184 = scmp.ne.s32.totalorder %s179, %s181
    %p185 = scmp.eq.s32.totalorder %s14, 0
    %p186 = por %p184, %p185
    %p187 = scmp.ne.s32.totalorder %s179, %s181
    %p188 = scmp.eq.s32.totalorder %s19, 1
    %p189 = por %p187, %p188
    %p190 = scmp.ne.s32.totalorder %s181, %s182
    %p191 = scmp.eq.s32.totalorder %s19, 0
    %p192 = por %p190, %p191
    %p193 = scmp.ne.s32.totalorder %s181, %s182
    %p194 = scmp.eq.s32.totalorder %s20, 1
    %p195 = por %p193, %p194
    %p197 = scmp.ne.s32.totalorder %s182, %s196
    %p198 = scmp.eq.s32.totalorder %s20, 0
    %p199 = por %p197, %p198
    %s200 = ssub.s32 %s14, %s21
    %p201 = scmp.eq.s32.totalorder %s200, 0
    %s203 = sadd.s32 %s202, 1
    %s204 = scalar_select %p201, %s202, %s203
    %p207 = pneg %p201
    %p208 = scmp.eq.s32.totalorder %s14, 1
    %p209 = por %p207, %p208
    %p210 = scmp.ne.s32.totalorder %s202, %s205
    %p211 = scmp.eq.s32.totalorder %s14, 0
    %p212 = por %p210, %p211
    %p213 = scmp.ne.s32.totalorder %s202, %s205
    %p214 = scmp.eq.s32.totalorder %s19, 1
    %p215 = por %p213, %p214
    %p216 = scmp.ne.s32.totalorder %s205, %s206
    %p217 = scmp.eq.s32.totalorder %s19, 0
    %p218 = por %p216, %p217
    %p219 = scmp.ne.s32.totalorder %s205, %s206
    %p220 = scmp.eq.s32.totalorder %s20, 1
    %p221 = por %p219, %p220
    %p223 = scmp.ne.s32.totalorder %s206, %s222
    %p224 = scmp.eq.s32.totalorder %s20, 0
    %p225 = por %p223, %p224
    %p226 = scmp.le.s32.totalorder 1, %s14
    %p227 = scmp.lt.s32.totalorder %s14, 3
    %p228 = pnand %p226, %p227
    %p229 = pneg %p228
    // Predicated region
    $region9: #{scorenet_forward.13} parent=5 // pred_check
      _
    $region10: #{scorenet_forward.13} parent=5 // pred_check_branch
      %231 = sbr.rel (%p228) target = $region12
    $region11: #{scorenet_forward.13} parent=5 // pred_region
      %s232 = ssub.s32 %s14, 1
      // Predicated region
      $region13: #{scorenet_forward.13} parent=11 // pred_check
        %p233 = pneg %p61
      $region14: #{scorenet_forward.13} parent=11 // pred_check_branch
        %235 = sbr.rel (%p233) target = $region16
      $region15: #{scorenet_forward.13} parent=11 // pred_region
        _
      $region16: #{scorenet_forward.13} parent=11 // pred_fallthru
        _
      // Predicated region
      $region17: #{scorenet_forward.13} parent=11 // pred_check
        %p236 = pneg %p108
      $region18: #{scorenet_forward.13} parent=11 // pred_check_branch
        %238 = sbr.rel (%p236) target = $region20
      $region19: #{scorenet_forward.13} parent=11 // pred_region
        _
      $region20: #{scorenet_forward.13} parent=11 // pred_fallthru
        _
      // Predicated region
      $region21: #{scorenet_forward.13} parent=11 // pred_check
        %p239 = pneg %p129
      $region22: #{scorenet_forward.13} parent=11 // pred_check_branch
        %241 = sbr.rel (%p239) target = $region24
      $region23: #{scorenet_forward.13} parent=11 // pred_region
        _
      $region24: #{scorenet_forward.13} parent=11 // pred_fallthru
        _
      // Predicated region
      $region25: #{scorenet_forward.13} parent=11 // pred_check
        %p242 = pneg %p150
      $region26: #{scorenet_forward.13} parent=11 // pred_check_branch
        %244 = sbr.rel (%p242) target = $region28
      $region27: #{scorenet_forward.13} parent=11 // pred_region
        _
      $region28: #{scorenet_forward.13} parent=11 // pred_fallthru
        _
      // Predicated region
      $region29: #{scorenet_forward.13} parent=11 // pred_check
        %p245 = pneg %p171
      $region30: #{scorenet_forward.13} parent=11 // pred_check_branch
        %247 = sbr.rel (%p245) target = $region32
      $region31: #{scorenet_forward.13} parent=11 // pred_region
        _
      $region32: #{scorenet_forward.13} parent=11 // pred_fallthru
        _
      // Predicated region
      $region33: #{scorenet_forward.13} parent=11 // pred_check
        %p248 = pneg %p192
      $region34: #{scorenet_forward.13} parent=11 // pred_check_branch
        %250 = sbr.rel (%p248) target = $region36
      $region35: #{scorenet_forward.13} parent=11 // pred_region
        _
      $region36: #{scorenet_forward.13} parent=11 // pred_fallthru
        _
    $region12: #{scorenet_forward.13} parent=5 // pred_fallthru
      _
    %p251 = scmp.lt.s32.totalorder %s14, 2
    // Predicated region
    $region37: #{scorenet_forward.13} parent=5 // pred_check
      %p252 = pneg %p251
    $region38: #{scorenet_forward.13} parent=5 // pred_check_branch
      %254 = sbr.rel (%p252) target = $region40
    $region39: #{scorenet_forward.13} parent=5 // pred_region
      // Predicated region
      $region41: #{scorenet_forward.13} parent=39 // pred_check
        %p255 = pneg %p34
      $region42: #{scorenet_forward.13} parent=39 // pred_check_branch
        %257 = sbr.rel (%p255) target = $region44
      $region43: #{scorenet_forward.13} parent=39 // pred_region
        %p258 = scmp.lt.s32.totalorder %s14, 1
        %s259 = scalar_select %p258, %s14, 1
        %s260 = smul.addr %s259, 36
        %s261 = smul.addr %s260, 4
        %s262 = scalar_lea.vmem %s0, %s261
      $region44: #{scorenet_forward.13} parent=39 // pred_fallthru
        _
      // Predicated region
      $region45: #{scorenet_forward.13} parent=39 // pred_check
        %p263 = pneg %p81
      $region46: #{scorenet_forward.13} parent=39 // pred_check_branch
        %265 = sbr.rel (%p263) target = $region48
      $region47: #{scorenet_forward.13} parent=39 // pred_region
        %p266 = scmp.lt.s32.totalorder %s14, 1
        %s267 = scalar_select %p266, %s14, 1
        %s268 = smul.addr %s267, 36
        %s269 = smul.addr %s268, 4
        %s270 = scalar_lea.vmem %s2, %s269
      $region48: #{scorenet_forward.13} parent=39 // pred_fallthru
        _
    $region40: #{scorenet_forward.13} parent=5 // pred_fallthru
      _
    %p271 = scmp.le.s32.totalorder 1, %s14
    %p272 = scmp.lt.s32.totalorder %s14, 3
    %p273 = pnand %p271, %p272
    %p274 = pneg %p273
    // Predicated region
    $region49: #{scorenet_forward.13} parent=5 // pred_check
      _
    $region50: #{scorenet_forward.13} parent=5 // pred_check_branch
      %276 = sbr.rel (%p273) target = $region52
    $region51: #{scorenet_forward.13} parent=5 // pred_region
      %s277 = ssub.s32 %s14, 1
      %p278 = scmp.lt.s32.totalorder %s19, 1
      %s279 = scalar_select %p278, %s19, 1
      %s280 = smul.addr %s279, 36
      %s281 = smul.addr %s280, 4
      %s282 = scalar_lea.vmem %s0, %s281
      %p283 = pneg %p40
      %p284 = pneg %p37
      %p285 = pneg %p61
      %p286 = pneg %p58
      %p287 = scmp.lt.s32.totalorder %s19, 1
      %s288 = scalar_select %p287, %s19, 1
      %s289 = smul.addr %s288, 36
      %s290 = smul.addr %s289, 4
      %s291 = scalar_lea.vmem %s2, %s290
      %p292 = pneg %p87
      %p293 = pneg %p84
      %p294 = pneg %p108
      %p295 = pneg %p105
      %p296 = pneg %p129
      %p297 = pneg %p126
      %p298 = pneg %p150
      %p299 = pneg %p147
      %p300 = pneg %p171
      %p301 = pneg %p168
      %p302 = pneg %p192
      %p303 = pneg %p189
      %p304 = pneg %p218
      %p305 = pneg %p215
      %p306 = scmp.lt.s32.totalorder %s19, 1
      %s307 = scalar_select %p306, %s19, 1
      %s308 = smul.addr %s307, 4
      %s309 = smul.addr %s308, 4
      %s310 = scalar_lea.vmem %s8, %s309
      %p311 = scmp.lt.s32.totalorder %s19, 1
      %s312 = scalar_select %p311, %s19, 1
      %s313 = smul.addr %s312, 36
      %s314 = smul.addr %s313, 4
      %s315 = scalar_lea.vmem %s0, %s314
      %p316 = scmp.lt.s32.totalorder %s19, 1
      %s317 = scalar_select %p316, %s19, 1
      %s318 = smul.addr %s317, 36
      %s319 = smul.addr %s318, 4
      %s320 = scalar_lea.vmem %s2, %s319
      %p321 = scmp.lt.s32.totalorder %s19, 1
      %s322 = scalar_select %p321, %s19, 1
      %s323 = smul.addr %s322, 4
      %s324 = smul.addr %s323, 4
      %s325 = scalar_lea.vmem %s8, %s324
      %v326 = vld [vmem:[%s315] sm:$0xff]
      %v327 = vld [vmem:[%s315 + $0x8] sm:$0xff]
      %v328 = vld [vmem:[%s315 + $0x10] sm:$0xff]
      %v329 = vld [vmem:[%s315 + $0x18] sm:$0xff]
      %v330 = vld [vmem:[%s315 + $0x20] sm:$0xf]
      %v331 = vld [vmem:[%s315 + $0x24] sm:$0xff]
      %v332 = vld [vmem:[%s315 + $0x2c] sm:$0xff]
      %v333 = vld [vmem:[%s315 + $0x34] sm:$0xff]
      %v334 = vld [vmem:[%s315 + $0x3c] sm:$0xff]
      %v335 = vld [vmem:[%s315 + $0x44] sm:$0xf]
      %v336 = vld [vmem:[%s315 + $0x48] sm:$0xff]
      %v337 = vld [vmem:[%s315 + $0x50] sm:$0xff]
      %v338 = vld [vmem:[%s315 + $0x58] sm:$0xff]
      %v339 = vld [vmem:[%s315 + $0x60] sm:$0xff]
      %v340 = vld [vmem:[%s315 + $0x68] sm:$0xf]
      %v341 = vld [vmem:[%s315 + $0x6c] sm:$0x11]
      %v342 = vld [vmem:[%s315 + $0x74] sm:$0x11]
      %v343 = vld [vmem:[%s315 + $0x7c] sm:$0x11]
      %v344 = vld [vmem:[%s315 + $0x84] sm:$0x11]
      %v345 = vld [vmem:[%s315 + $0x8c] sm:$0x1]
      %v346 = vld [vmem:[%s1] sm:$0xf]
      %v347 = vld [vmem:[%s1 + $0x4] sm:$0xf]
      %v348 = vld [vmem:[%s1 + $0x8] sm:$0xf]
      %v349 = vld [vmem:[%s1 + $0xc] sm:$0xf]
      %v350 = vld [vmem:[%s1 + $0x10] sm:$0xf]
      %v351 = vld [vmem:[%s1 + $0x14] sm:$0xf]
      %v352 = vld [vmem:[%s1 + $0x18] sm:$0xf]
      %v353 = vld [vmem:[%s1 + $0x1c] sm:$0xf]
      %v354 = vld [vmem:[%s1 + $0x20] sm:$0xf]
      %v355 = vld [vmem:[%s1 + $0x24] sm:$0xf]
      %v356 = vld [vmem:[%s1 + $0x28] sm:$0xf]
      %v357 = vld [vmem:[%s1 + $0x2c] sm:$0xf]
      %v358 = vld [vmem:[%s1 + $0x30] sm:$0xf]
      %v359 = vld [vmem:[%s1 + $0x34] sm:$0xf]
      %v360 = vld [vmem:[%s1 + $0x38] sm:$0xf]
      %v361 = vld [vmem:[%s1 + $0x3c] sm:$0xf]
      %v362 = vld [vmem:[%s1 + $0x40] sm:$0xf]
      %v363 = vld [vmem:[%s1 + $0x44] sm:$0xf]
      %v364 = vld [vmem:[%s1 + $0x48] sm:$0xf]
      %v365 = vld [vmem:[%s1 + $0x4c] sm:$0xf]
      %v366 = vld [vmem:[%s1 + $0x50] sm:$0xf]
      %v367 = vld [vmem:[%s1 + $0x54] sm:$0xf]
      %v368 = vld [vmem:[%s1 + $0x58] sm:$0xf]
      %v369 = vld [vmem:[%s1 + $0x5c] sm:$0xf]
      %v370 = vld [vmem:[%s1 + $0x60] sm:$0xf]
      %v371 = vld [vmem:[%s1 + $0x64] sm:$0xf]
      %v372 = vld [vmem:[%s1 + $0x68] sm:$0xf]
      %v373 = vld [vmem:[%s1 + $0x6c] sm:$0xf]
      %v374 = vld [vmem:[%s1 + $0x70] sm:$0xf]
      %v375 = vld [vmem:[%s1 + $0x74] sm:$0xf]
      %v376 = vld [vmem:[%s1 + $0x78] sm:$0xf]
      %v377 = vld [vmem:[%s1 + $0x7c] sm:$0xf]
      %v378 = vld [vmem:[%s1 + $0x80] sm:$0xf]
      %v379 = vld [vmem:[%s1 + $0x84] sm:$0xf]
      %v380 = vld [vmem:[%s1 + $0x88] sm:$0xf]
      %v381 = vld [vmem:[%s1 + $0x8c] sm:$0xf]
      %v382 = vld [vmem:[%s1 + $0x90] sm:$0xf]
      %v383 = vld [vmem:[%s1 + $0x94] sm:$0xf]
      %v384 = vld [vmem:[%s1 + $0x98] sm:$0xf]
      %v385 = vld [vmem:[%s1 + $0x9c] sm:$0xf]
      %v386 = vld [vmem:[%s1 + $0xa0] sm:$0xf]
      %v387 = vld [vmem:[%s1 + $0xa4] sm:$0xf]
      %v388 = vld [vmem:[%s1 + $0xa8] sm:$0xf]
      %v389 = vld [vmem:[%s1 + $0xac] sm:$0xf]
      %v390 = vld [vmem:[%s1 + $0xb0] sm:$0xf]
      %v391 = vld [vmem:[%s1 + $0xb4] sm:$0xf]
      %v392 = vld [vmem:[%s1 + $0xb8] sm:$0xf]
      %v393 = vld [vmem:[%s1 + $0xbc] sm:$0xf]
      %v394 = vld [vmem:[%s1 + $0xc0] sm:$0xf]
      %v395 = vld [vmem:[%s1 + $0xc4] sm:$0xf]
      %v396 = vld [vmem:[%s1 + $0xc8] sm:$0xf]
      %v397 = vld [vmem:[%s1 + $0xcc] sm:$0xf]
      %v398 = vld [vmem:[%s1 + $0xd0] sm:$0xf]
      %v399 = vld [vmem:[%s1 + $0xd4] sm:$0xf]
      %v400 = vld [vmem:[%s1 + $0xd8] sm:$0xf]
      %v401 = vld [vmem:[%s1 + $0xdc] sm:$0xf]
      %v402 = vld [vmem:[%s1 + $0xe0] sm:$0xf]
      %v403 = vld [vmem:[%s1 + $0xe4] sm:$0xf]
      %v404 = vld [vmem:[%s1 + $0xe8] sm:$0xf]
      %v405 = vld [vmem:[%s1 + $0xec] sm:$0xf]
      %v406 = vld [vmem:[%s1 + $0xf0] sm:$0xf]
      %v407 = vld [vmem:[%s1 + $0xf4] sm:$0xf]
      %v408 = vld [vmem:[%s1 + $0xf8] sm:$0xf]
      %v409 = vld [vmem:[%s1 + $0xfc] sm:$0xf]
      %v410 = vld [vmem:[%s1 + $0x100] sm:$0xf]
      %v411 = vld [vmem:[%s1 + $0x104] sm:$0xf]
      %v412 = vld [vmem:[%s1 + $0x108] sm:$0xf]
      %v413 = vld [vmem:[%s1 + $0x10c] sm:$0xf]
      %v414 = vld [vmem:[%s1 + $0x110] sm:$0xf]
      %v415 = vld [vmem:[%s1 + $0x114] sm:$0xf]
      %v416 = vld [vmem:[%s1 + $0x118] sm:$0xf]
      %v417 = vld [vmem:[%s1 + $0x11c] sm:$0xf]
      %v418 = vld [vmem:[%s1 + $0x120] sm:$0xf]
      %v419 = vld [vmem:[%s1 + $0x124] sm:$0xf]
      %v420 = vld [vmem:[%s1 + $0x128] sm:$0xf]
      %v421 = vld [vmem:[%s1 + $0x12c] sm:$0xf]
      %v422 = vld [vmem:[%s1 + $0x130] sm:$0xf]
      %v423 = vld [vmem:[%s1 + $0x134] sm:$0xf]
      %v424 = vld [vmem:[%s1 + $0x138] sm:$0xf]
      %v425 = vld [vmem:[%s1 + $0x13c] sm:$0xf]
      %v426 = vld [vmem:[%s1 + $0x140] sm:$0xf]
      %v427 = vld [vmem:[%s1 + $0x144] sm:$0xf]
      %v428 = vld [vmem:[%s1 + $0x148] sm:$0xf]
      %v429 = vld [vmem:[%s1 + $0x14c] sm:$0xf]
      %v430 = vld [vmem:[%s1 + $0x150] sm:$0xf]
      %v431 = vld [vmem:[%s1 + $0x154] sm:$0xf]
      %v432 = vld [vmem:[%s1 + $0x158] sm:$0xf]
      %v433 = vld [vmem:[%s1 + $0x15c] sm:$0xf]
      %v434 = vld [vmem:[%s1 + $0x160] sm:$0xf]
      %v435 = vld [vmem:[%s1 + $0x164] sm:$0xf]
      %v436 = vld [vmem:[%s1 + $0x168] sm:$0xf]
      %v437 = vld [vmem:[%s1 + $0x16c] sm:$0xf]
      %v438 = vld [vmem:[%s1 + $0x170] sm:$0xf]
      %v439 = vld [vmem:[%s1 + $0x174] sm:$0xf]
      %v440 = vld [vmem:[%s1 + $0x178] sm:$0xf]
      %v441 = vld [vmem:[%s1 + $0x17c] sm:$0xf]
      %v442 = vld [vmem:[%s1 + $0x180] sm:$0xf]
      %v443 = vld [vmem:[%s1 + $0x184] sm:$0xf]
      %v444 = vld [vmem:[%s1 + $0x188] sm:$0xf]
      %v445 = vld [vmem:[%s1 + $0x18c] sm:$0xf]
      %v446 = vld [vmem:[%s1 + $0x190] sm:$0xf]
      %v447 = vld [vmem:[%s1 + $0x194] sm:$0xf]
      %v448 = vld [vmem:[%s1 + $0x198] sm:$0xf]
      %v449 = vld [vmem:[%s1 + $0x19c] sm:$0xf]
      %v450 = vld [vmem:[%s1 + $0x1a0] sm:$0xf]
      %v451 = vld [vmem:[%s1 + $0x1a4] sm:$0xf]
      %v452 = vld [vmem:[%s1 + $0x1a8] sm:$0xf]
      %v453 = vld [vmem:[%s1 + $0x1ac] sm:$0xf]
      %v454 = vld [vmem:[%s1 + $0x1b0] sm:$0xf]
      %v455 = vld [vmem:[%s1 + $0x1b4] sm:$0xf]
      %v456 = vld [vmem:[%s1 + $0x1b8] sm:$0xf]
      %v457 = vld [vmem:[%s1 + $0x1bc] sm:$0xf]
      %v458 = vld [vmem:[%s1 + $0x1c0] sm:$0xf]
      %v459 = vld [vmem:[%s1 + $0x1c4] sm:$0xf]
      %v460 = vld [vmem:[%s1 + $0x1c8] sm:$0xf]
      %v461 = vld [vmem:[%s1 + $0x1cc] sm:$0xf]
      %v462 = vld [vmem:[%s1 + $0x1d0] sm:$0xf]
      %v463 = vld [vmem:[%s1 + $0x1d4] sm:$0xf]
      %v464 = vld [vmem:[%s1 + $0x1d8] sm:$0xf]
      %v465 = vld [vmem:[%s1 + $0x1dc] sm:$0xf]
      %v466 = vld [vmem:[%s1 + $0x1e0] sm:$0xf]
      %v467 = vld [vmem:[%s1 + $0x1e4] sm:$0xf]
      %v468 = vld [vmem:[%s1 + $0x1e8] sm:$0xf]
      %v469 = vld [vmem:[%s1 + $0x1ec] sm:$0xf]
      %v470 = vld [vmem:[%s1 + $0x1f0] sm:$0xf]
      %v471 = vld [vmem:[%s1 + $0x1f4] sm:$0xf]
      %v472 = vld [vmem:[%s1 + $0x1f8] sm:$0xf]
      %v473 = vld [vmem:[%s1 + $0x1fc] sm:$0xf]
      %v474 = vld [vmem:[%s1 + $0x200] sm:$0xf]
      %v475 = vld [vmem:[%s1 + $0x204] sm:$0xf]
      %v476 = vld [vmem:[%s1 + $0x208] sm:$0xf]
      %v477 = vld [vmem:[%s1 + $0x20c] sm:$0xf]
      %v478 = vld [vmem:[%s1 + $0x210] sm:$0xf]
      %v479 = vld [vmem:[%s1 + $0x214] sm:$0xf]
      %v480 = vld [vmem:[%s1 + $0x218] sm:$0xf]
      %v481 = vld [vmem:[%s1 + $0x21c] sm:$0xf]
      %v482 = vld [vmem:[%s1 + $0x220] sm:$0xf]
      %v483 = vld [vmem:[%s1 + $0x224] sm:$0xf]
      %v484 = vld [vmem:[%s1 + $0x228] sm:$0xf]
      %v485 = vld [vmem:[%s1 + $0x22c] sm:$0xf]
      %v486 = vld [vmem:[%s1 + $0x230] sm:$0xf]
      %v487 = vld [vmem:[%s1 + $0x234] sm:$0xf]
      %v488 = vld [vmem:[%s1 + $0x238] sm:$0xf]
      %v489 = vld [vmem:[%s1 + $0x23c] sm:$0xf]
      %v490 = vld [vmem:[%s320] sm:$0xff]
      %v491 = vld [vmem:[%s320 + $0x8] sm:$0xff]
      %v492 = vld [vmem:[%s320 + $0x10] sm:$0xff]
      %v493 = vld [vmem:[%s320 + $0x18] sm:$0xff]
      %v494 = vld [vmem:[%s320 + $0x20] sm:$0xf]
      %v495 = vld [vmem:[%s320 + $0x24] sm:$0xff]
      %v496 = vld [vmem:[%s320 + $0x2c] sm:$0xff]
      %v497 = vld [vmem:[%s320 + $0x34] sm:$0xff]
      %v498 = vld [vmem:[%s320 + $0x3c] sm:$0xff]
      %v499 = vld [vmem:[%s320 + $0x44] sm:$0xf]
      %v500 = vld [vmem:[%s320 + $0x48] sm:$0xff]
      %v501 = vld [vmem:[%s320 + $0x50] sm:$0xff]
      %v502 = vld [vmem:[%s320 + $0x58] sm:$0xff]
      %v503 = vld [vmem:[%s320 + $0x60] sm:$0xff]
      %v504 = vld [vmem:[%s320 + $0x68] sm:$0xf]
      %v505 = vld [vmem:[%s320 + $0x6c] sm:$0x11]
      %v506 = vld [vmem:[%s320 + $0x74] sm:$0x11]
      %v507 = vld [vmem:[%s320 + $0x7c] sm:$0x11]
      %v508 = vld [vmem:[%s320 + $0x84] sm:$0x11]
      %v509 = vld [vmem:[%s320 + $0x8c] sm:$0x1]
      %v510 = vld [vmem:[%s3] sm:$0xf]
      %v511 = vld [vmem:[%s3 + $0x4] sm:$0xf]
      %v512 = vld [vmem:[%s3 + $0x8] sm:$0xf]
      %v513 = vld [vmem:[%s3 + $0xc] sm:$0xf]
      %v514 = vld [vmem:[%s3 + $0x10] sm:$0xf]
      %v515 = vld [vmem:[%s3 + $0x14] sm:$0xf]
      %v516 = vld [vmem:[%s3 + $0x18] sm:$0xf]
      %v517 = vld [vmem:[%s3 + $0x1c] sm:$0xf]
      %v518 = vld [vmem:[%s3 + $0x20] sm:$0xf]
      %v519 = vld [vmem:[%s3 + $0x24] sm:$0xf]
      %v520 = vld [vmem:[%s3 + $0x28] sm:$0xf]
      %v521 = vld [vmem:[%s3 + $0x2c] sm:$0xf]
      %v522 = vld [vmem:[%s3 + $0x30] sm:$0xf]
      %v523 = vld [vmem:[%s3 + $0x34] sm:$0xf]
      %v524 = vld [vmem:[%s3 + $0x38] sm:$0xf]
      %v525 = vld [vmem:[%s3 + $0x3c] sm:$0xf]
      %v526 = vld [vmem:[%s3 + $0x40] sm:$0xf]
      %v527 = vld [vmem:[%s3 + $0x44] sm:$0xf]
      %v528 = vld [vmem:[%s3 + $0x48] sm:$0xf]
      %v529 = vld [vmem:[%s3 + $0x4c] sm:$0xf]
      %v530 = vld [vmem:[%s3 + $0x50] sm:$0xf]
      %v531 = vld [vmem:[%s3 + $0x54] sm:$0xf]
      %v532 = vld [vmem:[%s3 + $0x58] sm:$0xf]
      %v533 = vld [vmem:[%s3 + $0x5c] sm:$0xf]
      %v534 = vld [vmem:[%s3 + $0x60] sm:$0xf]
      %v535 = vld [vmem:[%s3 + $0x64] sm:$0xf]
      %v536 = vld [vmem:[%s3 + $0x68] sm:$0xf]
      %v537 = vld [vmem:[%s3 + $0x6c] sm:$0xf]
      %v538 = vld [vmem:[%s3 + $0x70] sm:$0xf]
      %v539 = vld [vmem:[%s3 + $0x74] sm:$0xf]
      %v540 = vld [vmem:[%s3 + $0x78] sm:$0xf]
      %v541 = vld [vmem:[%s3 + $0x7c] sm:$0xf]
      %v542 = vld [vmem:[%s3 + $0x80] sm:$0xf]
      %v543 = vld [vmem:[%s3 + $0x84] sm:$0xf]
      %v544 = vld [vmem:[%s3 + $0x88] sm:$0xf]
      %v545 = vld [vmem:[%s3 + $0x8c] sm:$0xf]
      %v546 = vld [vmem:[%s3 + $0x90] sm:$0xf]
      %v547 = vld [vmem:[%s3 + $0x94] sm:$0xf]
      %v548 = vld [vmem:[%s3 + $0x98] sm:$0xf]
      %v549 = vld [vmem:[%s3 + $0x9c] sm:$0xf]
      %v550 = vld [vmem:[%s3 + $0xa0] sm:$0xf]
      %v551 = vld [vmem:[%s3 + $0xa4] sm:$0xf]
      %v552 = vld [vmem:[%s3 + $0xa8] sm:$0xf]
      %v553 = vld [vmem:[%s3 + $0xac] sm:$0xf]
      %v554 = vld [vmem:[%s3 + $0xb0] sm:$0xf]
      %v555 = vld [vmem:[%s3 + $0xb4] sm:$0xf]
      %v556 = vld [vmem:[%s3 + $0xb8] sm:$0xf]
      %v557 = vld [vmem:[%s3 + $0xbc] sm:$0xf]
      %v558 = vld [vmem:[%s3 + $0xc0] sm:$0xf]
      %v559 = vld [vmem:[%s3 + $0xc4] sm:$0xf]
      %v560 = vld [vmem:[%s3 + $0xc8] sm:$0xf]
      %v561 = vld [vmem:[%s3 + $0xcc] sm:$0xf]
      %v562 = vld [vmem:[%s3 + $0xd0] sm:$0xf]
      %v563 = vld [vmem:[%s3 + $0xd4] sm:$0xf]
      %v564 = vld [vmem:[%s3 + $0xd8] sm:$0xf]
      %v565 = vld [vmem:[%s3 + $0xdc] sm:$0xf]
      %v566 = vld [vmem:[%s3 + $0xe0] sm:$0xf]
      %v567 = vld [vmem:[%s3 + $0xe4] sm:$0xf]
      %v568 = vld [vmem:[%s3 + $0xe8] sm:$0xf]
      %v569 = vld [vmem:[%s3 + $0xec] sm:$0xf]
      %v570 = vld [vmem:[%s3 + $0xf0] sm:$0xf]
      %v571 = vld [vmem:[%s3 + $0xf4] sm:$0xf]
      %v572 = vld [vmem:[%s3 + $0xf8] sm:$0xf]
      %v573 = vld [vmem:[%s3 + $0xfc] sm:$0xf]
      %v574 = vld [vmem:[%s3 + $0x100] sm:$0xf]
      %v575 = vld [vmem:[%s3 + $0x104] sm:$0xf]
      %v576 = vld [vmem:[%s3 + $0x108] sm:$0xf]
      %v577 = vld [vmem:[%s3 + $0x10c] sm:$0xf]
      %v578 = vld [vmem:[%s3 + $0x110] sm:$0xf]
      %v579 = vld [vmem:[%s3 + $0x114] sm:$0xf]
      %v580 = vld [vmem:[%s3 + $0x118] sm:$0xf]
      %v581 = vld [vmem:[%s3 + $0x11c] sm:$0xf]
      %v582 = vld [vmem:[%s3 + $0x120] sm:$0xf]
      %v583 = vld [vmem:[%s3 + $0x124] sm:$0xf]
      %v584 = vld [vmem:[%s3 + $0x128] sm:$0xf]
      %v585 = vld [vmem:[%s3 + $0x12c] sm:$0xf]
      %v586 = vld [vmem:[%s3 + $0x130] sm:$0xf]
      %v587 = vld [vmem:[%s3 + $0x134] sm:$0xf]
      %v588 = vld [vmem:[%s3 + $0x138] sm:$0xf]
      %v589 = vld [vmem:[%s3 + $0x13c] sm:$0xf]
      %v590 = vld [vmem:[%s3 + $0x140] sm:$0xf]
      %v591 = vld [vmem:[%s3 + $0x144] sm:$0xf]
      %v592 = vld [vmem:[%s3 + $0x148] sm:$0xf]
      %v593 = vld [vmem:[%s3 + $0x14c] sm:$0xf]
      %v594 = vld [vmem:[%s3 + $0x150] sm:$0xf]
      %v595 = vld [vmem:[%s3 + $0x154] sm:$0xf]
      %v596 = vld [vmem:[%s3 + $0x158] sm:$0xf]
      %v597 = vld [vmem:[%s3 + $0x15c] sm:$0xf]
      %v598 = vld [vmem:[%s3 + $0x160] sm:$0xf]
      %v599 = vld [vmem:[%s3 + $0x164] sm:$0xf]
      %v600 = vld [vmem:[%s3 + $0x168] sm:$0xf]
      %v601 = vld [vmem:[%s3 + $0x16c] sm:$0xf]
      %v602 = vld [vmem:[%s3 + $0x170] sm:$0xf]
      %v603 = vld [vmem:[%s3 + $0x174] sm:$0xf]
      %v604 = vld [vmem:[%s3 + $0x178] sm:$0xf]
      %v605 = vld [vmem:[%s3 + $0x17c] sm:$0xf]
      %v606 = vld [vmem:[%s3 + $0x180] sm:$0xf]
      %v607 = vld [vmem:[%s3 + $0x184] sm:$0xf]
      %v608 = vld [vmem:[%s3 + $0x188] sm:$0xf]
      %v609 = vld [vmem:[%s3 + $0x18c] sm:$0xf]
      %v610 = vld [vmem:[%s3 + $0x190] sm:$0xf]
      %v611 = vld [vmem:[%s3 + $0x194] sm:$0xf]
      %v612 = vld [vmem:[%s3 + $0x198] sm:$0xf]
      %v613 = vld [vmem:[%s3 + $0x19c] sm:$0xf]
      %v614 = vld [vmem:[%s3 + $0x1a0] sm:$0xf]
      %v615 = vld [vmem:[%s3 + $0x1a4] sm:$0xf]
      %v616 = vld [vmem:[%s3 + $0x1a8] sm:$0xf]
      %v617 = vld [vmem:[%s3 + $0x1ac] sm:$0xf]
      %v618 = vld [vmem:[%s3 + $0x1b0] sm:$0xf]
      %v619 = vld [vmem:[%s3 + $0x1b4] sm:$0xf]
      %v620 = vld [vmem:[%s3 + $0x1b8] sm:$0xf]
      %v621 = vld [vmem:[%s3 + $0x1bc] sm:$0xf]
      %v622 = vld [vmem:[%s3 + $0x1c0] sm:$0xf]
      %v623 = vld [vmem:[%s3 + $0x1c4] sm:$0xf]
      %v624 = vld [vmem:[%s3 + $0x1c8] sm:$0xf]
      %v625 = vld [vmem:[%s3 + $0x1cc] sm:$0xf]
      %v626 = vld [vmem:[%s3 + $0x1d0] sm:$0xf]
      %v627 = vld [vmem:[%s3 + $0x1d4] sm:$0xf]
      %v628 = vld [vmem:[%s3 + $0x1d8] sm:$0xf]
      %v629 = vld [vmem:[%s3 + $0x1dc] sm:$0xf]
      %v630 = vld [vmem:[%s3 + $0x1e0] sm:$0xf]
      %v631 = vld [vmem:[%s3 + $0x1e4] sm:$0xf]
      %v632 = vld [vmem:[%s3 + $0x1e8] sm:$0xf]
      %v633 = vld [vmem:[%s3 + $0x1ec] sm:$0xf]
      %v634 = vld [vmem:[%s3 + $0x1f0] sm:$0xf]
      %v635 = vld [vmem:[%s3 + $0x1f4] sm:$0xf]
      %v636 = vld [vmem:[%s3 + $0x1f8] sm:$0xf]
      %v637 = vld [vmem:[%s3 + $0x1fc] sm:$0xf]
      %v638 = vld [vmem:[%s3 + $0x200] sm:$0xf]
      %v639 = vld [vmem:[%s3 + $0x204] sm:$0xf]
      %v640 = vld [vmem:[%s3 + $0x208] sm:$0xf]
      %v641 = vld [vmem:[%s3 + $0x20c] sm:$0xf]
      %v642 = vld [vmem:[%s3 + $0x210] sm:$0xf]
      %v643 = vld [vmem:[%s3 + $0x214] sm:$0xf]
      %v644 = vld [vmem:[%s3 + $0x218] sm:$0xf]
      %v645 = vld [vmem:[%s3 + $0x21c] sm:$0xf]
      %v646 = vld [vmem:[%s3 + $0x220] sm:$0xf]
      %v647 = vld [vmem:[%s3 + $0x224] sm:$0xf]
      %v648 = vld [vmem:[%s3 + $0x228] sm:$0xf]
      %v649 = vld [vmem:[%s3 + $0x22c] sm:$0xf]
      %v650 = vld [vmem:[%s3 + $0x230] sm:$0xf]
      %v651 = vld [vmem:[%s3 + $0x234] sm:$0xf]
      %v652 = vld [vmem:[%s3 + $0x238] sm:$0xf]
      %v653 = vld [vmem:[%s3 + $0x23c] sm:$0xf]
      %v674 = vunpack.c.l.b16 %v490
      %v675 = vunpack.c.h.b16 %v490
      %v676 = vunpack.c.l.b16 %v491
      %v677 = vunpack.c.h.b16 %v491
      %v678 = vunpack.c.l.b16 %v492
      %v679 = vunpack.c.h.b16 %v492
      %v680 = vunpack.c.l.b16 %v493
      %v681 = vunpack.c.h.b16 %v493
      %v682 = vunpack.c.l.b16 %v494
      %v683 = vunpack.c.l.b16 %v495
      %v684 = vunpack.c.h.b16 %v495
      %v685 = vunpack.c.l.b16 %v496
      %v686 = vunpack.c.h.b16 %v496
      %v687 = vunpack.c.l.b16 %v497
      %v688 = vunpack.c.h.b16 %v497
      %v689 = vunpack.c.l.b16 %v498
      %v690 = vunpack.c.h.b16 %v498
      %v691 = vunpack.c.l.b16 %v499
      %v692 = vunpack.c.l.b16 %v500
      %v693 = vunpack.c.h.b16 %v500
      %v694 = vunpack.c.l.b16 %v501
      %v695 = vunpack.c.h.b16 %v501
      %v696 = vunpack.c.l.b16 %v502
      %v697 = vunpack.c.h.b16 %v502
      %v698 = vunpack.c.l.b16 %v503
      %v699 = vunpack.c.h.b16 %v503
      %v700 = vunpack.c.l.b16 %v504
      %v701 = vunpack.c.l.b16 %v505
      %v702 = vunpack.c.h.b16 %v505
      %v703 = vunpack.c.l.b16 %v506
      %v704 = vunpack.c.h.b16 %v506
      %v705 = vunpack.c.l.b16 %v507
      %v706 = vunpack.c.h.b16 %v507
      %v707 = vunpack.c.l.b16 %v508
      %v708 = vunpack.c.h.b16 %v508
      %v709 = vunpack.c.l.b16 %v509
      %v710 = vpack.c.b16 %v683, %v674
      %v711 = vpack.c.b16 %v684, %v675
      %v712 = vpack.c.b16 %v685, %v676
      %v713 = vpack.c.b16 %v686, %v677
      %v714 = vpack.c.b16 %v687, %v678
      %v715 = vpack.c.b16 %v688, %v679
      %v716 = vpack.c.b16 %v689, %v680
      %v717 = vpack.c.b16 %v690, %v681
      %v718 = vpack.c.b16 %v691, %v682
      %v719 = vpack.c.b16 %v701, %v692
      %v720 = vpack.c.b16 %v702, %v693
      %v721 = vpack.c.b16 %v703, %v694
      %v722 = vpack.c.b16 %v704, %v695
      %v723 = vpack.c.b16 %v705, %v696
      %v724 = vpack.c.b16 %v706, %v697
      %v725 = vpack.c.b16 %v707, %v698
      %v726 = vpack.c.b16 %v708, %v699
      %v727 = vpack.c.b16 %v709, %v700
      %v890 = vunpack.c.l.b16 %v510
      %v891 = vunpack.c.l.b16 %v511
      %v892 = vunpack.c.l.b16 %v512
      %v893 = vunpack.c.l.b16 %v513
      %v894 = vunpack.c.l.b16 %v514
      %v895 = vunpack.c.l.b16 %v515
      %v896 = vunpack.c.l.b16 %v516
      %v897 = vunpack.c.l.b16 %v517
      %v898 = vunpack.c.l.b16 %v518
      %v899 = vunpack.c.l.b16 %v519
      %v900 = vunpack.c.l.b16 %v520
      %v901 = vunpack.c.l.b16 %v521
      %v902 = vunpack.c.l.b16 %v522
      %v903 = vunpack.c.l.b16 %v523
      %v904 = vunpack.c.l.b16 %v524
      %v905 = vunpack.c.l.b16 %v525
      %v906 = vunpack.c.l.b16 %v526
      %v907 = vunpack.c.l.b16 %v527
      %v908 = vunpack.c.l.b16 %v528
      %v909 = vunpack.c.l.b16 %v529
      %v910 = vunpack.c.l.b16 %v530
      %v911 = vunpack.c.l.b16 %v531
      %v912 = vunpack.c.l.b16 %v532
      %v913 = vunpack.c.l.b16 %v533
      %v914 = vunpack.c.l.b16 %v534
      %v915 = vunpack.c.l.b16 %v535
      %v916 = vunpack.c.l.b16 %v536
      %v917 = vunpack.c.l.b16 %v537
      %v918 = vunpack.c.l.b16 %v538
      %v919 = vunpack.c.l.b16 %v539
      %v920 = vunpack.c.l.b16 %v540
      %v921 = vunpack.c.l.b16 %v541
      %v922 = vunpack.c.l.b16 %v542
      %v923 = vunpack.c.l.b16 %v543
      %v924 = vunpack.c.l.b16 %v544
      %v925 = vunpack.c.l.b16 %v545
      %v926 = vunpack.c.l.b16 %v546
      %v927 = vunpack.c.l.b16 %v547
      %v928 = vunpack.c.l.b16 %v548
      %v929 = vunpack.c.l.b16 %v549
      %v930 = vunpack.c.l.b16 %v550
      %v931 = vunpack.c.l.b16 %v551
      %v932 = vunpack.c.l.b16 %v552
      %v933 = vunpack.c.l.b16 %v553
      %v934 = vunpack.c.l.b16 %v554
      %v935 = vunpack.c.l.b16 %v555
      %v936 = vunpack.c.l.b16 %v556
      %v937 = vunpack.c.l.b16 %v557
      %v938 = vunpack.c.l.b16 %v558
      %v939 = vunpack.c.l.b16 %v559
      %v940 = vunpack.c.l.b16 %v560
      %v941 = vunpack.c.l.b16 %v561
      %v942 = vunpack.c.l.b16 %v562
      %v943 = vunpack.c.l.b16 %v563
      %v944 = vunpack.c.l.b16 %v564
      %v945 = vunpack.c.l.b16 %v565
      %v946 = vunpack.c.l.b16 %v566
      %v947 = vunpack.c.l.b16 %v567
      %v948 = vunpack.c.l.b16 %v568
      %v949 = vunpack.c.l.b16 %v569
      %v950 = vunpack.c.l.b16 %v570
      %v951 = vunpack.c.l.b16 %v571
      %v952 = vunpack.c.l.b16 %v572
      %v953 = vunpack.c.l.b16 %v573
      %v954 = vunpack.c.l.b16 %v574
      %v955 = vunpack.c.l.b16 %v575
      %v956 = vunpack.c.l.b16 %v576
      %v957 = vunpack.c.l.b16 %v577
      %v958 = vunpack.c.l.b16 %v578
      %v959 = vunpack.c.l.b16 %v579
      %v960 = vunpack.c.l.b16 %v580
      %v961 = vunpack.c.l.b16 %v581
      %v962 = vunpack.c.l.b16 %v582
      %v963 = vunpack.c.l.b16 %v583
      %v964 = vunpack.c.l.b16 %v584
      %v965 = vunpack.c.l.b16 %v585
      %v966 = vunpack.c.l.b16 %v586
      %v967 = vunpack.c.l.b16 %v587
      %v968 = vunpack.c.l.b16 %v588
      %v969 = vunpack.c.l.b16 %v589
      %v970 = vunpack.c.l.b16 %v590
      %v971 = vunpack.c.l.b16 %v591
      %v972 = vunpack.c.l.b16 %v592
      %v973 = vunpack.c.l.b16 %v593
      %v974 = vunpack.c.l.b16 %v594
      %v975 = vunpack.c.l.b16 %v595
      %v976 = vunpack.c.l.b16 %v596
      %v977 = vunpack.c.l.b16 %v597
      %v978 = vunpack.c.l.b16 %v598
      %v979 = vunpack.c.l.b16 %v599
      %v980 = vunpack.c.l.b16 %v600
      %v981 = vunpack.c.l.b16 %v601
      %v982 = vunpack.c.l.b16 %v602
      %v983 = vunpack.c.l.b16 %v603
      %v984 = vunpack.c.l.b16 %v604
      %v985 = vunpack.c.l.b16 %v605
      %v986 = vunpack.c.l.b16 %v606
      %v987 = vunpack.c.l.b16 %v607
      %v988 = vunpack.c.l.b16 %v608
      %v989 = vunpack.c.l.b16 %v609
      %v990 = vunpack.c.l.b16 %v610
      %v991 = vunpack.c.l.b16 %v611
      %v992 = vunpack.c.l.b16 %v612
      %v993 = vunpack.c.l.b16 %v613
      %v994 = vunpack.c.l.b16 %v614
      %v995 = vunpack.c.l.b16 %v615
      %v996 = vunpack.c.l.b16 %v616
      %v997 = vunpack.c.l.b16 %v617
      %v998 = vunpack.c.l.b16 %v618
      %v999 = vunpack.c.l.b16 %v619
      %v1000 = vunpack.c.l.b16 %v620
      %v1001 = vunpack.c.l.b16 %v621
      %v1002 = vunpack.c.l.b16 %v622
      %v1003 = vunpack.c.l.b16 %v623
      %v1004 = vunpack.c.l.b16 %v624
      %v1005 = vunpack.c.l.b16 %v625
      %v1006 = vunpack.c.l.b16 %v626
      %v1007 = vunpack.c.l.b16 %v627
      %v1008 = vunpack.c.l.b16 %v628
      %v1009 = vunpack.c.l.b16 %v629
      %v1010 = vunpack.c.l.b16 %v630
      %v1011 = vunpack.c.l.b16 %v631
      %v1012 = vunpack.c.l.b16 %v632
      %v1013 = vunpack.c.l.b16 %v633
      %v1014 = vunpack.c.l.b16 %v634
      %v1015 = vunpack.c.l.b16 %v635
      %v1016 = vunpack.c.l.b16 %v636
      %v1017 = vunpack.c.l.b16 %v637
      %v1018 = vunpack.c.l.b16 %v638
      %v1019 = vunpack.c.l.b16 %v639
      %v1020 = vunpack.c.l.b16 %v640
      %v1021 = vunpack.c.l.b16 %v641
      %v1022 = vunpack.c.l.b16 %v642
      %v1023 = vunpack.c.l.b16 %v643
      %v1024 = vunpack.c.l.b16 %v644
      %v1025 = vunpack.c.l.b16 %v645
      %v1026 = vunpack.c.l.b16 %v646
      %v1027 = vunpack.c.l.b16 %v647
      %v1028 = vunpack.c.l.b16 %v648
      %v1029 = vunpack.c.l.b16 %v649
      %v1030 = vunpack.c.l.b16 %v650
      %v1031 = vunpack.c.l.b16 %v651
      %v1032 = vunpack.c.l.b16 %v652
      %v1033 = vunpack.c.l.b16 %v653
      %v1034 = vpack.c.b16 %v891, %v890
      %v1035 = vpack.c.b16 %v893, %v892
      %v1036 = vpack.c.b16 %v895, %v894
      %v1037 = vpack.c.b16 %v897, %v896
      %v1038 = vpack.c.b16 %v899, %v898
      %v1039 = vpack.c.b16 %v901, %v900
      %v1040 = vpack.c.b16 %v903, %v902
      %v1041 = vpack.c.b16 %v905, %v904
      %v1042 = vpack.c.b16 %v907, %v906
      %v1043 = vpack.c.b16 %v909, %v908
      %v1044 = vpack.c.b16 %v911, %v910
      %v1045 = vpack.c.b16 %v913, %v912
      %v1046 = vpack.c.b16 %v915, %v914
      %v1047 = vpack.c.b16 %v917, %v916
      %v1048 = vpack.c.b16 %v919, %v918
      %v1049 = vpack.c.b16 %v921, %v920
      %v1050 = vpack.c.b16 %v923, %v922
      %v1051 = vpack.c.b16 %v925, %v924
      %v1052 = vpack.c.b16 %v927, %v926
      %v1053 = vpack.c.b16 %v929, %v928
      %v1054 = vpack.c.b16 %v931, %v930
      %v1055 = vpack.c.b16 %v933, %v932
      %v1056 = vpack.c.b16 %v935, %v934
      %v1057 = vpack.c.b16 %v937, %v936
      %v1058 = vpack.c.b16 %v939, %v938
      %v1059 = vpack.c.b16 %v941, %v940
      %v1060 = vpack.c.b16 %v943, %v942
      %v1061 = vpack.c.b16 %v945, %v944
      %v1062 = vpack.c.b16 %v947, %v946
      %v1063 = vpack.c.b16 %v949, %v948
      %v1064 = vpack.c.b16 %v951, %v950
      %v1065 = vpack.c.b16 %v953, %v952
      %v1066 = vpack.c.b16 %v955, %v954
      %v1067 = vpack.c.b16 %v957, %v956
      %v1068 = vpack.c.b16 %v959, %v958
      %v1069 = vpack.c.b16 %v961, %v960
      %v1070 = vpack.c.b16 %v963, %v962
      %v1071 = vpack.c.b16 %v965, %v964
      %v1072 = vpack.c.b16 %v967, %v966
      %v1073 = vpack.c.b16 %v969, %v968
      %v1074 = vpack.c.b16 %v971, %v970
      %v1075 = vpack.c.b16 %v973, %v972
      %v1076 = vpack.c.b16 %v975, %v974
      %v1077 = vpack.c.b16 %v977, %v976
      %v1078 = vpack.c.b16 %v979, %v978
      %v1079 = vpack.c.b16 %v981, %v980
      %v1080 = vpack.c.b16 %v983, %v982
      %v1081 = vpack.c.b16 %v985, %v984
      %v1082 = vpack.c.b16 %v987, %v986
      %v1083 = vpack.c.b16 %v989, %v988
      %v1084 = vpack.c.b16 %v991, %v990
      %v1085 = vpack.c.b16 %v993, %v992
      %v1086 = vpack.c.b16 %v995, %v994
      %v1087 = vpack.c.b16 %v997, %v996
      %v1088 = vpack.c.b16 %v999, %v998
      %v1089 = vpack.c.b16 %v1001, %v1000
      %v1090 = vpack.c.b16 %v1003, %v1002
      %v1091 = vpack.c.b16 %v1005, %v1004
      %v1092 = vpack.c.b16 %v1007, %v1006
      %v1093 = vpack.c.b16 %v1009, %v1008
      %v1094 = vpack.c.b16 %v1011, %v1010
      %v1095 = vpack.c.b16 %v1013, %v1012
      %v1096 = vpack.c.b16 %v1015, %v1014
      %v1097 = vpack.c.b16 %v1017, %v1016
      %v1098 = vpack.c.b16 %v1019, %v1018
      %v1099 = vpack.c.b16 %v1021, %v1020
      %v1100 = vpack.c.b16 %v1023, %v1022
      %v1101 = vpack.c.b16 %v1025, %v1024
      %v1102 = vpack.c.b16 %v1027, %v1026
      %v1103 = vpack.c.b16 %v1029, %v1028
      %v1104 = vpack.c.b16 %v1031, %v1030
      %v1105 = vpack.c.b16 %v1033, %v1032
      %1178 = vmatpush.bf16.msra.mxu0 %v1041
      %1179 = vmatpush.bf16.msra.mxu0 %v1040
      %1180 = vmatpush.bf16.msra.mxu0 %v1039
      %1181 = vmatpush.bf16.msra.mxu0 %v1038
      %1182 = vmatpush.bf16.msra.mxu0 %v1037
      %1183 = vmatpush.bf16.msra.mxu0 %v1036
      %1184 = vmatpush.bf16.msra.mxu0 %v1035
      %1185 = vmatpush.bf16.msra.mxu0 %v1034
      %1186 = vmatmul.bf16.gmra.mxu0 %v710
      %v1187 = vpop.f32.mrf.mxu0
      %v1188 = vadd.f32 0.0, %v1187
      %v1189 = vpop.f32.mrf.mxu0
      %v1190 = vadd.f32 0.0, %v1189
      %1191 = vmatmul.bf16.gmra.mxu0 %v719
      %v1192 = vpop.f32.mrf.mxu0
      %v1193 = vadd.f32 0.0, %v1192
      %v1194 = vpop.f32.mrf.mxu0
      %v1195 = vadd.f32 0.0, %v1194
      %1196 = vdwg.mxu0
      %1197 = vmatpush.bf16.msra.mxu0 %v1049
      %1198 = vmatpush.bf16.msra.mxu0 %v1048
      %1199 = vmatpush.bf16.msra.mxu0 %v1047
      %1200 = vmatpush.bf16.msra.mxu0 %v1046
      %1201 = vmatpush.bf16.msra.mxu0 %v1045
      %1202 = vmatpush.bf16.msra.mxu0 %v1044
      %1203 = vmatpush.bf16.msra.mxu0 %v1043
      %1204 = vmatpush.bf16.msra.mxu0 %v1042
      %1205 = vmatmul.bf16.gmra.mxu0 %v711
      %v1206 = vpop.f32.mrf.mxu0
      %v1207 = vadd.f32 %v1188, %v1206
      %v1208 = vpop.f32.mrf.mxu0
      %v1209 = vadd.f32 %v1190, %v1208
      %1210 = vmatmul.bf16.gmra.mxu0 %v720
      %v1211 = vpop.f32.mrf.mxu0
      %v1212 = vadd.f32 %v1193, %v1211
      %v1213 = vpop.f32.mrf.mxu0
      %v1214 = vadd.f32 %v1195, %v1213
      %1215 = vdwg.mxu0
      %1216 = vmatpush.bf16.msra.mxu0 %v1057
      %1217 = vmatpush.bf16.msra.mxu0 %v1056
      %1218 = vmatpush.bf16.msra.mxu0 %v1055
      %1219 = vmatpush.bf16.msra.mxu0 %v1054
      %1220 = vmatpush.bf16.msra.mxu0 %v1053
      %1221 = vmatpush.bf16.msra.mxu0 %v1052
      %1222 = vmatpush.bf16.msra.mxu0 %v1051
      %1223 = vmatpush.bf16.msra.mxu0 %v1050
      %1224 = vmatmul.bf16.gmra.mxu0 %v712
      %v1225 = vpop.f32.mrf.mxu0
      %v1226 = vadd.f32 %v1207, %v1225
      %v1227 = vpop.f32.mrf.mxu0
      %v1228 = vadd.f32 %v1209, %v1227
      %1229 = vmatmul.bf16.gmra.mxu0 %v721
      %v1230 = vpop.f32.mrf.mxu0
      %v1231 = vadd.f32 %v1212, %v1230
      %v1232 = vpop.f32.mrf.mxu0
      %v1233 = vadd.f32 %v1214, %v1232
      %1234 = vdwg.mxu0
      %1235 = vmatpush.bf16.msra.mxu0 %v1065
      %1236 = vmatpush.bf16.msra.mxu0 %v1064
      %1237 = vmatpush.bf16.msra.mxu0 %v1063
      %1238 = vmatpush.bf16.msra.mxu0 %v1062
      %1239 = vmatpush.bf16.msra.mxu0 %v1061
      %1240 = vmatpush.bf16.msra.mxu0 %v1060
      %1241 = vmatpush.bf16.msra.mxu0 %v1059
      %1242 = vmatpush.bf16.msra.mxu0 %v1058
      %1243 = vmatmul.bf16.gmra.mxu0 %v713
      %v1244 = vpop.f32.mrf.mxu0
      %v1245 = vadd.f32 %v1226, %v1244
      %v1246 = vpop.f32.mrf.mxu0
      %v1247 = vadd.f32 %v1228, %v1246
      %1248 = vmatmul.bf16.gmra.mxu0 %v722
      %v1249 = vpop.f32.mrf.mxu0
      %v1250 = vadd.f32 %v1231, %v1249
      %v1251 = vpop.f32.mrf.mxu0
      %v1252 = vadd.f32 %v1233, %v1251
      %1253 = vdwg.mxu0
      %1254 = vmatpush.bf16.msra.mxu0 %v1073
      %1255 = vmatpush.bf16.msra.mxu0 %v1072
      %1256 = vmatpush.bf16.msra.mxu0 %v1071
      %1257 = vmatpush.bf16.msra.mxu0 %v1070
      %1258 = vmatpush.bf16.msra.mxu0 %v1069
      %1259 = vmatpush.bf16.msra.mxu0 %v1068
      %1260 = vmatpush.bf16.msra.mxu0 %v1067
      %1261 = vmatpush.bf16.msra.mxu0 %v1066
      %1262 = vmatmul.bf16.gmra.mxu0 %v714
      %v1263 = vpop.f32.mrf.mxu0
      %v1264 = vadd.f32 %v1245, %v1263
      %v1265 = vpop.f32.mrf.mxu0
      %v1266 = vadd.f32 %v1247, %v1265
      %1267 = vmatmul.bf16.gmra.mxu0 %v723
      %v1268 = vpop.f32.mrf.mxu0
      %v1269 = vadd.f32 %v1250, %v1268
      %v1270 = vpop.f32.mrf.mxu0
      %v1271 = vadd.f32 %v1252, %v1270
      %1272 = vdwg.mxu0
      %1273 = vmatpush.bf16.msra.mxu0 %v1081
      %1274 = vmatpush.bf16.msra.mxu0 %v1080
      %1275 = vmatpush.bf16.msra.mxu0 %v1079
      %1276 = vmatpush.bf16.msra.mxu0 %v1078
      %1277 = vmatpush.bf16.msra.mxu0 %v1077
      %1278 = vmatpush.bf16.msra.mxu0 %v1076
      %1279 = vmatpush.bf16.msra.mxu0 %v1075
      %1280 = vmatpush.bf16.msra.mxu0 %v1074
      %1281 = vmatmul.bf16.gmra.mxu0 %v715
      %v1282 = vpop.f32.mrf.mxu0
      %v1283 = vadd.f32 %v1264, %v1282
      %v1284 = vpop.f32.mrf.mxu0
      %v1285 = vadd.f32 %v1266, %v1284
      %1286 = vmatmul.bf16.gmra.mxu0 %v724
      %v1287 = vpop.f32.mrf.mxu0
      %v1288 = vadd.f32 %v1269, %v1287
      %v1289 = vpop.f32.mrf.mxu0
      %v1290 = vadd.f32 %v1271, %v1289
      %1291 = vdwg.mxu0
      %1292 = vmatpush.bf16.msra.mxu0 %v1089
      %1293 = vmatpush.bf16.msra.mxu0 %v1088
      %1294 = vmatpush.bf16.msra.mxu0 %v1087
      %1295 = vmatpush.bf16.msra.mxu0 %v1086
      %1296 = vmatpush.bf16.msra.mxu0 %v1085
      %1297 = vmatpush.bf16.msra.mxu0 %v1084
      %1298 = vmatpush.bf16.msra.mxu0 %v1083
      %1299 = vmatpush.bf16.msra.mxu0 %v1082
      %1300 = vmatmul.bf16.gmra.mxu0 %v716
      %v1301 = vpop.f32.mrf.mxu0
      %v1302 = vadd.f32 %v1283, %v1301
      %v1303 = vpop.f32.mrf.mxu0
      %v1304 = vadd.f32 %v1285, %v1303
      %1305 = vmatmul.bf16.gmra.mxu0 %v725
      %v1306 = vpop.f32.mrf.mxu0
      %v1307 = vadd.f32 %v1288, %v1306
      %v1308 = vpop.f32.mrf.mxu0
      %v1309 = vadd.f32 %v1290, %v1308
      %1310 = vdwg.mxu0
      %1311 = vmatpush.bf16.msra.mxu0 %v1097
      %1312 = vmatpush.bf16.msra.mxu0 %v1096
      %1313 = vmatpush.bf16.msra.mxu0 %v1095
      %1314 = vmatpush.bf16.msra.mxu0 %v1094
      %1315 = vmatpush.bf16.msra.mxu0 %v1093
      %1316 = vmatpush.bf16.msra.mxu0 %v1092
      %1317 = vmatpush.bf16.msra.mxu0 %v1091
      %1318 = vmatpush.bf16.msra.mxu0 %v1090
      %1319 = vmatmul.bf16.gmra.mxu0 %v717
      %v1320 = vpop.f32.mrf.mxu0
      %v1321 = vadd.f32 %v1302, %v1320
      %v1322 = vpop.f32.mrf.mxu0
      %v1323 = vadd.f32 %v1304, %v1322
      %1324 = vmatmul.bf16.gmra.mxu0 %v726
      %v1325 = vpop.f32.mrf.mxu0
      %v1326 = vadd.f32 %v1307, %v1325
      %v1327 = vpop.f32.mrf.mxu0
      %v1328 = vadd.f32 %v1309, %v1327
      %1329 = vdwg.mxu0
      %1330 = vmatpush.bf16.msra.mxu0 %v1105
      %1331 = vmatpush.bf16.msra.mxu0 %v1104
      %1332 = vmatpush.bf16.msra.mxu0 %v1103
      %1333 = vmatpush.bf16.msra.mxu0 %v1102
      %1334 = vmatpush.bf16.msra.mxu0 %v1101
      %1335 = vmatpush.bf16.msra.mxu0 %v1100
      %1336 = vmatpush.bf16.msra.mxu0 %v1099
      %1337 = vmatpush.bf16.msra.mxu0 %v1098
      %1338 = vmatmul.bf16.gmra.mxu0 %v718
      %v1339 = vpop.f32.mrf.mxu0
      %v1340 = vadd.f32 %v1321, %v1339
      %v1341 = vpop.f32.mrf.mxu0
      %v1342 = vadd.f32 %v1323, %v1341
      %1343 = vmatmul.bf16.gmra.mxu0 %v727
      %v1344 = vpop.f32.mrf.mxu0
      %v1345 = vadd.f32 %v1326, %v1344
      %v1346 = vpop.f32.mrf.mxu0
      %v1347 = vadd.f32 %v1328, %v1346
      %1348 = vdwg.mxu0
      %v1369 = vunpack.c.l.b16 %v326
      %v1370 = vunpack.c.h.b16 %v326
      %v1371 = vunpack.c.l.b16 %v327
      %v1372 = vunpack.c.h.b16 %v327
      %v1373 = vunpack.c.l.b16 %v328
      %v1374 = vunpack.c.h.b16 %v328
      %v1375 = vunpack.c.l.b16 %v329
      %v1376 = vunpack.c.h.b16 %v329
      %v1377 = vunpack.c.l.b16 %v330
      %v1378 = vunpack.c.l.b16 %v331
      %v1379 = vunpack.c.h.b16 %v331
      %v1380 = vunpack.c.l.b16 %v332
      %v1381 = vunpack.c.h.b16 %v332
      %v1382 = vunpack.c.l.b16 %v333
      %v1383 = vunpack.c.h.b16 %v333
      %v1384 = vunpack.c.l.b16 %v334
      %v1385 = vunpack.c.h.b16 %v334
      %v1386 = vunpack.c.l.b16 %v335
      %v1387 = vunpack.c.l.b16 %v336
      %v1388 = vunpack.c.h.b16 %v336
      %v1389 = vunpack.c.l.b16 %v337
      %v1390 = vunpack.c.h.b16 %v337
      %v1391 = vunpack.c.l.b16 %v338
      %v1392 = vunpack.c.h.b16 %v338
      %v1393 = vunpack.c.l.b16 %v339
      %v1394 = vunpack.c.h.b16 %v339
      %v1395 = vunpack.c.l.b16 %v340
      %v1396 = vunpack.c.l.b16 %v341
      %v1397 = vunpack.c.h.b16 %v341
      %v1398 = vunpack.c.l.b16 %v342
      %v1399 = vunpack.c.h.b16 %v342
      %v1400 = vunpack.c.l.b16 %v343
      %v1401 = vunpack.c.h.b16 %v343
      %v1402 = vunpack.c.l.b16 %v344
      %v1403 = vunpack.c.h.b16 %v344
      %v1404 = vunpack.c.l.b16 %v345
      %v1405 = vpack.c.b16 %v1378, %v1369
      %v1406 = vpack.c.b16 %v1379, %v1370
      %v1407 = vpack.c.b16 %v1380, %v1371
      %v1408 = vpack.c.b16 %v1381, %v1372
      %v1409 = vpack.c.b16 %v1382, %v1373
      %v1410 = vpack.c.b16 %v1383, %v1374
      %v1411 = vpack.c.b16 %v1384, %v1375
      %v1412 = vpack.c.b16 %v1385, %v1376
      %v1413 = vpack.c.b16 %v1386, %v1377
      %v1414 = vpack.c.b16 %v1396, %v1387
      %v1415 = vpack.c.b16 %v1397, %v1388
      %v1416 = vpack.c.b16 %v1398, %v1389
      %v1417 = vpack.c.b16 %v1399, %v1390
      %v1418 = vpack.c.b16 %v1400, %v1391
      %v1419 = vpack.c.b16 %v1401, %v1392
      %v1420 = vpack.c.b16 %v1402, %v1393
      %v1421 = vpack.c.b16 %v1403, %v1394
      %v1422 = vpack.c.b16 %v1404, %v1395
      %v1585 = vunpack.c.l.b16 %v346
      %v1586 = vunpack.c.l.b16 %v347
      %v1587 = vunpack.c.l.b16 %v348
      %v1588 = vunpack.c.l.b16 %v349
      %v1589 = vunpack.c.l.b16 %v350
      %v1590 = vunpack.c.l.b16 %v351
      %v1591 = vunpack.c.l.b16 %v352
      %v1592 = vunpack.c.l.b16 %v353
      %v1593 = vunpack.c.l.b16 %v354
      %v1594 = vunpack.c.l.b16 %v355
      %v1595 = vunpack.c.l.b16 %v356
      %v1596 = vunpack.c.l.b16 %v357
      %v1597 = vunpack.c.l.b16 %v358
      %v1598 = vunpack.c.l.b16 %v359
      %v1599 = vunpack.c.l.b16 %v360
      %v1600 = vunpack.c.l.b16 %v361
      %v1601 = vunpack.c.l.b16 %v362
      %v1602 = vunpack.c.l.b16 %v363
      %v1603 = vunpack.c.l.b16 %v364
      %v1604 = vunpack.c.l.b16 %v365
      %v1605 = vunpack.c.l.b16 %v366
      %v1606 = vunpack.c.l.b16 %v367
      %v1607 = vunpack.c.l.b16 %v368
      %v1608 = vunpack.c.l.b16 %v369
      %v1609 = vunpack.c.l.b16 %v370
      %v1610 = vunpack.c.l.b16 %v371
      %v1611 = vunpack.c.l.b16 %v372
      %v1612 = vunpack.c.l.b16 %v373
      %v1613 = vunpack.c.l.b16 %v374
      %v1614 = vunpack.c.l.b16 %v375
      %v1615 = vunpack.c.l.b16 %v376
      %v1616 = vunpack.c.l.b16 %v377
      %v1617 = vunpack.c.l.b16 %v378
      %v1618 = vunpack.c.l.b16 %v379
      %v1619 = vunpack.c.l.b16 %v380
      %v1620 = vunpack.c.l.b16 %v381
      %v1621 = vunpack.c.l.b16 %v382
      %v1622 = vunpack.c.l.b16 %v383
      %v1623 = vunpack.c.l.b16 %v384
      %v1624 = vunpack.c.l.b16 %v385
      %v1625 = vunpack.c.l.b16 %v386
      %v1626 = vunpack.c.l.b16 %v387
      %v1627 = vunpack.c.l.b16 %v388
      %v1628 = vunpack.c.l.b16 %v389
      %v1629 = vunpack.c.l.b16 %v390
      %v1630 = vunpack.c.l.b16 %v391
      %v1631 = vunpack.c.l.b16 %v392
      %v1632 = vunpack.c.l.b16 %v393
      %v1633 = vunpack.c.l.b16 %v394
      %v1634 = vunpack.c.l.b16 %v395
      %v1635 = vunpack.c.l.b16 %v396
      %v1636 = vunpack.c.l.b16 %v397
      %v1637 = vunpack.c.l.b16 %v398
      %v1638 = vunpack.c.l.b16 %v399
      %v1639 = vunpack.c.l.b16 %v400
      %v1640 = vunpack.c.l.b16 %v401
      %v1641 = vunpack.c.l.b16 %v402
      %v1642 = vunpack.c.l.b16 %v403
      %v1643 = vunpack.c.l.b16 %v404
      %v1644 = vunpack.c.l.b16 %v405
      %v1645 = vunpack.c.l.b16 %v406
      %v1646 = vunpack.c.l.b16 %v407
      %v1647 = vunpack.c.l.b16 %v408
      %v1648 = vunpack.c.l.b16 %v409
      %v1649 = vunpack.c.l.b16 %v410
      %v1650 = vunpack.c.l.b16 %v411
      %v1651 = vunpack.c.l.b16 %v412
      %v1652 = vunpack.c.l.b16 %v413
      %v1653 = vunpack.c.l.b16 %v414
      %v1654 = vunpack.c.l.b16 %v415
      %v1655 = vunpack.c.l.b16 %v416
      %v1656 = vunpack.c.l.b16 %v417
      %v1657 = vunpack.c.l.b16 %v418
      %v1658 = vunpack.c.l.b16 %v419
      %v1659 = vunpack.c.l.b16 %v420
      %v1660 = vunpack.c.l.b16 %v421
      %v1661 = vunpack.c.l.b16 %v422
      %v1662 = vunpack.c.l.b16 %v423
      %v1663 = vunpack.c.l.b16 %v424
      %v1664 = vunpack.c.l.b16 %v425
      %v1665 = vunpack.c.l.b16 %v426
      %v1666 = vunpack.c.l.b16 %v427
      %v1667 = vunpack.c.l.b16 %v428
      %v1668 = vunpack.c.l.b16 %v429
      %v1669 = vunpack.c.l.b16 %v430
      %v1670 = vunpack.c.l.b16 %v431
      %v1671 = vunpack.c.l.b16 %v432
      %v1672 = vunpack.c.l.b16 %v433
      %v1673 = vunpack.c.l.b16 %v434
      %v1674 = vunpack.c.l.b16 %v435
      %v1675 = vunpack.c.l.b16 %v436
      %v1676 = vunpack.c.l.b16 %v437
      %v1677 = vunpack.c.l.b16 %v438
      %v1678 = vunpack.c.l.b16 %v439
      %v1679 = vunpack.c.l.b16 %v440
      %v1680 = vunpack.c.l.b16 %v441
      %v1681 = vunpack.c.l.b16 %v442
      %v1682 = vunpack.c.l.b16 %v443
      %v1683 = vunpack.c.l.b16 %v444
      %v1684 = vunpack.c.l.b16 %v445
      %v1685 = vunpack.c.l.b16 %v446
      %v1686 = vunpack.c.l.b16 %v447
      %v1687 = vunpack.c.l.b16 %v448
      %v1688 = vunpack.c.l.b16 %v449
      %v1689 = vunpack.c.l.b16 %v450
      %v1690 = vunpack.c.l.b16 %v451
      %v1691 = vunpack.c.l.b16 %v452
      %v1692 = vunpack.c.l.b16 %v453
      %v1693 = vunpack.c.l.b16 %v454
      %v1694 = vunpack.c.l.b16 %v455
      %v1695 = vunpack.c.l.b16 %v456
      %v1696 = vunpack.c.l.b16 %v457
      %v1697 = vunpack.c.l.b16 %v458
      %v1698 = vunpack.c.l.b16 %v459
      %v1699 = vunpack.c.l.b16 %v460
      %v1700 = vunpack.c.l.b16 %v461
      %v1701 = vunpack.c.l.b16 %v462
      %v1702 = vunpack.c.l.b16 %v463
      %v1703 = vunpack.c.l.b16 %v464
      %v1704 = vunpack.c.l.b16 %v465
      %v1705 = vunpack.c.l.b16 %v466
      %v1706 = vunpack.c.l.b16 %v467
      %v1707 = vunpack.c.l.b16 %v468
      %v1708 = vunpack.c.l.b16 %v469
      %v1709 = vunpack.c.l.b16 %v470
      %v1710 = vunpack.c.l.b16 %v471
      %v1711 = vunpack.c.l.b16 %v472
      %v1712 = vunpack.c.l.b16 %v473
      %v1713 = vunpack.c.l.b16 %v474
      %v1714 = vunpack.c.l.b16 %v475
      %v1715 = vunpack.c.l.b16 %v476
      %v1716 = vunpack.c.l.b16 %v477
      %v1717 = vunpack.c.l.b16 %v478
      %v1718 = vunpack.c.l.b16 %v479
      %v1719 = vunpack.c.l.b16 %v480
      %v1720 = vunpack.c.l.b16 %v481
      %v1721 = vunpack.c.l.b16 %v482
      %v1722 = vunpack.c.l.b16 %v483
      %v1723 = vunpack.c.l.b16 %v484
      %v1724 = vunpack.c.l.b16 %v485
      %v1725 = vunpack.c.l.b16 %v486
      %v1726 = vunpack.c.l.b16 %v487
      %v1727 = vunpack.c.l.b16 %v488
      %v1728 = vunpack.c.l.b16 %v489
      %v1729 = vpack.c.b16 %v1586, %v1585
      %v1730 = vpack.c.b16 %v1588, %v1587
      %v1731 = vpack.c.b16 %v1590, %v1589
      %v1732 = vpack.c.b16 %v1592, %v1591
      %v1733 = vpack.c.b16 %v1594, %v1593
      %v1734 = vpack.c.b16 %v1596, %v1595
      %v1735 = vpack.c.b16 %v1598, %v1597
      %v1736 = vpack.c.b16 %v1600, %v1599
      %v1737 = vpack.c.b16 %v1602, %v1601
      %v1738 = vpack.c.b16 %v1604, %v1603
      %v1739 = vpack.c.b16 %v1606, %v1605
      %v1740 = vpack.c.b16 %v1608, %v1607
      %v1741 = vpack.c.b16 %v1610, %v1609
      %v1742 = vpack.c.b16 %v1612, %v1611
      %v1743 = vpack.c.b16 %v1614, %v1613
      %v1744 = vpack.c.b16 %v1616, %v1615
      %v1745 = vpack.c.b16 %v1618, %v1617
      %v1746 = vpack.c.b16 %v1620, %v1619
      %v1747 = vpack.c.b16 %v1622, %v1621
      %v1748 = vpack.c.b16 %v1624, %v1623
      %v1749 = vpack.c.b16 %v1626, %v1625
      %v1750 = vpack.c.b16 %v1628, %v1627
      %v1751 = vpack.c.b16 %v1630, %v1629
      %v1752 = vpack.c.b16 %v1632, %v1631
      %v1753 = vpack.c.b16 %v1634, %v1633
      %v1754 = vpack.c.b16 %v1636, %v1635
      %v1755 = vpack.c.b16 %v1638, %v1637
      %v1756 = vpack.c.b16 %v1640, %v1639
      %v1757 = vpack.c.b16 %v1642, %v1641
      %v1758 = vpack.c.b16 %v1644, %v1643
      %v1759 = vpack.c.b16 %v1646, %v1645
      %v1760 = vpack.c.b16 %v1648, %v1647
      %v1761 = vpack.c.b16 %v1650, %v1649
      %v1762 = vpack.c.b16 %v1652, %v1651
      %v1763 = vpack.c.b16 %v1654, %v1653
      %v1764 = vpack.c.b16 %v1656, %v1655
      %v1765 = vpack.c.b16 %v1658, %v1657
      %v1766 = vpack.c.b16 %v1660, %v1659
      %v1767 = vpack.c.b16 %v1662, %v1661
      %v1768 = vpack.c.b16 %v1664, %v1663
      %v1769 = vpack.c.b16 %v1666, %v1665
      %v1770 = vpack.c.b16 %v1668, %v1667
      %v1771 = vpack.c.b16 %v1670, %v1669
      %v1772 = vpack.c.b16 %v1672, %v1671
      %v1773 = vpack.c.b16 %v1674, %v1673
      %v1774 = vpack.c.b16 %v1676, %v1675
      %v1775 = vpack.c.b16 %v1678, %v1677
      %v1776 = vpack.c.b16 %v1680, %v1679
      %v1777 = vpack.c.b16 %v1682, %v1681
      %v1778 = vpack.c.b16 %v1684, %v1683
      %v1779 = vpack.c.b16 %v1686, %v1685
      %v1780 = vpack.c.b16 %v1688, %v1687
      %v1781 = vpack.c.b16 %v1690, %v1689
      %v1782 = vpack.c.b16 %v1692, %v1691
      %v1783 = vpack.c.b16 %v1694, %v1693
      %v1784 = vpack.c.b16 %v1696, %v1695
      %v1785 = vpack.c.b16 %v1698, %v1697
      %v1786 = vpack.c.b16 %v1700, %v1699
      %v1787 = vpack.c.b16 %v1702, %v1701
      %v1788 = vpack.c.b16 %v1704, %v1703
      %v1789 = vpack.c.b16 %v1706, %v1705
      %v1790 = vpack.c.b16 %v1708, %v1707
      %v1791 = vpack.c.b16 %v1710, %v1709
      %v1792 = vpack.c.b16 %v1712, %v1711
      %v1793 = vpack.c.b16 %v1714, %v1713
      %v1794 = vpack.c.b16 %v1716, %v1715
      %v1795 = vpack.c.b16 %v1718, %v1717
      %v1796 = vpack.c.b16 %v1720, %v1719
      %v1797 = vpack.c.b16 %v1722, %v1721
      %v1798 = vpack.c.b16 %v1724, %v1723
      %v1799 = vpack.c.b16 %v1726, %v1725
      %v1800 = vpack.c.b16 %v1728, %v1727
      %1873 = vmatpush.bf16.msra.mxu0 %v1736
      %1874 = vmatpush.bf16.msra.mxu0 %v1735
      %1875 = vmatpush.bf16.msra.mxu0 %v1734
      %1876 = vmatpush.bf16.msra.mxu0 %v1733
      %1877 = vmatpush.bf16.msra.mxu0 %v1732
      %1878 = vmatpush.bf16.msra.mxu0 %v1731
      %1879 = vmatpush.bf16.msra.mxu0 %v1730
      %1880 = vmatpush.bf16.msra.mxu0 %v1729
      %1881 = vmatmul.bf16.gmra.mxu0 %v1405
      %v1882 = vpop.f32.mrf.mxu0
      %v1883 = vadd.f32 %v1340, %v1882
      %v1884 = vpop.f32.mrf.mxu0
      %v1885 = vadd.f32 %v1342, %v1884
      %1886 = vmatmul.bf16.gmra.mxu0 %v1414
      %v1887 = vpop.f32.mrf.mxu0
      %v1888 = vadd.f32 %v1345, %v1887
      %v1889 = vpop.f32.mrf.mxu0
      %v1890 = vadd.f32 %v1347, %v1889
      %1891 = vdwg.mxu0
      %1892 = vmatpush.bf16.msra.mxu0 %v1744
      %1893 = vmatpush.bf16.msra.mxu0 %v1743
      %1894 = vmatpush.bf16.msra.mxu0 %v1742
      %1895 = vmatpush.bf16.msra.mxu0 %v1741
      %1896 = vmatpush.bf16.msra.mxu0 %v1740
      %1897 = vmatpush.bf16.msra.mxu0 %v1739
      %1898 = vmatpush.bf16.msra.mxu0 %v1738
      %1899 = vmatpush.bf16.msra.mxu0 %v1737
      %1900 = vmatmul.bf16.gmra.mxu0 %v1406
      %v1901 = vpop.f32.mrf.mxu0
      %v1902 = vadd.f32 %v1883, %v1901
      %v1903 = vpop.f32.mrf.mxu0
      %v1904 = vadd.f32 %v1885, %v1903
      %1905 = vmatmul.bf16.gmra.mxu0 %v1415
      %v1906 = vpop.f32.mrf.mxu0
      %v1907 = vadd.f32 %v1888, %v1906
      %v1908 = vpop.f32.mrf.mxu0
      %v1909 = vadd.f32 %v1890, %v1908
      %1910 = vdwg.mxu0
      %1911 = vmatpush.bf16.msra.mxu0 %v1752
      %1912 = vmatpush.bf16.msra.mxu0 %v1751
      %1913 = vmatpush.bf16.msra.mxu0 %v1750
      %1914 = vmatpush.bf16.msra.mxu0 %v1749
      %1915 = vmatpush.bf16.msra.mxu0 %v1748
      %1916 = vmatpush.bf16.msra.mxu0 %v1747
      %1917 = vmatpush.bf16.msra.mxu0 %v1746
      %1918 = vmatpush.bf16.msra.mxu0 %v1745
      %1919 = vmatmul.bf16.gmra.mxu0 %v1407
      %v1920 = vpop.f32.mrf.mxu0
      %v1921 = vadd.f32 %v1902, %v1920
      %v1922 = vpop.f32.mrf.mxu0
      %v1923 = vadd.f32 %v1904, %v1922
      %1924 = vmatmul.bf16.gmra.mxu0 %v1416
      %v1925 = vpop.f32.mrf.mxu0
      %v1926 = vadd.f32 %v1907, %v1925
      %v1927 = vpop.f32.mrf.mxu0
      %v1928 = vadd.f32 %v1909, %v1927
      %1929 = vdwg.mxu0
      %1930 = vmatpush.bf16.msra.mxu0 %v1760
      %1931 = vmatpush.bf16.msra.mxu0 %v1759
      %1932 = vmatpush.bf16.msra.mxu0 %v1758
      %1933 = vmatpush.bf16.msra.mxu0 %v1757
      %1934 = vmatpush.bf16.msra.mxu0 %v1756
      %1935 = vmatpush.bf16.msra.mxu0 %v1755
      %1936 = vmatpush.bf16.msra.mxu0 %v1754
      %1937 = vmatpush.bf16.msra.mxu0 %v1753
      %1938 = vmatmul.bf16.gmra.mxu0 %v1408
      %v1939 = vpop.f32.mrf.mxu0
      %v1940 = vadd.f32 %v1921, %v1939
      %v1941 = vpop.f32.mrf.mxu0
      %v1942 = vadd.f32 %v1923, %v1941
      %1943 = vmatmul.bf16.gmra.mxu0 %v1417
      %v1944 = vpop.f32.mrf.mxu0
      %v1945 = vadd.f32 %v1926, %v1944
      %v1946 = vpop.f32.mrf.mxu0
      %v1947 = vadd.f32 %v1928, %v1946
      %1948 = vdwg.mxu0
      %1949 = vmatpush.bf16.msra.mxu0 %v1768
      %1950 = vmatpush.bf16.msra.mxu0 %v1767
      %1951 = vmatpush.bf16.msra.mxu0 %v1766
      %1952 = vmatpush.bf16.msra.mxu0 %v1765
      %1953 = vmatpush.bf16.msra.mxu0 %v1764
      %1954 = vmatpush.bf16.msra.mxu0 %v1763
      %1955 = vmatpush.bf16.msra.mxu0 %v1762
      %1956 = vmatpush.bf16.msra.mxu0 %v1761
      %1957 = vmatmul.bf16.gmra.mxu0 %v1409
      %v1958 = vpop.f32.mrf.mxu0
      %v1959 = vadd.f32 %v1940, %v1958
      %v1960 = vpop.f32.mrf.mxu0
      %v1961 = vadd.f32 %v1942, %v1960
      %1962 = vmatmul.bf16.gmra.mxu0 %v1418
      %v1963 = vpop.f32.mrf.mxu0
      %v1964 = vadd.f32 %v1945, %v1963
      %v1965 = vpop.f32.mrf.mxu0
      %v1966 = vadd.f32 %v1947, %v1965
      %1967 = vdwg.mxu0
      %1968 = vmatpush.bf16.msra.mxu0 %v1776
      %1969 = vmatpush.bf16.msra.mxu0 %v1775
      %1970 = vmatpush.bf16.msra.mxu0 %v1774
      %1971 = vmatpush.bf16.msra.mxu0 %v1773
      %1972 = vmatpush.bf16.msra.mxu0 %v1772
      %1973 = vmatpush.bf16.msra.mxu0 %v1771
      %1974 = vmatpush.bf16.msra.mxu0 %v1770
      %1975 = vmatpush.bf16.msra.mxu0 %v1769
      %1976 = vmatmul.bf16.gmra.mxu0 %v1410
      %v1977 = vpop.f32.mrf.mxu0
      %v1978 = vadd.f32 %v1959, %v1977
      %v1979 = vpop.f32.mrf.mxu0
      %v1980 = vadd.f32 %v1961, %v1979
      %1981 = vmatmul.bf16.gmra.mxu0 %v1419
      %v1982 = vpop.f32.mrf.mxu0
      %v1983 = vadd.f32 %v1964, %v1982
      %v1984 = vpop.f32.mrf.mxu0
      %v1985 = vadd.f32 %v1966, %v1984
      %1986 = vdwg.mxu0
      %1987 = vmatpush.bf16.msra.mxu0 %v1784
      %1988 = vmatpush.bf16.msra.mxu0 %v1783
      %1989 = vmatpush.bf16.msra.mxu0 %v1782
      %1990 = vmatpush.bf16.msra.mxu0 %v1781
      %1991 = vmatpush.bf16.msra.mxu0 %v1780
      %1992 = vmatpush.bf16.msra.mxu0 %v1779
      %1993 = vmatpush.bf16.msra.mxu0 %v1778
      %1994 = vmatpush.bf16.msra.mxu0 %v1777
      %1995 = vmatmul.bf16.gmra.mxu0 %v1411
      %v1996 = vpop.f32.mrf.mxu0
      %v1997 = vadd.f32 %v1978, %v1996
      %v1998 = vpop.f32.mrf.mxu0
      %v1999 = vadd.f32 %v1980, %v1998
      %2000 = vmatmul.bf16.gmra.mxu0 %v1420
      %v2001 = vpop.f32.mrf.mxu0
      %v2002 = vadd.f32 %v1983, %v2001
      %v2003 = vpop.f32.mrf.mxu0
      %v2004 = vadd.f32 %v1985, %v2003
      %2005 = vdwg.mxu0
      %2006 = vmatpush.bf16.msra.mxu0 %v1792
      %2007 = vmatpush.bf16.msra.mxu0 %v1791
      %2008 = vmatpush.bf16.msra.mxu0 %v1790
      %2009 = vmatpush.bf16.msra.mxu0 %v1789
      %2010 = vmatpush.bf16.msra.mxu0 %v1788
      %2011 = vmatpush.bf16.msra.mxu0 %v1787
      %2012 = vmatpush.bf16.msra.mxu0 %v1786
      %2013 = vmatpush.bf16.msra.mxu0 %v1785
      %2014 = vmatmul.bf16.gmra.mxu0 %v1412
      %v2015 = vpop.f32.mrf.mxu0
      %v2016 = vadd.f32 %v1997, %v2015
      %v2017 = vpop.f32.mrf.mxu0
      %v2018 = vadd.f32 %v1999, %v2017
      %2019 = vmatmul.bf16.gmra.mxu0 %v1421
      %v2020 = vpop.f32.mrf.mxu0
      %v2021 = vadd.f32 %v2002, %v2020
      %v2022 = vpop.f32.mrf.mxu0
      %v2023 = vadd.f32 %v2004, %v2022
      %2024 = vdwg.mxu0
      %2025 = vmatpush.bf16.msra.mxu0 %v1800
      %2026 = vmatpush.bf16.msra.mxu0 %v1799
      %2027 = vmatpush.bf16.msra.mxu0 %v1798
      %2028 = vmatpush.bf16.msra.mxu0 %v1797
      %2029 = vmatpush.bf16.msra.mxu0 %v1796
      %2030 = vmatpush.bf16.msra.mxu0 %v1795
      %2031 = vmatpush.bf16.msra.mxu0 %v1794
      %2032 = vmatpush.bf16.msra.mxu0 %v1793
      %2033 = vmatmul.bf16.gmra.mxu0 %v1413
      %v2034 = vpop.f32.mrf.mxu0
      %v2035 = vadd.f32 %v2016, %v2034
      %v2036 = vpop.f32.mrf.mxu0
      %v2037 = vadd.f32 %v2018, %v2036
      %2038 = vmatmul.bf16.gmra.mxu0 %v1422
      %v2039 = vpop.f32.mrf.mxu0
      %v2040 = vadd.f32 %v2021, %v2039
      %v2041 = vpop.f32.mrf.mxu0
      %v2042 = vadd.f32 %v2023, %v2041
      %2043 = vdwg.mxu0
      %vm2044 = vcmask 523264
      %v2045 = vsel %vm2044, %v2035, 0.0
      %v2046 = vsel %vm2044, %v2037, 0.0
      %v2047 = vadd.f32 %v2045, %v2046
      %v2048 = vsel %vm2044, %v2040, 0.0
      %v2049 = vadd.f32 %v2047, %v2048
      %vm2050 = vcmask 516096
      %v2051 = vsel %vm2050, %v2042, 0.0
      %v2052 = vadd.f32 %v2049, %v2051
      %v2053 = vrot.slane %v2052, 4
      %v2054 = vadd.f32 %v2052, %v2053
      %v2055 = vrot.slane %v2054, 2
      %v2056 = vadd.f32 %v2054, %v2055
      %v2057 = vrot.slane %v2056, 1
      %v2058 = vadd.f32 %v2056, %v2057
      %v2059 = vmul.f32 %v2035, %v2035
      %v2060 = vmul.f32 %v2037, %v2037
      %v2061 = vmul.f32 %v2040, %v2040
      %v2062 = vmul.f32 %v2042, %v2042
      %v2063 = vsel %vm2044, %v2059, 0.0
      %v2064 = vsel %vm2044, %v2060, 0.0
      %v2065 = vadd.f32 %v2063, %v2064
      %v2066 = vsel %vm2044, %v2061, 0.0
      %v2067 = vadd.f32 %v2065, %v2066
      %v2068 = vsel %vm2050, %v2062, 0.0
      %v2069 = vadd.f32 %v2067, %v2068
      %v2070 = vrot.slane %v2069, 4
      %v2071 = vadd.f32 %v2069, %v2070
      %v2072 = vrot.slane %v2071, 2
      %v2073 = vadd.f32 %v2071, %v2072
      %v2074 = vrot.slane %v2073, 1
      %v2075 = vadd.f32 %v2073, %v2074
      %2077 = vrot.lane.b32.xlu0 %v2075, 64
      %v2078 = vpop.permute.xlu0 %2077
      %v2080 = vsel %vm2044, %v2058, %v2078
      %v2081 = vld [vmem:[%s4] sm:$0xff]
      %v2082 = vld [vmem:[%s4 + $0x8] sm:$0xff]
      %v2083 = vld [vmem:[%s4 + $0x10] sm:$0xff]
      %v2084 = vld [vmem:[%s4 + $0x18] sm:$0xff]
      %v2085 = vld [vmem:[%s4 + $0x20] sm:$0xff]
      %v2086 = vld [vmem:[%s4 + $0x28] sm:$0xff]
      %v2087 = vld [vmem:[%s4 + $0x30] sm:$0xff]
      %v2088 = vld [vmem:[%s4 + $0x38] sm:$0xff]
      %v2089 = vld [vmem:[%s4 + $0x40] sm:$0xff]
      %v2090 = vld [vmem:[%s4 + $0x48] sm:$0xff]
      %v2091 = vld [vmem:[%s4 + $0x50] sm:$0xff]
      %v2092 = vld [vmem:[%s4 + $0x58] sm:$0xff]
      %v2093 = vld [vmem:[%s4 + $0x60] sm:$0xff]
      %v2094 = vld [vmem:[%s4 + $0x68] sm:$0xff]
      %v2095 = vld [vmem:[%s4 + $0x70] sm:$0xff]
      %v2096 = vld [vmem:[%s4 + $0x78] sm:$0xff]
      %2097 = vmatpush.msra.mxu0 %v2096
      %2098 = vmatpush.msra.mxu0 %v2095
      %2099 = vmatpush.msra.mxu0 %v2094
      %2100 = vmatpush.msra.mxu0 %v2093
      %2101 = vmatpush.msra.mxu0 %v2092
      %2102 = vmatpush.msra.mxu0 %v2091
      %2103 = vmatpush.msra.mxu0 %v2090
      %2104 = vmatpush.msra.mxu0 %v2089
      %2105 = vmatpush.msra.mxu0 %v2088
      %2106 = vmatpush.msra.mxu0 %v2087
      %2107 = vmatpush.msra.mxu0 %v2086
      %2108 = vmatpush.msra.mxu0 %v2085
      %2109 = vmatpush.msra.mxu0 %v2084
      %2110 = vmatpush.msra.mxu0 %v2083
      %2111 = vmatpush.msra.mxu0 %v2082
      %2112 = vmatpush.msra.mxu0 %v2081
      %2113 = vmatmul.f32.gmra.mxu0 %v2080
      %v2114 = vpop.f32.mrf.mxu0
      %v2115 = vadd.f32 0.0, %v2114
      %2116 = vdwg.mxu0
      %v2117 = vmul.f32 %v2115, 0.02
      %v2118 = vmul.f32 %v2117, %v2117
      %2120 = vrot.lane.b32.xlu0 %v2118, 32
      %v2121 = vpop.permute.xlu0 %2120
      %v2123 = vsub.f32 %v2117, %v2121
      %v2124 = vmax.f32 %v2123, 0.0
      %v2125 = vadd.f32 %v2124, 1e-05
      %v2126 = vrsqrt.pop %v2125
      %v2127 = vmul.f32 %v2126, %v2125
      %v2128 = vmul.f32 %v2127, %v2126
      %v2129 = vmul.f32 0.5, %v2128
      %v2130 = vsub.f32 1.5, %v2129
      %v2131 = vmul.f32 %v2126, %v2130
      %vm2132 = vweird.f32 %v2125
      %vm2133 = vweird.f32 %v2126
      %vm2134 = vmor %vm2132, %vm2133
      %v2135 = vsel %vm2134, %v2126, %v2131
      %vm2136 = vcmask 261120
      %v2137 = vsel %vm2136, %v2117, %v2135
      %v2138 = vld [vmem:[%s5] sm:$0xff]
      %v2139 = vld [vmem:[%s5 + $0x8] sm:$0xff]
      %v2140 = vld [vmem:[%s5 + $0x10] sm:$0xff]
      %v2141 = vld [vmem:[%s5 + $0x18] sm:$0xff]
      %v2142 = vld [vmem:[%s5 + $0x20] sm:$0xff]
      %v2143 = vld [vmem:[%s5 + $0x28] sm:$0xff]
      %v2144 = vld [vmem:[%s5 + $0x30] sm:$0xff]
      %v2145 = vld [vmem:[%s5 + $0x38] sm:$0xff]
      %v2147 = vsel %vm2044, %v2137, 0
      %2149 = vmatpush.msra.mxu0 0.0
      %2150 = vmatpush.msra.mxu0 0.0
      %2151 = vmatpush.msra.mxu0 0.0
      %2152 = vmatpush.msra.mxu0 0.0
      %2153 = vmatpush.msra.mxu0 0.0
      %2154 = vmatpush.msra.mxu0 0.0
      %2155 = vmatpush.msra.mxu0 0.0
      %2156 = vmatpush.msra.mxu0 0.0
      %2157 = vmatpush.msra.mxu0 %v2145
      %2158 = vmatpush.msra.mxu0 %v2144
      %2159 = vmatpush.msra.mxu0 %v2143
      %2160 = vmatpush.msra.mxu0 %v2142
      %2161 = vmatpush.msra.mxu0 %v2141
      %2162 = vmatpush.msra.mxu0 %v2140
      %2163 = vmatpush.msra.mxu0 %v2139
      %2164 = vmatpush.msra.mxu0 %v2138
      %2165 = vmatmul.f32.gmra.mxu0 %v2147
      %v2166 = vpop.f32.mrf.mxu0
      %v2167 = vadd.f32 0.0, %v2166
      %2168 = vdwg.mxu0
      %v2169 = vld [vmem:[%s6] sm:$0x1]
      %2171 = vrot.lane.b32.xlu0 %v2167, 64
      %v2172 = vpop.permute.xlu0 %2171
      %v2174 = vmul.f32 %v2169, %v2172
      %v2175 = vld [vmem:[%s7] sm:$0x1]
      %v2176 = vmul.f32 %v2167, %v2174
      %v2177 = vsub.f32 %v2175, %v2176
      %v2179 = vperm.slane %v2174, 0
      %v2181 = vmul.f32 %v2035, %v2179
      %v2182 = vmul.f32 %v2037, %v2179
      %v2183 = vmul.f32 %v2040, %v2179
      %v2184 = vmul.f32 %v2042, %v2179
      %v2186 = vperm.slane %v2177, 0
      %v2188 = vadd.f32 %v2181, %v2186
      %v2189 = vadd.f32 %v2182, %v2186
      %v2190 = vadd.f32 %v2183, %v2186
      %v2191 = vadd.f32 %v2184, %v2186
      %v2192 = vmul.f32 %v2188, 0.5
      %v2193 = vmul.f32 %v2189, 0.5
      %v2194 = vmul.f32 %v2190, 0.5
      %v2195 = vmul.f32 %v2191, 0.5
      %v2196 = vtanh.pop %v2192
      %v2197 = vtanh.pop %v2193
      %v2198 = vtanh.pop %v2194
      %v2199 = vtanh.pop %v2195
      %v2200 = vmul.f32 %v2196, 0.5
      %v2201 = vmul.f32 %v2197, 0.5
      %v2202 = vmul.f32 %v2198, 0.5
      %v2203 = vmul.f32 %v2199, 0.5
      %v2204 = vadd.f32 %v2200, 0.5
      %v2205 = vadd.f32 %v2201, 0.5
      %v2206 = vadd.f32 %v2202, 0.5
      %v2207 = vadd.f32 %v2203, 0.5
      %v2208 = vmul.f32 %v2188, %v2204
      %v2209 = vmul.f32 %v2189, %v2205
      %v2210 = vmul.f32 %v2190, %v2206
      %v2211 = vmul.f32 %v2191, %v2207
      %v2212 = vpack.c.bf16 %v2208, %v2208
      %v2213 = vpack.c.bf16 %v2209, %v2209
      %v2214 = vpack.c.bf16 %v2210, %v2210
      %v2215 = vpack.c.bf16 %v2211, %v2211
      %vm2216 = vcmask 519168
      %2217 = vst.msk [vmem:[%s325] sm:$0xf] %vm2216, %v2212
      %2218 = vst.msk [vmem:[%s325 + $0x4] sm:$0xf] %vm2216, %v2213
      %2219 = vst.msk [vmem:[%s325 + $0x8] sm:$0xf] %vm2216, %v2214
      %vm2220 = vcmask 516096
      %vm2221 = vsmask.f32 256
      %vm2222 = vmand %vm2220, %vm2221
      %v2223 = vld [vmem:[%s325 + $0xc] sm:$0x1]
      %v2224 = vsel %vm2222, %v2215, %v2223
      %2225 = vst [vmem:[%s325 + $0xc] sm:$0x1] %v2224
      %p2226 = scmp.lt.s32.totalorder %s19, 1
      %s2227 = scalar_select %p2226, %s19, 1
      %s2228 = smul.addr %s2227, 4
      %s2229 = smul.addr %s2228, 4
      %s2230 = scalar_lea.vmem %s8, %s2229
      // Predicated region
      $region53: #{scorenet_forward.13} parent=51 // pred_check
        %p2231 = pneg %p215
      $region54: #{scorenet_forward.13} parent=51 // pred_check_branch
        %2233 = sbr.rel (%p2231) target = $region56
      $region55: #{scorenet_forward.13} parent=51 // pred_region
        _
      $region56: #{scorenet_forward.13} parent=51 // pred_fallthru
        _
    $region52: #{scorenet_forward.13} parent=5 // pred_fallthru
      _
    %p2234 = scmp.le.s32.totalorder 2, %s14
    // Predicated region
    $region57: #{scorenet_forward.13} parent=5 // pred_check
      %p2235 = pneg %p2234
    $region58: #{scorenet_forward.13} parent=5 // pred_check_branch
      %2237 = sbr.rel (%p2235) target = $region60
    $region59: #{scorenet_forward.13} parent=5 // pred_region
      %s2238 = ssub.s32 %s14, 2
      // Predicated region
      $region61: #{scorenet_forward.13} parent=59 // pred_check
        %p2239 = pneg %p221
      $region62: #{scorenet_forward.13} parent=59 // pred_check_branch
        %2241 = sbr.rel (%p2239) target = $region64
      $region63: #{scorenet_forward.13} parent=59 // pred_region
        %p2242 = scmp.lt.s32.totalorder %s20, 1
        %s2243 = scalar_select %p2242, %s20, 1
        %s2244 = smul.addr %s2243, 4
        %s2245 = smul.addr %s2244, 4
        %s2246 = scalar_lea.vmem %s8, %s2245
      $region64: #{scorenet_forward.13} parent=59 // pred_fallthru
        _
    $region60: #{scorenet_forward.13} parent=5 // pred_fallthru
      _
  $region6: #{scorenet_forward.13} parent=0 // loop_footer
    %s18 = sadd.s32 1, %s14
  $region7: #{scorenet_forward.13} parent=0 // loop_footer_branch
    %13 = sbr.rel target = $region3
  $region8: #{scorenet_forward.13} parent=0 // loop_exit
    _

// kernel: scorenet_forward.15
$region0: #{scorenet_forward.15}
  #allocation0 [shape = 'u32[]', space=smem, size = 0x4, offset = 0x4, fixed_abs, tag = 'smem constant byte address 0x4 - core index']
  #allocation1 [shape = 'u32[72,128]{1,0:T(1,128)}', space=vmem, size = 0x9000, scoped, tag = 'internal scratch']
  #allocation2 [shape = 'f32[1,1]{1,0:T(1,128)S(1)}', space=vmem, size = 0x200, scoped, tag = 'scoped memory for scorenet_forward.15']
  %s0 = inlined_call_operand.vmem [shape: bf16[2,100,288], index: 0, kind: input, shape index: {}]
  %s1 = inlined_call_operand.vmem [shape: bf16[288,128], index: 1, kind: input, shape index: {}]
  %s2 = inlined_call_operand.vmem [shape: bf16[2,100,288], index: 2, kind: input, shape index: {}]
  %s3 = inlined_call_operand.vmem [shape: bf16[288,128], index: 3, kind: input, shape index: {}]
  %s4 = inlined_call_operand.<no memory space> [shape: f32[1,1], index: 4, kind: input, shape index: {}]
  %s5 = inlined_call_operand.vmem [shape: f32[2], index: 5, kind: input, shape index: {}]
  %s6 = inlined_call_operand.vmem [shape: f32[2,100,1], index: 6, kind: output, shape index: {}]
  %s7 = sld [smem:[#allocation0]]
  $region61: #{scorenet_forward.15} parent=0
    _
  %s9 = ssub.s32 1, %s7
  %s10 = scalar_select 0, %s9, %s7
  %v11 = vstv %s4
  %12 = vst [vmem:[#allocation2] sm:$0x1] %v11
  $region1: #{scorenet_forward.15} parent=0
    #allocation3 [shape = 'u8[512]{0}', space=smem, size = 0x200, scoped, tag = 'input window, operand 5, single buffered']
    #allocation4 [shape = 's32[2]{0}', space=sflag, size = 0x8, scoped, tag = 'scoped memory for scorenet_forward.15']
    %13 = vsyncpa [#allocation4], 0
    loop: start=0, step=1, limit=4
    $region2: #{scorenet_forward.15} parent=1 // loop_pre_header
      _
    $region3: #{scorenet_forward.15} parent=1 // loop_header
      %s15 = sphi 0, %s19
      %p16 = scmp.ge.s32.totalorder %s15, 4
      %s25 = sphi 0, %s27
      %s28 = sphi 0, %s25
      %s29 = sphi 0, %s28
      %s45 = sphi 0, %s29
      %s49 = sphi 0, %s49
      %s51 = sphi 0, %s49
      %s52 = sphi 0, %s51
      %s66 = sphi 0, %s52
      %s72 = sphi 0, %s74
      %s75 = sphi 0, %s72
      %s76 = sphi 0, %s75
      %s92 = sphi 0, %s76
      %s96 = sphi 0, %s96
      %s98 = sphi 0, %s96
      %s99 = sphi 0, %s98
      %s113 = sphi 0, %s99
      %s117 = sphi 0, %s117
      %s119 = sphi 0, %s117
      %s120 = sphi 0, %s119
      %s134 = sphi 0, %s120
      %s138 = sphi 0, %s138
      %s140 = sphi 0, %s138
      %s141 = sphi 0, %s140
      %s155 = sphi 0, %s141
      %s161 = sphi 0, %s163
      %s164 = sphi 0, %s161
      %s165 = sphi 0, %s164
      %s181 = sphi 0, %s165
    $region4: #{scorenet_forward.15} parent=1 // loop_header_branch
      %18 = sbr.rel (%p16) target = $region8
    $region5: #{scorenet_forward.15} parent=1 // loop_body
      %s20 = ssub.s32 %s15, 1
      %s21 = ssub.s32 %s15, 2
      %s22 = sadd.s32 %s15, 1
      %s23 = ssub.s32 %s15, %s22
      %p24 = scmp.eq.s32.totalorder %s23, 0
      %s26 = sadd.s32 %s25, 1
      %s27 = scalar_select %p24, %s25, %s26
      %p30 = pneg %p24
      %p31 = scmp.eq.s32.totalorder %s15, 1
      %p32 = por %p30, %p31
      %p33 = scmp.ne.s32.totalorder %s25, %s28
      %p34 = scmp.eq.s32.totalorder %s15, 0
      %p35 = por %p33, %p34
      %p36 = scmp.ne.s32.totalorder %s25, %s28
      %p37 = scmp.eq.s32.totalorder %s20, 1
      %p38 = por %p36, %p37
      %p39 = scmp.ne.s32.totalorder %s28, %s29
      %p40 = scmp.eq.s32.totalorder %s20, 0
      %p41 = por %p39, %p40
      %p42 = scmp.ne.s32.totalorder %s28, %s29
      %p43 = scmp.eq.s32.totalorder %s21, 1
      %p44 = por %p42, %p43
      %p46 = scmp.ne.s32.totalorder %s29, %s45
      %p47 = scmp.eq.s32.totalorder %s21, 0
      %p48 = por %p46, %p47
      %s50 = sadd.s32 %s49, 1
      %p53 = scmp.eq.s32.totalorder %s15, 1
      %p54 = scmp.ne.s32.totalorder %s49, %s51
      %p55 = scmp.eq.s32.totalorder %s15, 0
      %p56 = por %p54, %p55
      %p57 = scmp.ne.s32.totalorder %s49, %s51
      %p58 = scmp.eq.s32.totalorder %s20, 1
      %p59 = por %p57, %p58
      %p60 = scmp.ne.s32.totalorder %s51, %s52
      %p61 = scmp.eq.s32.totalorder %s20, 0
      %p62 = por %p60, %p61
      %p63 = scmp.ne.s32.totalorder %s51, %s52
      %p64 = scmp.eq.s32.totalorder %s21, 1
      %p65 = por %p63, %p64
      %p67 = scmp.ne.s32.totalorder %s52, %s66
      %p68 = scmp.eq.s32.totalorder %s21, 0
      %p69 = por %p67, %p68
      %s70 = ssub.s32 %s15, %s22
      %p71 = scmp.eq.s32.totalorder %s70, 0
      %s73 = sadd.s32 %s72, 1
      %s74 = scalar_select %p71, %s72, %s73
      %p77 = pneg %p71
      %p78 = scmp.eq.s32.totalorder %s15, 1
      %p79 = por %p77, %p78
      %p80 = scmp.ne.s32.totalorder %s72, %s75
      %p81 = scmp.eq.s32.totalorder %s15, 0
      %p82 = por %p80, %p81
      %p83 = scmp.ne.s32.totalorder %s72, %s75
      %p84 = scmp.eq.s32.totalorder %s20, 1
      %p85 = por %p83, %p84
      %p86 = scmp.ne.s32.totalorder %s75, %s76
      %p87 = scmp.eq.s32.totalorder %s20, 0
      %p88 = por %p86, %p87
      %p89 = scmp.ne.s32.totalorder %s75, %s76
      %p90 = scmp.eq.s32.totalorder %s21, 1
      %p91 = por %p89, %p90
      %p93 = scmp.ne.s32.totalorder %s76, %s92
      %p94 = scmp.eq.s32.totalorder %s21, 0
      %p95 = por %p93, %p94
      %s97 = sadd.s32 %s96, 1
      %p100 = scmp.eq.s32.totalorder %s15, 1
      %p101 = scmp.ne.s32.totalorder %s96, %s98
      %p102 = scmp.eq.s32.totalorder %s15, 0
      %p103 = por %p101, %p102
      %p104 = scmp.ne.s32.totalorder %s96, %s98
      %p105 = scmp.eq.s32.totalorder %s20, 1
      %p106 = por %p104, %p105
      %p107 = scmp.ne.s32.totalorder %s98, %s99
      %p108 = scmp.eq.s32.totalorder %s20, 0
      %p109 = por %p107, %p108
      %p110 = scmp.ne.s32.totalorder %s98, %s99
      %p111 = scmp.eq.s32.totalorder %s21, 1
      %p112 = por %p110, %p111
      %p114 = scmp.ne.s32.totalorder %s99, %s113
      %p115 = scmp.eq.s32.totalorder %s21, 0
      %p116 = por %p114, %p115
      %s118 = sadd.s32 %s117, 1
      %p121 = scmp.eq.s32.totalorder %s15, 1
      %p122 = scmp.ne.s32.totalorder %s117, %s119
      %p123 = scmp.eq.s32.totalorder %s15, 0
      %p124 = por %p122, %p123
      %p125 = scmp.ne.s32.totalorder %s117, %s119
      %p126 = scmp.eq.s32.totalorder %s20, 1
      %p127 = por %p125, %p126
      %p128 = scmp.ne.s32.totalorder %s119, %s120
      %p129 = scmp.eq.s32.totalorder %s20, 0
      %p130 = por %p128, %p129
      %p131 = scmp.ne.s32.totalorder %s119, %s120
      %p132 = scmp.eq.s32.totalorder %s21, 1
      %p133 = por %p131, %p132
      %p135 = scmp.ne.s32.totalorder %s120, %s134
      %p136 = scmp.eq.s32.totalorder %s21, 0
      %p137 = por %p135, %p136
      %s139 = sadd.s32 %s138, 1
      %p142 = scmp.eq.s32.totalorder %s15, 1
      %p143 = scmp.ne.s32.totalorder %s138, %s140
      %p144 = scmp.eq.s32.totalorder %s15, 0
      %p145 = por %p143, %p144
      %p146 = scmp.ne.s32.totalorder %s138, %s140
      %p147 = scmp.eq.s32.totalorder %s20, 1
      %p148 = por %p146, %p147
      %p149 = scmp.ne.s32.totalorder %s140, %s141
      %p150 = scmp.eq.s32.totalorder %s20, 0
      %p151 = por %p149, %p150
      %p152 = scmp.ne.s32.totalorder %s140, %s141
      %p153 = scmp.eq.s32.totalorder %s21, 1
      %p154 = por %p152, %p153
      %p156 = scmp.ne.s32.totalorder %s141, %s155
      %p157 = scmp.eq.s32.totalorder %s21, 0
      %p158 = por %p156, %p157
      %s159 = ssub.s32 %s15, %s22
      %p160 = scmp.eq.s32.totalorder %s159, 0
      %s162 = sadd.s32 %s161, 1
      %s163 = scalar_select %p160, %s161, %s162
      %p166 = pneg %p160
      %p167 = scmp.eq.s32.totalorder %s15, 1
      %p168 = por %p166, %p167
      %p169 = scmp.ne.s32.totalorder %s161, %s164
      %p170 = scmp.eq.s32.totalorder %s15, 0
      %p171 = por %p169, %p170
      %p172 = scmp.ne.s32.totalorder %s161, %s164
      %p173 = scmp.eq.s32.totalorder %s20, 1
      %p174 = por %p172, %p173
      %p175 = scmp.ne.s32.totalorder %s164, %s165
      %p176 = scmp.eq.s32.totalorder %s20, 0
      %p177 = por %p175, %p176
      %p178 = scmp.ne.s32.totalorder %s164, %s165
      %p179 = scmp.eq.s32.totalorder %s21, 1
      %p180 = por %p178, %p179
      %p182 = scmp.ne.s32.totalorder %s165, %s181
      %p183 = scmp.eq.s32.totalorder %s21, 0
      %p184 = por %p182, %p183
      %p185 = scmp.le.s32.totalorder 1, %s15
      %p186 = scmp.lt.s32.totalorder %s15, 3
      %p187 = pnand %p185, %p186
      %p188 = pneg %p187
      // Predicated region
      $region9: #{scorenet_forward.15} parent=5 // pred_check
        _
      $region10: #{scorenet_forward.15} parent=5 // pred_check_branch
        %190 = sbr.rel (%p187) target = $region12
      $region11: #{scorenet_forward.15} parent=5 // pred_region
        %s191 = ssub.s32 %s15, 1
        // Predicated region
        $region13: #{scorenet_forward.15} parent=11 // pred_check
          %p192 = pneg %p62
        $region14: #{scorenet_forward.15} parent=11 // pred_check_branch
          %194 = sbr.rel (%p192) target = $region16
        $region15: #{scorenet_forward.15} parent=11 // pred_region
          _
        $region16: #{scorenet_forward.15} parent=11 // pred_fallthru
          _
        // Predicated region
        $region17: #{scorenet_forward.15} parent=11 // pred_check
          %p195 = pneg %p109
        $region18: #{scorenet_forward.15} parent=11 // pred_check_branch
          %197 = sbr.rel (%p195) target = $region20
        $region19: #{scorenet_forward.15} parent=11 // pred_region
          _
        $region20: #{scorenet_forward.15} parent=11 // pred_fallthru
          _
        // Predicated region
        $region21: #{scorenet_forward.15} parent=11 // pred_check
          %p198 = pneg %p130
        $region22: #{scorenet_forward.15} parent=11 // pred_check_branch
          %200 = sbr.rel (%p198) target = $region24
        $region23: #{scorenet_forward.15} parent=11 // pred_region
          _
        $region24: #{scorenet_forward.15} parent=11 // pred_fallthru
          _
        // Predicated region
        $region25: #{scorenet_forward.15} parent=11 // pred_check
          %p201 = pneg %p151
        $region26: #{scorenet_forward.15} parent=11 // pred_check_branch
          %203 = sbr.rel (%p201) target = $region28
        $region27: #{scorenet_forward.15} parent=11 // pred_region
          %205 = vsyncadd [#allocation4], 0
          %s207 = sshll.u32 %s5, 4
          %s208 = int_to_ptr.vmem [resolvable:$true] %s207
          %210 = dma.vmem_to_smem %s208, 16, [#allocation3], [#allocation4]
        $region28: #{scorenet_forward.15} parent=11 // pred_fallthru
          _
      $region12: #{scorenet_forward.15} parent=5 // pred_fallthru
        _
      %p211 = scmp.lt.s32.totalorder %s15, 2
      // Predicated region
      $region29: #{scorenet_forward.15} parent=5 // pred_check
        %p212 = pneg %p211
      $region30: #{scorenet_forward.15} parent=5 // pred_check_branch
        %214 = sbr.rel (%p212) target = $region32
      $region31: #{scorenet_forward.15} parent=5 // pred_region
        // Predicated region
        $region33: #{scorenet_forward.15} parent=31 // pred_check
          %p215 = pneg %p35
        $region34: #{scorenet_forward.15} parent=31 // pred_check_branch
          %217 = sbr.rel (%p215) target = $region36
        $region35: #{scorenet_forward.15} parent=31 // pred_region
          %p218 = scmp.lt.s32.totalorder %s15, 1
          %s219 = scalar_select %p218, %s15, 1
          %s220 = smul.addr %s219, 39
          %s221 = smul.addr %s220, 4
          %s222 = scalar_lea.vmem %s0, %s221
        $region36: #{scorenet_forward.15} parent=31 // pred_fallthru
          _
        // Predicated region
        $region37: #{scorenet_forward.15} parent=31 // pred_check
          %p223 = pneg %p82
        $region38: #{scorenet_forward.15} parent=31 // pred_check_branch
          %225 = sbr.rel (%p223) target = $region40
        $region39: #{scorenet_forward.15} parent=31 // pred_region
          %p226 = scmp.lt.s32.totalorder %s15, 1
          %s227 = scalar_select %p226, %s15, 1
          %s228 = smul.addr %s227, 39
          %s229 = smul.addr %s228, 4
          %s230 = scalar_lea.vmem %s2, %s229
        $region40: #{scorenet_forward.15} parent=31 // pred_fallthru
          _
      $region32: #{scorenet_forward.15} parent=5 // pred_fallthru
        _
      %p231 = scmp.le.s32.totalorder 1, %s15
      %p232 = scmp.lt.s32.totalorder %s15, 3
      %p233 = pnand %p231, %p232
      %p234 = pneg %p233
      // Predicated region
      $region41: #{scorenet_forward.15} parent=5 // pred_check
        _
      $region42: #{scorenet_forward.15} parent=5 // pred_check_branch
        %236 = sbr.rel (%p233) target = $region44
      $region43: #{scorenet_forward.15} parent=5 // pred_region
        %s237 = ssub.s32 %s15, 1
        // Predicated region
        $region45: #{scorenet_forward.15} parent=43 // pred_check
          %p238 = pneg %p151
        $region46: #{scorenet_forward.15} parent=43 // pred_check_branch
          %240 = sbr.rel (%p238) target = $region48
        $region47: #{scorenet_forward.15} parent=43 // pred_region
          %242 = dma.done [#allocation4], 16
        $region48: #{scorenet_forward.15} parent=43 // pred_fallthru
          _
        %243 = sfence
        %p244 = scmp.lt.s32.totalorder %s20, 1
        %s245 = scalar_select %p244, %s20, 1
        %s246 = smul.addr %s245, 39
        %s247 = smul.addr %s246, 4
        %s248 = scalar_lea.vmem %s0, %s247
        %p249 = pneg %p41
        %p250 = pneg %p38
        %p251 = pneg %p62
        %p252 = pneg %p59
        %p253 = scmp.lt.s32.totalorder %s20, 1
        %s254 = scalar_select %p253, %s20, 1
        %s255 = smul.addr %s254, 39
        %s256 = smul.addr %s255, 4
        %s257 = scalar_lea.vmem %s2, %s256
        %p258 = pneg %p88
        %p259 = pneg %p85
        %p260 = pneg %p109
        %p261 = pneg %p106
        %p262 = pneg %p130
        %p263 = pneg %p127
        %p264 = pneg %p151
        %p265 = pneg %p148
        %p266 = pneg %p177
        %p267 = pneg %p174
        %p268 = scmp.lt.s32.totalorder %s20, 1
        %s269 = scalar_select %p268, %s20, 1
        %s270 = smul.addr %s269, 13
        %s271 = smul.addr %s270, 8
        %s272 = scalar_lea.vmem %s6, %s271
        %p273 = scmp.lt.s32.totalorder %s20, 1
        %s274 = scalar_select %p273, %s20, 1
        %s275 = smul.addr %s274, 39
        %s276 = smul.addr %s275, 4
        %s277 = scalar_lea.vmem %s0, %s276
        %p278 = scmp.lt.s32.totalorder %s20, 1
        %s279 = scalar_select %p278, %s20, 1
        %s280 = smul.addr %s279, 39
        %s281 = smul.addr %s280, 4
        %s282 = scalar_lea.vmem %s2, %s281
        %p283 = scmp.lt.s32.totalorder %s20, 1
        %s284 = scalar_select %p283, %s20, 1
        %s285 = smul.addr %s284, 13
        %s286 = smul.addr %s285, 8
        %s287 = scalar_lea.vmem %s6, %s286
        %v289 = vld [vmem:[%s277] sm:$0xff]
        %v290 = vld [vmem:[%s277 + $0x8] sm:$0xf]
        %v291 = vld [vmem:[%s277 + $0xc] sm:$0xff]
        %v292 = vld [vmem:[%s277 + $0x14] sm:$0xf]
        %v293 = vld [vmem:[%s277 + $0x18] sm:$0xff]
        %v294 = vld [vmem:[%s277 + $0x20] sm:$0xf]
        %v295 = vld [vmem:[%s277 + $0x24] sm:$0xff]
        %v296 = vld [vmem:[%s277 + $0x2c] sm:$0xf]
        %v297 = vld [vmem:[%s277 + $0x30] sm:$0xff]
        %v298 = vld [vmem:[%s277 + $0x38] sm:$0xf]
        %v299 = vld [vmem:[%s277 + $0x3c] sm:$0xff]
        %v300 = vld [vmem:[%s277 + $0x44] sm:$0xf]
        %v301 = vld [vmem:[%s277 + $0x48] sm:$0xff]
        %v302 = vld [vmem:[%s277 + $0x50] sm:$0xf]
        %v303 = vld [vmem:[%s277 + $0x54] sm:$0xff]
        %v304 = vld [vmem:[%s277 + $0x5c] sm:$0xf]
        %v305 = vld [vmem:[%s277 + $0x60] sm:$0xff]
        %v306 = vld [vmem:[%s277 + $0x68] sm:$0xf]
        %v307 = vld [vmem:[%s277 + $0x6c] sm:$0xff]
        %v308 = vld [vmem:[%s277 + $0x74] sm:$0xf]
        %v309 = vld [vmem:[%s277 + $0x78] sm:$0xff]
        %v310 = vld [vmem:[%s277 + $0x80] sm:$0xf]
        %v311 = vld [vmem:[%s277 + $0x84] sm:$0xff]
        %v312 = vld [vmem:[%s277 + $0x8c] sm:$0xf]
        %v313 = vld [vmem:[%s277 + $0x90] sm:$0x33]
        %v314 = vld [vmem:[%s277 + $0x98] sm:$0x3]
        %v315 = vld [vmem:[%s1] sm:$0xf]
        %v316 = vld [vmem:[%s1 + $0x4] sm:$0xf]
        %v317 = vld [vmem:[%s1 + $0x8] sm:$0xf]
        %v318 = vld [vmem:[%s1 + $0xc] sm:$0xf]
        %v319 = vld [vmem:[%s1 + $0x10] sm:$0xf]
        %v320 = vld [vmem:[%s1 + $0x14] sm:$0xf]
        %v321 = vld [vmem:[%s1 + $0x18] sm:$0xf]
        %v322 = vld [vmem:[%s1 + $0x1c] sm:$0xf]
        %v323 = vld [vmem:[%s1 + $0x20] sm:$0xf]
        %v324 = vld [vmem:[%s1 + $0x24] sm:$0xf]
        %v325 = vld [vmem:[%s1 + $0x28] sm:$0xf]
        %v326 = vld [vmem:[%s1 + $0x2c] sm:$0xf]
        %v327 = vld [vmem:[%s1 + $0x30] sm:$0xf]
        %v328 = vld [vmem:[%s1 + $0x34] sm:$0xf]
        %v329 = vld [vmem:[%s1 + $0x38] sm:$0xf]
        %v330 = vld [vmem:[%s1 + $0x3c] sm:$0xf]
        %v331 = vld [vmem:[%s1 + $0x40] sm:$0xf]
        %v332 = vld [vmem:[%s1 + $0x44] sm:$0xf]
        %v333 = vld [vmem:[%s1 + $0x48] sm:$0xf]
        %v334 = vld [vmem:[%s1 + $0x4c] sm:$0xf]
        %v335 = vld [vmem:[%s1 + $0x50] sm:$0xf]
        %v336 = vld [vmem:[%s1 + $0x54] sm:$0xf]
        %v337 = vld [vmem:[%s1 + $0x58] sm:$0xf]
        %v338 = vld [vmem:[%s1 + $0x5c] sm:$0xf]
        %v339 = vld [vmem:[%s1 + $0x60] sm:$0xf]
        %v340 = vld [vmem:[%s1 + $0x64] sm:$0xf]
        %v341 = vld [vmem:[%s1 + $0x68] sm:$0xf]
        %v342 = vld [vmem:[%s1 + $0x6c] sm:$0xf]
        %v343 = vld [vmem:[%s1 + $0x70] sm:$0xf]
        %v344 = vld [vmem:[%s1 + $0x74] sm:$0xf]
        %v345 = vld [vmem:[%s1 + $0x78] sm:$0xf]
        %v346 = vld [vmem:[%s1 + $0x7c] sm:$0xf]
        %v347 = vld [vmem:[%s1 + $0x80] sm:$0xf]
        %v348 = vld [vmem:[%s1 + $0x84] sm:$0xf]
        %v349 = vld [vmem:[%s1 + $0x88] sm:$0xf]
        %v350 = vld [vmem:[%s1 + $0x8c] sm:$0xf]
        %v351 = vld [vmem:[%s282] sm:$0xff]
        %v352 = vld [vmem:[%s282 + $0x8] sm:$0xf]
        %v353 = vld [vmem:[%s282 + $0xc] sm:$0xff]
        %v354 = vld [vmem:[%s282 + $0x14] sm:$0xf]
        %v355 = vld [vmem:[%s282 + $0x18] sm:$0xff]
        %v356 = vld [vmem:[%s282 + $0x20] sm:$0xf]
        %v357 = vld [vmem:[%s282 + $0x24] sm:$0xff]
        %v358 = vld [vmem:[%s282 + $0x2c] sm:$0xf]
        %v359 = vld [vmem:[%s282 + $0x30] sm:$0xff]
        %v360 = vld [vmem:[%s282 + $0x38] sm:$0xf]
        %v361 = vld [vmem:[%s282 + $0x3c] sm:$0xff]
        %v362 = vld [vmem:[%s282 + $0x44] sm:$0xf]
        %v363 = vld [vmem:[%s282 + $0x48] sm:$0xff]
        %v364 = vld [vmem:[%s282 + $0x50] sm:$0xf]
        %v365 = vld [vmem:[%s282 + $0x54] sm:$0xff]
        %v366 = vld [vmem:[%s282 + $0x5c] sm:$0xf]
        %v367 = vld [vmem:[%s282 + $0x60] sm:$0xff]
        %v368 = vld [vmem:[%s282 + $0x68] sm:$0xf]
        %v369 = vld [vmem:[%s282 + $0x6c] sm:$0xff]
        %v370 = vld [vmem:[%s282 + $0x74] sm:$0xf]
        %v371 = vld [vmem:[%s282 + $0x78] sm:$0xff]
        %v372 = vld [vmem:[%s282 + $0x80] sm:$0xf]
        %v373 = vld [vmem:[%s282 + $0x84] sm:$0xff]
        %v374 = vld [vmem:[%s282 + $0x8c] sm:$0xf]
        %v375 = vld [vmem:[%s282 + $0x90] sm:$0x33]
        %v376 = vld [vmem:[%s282 + $0x98] sm:$0x3]
        %v377 = vld [vmem:[%s3] sm:$0xf]
        %v378 = vld [vmem:[%s3 + $0x4] sm:$0xf]
        %v379 = vld [vmem:[%s3 + $0x8] sm:$0xf]
        %v380 = vld [vmem:[%s3 + $0xc] sm:$0xf]
        %v381 = vld [vmem:[%s3 + $0x10] sm:$0xf]
        %v382 = vld [vmem:[%s3 + $0x14] sm:$0xf]
        %v383 = vld [vmem:[%s3 + $0x18] sm:$0xf]
        %v384 = vld [vmem:[%s3 + $0x1c] sm:$0xf]
        %v385 = vld [vmem:[%s3 + $0x20] sm:$0xf]
        %v386 = vld [vmem:[%s3 + $0x24] sm:$0xf]
        %v387 = vld [vmem:[%s3 + $0x28] sm:$0xf]
        %v388 = vld [vmem:[%s3 + $0x2c] sm:$0xf]
        %v389 = vld [vmem:[%s3 + $0x30] sm:$0xf]
        %v390 = vld [vmem:[%s3 + $0x34] sm:$0xf]
        %v391 = vld [vmem:[%s3 + $0x38] sm:$0xf]
        %v392 = vld [vmem:[%s3 + $0x3c] sm:$0xf]
        %v393 = vld [vmem:[%s3 + $0x40] sm:$0xf]
        %v394 = vld [vmem:[%s3 + $0x44] sm:$0xf]
        %v395 = vld [vmem:[%s3 + $0x48] sm:$0xf]
        %v396 = vld [vmem:[%s3 + $0x4c] sm:$0xf]
        %v397 = vld [vmem:[%s3 + $0x50] sm:$0xf]
        %v398 = vld [vmem:[%s3 + $0x54] sm:$0xf]
        %v399 = vld [vmem:[%s3 + $0x58] sm:$0xf]
        %v400 = vld [vmem:[%s3 + $0x5c] sm:$0xf]
        %v401 = vld [vmem:[%s3 + $0x60] sm:$0xf]
        %v402 = vld [vmem:[%s3 + $0x64] sm:$0xf]
        %v403 = vld [vmem:[%s3 + $0x68] sm:$0xf]
        %v404 = vld [vmem:[%s3 + $0x6c] sm:$0xf]
        %v405 = vld [vmem:[%s3 + $0x70] sm:$0xf]
        %v406 = vld [vmem:[%s3 + $0x74] sm:$0xf]
        %v407 = vld [vmem:[%s3 + $0x78] sm:$0xf]
        %v408 = vld [vmem:[%s3 + $0x7c] sm:$0xf]
        %v409 = vld [vmem:[%s3 + $0x80] sm:$0xf]
        %v410 = vld [vmem:[%s3 + $0x84] sm:$0xf]
        %v411 = vld [vmem:[%s3 + $0x88] sm:$0xf]
        %v412 = vld [vmem:[%s3 + $0x8c] sm:$0xf]
        %v439 = vunpack.c.l.b16 %v351
        %v440 = vunpack.c.h.b16 %v351
        %v441 = vunpack.c.l.b16 %v352
        %v442 = vunpack.c.l.b16 %v353
        %v443 = vunpack.c.h.b16 %v353
        %v444 = vunpack.c.l.b16 %v354
        %v445 = vunpack.c.l.b16 %v355
        %v446 = vunpack.c.h.b16 %v355
        %v447 = vunpack.c.l.b16 %v356
        %v448 = vunpack.c.l.b16 %v357
        %v449 = vunpack.c.h.b16 %v357
        %v450 = vunpack.c.l.b16 %v358
        %v451 = vunpack.c.l.b16 %v359
        %v452 = vunpack.c.h.b16 %v359
        %v453 = vunpack.c.l.b16 %v360
        %v454 = vunpack.c.l.b16 %v361
        %v455 = vunpack.c.h.b16 %v361
        %v456 = vunpack.c.l.b16 %v362
        %v457 = vunpack.c.l.b16 %v363
        %v458 = vunpack.c.h.b16 %v363
        %v459 = vunpack.c.l.b16 %v364
        %v460 = vunpack.c.l.b16 %v365
        %v461 = vunpack.c.h.b16 %v365
        %v462 = vunpack.c.l.b16 %v366
        %v463 = vunpack.c.l.b16 %v367
        %v464 = vunpack.c.h.b16 %v367
        %v465 = vunpack.c.l.b16 %v368
        %v466 = vunpack.c.l.b16 %v369
        %v467 = vunpack.c.h.b16 %v369
        %v468 = vunpack.c.l.b16 %v370
        %v469 = vunpack.c.l.b16 %v371
        %v470 = vunpack.c.h.b16 %v371
        %v471 = vunpack.c.l.b16 %v372
        %v472 = vunpack.c.l.b16 %v373
        %v473 = vunpack.c.h.b16 %v373
        %v474 = vunpack.c.l.b16 %v374
        %v475 = vunpack.c.l.b16 %v375
        %v476 = vunpack.c.h.b16 %v375
        %v477 = vunpack.c.l.b16 %v376
        %v478 = vpack.c.b16 %v442, %v439
        %v479 = vpack.c.b16 %v443, %v440
        %v480 = vpack.c.b16 %v444, %v441
        %v481 = vpack.c.b16 %v448, %v445
        %v482 = vpack.c.b16 %v449, %v446
        %v483 = vpack.c.b16 %v450, %v447
        %v484 = vpack.c.b16 %v454, %v451
        %v485 = vpack.c.b16 %v455, %v452
        %v486 = vpack.c.b16 %v456, %v453
        %v487 = vpack.c.b16 %v460, %v457
        %v488 = vpack.c.b16 %v461, %v458
        %v489 = vpack.c.b16 %v462, %v459
        %v490 = vpack.c.b16 %v466, %v463
        %v491 = vpack.c.b16 %v467, %v464
        %v492 = vpack.c.b16 %v468, %v465
        %v493 = vpack.c.b16 %v472, %v469
        %v494 = vpack.c.b16 %v473, %v470
        %v495 = vpack.c.b16 %v474, %v471
        %v496 = vpack.c.b16 %v475, %v475
        %v497 = vpack.c.b16 %v476, %v476
        %v498 = vpack.c.b16 %v477, %v477
        %v549 = vunpack.c.l.b16 %v377
        %v550 = vunpack.c.l.b16 %v378
        %v551 = vunpack.c.l.b16 %v379
        %v552 = vunpack.c.l.b16 %v380
        %v553 = vunpack.c.l.b16 %v381
        %v554 = vunpack.c.l.b16 %v382
        %v555 = vunpack.c.l.b16 %v383
        %v556 = vunpack.c.l.b16 %v384
        %v557 = vunpack.c.l.b16 %v385
        %v558 = vunpack.c.l.b16 %v386
        %v559 = vunpack.c.l.b16 %v387
        %v560 = vunpack.c.l.b16 %v388
        %v561 = vunpack.c.l.b16 %v389
        %v562 = vunpack.c.l.b16 %v390
        %v563 = vunpack.c.l.b16 %v391
        %v564 = vunpack.c.l.b16 %v392
        %v565 = vunpack.c.l.b16 %v393
        %v566 = vunpack.c.l.b16 %v394
        %v567 = vunpack.c.l.b16 %v395
        %v568 = vunpack.c.l.b16 %v396
        %v569 = vunpack.c.l.b16 %v397
        %v570 = vunpack.c.l.b16 %v398
        %v571 = vunpack.c.l.b16 %v399
        %v572 = vunpack.c.l.b16 %v400
        %v573 = vunpack.c.l.b16 %v401
        %v574 = vunpack.c.l.b16 %v402
        %v575 = vunpack.c.l.b16 %v403
        %v576 = vunpack.c.l.b16 %v404
        %v577 = vunpack.c.l.b16 %v405
        %v578 = vunpack.c.l.b16 %v406
        %v579 = vunpack.c.l.b16 %v407
        %v580 = vunpack.c.l.b16 %v408
        %v581 = vunpack.c.l.b16 %v409
        %v582 = vunpack.c.l.b16 %v410
        %v583 = vunpack.c.l.b16 %v411
        %v584 = vunpack.c.l.b16 %v412
        %v585 = vpack.c.b16 %v550, %v549
        %v586 = vpack.c.b16 %v552, %v551
        %v587 = vpack.c.b16 %v554, %v553
        %v588 = vpack.c.b16 %v556, %v555
        %v589 = vpack.c.b16 %v558, %v557
        %v590 = vpack.c.b16 %v560, %v559
        %v591 = vpack.c.b16 %v562, %v561
        %v592 = vpack.c.b16 %v564, %v563
        %v593 = vpack.c.b16 %v566, %v565
        %v594 = vpack.c.b16 %v568, %v567
        %v595 = vpack.c.b16 %v570, %v569
        %v596 = vpack.c.b16 %v572, %v571
        %v597 = vpack.c.b16 %v574, %v573
        %v598 = vpack.c.b16 %v576, %v575
        %v599 = vpack.c.b16 %v578, %v577
        %v600 = vpack.c.b16 %v580, %v579
        %v601 = vpack.c.b16 %v582, %v581
        %v602 = vpack.c.b16 %v584, %v583
        %vm621 = vcmask 261120
        %v623 = vsel %vm621, %v480, 0
        %v626 = vsel %vm621, %v483, 0
        %v629 = vsel %vm621, %v486, 0
        %v632 = vsel %vm621, %v489, 0
        %v635 = vsel %vm621, %v492, 0
        %v638 = vsel %vm621, %v495, 0
        %v641 = vsel %vm621, %v498, 0
        %643 = vmatpush.bf16.msra.mxu0 %v592
        %644 = vmatpush.bf16.msra.mxu0 %v591
        %645 = vmatpush.bf16.msra.mxu0 %v590
        %646 = vmatpush.bf16.msra.mxu0 %v589
        %647 = vmatpush.bf16.msra.mxu0 %v588
        %648 = vmatpush.bf16.msra.mxu0 %v587
        %649 = vmatpush.bf16.msra.mxu0 %v586
        %650 = vmatpush.bf16.msra.mxu0 %v585
        %651 = vmatmul.bf16.gmra.mxu0 %v478
        %v652 = vpop.f32.mrf.mxu0
        %v653 = vadd.f32 0.0, %v652
        %v654 = vpop.f32.mrf.mxu0
        %v655 = vadd.f32 0.0, %v654
        %656 = vmatmul.bf16.gmra.mxu0 %v481
        %v657 = vpop.f32.mrf.mxu0
        %v658 = vadd.f32 0.0, %v657
        %v659 = vpop.f32.mrf.mxu0
        %v660 = vadd.f32 0.0, %v659
        %661 = vmatmul.bf16.gmra.mxu0 %v484
        %v662 = vpop.f32.mrf.mxu0
        %v663 = vadd.f32 0.0, %v662
        %v664 = vpop.f32.mrf.mxu0
        %v665 = vadd.f32 0.0, %v664
        %666 = vmatmul.bf16.gmra.mxu0 %v487
        %v667 = vpop.f32.mrf.mxu0
        %v668 = vadd.f32 0.0, %v667
        %v669 = vpop.f32.mrf.mxu0
        %v670 = vadd.f32 0.0, %v669
        %671 = vmatmul.bf16.gmra.mxu0 %v490
        %v672 = vpop.f32.mrf.mxu0
        %v673 = vadd.f32 0.0, %v672
        %v674 = vpop.f32.mrf.mxu0
        %v675 = vadd.f32 0.0, %v674
        %676 = vmatmul.bf16.gmra.mxu0 %v493
        %v677 = vpop.f32.mrf.mxu0
        %v678 = vadd.f32 0.0, %v677
        %v679 = vpop.f32.mrf.mxu0
        %v680 = vadd.f32 0.0, %v679
        %681 = vmatmul.bf16.gmra.mxu0 %v496
        %v682 = vpop.f32.mrf.mxu0
        %v683 = vadd.f32 0.0, %v682
        %v684 = vpop.f32.mrf.mxu0
        %685 = vdwg.mxu0
        %686 = vmatpush.bf16.msra.mxu0 %v600
        %687 = vmatpush.bf16.msra.mxu0 %v599
        %688 = vmatpush.bf16.msra.mxu0 %v598
        %689 = vmatpush.bf16.msra.mxu0 %v597
        %690 = vmatpush.bf16.msra.mxu0 %v596
        %691 = vmatpush.bf16.msra.mxu0 %v595
        %692 = vmatpush.bf16.msra.mxu0 %v594
        %693 = vmatpush.bf16.msra.mxu0 %v593
        %694 = vmatmul.bf16.gmra.mxu0 %v479
        %v695 = vpop.f32.mrf.mxu0
        %v696 = vadd.f32 %v653, %v695
        %v697 = vpop.f32.mrf.mxu0
        %v698 = vadd.f32 %v655, %v697
        %699 = vmatmul.bf16.gmra.mxu0 %v482
        %v700 = vpop.f32.mrf.mxu0
        %v701 = vadd.f32 %v658, %v700
        %v702 = vpop.f32.mrf.mxu0
        %v703 = vadd.f32 %v660, %v702
        %704 = vmatmul.bf16.gmra.mxu0 %v485
        %v705 = vpop.f32.mrf.mxu0
        %v706 = vadd.f32 %v663, %v705
        %v707 = vpop.f32.mrf.mxu0
        %v708 = vadd.f32 %v665, %v707
        %709 = vmatmul.bf16.gmra.mxu0 %v488
        %v710 = vpop.f32.mrf.mxu0
        %v711 = vadd.f32 %v668, %v710
        %v712 = vpop.f32.mrf.mxu0
        %v713 = vadd.f32 %v670, %v712
        %714 = vmatmul.bf16.gmra.mxu0 %v491
        %v715 = vpop.f32.mrf.mxu0
        %v716 = vadd.f32 %v673, %v715
        %v717 = vpop.f32.mrf.mxu0
        %v718 = vadd.f32 %v675, %v717
        %719 = vmatmul.bf16.gmra.mxu0 %v494
        %v720 = vpop.f32.mrf.mxu0
        %v721 = vadd.f32 %v678, %v720
        %v722 = vpop.f32.mrf.mxu0
        %v723 = vadd.f32 %v680, %v722
        %724 = vmatmul.bf16.gmra.mxu0 %v497
        %v725 = vpop.f32.mrf.mxu0
        %v726 = vadd.f32 %v683, %v725
        %v727 = vpop.f32.mrf.mxu0
        %728 = vdwg.mxu0
        %729 = vmatpush.bf16.msra.mxu0 0
        %730 = vmatpush.bf16.msra.mxu0 0
        %731 = vmatpush.bf16.msra.mxu0 0
        %732 = vmatpush.bf16.msra.mxu0 0
        %733 = vmatpush.bf16.msra.mxu0 0
        %734 = vmatpush.bf16.msra.mxu0 0
        %735 = vmatpush.bf16.msra.mxu0 %v602
        %736 = vmatpush.bf16.msra.mxu0 %v601
        %737 = vmatmul.bf16.gmra.mxu0 %v623
        %v738 = vpop.f32.mrf.mxu0
        %v739 = vadd.f32 %v696, %v738
        %v740 = vpop.f32.mrf.mxu0
        %v741 = vadd.f32 %v698, %v740
        %742 = vmatmul.bf16.gmra.mxu0 %v626
        %v743 = vpop.f32.mrf.mxu0
        %v744 = vadd.f32 %v701, %v743
        %v745 = vpop.f32.mrf.mxu0
        %v746 = vadd.f32 %v703, %v745
        %747 = vmatmul.bf16.gmra.mxu0 %v629
        %v748 = vpop.f32.mrf.mxu0
        %v749 = vadd.f32 %v706, %v748
        %v750 = vpop.f32.mrf.mxu0
        %v751 = vadd.f32 %v708, %v750
        %752 = vmatmul.bf16.gmra.mxu0 %v632
        %v753 = vpop.f32.mrf.mxu0
        %v754 = vadd.f32 %v711, %v753
        %v755 = vpop.f32.mrf.mxu0
        %v756 = vadd.f32 %v713, %v755
        %757 = vmatmul.bf16.gmra.mxu0 %v635
        %v758 = vpop.f32.mrf.mxu0
        %v759 = vadd.f32 %v716, %v758
        %v760 = vpop.f32.mrf.mxu0
        %v761 = vadd.f32 %v718, %v760
        %762 = vmatmul.bf16.gmra.mxu0 %v638
        %v763 = vpop.f32.mrf.mxu0
        %v764 = vadd.f32 %v721, %v763
        %v765 = vpop.f32.mrf.mxu0
        %v766 = vadd.f32 %v723, %v765
        %767 = vmatmul.bf16.gmra.mxu0 %v641
        %v768 = vpop.f32.mrf.mxu0
        %v769 = vadd.f32 %v726, %v768
        %v770 = vpop.f32.mrf.mxu0
        %771 = vdwg.mxu0
        %v798 = vunpack.c.l.b16 %v289
        %v799 = vunpack.c.h.b16 %v289
        %v800 = vunpack.c.l.b16 %v290
        %v801 = vunpack.c.l.b16 %v291
        %v802 = vunpack.c.h.b16 %v291
        %v803 = vunpack.c.l.b16 %v292
        %v804 = vunpack.c.l.b16 %v293
        %v805 = vunpack.c.h.b16 %v293
        %v806 = vunpack.c.l.b16 %v294
        %v807 = vunpack.c.l.b16 %v295
        %v808 = vunpack.c.h.b16 %v295
        %v809 = vunpack.c.l.b16 %v296
        %v810 = vunpack.c.l.b16 %v297
        %v811 = vunpack.c.h.b16 %v297
        %v812 = vunpack.c.l.b16 %v298
        %v813 = vunpack.c.l.b16 %v299
        %v814 = vunpack.c.h.b16 %v299
        %v815 = vunpack.c.l.b16 %v300
        %v816 = vunpack.c.l.b16 %v301
        %v817 = vunpack.c.h.b16 %v301
        %v818 = vunpack.c.l.b16 %v302
        %v819 = vunpack.c.l.b16 %v303
        %v820 = vunpack.c.h.b16 %v303
        %v821 = vunpack.c.l.b16 %v304
        %v822 = vunpack.c.l.b16 %v305
        %v823 = vunpack.c.h.b16 %v305
        %v824 = vunpack.c.l.b16 %v306
        %v825 = vunpack.c.l.b16 %v307
        %v826 = vunpack.c.h.b16 %v307
        %v827 = vunpack.c.l.b16 %v308
        %v828 = vunpack.c.l.b16 %v309
        %v829 = vunpack.c.h.b16 %v309
        %v830 = vunpack.c.l.b16 %v310
        %v831 = vunpack.c.l.b16 %v311
        %v832 = vunpack.c.h.b16 %v311
        %v833 = vunpack.c.l.b16 %v312
        %v834 = vunpack.c.l.b16 %v313
        %v835 = vunpack.c.h.b16 %v313
        %v836 = vunpack.c.l.b16 %v314
        %v837 = vpack.c.b16 %v801, %v798
        %v838 = vpack.c.b16 %v802, %v799
        %v839 = vpack.c.b16 %v803, %v800
        %v840 = vpack.c.b16 %v807, %v804
        %v841 = vpack.c.b16 %v808, %v805
        %v842 = vpack.c.b16 %v809, %v806
        %v843 = vpack.c.b16 %v813, %v810
        %v844 = vpack.c.b16 %v814, %v811
        %v845 = vpack.c.b16 %v815, %v812
        %v846 = vpack.c.b16 %v819, %v816
        %v847 = vpack.c.b16 %v820, %v817
        %v848 = vpack.c.b16 %v821, %v818
        %v849 = vpack.c.b16 %v825, %v822
        %v850 = vpack.c.b16 %v826, %v823
        %v851 = vpack.c.b16 %v827, %v824
        %v852 = vpack.c.b16 %v831, %v828
        %v853 = vpack.c.b16 %v832, %v829
        %v854 = vpack.c.b16 %v833, %v830
        %v855 = vpack.c.b16 %v834, %v834
        %v856 = vpack.c.b16 %v835, %v835
        %v857 = vpack.c.b16 %v836, %v836
        %v908 = vunpack.c.l.b16 %v315
        %v909 = vunpack.c.l.b16 %v316
        %v910 = vunpack.c.l.b16 %v317
        %v911 = vunpack.c.l.b16 %v318
        %v912 = vunpack.c.l.b16 %v319
        %v913 = vunpack.c.l.b16 %v320
        %v914 = vunpack.c.l.b16 %v321
        %v915 = vunpack.c.l.b16 %v322
        %v916 = vunpack.c.l.b16 %v323
        %v917 = vunpack.c.l.b16 %v324
        %v918 = vunpack.c.l.b16 %v325
        %v919 = vunpack.c.l.b16 %v326
        %v920 = vunpack.c.l.b16 %v327
        %v921 = vunpack.c.l.b16 %v328
        %v922 = vunpack.c.l.b16 %v329
        %v923 = vunpack.c.l.b16 %v330
        %v924 = vunpack.c.l.b16 %v331
        %v925 = vunpack.c.l.b16 %v332
        %v926 = vunpack.c.l.b16 %v333
        %v927 = vunpack.c.l.b16 %v334
        %v928 = vunpack.c.l.b16 %v335
        %v929 = vunpack.c.l.b16 %v336
        %v930 = vunpack.c.l.b16 %v337
        %v931 = vunpack.c.l.b16 %v338
        %v932 = vunpack.c.l.b16 %v339
        %v933 = vunpack.c.l.b16 %v340
        %v934 = vunpack.c.l.b16 %v341
        %v935 = vunpack.c.l.b16 %v342
        %v936 = vunpack.c.l.b16 %v343
        %v937 = vunpack.c.l.b16 %v344
        %v938 = vunpack.c.l.b16 %v345
        %v939 = vunpack.c.l.b16 %v346
        %v940 = vunpack.c.l.b16 %v347
        %v941 = vunpack.c.l.b16 %v348
        %v942 = vunpack.c.l.b16 %v349
        %v943 = vunpack.c.l.b16 %v350
        %v944 = vpack.c.b16 %v909, %v908
        %v945 = vpack.c.b16 %v911, %v910
        %v946 = vpack.c.b16 %v913, %v912
        %v947 = vpack.c.b16 %v915, %v914
        %v948 = vpack.c.b16 %v917, %v916
        %v949 = vpack.c.b16 %v919, %v918
        %v950 = vpack.c.b16 %v921, %v920
        %v951 = vpack.c.b16 %v923, %v922
        %v952 = vpack.c.b16 %v925, %v924
        %v953 = vpack.c.b16 %v927, %v926
        %v954 = vpack.c.b16 %v929, %v928
        %v955 = vpack.c.b16 %v931, %v930
        %v956 = vpack.c.b16 %v933, %v932
        %v957 = vpack.c.b16 %v935, %v934
        %v958 = vpack.c.b16 %v937, %v936
        %v959 = vpack.c.b16 %v939, %v938
        %v960 = vpack.c.b16 %v941, %v940
        %v961 = vpack.c.b16 %v943, %v942
        %v981 = vsel %vm621, %v839, 0
        %v984 = vsel %vm621, %v842, 0
        %v987 = vsel %vm621, %v845, 0
        %v990 = vsel %vm621, %v848, 0
        %v993 = vsel %vm621, %v851, 0
        %v996 = vsel %vm621, %v854, 0
        %v999 = vsel %vm621, %v857, 0
        %1001 = vmatpush.bf16.msra.mxu0 %v951
        %1002 = vmatpush.bf16.msra.mxu0 %v950
        %1003 = vmatpush.bf16.msra.mxu0 %v949
        %1004 = vmatpush.bf16.msra.mxu0 %v948
        %1005 = vmatpush.bf16.msra.mxu0 %v947
        %1006 = vmatpush.bf16.msra.mxu0 %v946
        %1007 = vmatpush.bf16.msra.mxu0 %v945
        %1008 = vmatpush.bf16.msra.mxu0 %v944
        %1009 = vmatmul.bf16.gmra.mxu0 %v837
        %v1010 = vpop.f32.mrf.mxu0
        %v1011 = vadd.f32 %v739, %v1010
        %v1012 = vpop.f32.mrf.mxu0
        %v1013 = vadd.f32 %v741, %v1012
        %1014 = vmatmul.bf16.gmra.mxu0 %v840
        %v1015 = vpop.f32.mrf.mxu0
        %v1016 = vadd.f32 %v744, %v1015
        %v1017 = vpop.f32.mrf.mxu0
        %v1018 = vadd.f32 %v746, %v1017
        %1019 = vmatmul.bf16.gmra.mxu0 %v843
        %v1020 = vpop.f32.mrf.mxu0
        %v1021 = vadd.f32 %v749, %v1020
        %v1022 = vpop.f32.mrf.mxu0
        %v1023 = vadd.f32 %v751, %v1022
        %1024 = vmatmul.bf16.gmra.mxu0 %v846
        %v1025 = vpop.f32.mrf.mxu0
        %v1026 = vadd.f32 %v754, %v1025
        %v1027 = vpop.f32.mrf.mxu0
        %v1028 = vadd.f32 %v756, %v1027
        %1029 = vmatmul.bf16.gmra.mxu0 %v849
        %v1030 = vpop.f32.mrf.mxu0
        %v1031 = vadd.f32 %v759, %v1030
        %v1032 = vpop.f32.mrf.mxu0
        %v1033 = vadd.f32 %v761, %v1032
        %1034 = vmatmul.bf16.gmra.mxu0 %v852
        %v1035 = vpop.f32.mrf.mxu0
        %v1036 = vadd.f32 %v764, %v1035
        %v1037 = vpop.f32.mrf.mxu0
        %v1038 = vadd.f32 %v766, %v1037
        %1039 = vmatmul.bf16.gmra.mxu0 %v855
        %v1040 = vpop.f32.mrf.mxu0
        %v1041 = vadd.f32 %v769, %v1040
        %v1042 = vpop.f32.mrf.mxu0
        %1043 = vdwg.mxu0
        %1044 = vmatpush.bf16.msra.mxu0 %v959
        %1045 = vmatpush.bf16.msra.mxu0 %v958
        %1046 = vmatpush.bf16.msra.mxu0 %v957
        %1047 = vmatpush.bf16.msra.mxu0 %v956
        %1048 = vmatpush.bf16.msra.mxu0 %v955
        %1049 = vmatpush.bf16.msra.mxu0 %v954
        %1050 = vmatpush.bf16.msra.mxu0 %v953
        %1051 = vmatpush.bf16.msra.mxu0 %v952
        %1052 = vmatmul.bf16.gmra.mxu0 %v838
        %v1053 = vpop.f32.mrf.mxu0
        %v1054 = vadd.f32 %v1011, %v1053
        %v1055 = vpop.f32.mrf.mxu0
        %v1056 = vadd.f32 %v1013, %v1055
        %1057 = vmatmul.bf16.gmra.mxu0 %v841
        %v1058 = vpop.f32.mrf.mxu0
        %v1059 = vadd.f32 %v1016, %v1058
        %v1060 = vpop.f32.mrf.mxu0
        %v1061 = vadd.f32 %v1018, %v1060
        %1062 = vmatmul.bf16.gmra.mxu0 %v844
        %v1063 = vpop.f32.mrf.mxu0
        %v1064 = vadd.f32 %v1021, %v1063
        %v1065 = vpop.f32.mrf.mxu0
        %v1066 = vadd.f32 %v1023, %v1065
        %1067 = vmatmul.bf16.gmra.mxu0 %v847
        %v1068 = vpop.f32.mrf.mxu0
        %v1069 = vadd.f32 %v1026, %v1068
        %v1070 = vpop.f32.mrf.mxu0
        %v1071 = vadd.f32 %v1028, %v1070
        %1072 = vmatmul.bf16.gmra.mxu0 %v850
        %v1073 = vpop.f32.mrf.mxu0
        %v1074 = vadd.f32 %v1031, %v1073
        %v1075 = vpop.f32.mrf.mxu0
        %v1076 = vadd.f32 %v1033, %v1075
        %1077 = vmatmul.bf16.gmra.mxu0 %v853
        %v1078 = vpop.f32.mrf.mxu0
        %v1079 = vadd.f32 %v1036, %v1078
        %v1080 = vpop.f32.mrf.mxu0
        %v1081 = vadd.f32 %v1038, %v1080
        %1082 = vmatmul.bf16.gmra.mxu0 %v856
        %v1083 = vpop.f32.mrf.mxu0
        %v1084 = vadd.f32 %v1041, %v1083
        %v1085 = vpop.f32.mrf.mxu0
        %1086 = vdwg.mxu0
        %1087 = vmatpush.bf16.msra.mxu0 0
        %1088 = vmatpush.bf16.msra.mxu0 0
        %1089 = vmatpush.bf16.msra.mxu0 0
        %1090 = vmatpush.bf16.msra.mxu0 0
        %1091 = vmatpush.bf16.msra.mxu0 0
        %1092 = vmatpush.bf16.msra.mxu0 0
        %1093 = vmatpush.bf16.msra.mxu0 %v961
        %1094 = vmatpush.bf16.msra.mxu0 %v960
        %1095 = vmatmul.bf16.gmra.mxu0 %v981
        %v1096 = vpop.f32.mrf.mxu0
        %v1097 = vadd.f32 %v1054, %v1096
        %v1098 = vpop.f32.mrf.mxu0
        %v1099 = vadd.f32 %v1056, %v1098
        %1100 = vmatmul.bf16.gmra.mxu0 %v984
        %v1101 = vpop.f32.mrf.mxu0
        %v1102 = vadd.f32 %v1059, %v1101
        %v1103 = vpop.f32.mrf.mxu0
        %v1104 = vadd.f32 %v1061, %v1103
        %1105 = vmatmul.bf16.gmra.mxu0 %v987
        %v1106 = vpop.f32.mrf.mxu0
        %v1107 = vadd.f32 %v1064, %v1106
        %v1108 = vpop.f32.mrf.mxu0
        %v1109 = vadd.f32 %v1066, %v1108
        %1110 = vmatmul.bf16.gmra.mxu0 %v990
        %v1111 = vpop.f32.mrf.mxu0
        %v1112 = vadd.f32 %v1069, %v1111
        %v1113 = vpop.f32.mrf.mxu0
        %v1114 = vadd.f32 %v1071, %v1113
        %1115 = vmatmul.bf16.gmra.mxu0 %v993
        %v1116 = vpop.f32.mrf.mxu0
        %v1117 = vadd.f32 %v1074, %v1116
        %v1118 = vpop.f32.mrf.mxu0
        %v1119 = vadd.f32 %v1076, %v1118
        %1120 = vmatmul.bf16.gmra.mxu0 %v996
        %v1121 = vpop.f32.mrf.mxu0
        %v1122 = vadd.f32 %v1079, %v1121
        %v1123 = vpop.f32.mrf.mxu0
        %v1124 = vadd.f32 %v1081, %v1123
        %1125 = vmatmul.bf16.gmra.mxu0 %v999
        %v1126 = vpop.f32.mrf.mxu0
        %v1127 = vadd.f32 %v1084, %v1126
        %v1128 = vpop.f32.mrf.mxu0
        %1129 = vdwg.mxu0
        %s1130 = sld [smem:[#allocation3 + %s20]]
        %v1131 = vld [vmem:[#allocation2] sm:$0x1]
        %v1133 = vperm.slane %v1131, 0
        %v1135 = vadd.f32 %v1097, %v1133
        %v1136 = vadd.f32 %v1099, %v1133
        %v1137 = vadd.f32 %v1102, %v1133
        %v1138 = vadd.f32 %v1104, %v1133
        %v1139 = vadd.f32 %v1107, %v1133
        %v1140 = vadd.f32 %v1109, %v1133
        %v1141 = vadd.f32 %v1112, %v1133
        %v1142 = vadd.f32 %v1114, %v1133
        %v1143 = vadd.f32 %v1117, %v1133
        %v1144 = vadd.f32 %v1119, %v1133
        %v1145 = vadd.f32 %v1122, %v1133
        %v1146 = vadd.f32 %v1124, %v1133
        %v1147 = vadd.f32 %v1127, %v1133
        %v1148 = vstv %s1130
        %v1149 = vmul.f32 %v1135, %v1148
        %v1150 = vmul.f32 %v1136, %v1148
        %v1151 = vmul.f32 %v1137, %v1148
        %v1152 = vmul.f32 %v1138, %v1148
        %v1153 = vmul.f32 %v1139, %v1148
        %v1154 = vmul.f32 %v1140, %v1148
        %v1155 = vmul.f32 %v1141, %v1148
        %v1156 = vmul.f32 %v1142, %v1148
        %v1157 = vmul.f32 %v1143, %v1148
        %v1158 = vmul.f32 %v1144, %v1148
        %v1159 = vmul.f32 %v1145, %v1148
        %v1160 = vmul.f32 %v1146, %v1148
        %v1161 = vmul.f32 %v1147, %v1148
        %vm1162 = vcmask 7168
        %1163 = vst.msk [vmem:[%s287] sm:$0xff] %vm1162, %v1149
        %1164 = vst.msk [vmem:[%s287 + $0x8] sm:$0xff] %vm1162, %v1150
        %1165 = vst.msk [vmem:[%s287 + $0x10] sm:$0xff] %vm1162, %v1151
        %1166 = vst.msk [vmem:[%s287 + $0x18] sm:$0xff] %vm1162, %v1152
        %1167 = vst.msk [vmem:[%s287 + $0x20] sm:$0xff] %vm1162, %v1153
        %1168 = vst.msk [vmem:[%s287 + $0x28] sm:$0xff] %vm1162, %v1154
        %1169 = vst.msk [vmem:[%s287 + $0x30] sm:$0xff] %vm1162, %v1155
        %1170 = vst.msk [vmem:[%s287 + $0x38] sm:$0xff] %vm1162, %v1156
        %1171 = vst.msk [vmem:[%s287 + $0x40] sm:$0xff] %vm1162, %v1157
        %1172 = vst.msk [vmem:[%s287 + $0x48] sm:$0xff] %vm1162, %v1158
        %1173 = vst.msk [vmem:[%s287 + $0x50] sm:$0xff] %vm1162, %v1159
        %1174 = vst.msk [vmem:[%s287 + $0x58] sm:$0xff] %vm1162, %v1160
        %vm1175 = vcmask 3072
        %1176 = vst.msk [vmem:[%s287 + $0x60] sm:$0xf] %vm1175, %v1161
        %p1177 = scmp.lt.s32.totalorder %s20, 1
        %s1178 = scalar_select %p1177, %s20, 1
        %s1179 = smul.addr %s1178, 13
        %s1180 = smul.addr %s1179, 8
        %s1181 = scalar_lea.vmem %s6, %s1180
        // Predicated region
        $region49: #{scorenet_forward.15} parent=43 // pred_check
          %p1182 = pneg %p174
        $region50: #{scorenet_forward.15} parent=43 // pred_check_branch
          %1184 = sbr.rel (%p1182) target = $region52
        $region51: #{scorenet_forward.15} parent=43 // pred_region
          _
        $region52: #{scorenet_forward.15} parent=43 // pred_fallthru
          _
      $region44: #{scorenet_forward.15} parent=5 // pred_fallthru
        _
      %p1185 = scmp.le.s32.totalorder 2, %s15
      // Predicated region
      $region53: #{scorenet_forward.15} parent=5 // pred_check
        %p1186 = pneg %p1185
      $region54: #{scorenet_forward.15} parent=5 // pred_check_branch
        %1188 = sbr.rel (%p1186) target = $region56
      $region55: #{scorenet_forward.15} parent=5 // pred_region
        %s1189 = ssub.s32 %s15, 2
        // Predicated region
        $region57: #{scorenet_forward.15} parent=55 // pred_check
          %p1190 = pneg %p180
        $region58: #{scorenet_forward.15} parent=55 // pred_check_branch
          %1192 = sbr.rel (%p1190) target = $region60
        $region59: #{scorenet_forward.15} parent=55 // pred_region
          %p1193 = scmp.lt.s32.totalorder %s21, 1
          %s1194 = scalar_select %p1193, %s21, 1
          %s1195 = smul.addr %s1194, 13
          %s1196 = smul.addr %s1195, 8
          %s1197 = scalar_lea.vmem %s6, %s1196
        $region60: #{scorenet_forward.15} parent=55 // pred_fallthru
          _
      $region56: #{scorenet_forward.15} parent=5 // pred_fallthru
        _
    $region6: #{scorenet_forward.15} parent=1 // loop_footer
      %s19 = sadd.s32 1, %s15
    $region7: #{scorenet_forward.15} parent=1 // loop_footer_branch
      %14 = sbr.rel target = $region3
    $region8: #{scorenet_forward.15} parent=1 // loop_exit
      _
    %1198 = vsyncpa [#allocation4], 1
    %s1199 = scalar_lea.sflag [#allocation4], 1
    %1200 = vsyncpa %s1199, 1

</llo_original>
